<compile_context>
chip_gen: v7x
topology: tpu7x:2x2x1
jax: 0.10.0
libtpu: 0.0.40
codegen_flags: <defaults>
</compile_context>

<pallas_src>
import jax
import jax.numpy as jnp
from jax.experimental import pallas as pl
from jax.experimental.pallas import tpu as pltpu


# ---- fixed model geometry (Linear(12*64, 100) forces length = 100) ---------
L1, L2, L3, P = 100, 50, 25, 12      # positions per stage / pooled positions
SEG1, SEG2, SEG3 = 104, 56, 32       # per-batch segment lengths (8-aligned)
HEAD = 8                             # leading zero rows: keeps the "-1" im2col
                                     # store offset legal and matmul slices aligned
C = 64                               # conv channels
CIN = 5                              # sentence(4) + structure(1)
K = 3                                # conv taps


def _elu(x):
    # nn.ELU(alpha=1): x if x > 0 else exp(x) - 1 (clamped branch, no overflow).
    return jnp.where(x > 0, x, jnp.exp(jnp.minimum(x, 0.0)) - 1.0)


# --------------------------------------------------------------------------
# Fused forward kernel
# --------------------------------------------------------------------------
def _mfe_kernel(xcol_ref,
                c1w_ref, c1s_ref, c1t_ref,
                c2w_ref, c2s_ref, c2t_ref,
                c3w_ref, c3s_ref, c3t_ref,
                hw1_ref, hb1_ref, hs1_ref, ht1_ref,
                hw2_ref, hb2_ref, hs2_ref, ht2_ref,
                hw3_ref, hb3_ref,
                o_ref,
                pad1_ref, pad2_ref, feat_ref):
    B = o_ref.shape[0]

    # ---- minimal border zeroing of the im2col scratches --------------------
    # pad1/pad2 row HEAD + b*SEG + l holds the im2col row for output position l
    # of batch b: cols [0:64] = xp[l], [64:128] = xp[l+1], [128:192] = xp[l+2].
    # Required zeros: the l=0 leading pad in block 0 and (stage 2 only, because
    # stage 3's last conv row is dropped by the floor-mode pool) the l=49
    # trailing pad in block 2.  8-row aligned bands cover them; the data parts
    # of the bands are overwritten by the pooled stores below.  All other
    # never-written rows feed only junk conv rows that are never read.
    zero_band = jnp.zeros((8, K * C), jnp.float32)
    for b in range(B):
        pad1_ref[HEAD + b * SEG2:HEAD + b * SEG2 + 8, :] = zero_band
        pad1_ref[HEAD + b * SEG2 + 48:HEAD + b * SEG2 + 56, :] = zero_band
        pad2_ref[HEAD + b * SEG3:HEAD + b * SEG3 + 8, :] = zero_band

    # ---- stage 1: Conv1d(5 -> 64, k=3, 'same') + BN + ReLU + MaxPool(2) -----
    # Single K=15 im2col matmul; LHS was built in the wrapper (zero tail rows).
    acc1 = jnp.dot(xcol_ref[...], c1w_ref[...],
                   preferred_element_type=jnp.float32)            # (B*104, 64)
    y1 = jnp.maximum(acc1 * c1s_ref[...] + c1t_ref[...], 0.0)
    for b in range(B):
        pooled = jnp.max(
            y1[b * SEG1:b * SEG1 + L1, :].reshape(L1 // 2, 2, C), axis=1)  # (50,64)
        base = HEAD + b * SEG2
        pad1_ref[base + 1:base + 1 + L2, 0:C] = pooled            # xp[l]   = x[l-1]
        pad1_ref[base:base + L2, C:2 * C] = pooled                # xp[l+1] = x[l]
        pad1_ref[base - 1:base - 1 + L2, 2 * C:3 * C] = pooled    # xp[l+2] = x[l+1]

    # ---- stage 2: Conv1d(64 -> 64), single K=192 contraction ----------------
    acc2 = jnp.dot(pad1_ref[HEAD:HEAD + B * SEG2, :], c2w_ref[...],
                   preferred_element_type=jnp.float32)            # (B*56, 64)
    y2 = jnp.maximum(acc2 * c2s_ref[...] + c2t_ref[...], 0.0)
    for b in range(B):
        pooled = jnp.max(
            y2[b * SEG2:b * SEG2 + L2, :].reshape(L2 // 2, 2, C), axis=1)  # (25,64)
        base = HEAD + b * SEG3
        pad2_ref[base + 1:base + 1 + L3, 0:C] = pooled
        pad2_ref[base:base + L3, C:2 * C] = pooled
        pad2_ref[base - 1:base - 1 + L3, 2 * C:3 * C] = pooled

    # ---- stage 3: Conv1d(64 -> 64), single K=192 contraction ----------------
    acc3 = jnp.dot(pad2_ref[HEAD:HEAD + B * SEG3, :], c3w_ref[...],
                   preferred_element_type=jnp.float32)            # (B*32, 64)
    y3 = jnp.maximum(acc3 * c3s_ref[...] + c3t_ref[...], 0.0)
    for b in range(B):
        feat_ref[b] = jnp.max(
            y3[b * SEG3:b * SEG3 + 2 * P, :].reshape(P, 2, C), axis=1)     # (12,64)

    # ---- MLP head ------------------------------------------------------------
    # PyTorch flattens the (B, 64, 12) NCW encoder output channel-major; that
    # permutation is folded into hw1 (P blocks of (64, 100)) at build time.
    x3 = feat_ref[...]                                            # (B, 12, 64)
    a1 = jnp.dot(x3[:, 0, :], hw1_ref[0],
                 preferred_element_type=jnp.float32) + hb1_ref[...]
    for j in range(1, P):
        a1 = a1 + jnp.dot(x3[:, j, :], hw1_ref[j],
                          preferred_element_type=jnp.float32)
    a1 = _elu(a1)                                                 # m1
    a1 = a1 * hs1_ref[...] + ht1_ref[...]                         # bn1 (inference)
    a2 = _elu(jnp.dot(a1, hw2_ref[...],
                      preferred_element_type=jnp.float32) + hb2_ref[...])  # m2
    a2 = a2 * hs2_ref[...] + ht2_ref[...]                         # bn2 (inference)
    a3 = _elu(jnp.dot(a2, hw3_ref[...],
                      preferred_element_type=jnp.float32) + hb3_ref[...])  # m3(FF1)
    o_ref[...] = a3.astype(o_ref.dtype)


def mfe_forward(sentence, structure, params):
    """sentence: (B, L, 4) f32, structure: (B, L, 1) f32 -> (B, 1) f32."""
    B, L, _ = sentence.shape
    kp = params["kernel"]

    # Stage-1 im2col LHS, built once outside the kernel (one tiny fused XLA op):
    # row b*SEG1 + l = [xp[l] | xp[l+1] | xp[l+2]] (5 channels each), xp = zero-
    # padded concat([sentence, structure], -1).  Tail rows of each segment are 0.
    x5 = jnp.concatenate([sentence, structure], axis=2)                 # (B,100,5)
    xp = jnp.pad(x5, ((0, 0), (1, 1), (0, 0)))                          # (B,102,5)
    xcol = jnp.concatenate([xp[:, 0:L], xp[:, 1:L + 1], xp[:, 2:L + 2]],
                           axis=2)                                      # (B,100,15)
    xcol = jnp.pad(xcol, ((0, 0), (0, SEG1 - L), (0, 0)))
    xcol = xcol.reshape(B * SEG1, K * CIN)                              # (B*104,15)

    args = (xcol,
            kp["c1w"], kp["c1s"], kp["c1t"],
            kp["c2w"], kp["c2s"], kp["c2t"],
            kp["c3w"], kp["c3s"], kp["c3t"],
            kp["hw1"], kp["hb1"], kp["hs1"], kp["ht1"],
            kp["hw2"], kp["hb2"], kp["hs2"], kp["ht2"],
            kp["hw3"], kp["hb3"])
    in_specs = [pl.BlockSpec(a.shape, lambda i, n=a.ndim: (0,) * n) for a in args]

    flops = 2 * (B * SEG1 * (K * CIN) * C + B * SEG2 * (K * C) * C
                 + B * SEG3 * (K * C) * C + B * P * C * 100
                 + B * 100 * 30 + B * 30)
    bytes_accessed = 4 * (sum(int(a.size) for a in args) + B)

    return pl.pallas_call(
        _mfe_kernel,
        out_shape=jax.ShapeDtypeStruct((B, 1), jnp.float32),
        grid_spec=pltpu.PrefetchScalarGridSpec(
            num_scalar_prefetch=0,
            grid=(1,),                       # whole model resident in VMEM (<1 MiB)
            in_specs=in_specs,
            out_specs=pl.BlockSpec((B, 1), lambda i: (0, 0)),
            scratch_shapes=[
                pltpu.VMEM((HEAD + B * SEG2, K * C), jnp.float32),  # stage-2 im2col
                pltpu.VMEM((HEAD + B * SEG3, K * C), jnp.float32),  # stage-3 im2col
                pltpu.VMEM((B, P, C), jnp.float32),                 # encoder features
            ]),
        compiler_params=pltpu.CompilerParams(
            dimension_semantics=("arbitrary",)),
        cost_estimate=pl.CostEstimate(flops=flops,
                                      transcendentals=B * (100 + 30 + 1),
                                      bytes_accessed=bytes_accessed),
    )(*args)


# --------------------------------------------------------------------------
# Parameter construction (deterministic, synthetic) + BN folding
# --------------------------------------------------------------------------
def _bn_fold(gamma, beta, mean, var, eps=1e-5):
    s = gamma / jnp.sqrt(var + eps)
    return s, beta - mean * s


def _bn_params(key, n):
    k1, k2, k3, k4 = jax.random.split(key, 4)
    gamma = 1.0 + 0.1 * jax.random.normal(k1, (n,), jnp.float32)
    beta = 0.1 * jax.random.normal(k2, (n,), jnp.float32)
    mean = 0.1 * jax.random.normal(k3, (n,), jnp.float32)
    var = 1.0 + 0.1 * jnp.abs(jax.random.normal(k4, (n,), jnp.float32))
    return gamma, beta, mean, var


def make_params(key):
    keys = jax.random.split(key, 9)
    enc = []
    cins = (CIN, C, C)
    for i, cin in enumerate(cins):
        kw, kb, kbn = jax.random.split(keys[i], 3)
        w = 0.1 * jax.random.normal(kw, (K, cin, C), jnp.float32)   # (K, Cin, Cout)
        bias = 0.1 * jax.random.normal(kb, (C,), jnp.float32)
        g, bb, m, v = _bn_params(kbn, C)
        s, t = _bn_fold(g, bb, m, v)
        enc.append({"w": w, "scale": s.reshape(1, C),
                    "shift": (bias * s + t).reshape(1, C)})          # conv bias folded

    def lin(k, nin, nout):
        kw, kb = jax.random.split(k)
        w = 0.05 * jax.random.normal(kw, (nin, nout), jnp.float32)
        b = 0.05 * jax.random.normal(kb, (1, nout), jnp.float32)
        return w, b

    w1, b1 = lin(keys[4], P * C, 100)          # Linear(768, 100), rows = c*12 + l
    w2, b2 = lin(keys[5], 100, 30)
    w3, b3 = lin(keys[6], 30, 1)
    g1, be1, m1, v1 = _bn_params(keys[7], 100)
    s1, t1 = _bn_fold(g1, be1, m1, v1)
    g2, be2, m2, v2 = _bn_params(keys[8], 30)
    s2, t2 = _bn_fold(g2, be2, m2, v2)

    head = {"w1": w1, "b1": b1, "s1": s1.reshape(1, 100), "t1": t1.reshape(1, 100),
            "w2": w2, "b2": b2, "s2": s2.reshape(1, 30), "t2": t2.reshape(1, 30),
            "w3": w3, "b3": b3}

    # Kernel-layout parameters:
    #   conv weights flattened im2col-style (row index = tap*Cin + cin);
    #   hw1 = PyTorch channel-major flatten folded into P blocks of (64, 100).
    kernel = {
        "c1w": enc[0]["w"].reshape(K * CIN, C),
        "c1s": enc[0]["scale"], "c1t": enc[0]["shift"],
        "c2w": enc[1]["w"].reshape(K * C, C),
        "c2s": enc[1]["scale"], "c2t": enc[1]["shift"],
        "c3w": enc[2]["w"].reshape(K * C, C),
        "c3s": enc[2]["scale"], "c3t": enc[2]["shift"],
        "hw1": w1.reshape(C, P, 100).transpose(1, 0, 2),   # (12, 64, 100)
        "hb1": b1, "hs1": head["s1"], "ht1": head["t1"],
        "hw2": w2, "hb2": b2, "hs2": head["s2"], "ht2": head["t2"],
        "hw3": w3, "hb3": b3,
    }
    return {"encoder": enc, "head": head, "kernel": kernel}


# --------------------------------------------------------------------------
# Pure-JAX reference (mirrors the PyTorch forward, channel-major flatten)
# --------------------------------------------------------------------------
def mfe_reference(sentence, structure, params):
    x = jnp.concatenate([sentence, structure], axis=2)        # (B, L, 5)
    for stage in params["encoder"]:
        w = stage["w"]
        L = x.shape[1]
        xp = jnp.pad(x, ((0, 0), (1, 1), (0, 0)))
        acc = sum(jnp.einsum("blc,co->blo", xp[:, k:k + L, :], w[k])
                  for k in range(w.shape[0]))
        y = jnp.maximum(acc * stage["scale"] + stage["shift"], 0.0)
        h = L // 2
        x = jnp.max(y[:, :2 * h, :].reshape(x.shape[0], h, 2, C), axis=2)
    B = x.shape[0]
    feat = jnp.transpose(x, (0, 2, 1)).reshape(B, -1)          # channel-major flatten
    hd = params["head"]
    a1 = _elu(feat @ hd["w1"] + hd["b1"])
    a1 = a1 * hd["s1"] + hd["t1"]
    a2 = _elu(a1 @ hd["w2"] + hd["b2"])
    a2 = a2 * hd["s2"] + hd["t2"]
    return _elu(a2 @ hd["w3"] + hd["b3"])


if __name__ == "__main__":
    B, L = 4, 100   # Linear(12 * 64, 100) requires length = 100 (100 -> 50 -> 25 -> 12)

    key = jax.random.PRNGKey(0)
    k_sent, k_struct = jax.random.split(key)
    sentence = jax.random.normal(k_sent, (B, L, 4), jnp.float32)
    structure = jax.random.normal(k_struct, (B, L, 1), jnp.float32)

    params = make_params(jax.random.PRNGKey(1))

    out = jax.jit(mfe_forward)(sentence, structure, params)
    out = jax.block_until_ready(out)
    assert out.shape == (B, 1) and out.dtype == jnp.float32

    ref = mfe_reference(sentence, structure, params)
    assert jnp.allclose(out, ref, rtol=1e-3, atol=1e-3), (out, ref)

    print("KERNEL_OK")
</pallas_src>

<mosaic_0001>
module attributes {stable_mosaic.version = 11 : i64} {
  func.func @_mfe_kernel(%arg0: i32, %arg1: memref<416x15xf32, #tpu.memory_space<vmem>>, %arg2: memref<15x64xf32, #tpu.memory_space<vmem>>, %arg3: memref<1x64xf32, #tpu.memory_space<vmem>>, %arg4: memref<1x64xf32, #tpu.memory_space<vmem>>, %arg5: memref<192x64xf32, #tpu.memory_space<vmem>>, %arg6: memref<1x64xf32, #tpu.memory_space<vmem>>, %arg7: memref<1x64xf32, #tpu.memory_space<vmem>>, %arg8: memref<192x64xf32, #tpu.memory_space<vmem>>, %arg9: memref<1x64xf32, #tpu.memory_space<vmem>>, %arg10: memref<1x64xf32, #tpu.memory_space<vmem>>, %arg11: memref<12x64x100xf32, #tpu.memory_space<vmem>>, %arg12: memref<1x100xf32, #tpu.memory_space<vmem>>, %arg13: memref<1x100xf32, #tpu.memory_space<vmem>>, %arg14: memref<1x100xf32, #tpu.memory_space<vmem>>, %arg15: memref<100x30xf32, #tpu.memory_space<vmem>>, %arg16: memref<1x30xf32, #tpu.memory_space<vmem>>, %arg17: memref<1x30xf32, #tpu.memory_space<vmem>>, %arg18: memref<1x30xf32, #tpu.memory_space<vmem>>, %arg19: memref<30x1xf32, #tpu.memory_space<vmem>>, %arg20: memref<1x1xf32, #tpu.memory_space<vmem>>, %arg21: memref<4x1xf32, #tpu.memory_space<vmem>>, %arg22: memref<232x192xf32, #tpu.memory_space<vmem>>, %arg23: memref<136x192xf32, #tpu.memory_space<vmem>>, %arg24: memref<4x12x64xf32, #tpu.memory_space<vmem>>) attributes {dimension_semantics = [#tpu.dimension_semantics<arbitrary>], iteration_bounds = array<i64: 1>, scalar_prefetch = 0 : i64, scratch_operands = 3 : i64, tpu.core_type = #tpu.core_type<tc>, window_params = [{pipeline_mode = #tpu.pipeline_mode<synchronous>, transform_indices = @transform_0, window_bounds = array<i64: 416, 15>}, {pipeline_mode = #tpu.pipeline_mode<synchronous>, transform_indices = @transform_1, window_bounds = array<i64: 15, 64>}, {pipeline_mode = #tpu.pipeline_mode<synchronous>, transform_indices = @transform_2, window_bounds = array<i64: 1, 64>}, {pipeline_mode = #tpu.pipeline_mode<synchronous>, transform_indices = @transform_3, window_bounds = array<i64: 1, 64>}, {pipeline_mode = #tpu.pipeline_mode<synchronous>, transform_indices = @transform_4, window_bounds = array<i64: 192, 64>}, {pipeline_mode = #tpu.pipeline_mode<synchronous>, transform_indices = @transform_5, window_bounds = array<i64: 1, 64>}, {pipeline_mode = #tpu.pipeline_mode<synchronous>, transform_indices = @transform_6, window_bounds = array<i64: 1, 64>}, {pipeline_mode = #tpu.pipeline_mode<synchronous>, transform_indices = @transform_7, window_bounds = array<i64: 192, 64>}, {pipeline_mode = #tpu.pipeline_mode<synchronous>, transform_indices = @transform_8, window_bounds = array<i64: 1, 64>}, {pipeline_mode = #tpu.pipeline_mode<synchronous>, transform_indices = @transform_9, window_bounds = array<i64: 1, 64>}, {pipeline_mode = #tpu.pipeline_mode<synchronous>, transform_indices = @transform_10, window_bounds = array<i64: 12, 64, 100>}, {pipeline_mode = #tpu.pipeline_mode<synchronous>, transform_indices = @transform_11, window_bounds = array<i64: 1, 100>}, {pipeline_mode = #tpu.pipeline_mode<synchronous>, transform_indices = @transform_12, window_bounds = array<i64: 1, 100>}, {pipeline_mode = #tpu.pipeline_mode<synchronous>, transform_indices = @transform_13, window_bounds = array<i64: 1, 100>}, {pipeline_mode = #tpu.pipeline_mode<synchronous>, transform_indices = @transform_14, window_bounds = array<i64: 100, 30>}, {pipeline_mode = #tpu.pipeline_mode<synchronous>, transform_indices = @transform_15, window_bounds = array<i64: 1, 30>}, {pipeline_mode = #tpu.pipeline_mode<synchronous>, transform_indices = @transform_16, window_bounds = array<i64: 1, 30>}, {pipeline_mode = #tpu.pipeline_mode<synchronous>, transform_indices = @transform_17, window_bounds = array<i64: 1, 30>}, {pipeline_mode = #tpu.pipeline_mode<synchronous>, transform_indices = @transform_18, window_bounds = array<i64: 30, 1>}, {pipeline_mode = #tpu.pipeline_mode<synchronous>, transform_indices = @transform_19, window_bounds = array<i64: 1, 1>}, {pipeline_mode = #tpu.pipeline_mode<synchronous>, transform_indices = @transform_20, window_bounds = array<i64: 4, 1>}]} {
    %cst = arith.constant 0.000000e+00 : f32
    %0 = vector.broadcast %cst : f32 to vector<8x192xf32>
    %c8 = arith.constant 8 : index
    %c0 = arith.constant 0 : index
    %1 = vector.load %arg22[%c8, %c0] : memref<232x192xf32, #tpu.memory_space<vmem>>, vector<8x192xf32>
    tpu.vector_store %arg22[%c8, %c0], %0 {strides = array<i32>} : memref<232x192xf32, #tpu.memory_space<vmem>>, vector<8x192xf32>,
    %c56 = arith.constant 56 : index
    %c0_0 = arith.constant 0 : index
    %2 = vector.load %arg22[%c56, %c0_0] : memref<232x192xf32, #tpu.memory_space<vmem>>, vector<8x192xf32>
    tpu.vector_store %arg22[%c56, %c0_0], %0 {strides = array<i32>} : memref<232x192xf32, #tpu.memory_space<vmem>>, vector<8x192xf32>,
    %c8_1 = arith.constant 8 : index
    %c0_2 = arith.constant 0 : index
    %3 = vector.load %arg23[%c8_1, %c0_2] : memref<136x192xf32, #tpu.memory_space<vmem>>, vector<8x192xf32>
    tpu.vector_store %arg23[%c8_1, %c0_2], %0 {strides = array<i32>} : memref<136x192xf32, #tpu.memory_space<vmem>>, vector<8x192xf32>,
    %c64 = arith.constant 64 : index
    %c0_3 = arith.constant 0 : index
    %4 = vector.load %arg22[%c64, %c0_3] : memref<232x192xf32, #tpu.memory_space<vmem>>, vector<8x192xf32>
    tpu.vector_store %arg22[%c64, %c0_3], %0 {strides = array<i32>} : memref<232x192xf32, #tpu.memory_space<vmem>>, vector<8x192xf32>,
    %c112 = arith.constant 112 : index
    %c0_4 = arith.constant 0 : index
    %5 = vector.load %arg22[%c112, %c0_4] : memref<232x192xf32, #tpu.memory_space<vmem>>, vector<8x192xf32>
    tpu.vector_store %arg22[%c112, %c0_4], %0 {strides = array<i32>} : memref<232x192xf32, #tpu.memory_space<vmem>>, vector<8x192xf32>,
    %c40 = arith.constant 40 : index
    %c0_5 = arith.constant 0 : index
    %6 = vector.load %arg23[%c40, %c0_5] : memref<136x192xf32, #tpu.memory_space<vmem>>, vector<8x192xf32>
    tpu.vector_store %arg23[%c40, %c0_5], %0 {strides = array<i32>} : memref<136x192xf32, #tpu.memory_space<vmem>>, vector<8x192xf32>,
    %c120 = arith.constant 120 : index
    %c0_6 = arith.constant 0 : index
    %7 = vector.load %arg22[%c120, %c0_6] : memref<232x192xf32, #tpu.memory_space<vmem>>, vector<8x192xf32>
    tpu.vector_store %arg22[%c120, %c0_6], %0 {strides = array<i32>} : memref<232x192xf32, #tpu.memory_space<vmem>>, vector<8x192xf32>,
    %c168 = arith.constant 168 : index
    %c0_7 = arith.constant 0 : index
    %8 = vector.load %arg22[%c168, %c0_7] : memref<232x192xf32, #tpu.memory_space<vmem>>, vector<8x192xf32>
    tpu.vector_store %arg22[%c168, %c0_7], %0 {strides = array<i32>} : memref<232x192xf32, #tpu.memory_space<vmem>>, vector<8x192xf32>,
    %c72 = arith.constant 72 : index
    %c0_8 = arith.constant 0 : index
    %9 = vector.load %arg23[%c72, %c0_8] : memref<136x192xf32, #tpu.memory_space<vmem>>, vector<8x192xf32>
    tpu.vector_store %arg23[%c72, %c0_8], %0 {strides = array<i32>} : memref<136x192xf32, #tpu.memory_space<vmem>>, vector<8x192xf32>,
    %c176 = arith.constant 176 : index
    %c0_9 = arith.constant 0 : index
    %10 = vector.load %arg22[%c176, %c0_9] : memref<232x192xf32, #tpu.memory_space<vmem>>, vector<8x192xf32>
    tpu.vector_store %arg22[%c176, %c0_9], %0 {strides = array<i32>} : memref<232x192xf32, #tpu.memory_space<vmem>>, vector<8x192xf32>,
    %c224 = arith.constant 224 : index
    %c0_10 = arith.constant 0 : index
    %11 = vector.load %arg22[%c224, %c0_10] : memref<232x192xf32, #tpu.memory_space<vmem>>, vector<8x192xf32>
    tpu.vector_store %arg22[%c224, %c0_10], %0 {strides = array<i32>} : memref<232x192xf32, #tpu.memory_space<vmem>>, vector<8x192xf32>,
    %c104 = arith.constant 104 : index
    %c0_11 = arith.constant 0 : index
    %12 = vector.load %arg23[%c104, %c0_11] : memref<136x192xf32, #tpu.memory_space<vmem>>, vector<8x192xf32>
    tpu.vector_store %arg23[%c104, %c0_11], %0 {strides = array<i32>} : memref<136x192xf32, #tpu.memory_space<vmem>>, vector<8x192xf32>,
    %c0_12 = arith.constant 0 : index
    %c0_13 = arith.constant 0 : index
    %13 = vector.load %arg1[%c0_12, %c0_13] : memref<416x15xf32, #tpu.memory_space<vmem>>, vector<416x15xf32>
    %c0_14 = arith.constant 0 : index
    %c0_15 = arith.constant 0 : index
    %14 = vector.load %arg2[%c0_14, %c0_15] : memref<15x64xf32, #tpu.memory_space<vmem>>, vector<15x64xf32>
    %cst_16 = arith.constant dense<0.000000e+00> : vector<416x64xf32>
    %15 = tpu.matmul %13, %14, %cst_16 {dimension_numbers = #tpu.dot_dimension_numbers<[1], [0], [0], [1], [0, 0, 1, 1], [], []>} : vector<416x15xf32>, vector<15x64xf32>, vector<416x64xf32> -> vector<416x64xf32>
    %c0_17 = arith.constant 0 : index
    %c0_18 = arith.constant 0 : index
    %16 = vector.load %arg3[%c0_17, %c0_18] : memref<1x64xf32, #tpu.memory_space<vmem>>, vector<1x64xf32>
    %17 = vector.broadcast %16 : vector<1x64xf32> to vector<416x64xf32>
    %18 = arith.mulf %15, %17 : vector<416x64xf32>
    %c0_19 = arith.constant 0 : index
    %c0_20 = arith.constant 0 : index
    %19 = vector.load %arg4[%c0_19, %c0_20] : memref<1x64xf32, #tpu.memory_space<vmem>>, vector<1x64xf32>
    %20 = vector.broadcast %19 : vector<1x64xf32> to vector<416x64xf32>
    %21 = arith.addf %18, %20 : vector<416x64xf32>
    %cst_21 = arith.constant 0.000000e+00 : f32
    %22 = vector.broadcast %cst_21 : f32 to vector<416x64xf32>
    %23 = arith.maximumf %21, %22 : vector<416x64xf32>
    %24 = vector.extract_strided_slice %23 {offsets = [0, 0], sizes = [100, 64], strides = [1, 1]} : vector<416x64xf32> to vector<100x64xf32>
    %25 = vector.shape_cast %24 : vector<100x64xf32> to vector<50x2x64xf32>
    %cst_22 = arith.constant dense<0xFF800000> : vector<50x64xf32>
    %26 = vector.multi_reduction <maximumf>, %25, %cst_22 [1] : vector<50x2x64xf32> to vector<50x64xf32>
    %c9 = arith.constant 9 : index
    %c0_23 = arith.constant 0 : index
    %27 = vector.load %arg22[%c9, %c0_23] : memref<232x192xf32, #tpu.memory_space<vmem>>, vector<50x64xf32>
    tpu.vector_store %arg22[%c9, %c0_23], %26 {strides = array<i32>} : memref<232x192xf32, #tpu.memory_space<vmem>>, vector<50x64xf32>,
    %c8_24 = arith.constant 8 : index
    %c64_25 = arith.constant 64 : index
    %28 = vector.load %arg22[%c8_24, %c64_25] : memref<232x192xf32, #tpu.memory_space<vmem>>, vector<50x64xf32>
    tpu.vector_store %arg22[%c8_24, %c64_25], %26 {strides = array<i32>} : memref<232x192xf32, #tpu.memory_space<vmem>>, vector<50x64xf32>,
    %c7 = arith.constant 7 : index
    %c128 = arith.constant 128 : index
    %29 = vector.load %arg22[%c7, %c128] : memref<232x192xf32, #tpu.memory_space<vmem>>, vector<50x64xf32>
    tpu.vector_store %arg22[%c7, %c128], %26 {strides = array<i32>} : memref<232x192xf32, #tpu.memory_space<vmem>>, vector<50x64xf32>,
    %30 = vector.extract_strided_slice %23 {offsets = [104, 0], sizes = [100, 64], strides = [1, 1]} : vector<416x64xf32> to vector<100x64xf32>
    %31 = vector.shape_cast %30 : vector<100x64xf32> to vector<50x2x64xf32>
    %cst_26 = arith.constant dense<0xFF800000> : vector<50x64xf32>
    %32 = vector.multi_reduction <maximumf>, %31, %cst_26 [1] : vector<50x2x64xf32> to vector<50x64xf32>
    %c65 = arith.constant 65 : index
    %c0_27 = arith.constant 0 : index
    %33 = vector.load %arg22[%c65, %c0_27] : memref<232x192xf32, #tpu.memory_space<vmem>>, vector<50x64xf32>
    tpu.vector_store %arg22[%c65, %c0_27], %32 {strides = array<i32>} : memref<232x192xf32, #tpu.memory_space<vmem>>, vector<50x64xf32>,
    %c64_28 = arith.constant 64 : index
    %c64_29 = arith.constant 64 : index
    %34 = vector.load %arg22[%c64_28, %c64_29] : memref<232x192xf32, #tpu.memory_space<vmem>>, vector<50x64xf32>
    tpu.vector_store %arg22[%c64_28, %c64_29], %32 {strides = array<i32>} : memref<232x192xf32, #tpu.memory_space<vmem>>, vector<50x64xf32>,
    %c63 = arith.constant 63 : index
    %c128_30 = arith.constant 128 : index
    %35 = vector.load %arg22[%c63, %c128_30] : memref<232x192xf32, #tpu.memory_space<vmem>>, vector<50x64xf32>
    tpu.vector_store %arg22[%c63, %c128_30], %32 {strides = array<i32>} : memref<232x192xf32, #tpu.memory_space<vmem>>, vector<50x64xf32>,
    %36 = vector.extract_strided_slice %23 {offsets = [208, 0], sizes = [100, 64], strides = [1, 1]} : vector<416x64xf32> to vector<100x64xf32>
    %37 = vector.shape_cast %36 : vector<100x64xf32> to vector<50x2x64xf32>
    %cst_31 = arith.constant dense<0xFF800000> : vector<50x64xf32>
    %38 = vector.multi_reduction <maximumf>, %37, %cst_31 [1] : vector<50x2x64xf32> to vector<50x64xf32>
    %c121 = arith.constant 121 : index
    %c0_32 = arith.constant 0 : index
    %39 = vector.load %arg22[%c121, %c0_32] : memref<232x192xf32, #tpu.memory_space<vmem>>, vector<50x64xf32>
    tpu.vector_store %arg22[%c121, %c0_32], %38 {strides = array<i32>} : memref<232x192xf32, #tpu.memory_space<vmem>>, vector<50x64xf32>,
    %c120_33 = arith.constant 120 : index
    %c64_34 = arith.constant 64 : index
    %40 = vector.load %arg22[%c120_33, %c64_34] : memref<232x192xf32, #tpu.memory_space<vmem>>, vector<50x64xf32>
    tpu.vector_store %arg22[%c120_33, %c64_34], %38 {strides = array<i32>} : memref<232x192xf32, #tpu.memory_space<vmem>>, vector<50x64xf32>,
    %c119 = arith.constant 119 : index
    %c128_35 = arith.constant 128 : index
    %41 = vector.load %arg22[%c119, %c128_35] : memref<232x192xf32, #tpu.memory_space<vmem>>, vector<50x64xf32>
    tpu.vector_store %arg22[%c119, %c128_35], %38 {strides = array<i32>} : memref<232x192xf32, #tpu.memory_space<vmem>>, vector<50x64xf32>,
    %42 = vector.extract_strided_slice %23 {offsets = [312, 0], sizes = [100, 64], strides = [1, 1]} : vector<416x64xf32> to vector<100x64xf32>
    %43 = vector.shape_cast %42 : vector<100x64xf32> to vector<50x2x64xf32>
    %cst_36 = arith.constant dense<0xFF800000> : vector<50x64xf32>
    %44 = vector.multi_reduction <maximumf>, %43, %cst_36 [1] : vector<50x2x64xf32> to vector<50x64xf32>
    %c177 = arith.constant 177 : index
    %c0_37 = arith.constant 0 : index
    %45 = vector.load %arg22[%c177, %c0_37] : memref<232x192xf32, #tpu.memory_space<vmem>>, vector<50x64xf32>
    tpu.vector_store %arg22[%c177, %c0_37], %44 {strides = array<i32>} : memref<232x192xf32, #tpu.memory_space<vmem>>, vector<50x64xf32>,
    %c176_38 = arith.constant 176 : index
    %c64_39 = arith.constant 64 : index
    %46 = vector.load %arg22[%c176_38, %c64_39] : memref<232x192xf32, #tpu.memory_space<vmem>>, vector<50x64xf32>
    tpu.vector_store %arg22[%c176_38, %c64_39], %44 {strides = array<i32>} : memref<232x192xf32, #tpu.memory_space<vmem>>, vector<50x64xf32>,
    %c175 = arith.constant 175 : index
    %c128_40 = arith.constant 128 : index
    %47 = vector.load %arg22[%c175, %c128_40] : memref<232x192xf32, #tpu.memory_space<vmem>>, vector<50x64xf32>
    tpu.vector_store %arg22[%c175, %c128_40], %44 {strides = array<i32>} : memref<232x192xf32, #tpu.memory_space<vmem>>, vector<50x64xf32>,
    %c8_41 = arith.constant 8 : index
    %c0_42 = arith.constant 0 : index
    %48 = vector.load %arg22[%c8_41, %c0_42] : memref<232x192xf32, #tpu.memory_space<vmem>>, vector<224x192xf32>
    %c0_43 = arith.constant 0 : index
    %c0_44 = arith.constant 0 : index
    %49 = vector.load %arg5[%c0_43, %c0_44] : memref<192x64xf32, #tpu.memory_space<vmem>>, vector<192x64xf32>
    %cst_45 = arith.constant dense<0.000000e+00> : vector<224x64xf32>
    %50 = tpu.matmul %48, %49, %cst_45 {dimension_numbers = #tpu.dot_dimension_numbers<[1], [0], [0], [1], [0, 0, 1, 1], [], []>} : vector<224x192xf32>, vector<192x64xf32>, vector<224x64xf32> -> vector<224x64xf32>
    %c0_46 = arith.constant 0 : index
    %c0_47 = arith.constant 0 : index
    %51 = vector.load %arg6[%c0_46, %c0_47] : memref<1x64xf32, #tpu.memory_space<vmem>>, vector<1x64xf32>
    %52 = vector.broadcast %51 : vector<1x64xf32> to vector<224x64xf32>
    %53 = arith.mulf %50, %52 : vector<224x64xf32>
    %c0_48 = arith.constant 0 : index
    %c0_49 = arith.constant 0 : index
    %54 = vector.load %arg7[%c0_48, %c0_49] : memref<1x64xf32, #tpu.memory_space<vmem>>, vector<1x64xf32>
    %55 = vector.broadcast %54 : vector<1x64xf32> to vector<224x64xf32>
    %56 = arith.addf %53, %55 : vector<224x64xf32>
    %cst_50 = arith.constant 0.000000e+00 : f32
    %57 = vector.broadcast %cst_50 : f32 to vector<224x64xf32>
    %58 = arith.maximumf %56, %57 : vector<224x64xf32>
    %59 = vector.extract_strided_slice %58 {offsets = [0, 0], sizes = [50, 64], strides = [1, 1]} : vector<224x64xf32> to vector<50x64xf32>
    %60 = vector.shape_cast %59 : vector<50x64xf32> to vector<25x2x64xf32>
    %cst_51 = arith.constant dense<0xFF800000> : vector<25x64xf32>
    %61 = vector.multi_reduction <maximumf>, %60, %cst_51 [1] : vector<25x2x64xf32> to vector<25x64xf32>
    %c9_52 = arith.constant 9 : index
    %c0_53 = arith.constant 0 : index
    %62 = vector.load %arg23[%c9_52, %c0_53] : memref<136x192xf32, #tpu.memory_space<vmem>>, vector<25x64xf32>
    tpu.vector_store %arg23[%c9_52, %c0_53], %61 {strides = array<i32>} : memref<136x192xf32, #tpu.memory_space<vmem>>, vector<25x64xf32>,
    %c8_54 = arith.constant 8 : index
    %c64_55 = arith.constant 64 : index
    %63 = vector.load %arg23[%c8_54, %c64_55] : memref<136x192xf32, #tpu.memory_space<vmem>>, vector<25x64xf32>
    tpu.vector_store %arg23[%c8_54, %c64_55], %61 {strides = array<i32>} : memref<136x192xf32, #tpu.memory_space<vmem>>, vector<25x64xf32>,
    %c7_56 = arith.constant 7 : index
    %c128_57 = arith.constant 128 : index
    %64 = vector.load %arg23[%c7_56, %c128_57] : memref<136x192xf32, #tpu.memory_space<vmem>>, vector<25x64xf32>
    tpu.vector_store %arg23[%c7_56, %c128_57], %61 {strides = array<i32>} : memref<136x192xf32, #tpu.memory_space<vmem>>, vector<25x64xf32>,
    %65 = vector.extract_strided_slice %58 {offsets = [56, 0], sizes = [50, 64], strides = [1, 1]} : vector<224x64xf32> to vector<50x64xf32>
    %66 = vector.shape_cast %65 : vector<50x64xf32> to vector<25x2x64xf32>
    %cst_58 = arith.constant dense<0xFF800000> : vector<25x64xf32>
    %67 = vector.multi_reduction <maximumf>, %66, %cst_58 [1] : vector<25x2x64xf32> to vector<25x64xf32>
    %c41 = arith.constant 41 : index
    %c0_59 = arith.constant 0 : index
    %68 = vector.load %arg23[%c41, %c0_59] : memref<136x192xf32, #tpu.memory_space<vmem>>, vector<25x64xf32>
    tpu.vector_store %arg23[%c41, %c0_59], %67 {strides = array<i32>} : memref<136x192xf32, #tpu.memory_space<vmem>>, vector<25x64xf32>,
    %c40_60 = arith.constant 40 : index
    %c64_61 = arith.constant 64 : index
    %69 = vector.load %arg23[%c40_60, %c64_61] : memref<136x192xf32, #tpu.memory_space<vmem>>, vector<25x64xf32>
    tpu.vector_store %arg23[%c40_60, %c64_61], %67 {strides = array<i32>} : memref<136x192xf32, #tpu.memory_space<vmem>>, vector<25x64xf32>,
    %c39 = arith.constant 39 : index
    %c128_62 = arith.constant 128 : index
    %70 = vector.load %arg23[%c39, %c128_62] : memref<136x192xf32, #tpu.memory_space<vmem>>, vector<25x64xf32>
    tpu.vector_store %arg23[%c39, %c128_62], %67 {strides = array<i32>} : memref<136x192xf32, #tpu.memory_space<vmem>>, vector<25x64xf32>,
    %71 = vector.extract_strided_slice %58 {offsets = [112, 0], sizes = [50, 64], strides = [1, 1]} : vector<224x64xf32> to vector<50x64xf32>
    %72 = vector.shape_cast %71 : vector<50x64xf32> to vector<25x2x64xf32>
    %cst_63 = arith.constant dense<0xFF800000> : vector<25x64xf32>
    %73 = vector.multi_reduction <maximumf>, %72, %cst_63 [1] : vector<25x2x64xf32> to vector<25x64xf32>
    %c73 = arith.constant 73 : index
    %c0_64 = arith.constant 0 : index
    %74 = vector.load %arg23[%c73, %c0_64] : memref<136x192xf32, #tpu.memory_space<vmem>>, vector<25x64xf32>
    tpu.vector_store %arg23[%c73, %c0_64], %73 {strides = array<i32>} : memref<136x192xf32, #tpu.memory_space<vmem>>, vector<25x64xf32>,
    %c72_65 = arith.constant 72 : index
    %c64_66 = arith.constant 64 : index
    %75 = vector.load %arg23[%c72_65, %c64_66] : memref<136x192xf32, #tpu.memory_space<vmem>>, vector<25x64xf32>
    tpu.vector_store %arg23[%c72_65, %c64_66], %73 {strides = array<i32>} : memref<136x192xf32, #tpu.memory_space<vmem>>, vector<25x64xf32>,
    %c71 = arith.constant 71 : index
    %c128_67 = arith.constant 128 : index
    %76 = vector.load %arg23[%c71, %c128_67] : memref<136x192xf32, #tpu.memory_space<vmem>>, vector<25x64xf32>
    tpu.vector_store %arg23[%c71, %c128_67], %73 {strides = array<i32>} : memref<136x192xf32, #tpu.memory_space<vmem>>, vector<25x64xf32>,
    %77 = vector.extract_strided_slice %58 {offsets = [168, 0], sizes = [50, 64], strides = [1, 1]} : vector<224x64xf32> to vector<50x64xf32>
    %78 = vector.shape_cast %77 : vector<50x64xf32> to vector<25x2x64xf32>
    %cst_68 = arith.constant dense<0xFF800000> : vector<25x64xf32>
    %79 = vector.multi_reduction <maximumf>, %78, %cst_68 [1] : vector<25x2x64xf32> to vector<25x64xf32>
    %c105 = arith.constant 105 : index
    %c0_69 = arith.constant 0 : index
    %80 = vector.load %arg23[%c105, %c0_69] : memref<136x192xf32, #tpu.memory_space<vmem>>, vector<25x64xf32>
    tpu.vector_store %arg23[%c105, %c0_69], %79 {strides = array<i32>} : memref<136x192xf32, #tpu.memory_space<vmem>>, vector<25x64xf32>,
    %c104_70 = arith.constant 104 : index
    %c64_71 = arith.constant 64 : index
    %81 = vector.load %arg23[%c104_70, %c64_71] : memref<136x192xf32, #tpu.memory_space<vmem>>, vector<25x64xf32>
    tpu.vector_store %arg23[%c104_70, %c64_71], %79 {strides = array<i32>} : memref<136x192xf32, #tpu.memory_space<vmem>>, vector<25x64xf32>,
    %c103 = arith.constant 103 : index
    %c128_72 = arith.constant 128 : index
    %82 = vector.load %arg23[%c103, %c128_72] : memref<136x192xf32, #tpu.memory_space<vmem>>, vector<25x64xf32>
    tpu.vector_store %arg23[%c103, %c128_72], %79 {strides = array<i32>} : memref<136x192xf32, #tpu.memory_space<vmem>>, vector<25x64xf32>,
    %c8_73 = arith.constant 8 : index
    %c0_74 = arith.constant 0 : index
    %83 = vector.load %arg23[%c8_73, %c0_74] : memref<136x192xf32, #tpu.memory_space<vmem>>, vector<128x192xf32>
    %c0_75 = arith.constant 0 : index
    %c0_76 = arith.constant 0 : index
    %84 = vector.load %arg8[%c0_75, %c0_76] : memref<192x64xf32, #tpu.memory_space<vmem>>, vector<192x64xf32>
    %cst_77 = arith.constant dense<0.000000e+00> : vector<128x64xf32>
    %85 = tpu.matmul %83, %84, %cst_77 {dimension_numbers = #tpu.dot_dimension_numbers<[1], [0], [0], [1], [0, 0, 1, 1], [], []>} : vector<128x192xf32>, vector<192x64xf32>, vector<128x64xf32> -> vector<128x64xf32>
    %c0_78 = arith.constant 0 : index
    %c0_79 = arith.constant 0 : index
    %86 = vector.load %arg9[%c0_78, %c0_79] : memref<1x64xf32, #tpu.memory_space<vmem>>, vector<1x64xf32>
    %87 = vector.broadcast %86 : vector<1x64xf32> to vector<128x64xf32>
    %88 = arith.mulf %85, %87 : vector<128x64xf32>
    %c0_80 = arith.constant 0 : index
    %c0_81 = arith.constant 0 : index
    %89 = vector.load %arg10[%c0_80, %c0_81] : memref<1x64xf32, #tpu.memory_space<vmem>>, vector<1x64xf32>
    %90 = vector.broadcast %89 : vector<1x64xf32> to vector<128x64xf32>
    %91 = arith.addf %88, %90 : vector<128x64xf32>
    %cst_82 = arith.constant 0.000000e+00 : f32
    %92 = vector.broadcast %cst_82 : f32 to vector<128x64xf32>
    %93 = arith.maximumf %91, %92 : vector<128x64xf32>
    %94 = vector.extract_strided_slice %93 {offsets = [0, 0], sizes = [24, 64], strides = [1, 1]} : vector<128x64xf32> to vector<24x64xf32>
    %95 = vector.shape_cast %94 : vector<24x64xf32> to vector<12x2x64xf32>
    %cst_83 = arith.constant dense<0xFF800000> : vector<12x64xf32>
    %96 = vector.multi_reduction <maximumf>, %95, %cst_83 [1] : vector<12x2x64xf32> to vector<12x64xf32>
    %c0_84 = arith.constant 0 : index
    %c0_85 = arith.constant 0 : index
    %c0_86 = arith.constant 0 : index
    %97 = vector.load %arg24[%c0_84, %c0_85, %c0_86] : memref<4x12x64xf32, #tpu.memory_space<vmem>>, vector<1x12x64xf32>
    %98 = vector.shape_cast %97 : vector<1x12x64xf32> to vector<12x64xf32>
    %99 = vector.shape_cast %96 : vector<12x64xf32> to vector<1x12x64xf32>
    tpu.vector_store %arg24[%c0_84, %c0_85, %c0_86], %99 {strides = array<i32>} : memref<4x12x64xf32, #tpu.memory_space<vmem>>, vector<1x12x64xf32>,
    %100 = vector.extract_strided_slice %93 {offsets = [32, 0], sizes = [24, 64], strides = [1, 1]} : vector<128x64xf32> to vector<24x64xf32>
    %101 = vector.shape_cast %100 : vector<24x64xf32> to vector<12x2x64xf32>
    %cst_87 = arith.constant dense<0xFF800000> : vector<12x64xf32>
    %102 = vector.multi_reduction <maximumf>, %101, %cst_87 [1] : vector<12x2x64xf32> to vector<12x64xf32>
    %c1 = arith.constant 1 : index
    %c0_88 = arith.constant 0 : index
    %c0_89 = arith.constant 0 : index
    %103 = vector.load %arg24[%c1, %c0_88, %c0_89] : memref<4x12x64xf32, #tpu.memory_space<vmem>>, vector<1x12x64xf32>
    %104 = vector.shape_cast %103 : vector<1x12x64xf32> to vector<12x64xf32>
    %105 = vector.shape_cast %102 : vector<12x64xf32> to vector<1x12x64xf32>
    tpu.vector_store %arg24[%c1, %c0_88, %c0_89], %105 {strides = array<i32>} : memref<4x12x64xf32, #tpu.memory_space<vmem>>, vector<1x12x64xf32>,
    %106 = vector.extract_strided_slice %93 {offsets = [64, 0], sizes = [24, 64], strides = [1, 1]} : vector<128x64xf32> to vector<24x64xf32>
    %107 = vector.shape_cast %106 : vector<24x64xf32> to vector<12x2x64xf32>
    %cst_90 = arith.constant dense<0xFF800000> : vector<12x64xf32>
    %108 = vector.multi_reduction <maximumf>, %107, %cst_90 [1] : vector<12x2x64xf32> to vector<12x64xf32>
    %c2 = arith.constant 2 : index
    %c0_91 = arith.constant 0 : index
    %c0_92 = arith.constant 0 : index
    %109 = vector.load %arg24[%c2, %c0_91, %c0_92] : memref<4x12x64xf32, #tpu.memory_space<vmem>>, vector<1x12x64xf32>
    %110 = vector.shape_cast %109 : vector<1x12x64xf32> to vector<12x64xf32>
    %111 = vector.shape_cast %108 : vector<12x64xf32> to vector<1x12x64xf32>
    tpu.vector_store %arg24[%c2, %c0_91, %c0_92], %111 {strides = array<i32>} : memref<4x12x64xf32, #tpu.memory_space<vmem>>, vector<1x12x64xf32>,
    %112 = vector.extract_strided_slice %93 {offsets = [96, 0], sizes = [24, 64], strides = [1, 1]} : vector<128x64xf32> to vector<24x64xf32>
    %113 = vector.shape_cast %112 : vector<24x64xf32> to vector<12x2x64xf32>
    %cst_93 = arith.constant dense<0xFF800000> : vector<12x64xf32>
    %114 = vector.multi_reduction <maximumf>, %113, %cst_93 [1] : vector<12x2x64xf32> to vector<12x64xf32>
    %c3 = arith.constant 3 : index
    %c0_94 = arith.constant 0 : index
    %c0_95 = arith.constant 0 : index
    %115 = vector.load %arg24[%c3, %c0_94, %c0_95] : memref<4x12x64xf32, #tpu.memory_space<vmem>>, vector<1x12x64xf32>
    %116 = vector.shape_cast %115 : vector<1x12x64xf32> to vector<12x64xf32>
    %117 = vector.shape_cast %114 : vector<12x64xf32> to vector<1x12x64xf32>
    tpu.vector_store %arg24[%c3, %c0_94, %c0_95], %117 {strides = array<i32>} : memref<4x12x64xf32, #tpu.memory_space<vmem>>, vector<1x12x64xf32>,
    %c0_96 = arith.constant 0 : index
    %c0_97 = arith.constant 0 : index
    %c0_98 = arith.constant 0 : index
    %118 = vector.load %arg24[%c0_96, %c0_97, %c0_98] : memref<4x12x64xf32, #tpu.memory_space<vmem>>, vector<4x12x64xf32>
    %119 = vector.extract_strided_slice %118 {offsets = [0, 0, 0], sizes = [4, 1, 64], strides = [1, 1, 1]} : vector<4x12x64xf32> to vector<4x1x64xf32>
    %120 = vector.shape_cast %119 : vector<4x1x64xf32> to vector<4x64xf32>
    %c0_99 = arith.constant 0 : index
    %c0_100 = arith.constant 0 : index
    %c0_101 = arith.constant 0 : index
    %121 = vector.load %arg11[%c0_99, %c0_100, %c0_101] : memref<12x64x100xf32, #tpu.memory_space<vmem>>, vector<1x64x100xf32>
    %122 = vector.shape_cast %121 : vector<1x64x100xf32> to vector<64x100xf32>
    %cst_102 = arith.constant dense<0.000000e+00> : vector<4x100xf32>
    %123 = tpu.matmul %120, %122, %cst_102 {dimension_numbers = #tpu.dot_dimension_numbers<[1], [0], [0], [1], [0, 0, 1, 1], [], []>} : vector<4x64xf32>, vector<64x100xf32>, vector<4x100xf32> -> vector<4x100xf32>
    %c0_103 = arith.constant 0 : index
    %c0_104 = arith.constant 0 : index
    %124 = vector.load %arg12[%c0_103, %c0_104] : memref<1x100xf32, #tpu.memory_space<vmem>>, vector<1x100xf32>
    %125 = vector.broadcast %124 : vector<1x100xf32> to vector<4x100xf32>
    %126 = arith.addf %123, %125 : vector<4x100xf32>
    %127 = vector.extract_strided_slice %118 {offsets = [0, 1, 0], sizes = [4, 1, 64], strides = [1, 1, 1]} : vector<4x12x64xf32> to vector<4x1x64xf32>
    %128 = vector.shape_cast %127 : vector<4x1x64xf32> to vector<4x64xf32>
    %c1_105 = arith.constant 1 : index
    %c0_106 = arith.constant 0 : index
    %c0_107 = arith.constant 0 : index
    %129 = vector.load %arg11[%c1_105, %c0_106, %c0_107] : memref<12x64x100xf32, #tpu.memory_space<vmem>>, vector<1x64x100xf32>
    %130 = vector.shape_cast %129 : vector<1x64x100xf32> to vector<64x100xf32>
    %cst_108 = arith.constant dense<0.000000e+00> : vector<4x100xf32>
    %131 = tpu.matmul %128, %130, %cst_108 {dimension_numbers = #tpu.dot_dimension_numbers<[1], [0], [0], [1], [0, 0, 1, 1], [], []>} : vector<4x64xf32>, vector<64x100xf32>, vector<4x100xf32> -> vector<4x100xf32>
    %132 = arith.addf %126, %131 : vector<4x100xf32>
    %133 = vector.extract_strided_slice %118 {offsets = [0, 2, 0], sizes = [4, 1, 64], strides = [1, 1, 1]} : vector<4x12x64xf32> to vector<4x1x64xf32>
    %134 = vector.shape_cast %133 : vector<4x1x64xf32> to vector<4x64xf32>
    %c2_109 = arith.constant 2 : index
    %c0_110 = arith.constant 0 : index
    %c0_111 = arith.constant 0 : index
    %135 = vector.load %arg11[%c2_109, %c0_110, %c0_111] : memref<12x64x100xf32, #tpu.memory_space<vmem>>, vector<1x64x100xf32>
    %136 = vector.shape_cast %135 : vector<1x64x100xf32> to vector<64x100xf32>
    %cst_112 = arith.constant dense<0.000000e+00> : vector<4x100xf32>
    %137 = tpu.matmul %134, %136, %cst_112 {dimension_numbers = #tpu.dot_dimension_numbers<[1], [0], [0], [1], [0, 0, 1, 1], [], []>} : vector<4x64xf32>, vector<64x100xf32>, vector<4x100xf32> -> vector<4x100xf32>
    %138 = arith.addf %132, %137 : vector<4x100xf32>
    %139 = vector.extract_strided_slice %118 {offsets = [0, 3, 0], sizes = [4, 1, 64], strides = [1, 1, 1]} : vector<4x12x64xf32> to vector<4x1x64xf32>
    %140 = vector.shape_cast %139 : vector<4x1x64xf32> to vector<4x64xf32>
    %c3_113 = arith.constant 3 : index
    %c0_114 = arith.constant 0 : index
    %c0_115 = arith.constant 0 : index
    %141 = vector.load %arg11[%c3_113, %c0_114, %c0_115] : memref<12x64x100xf32, #tpu.memory_space<vmem>>, vector<1x64x100xf32>
    %142 = vector.shape_cast %141 : vector<1x64x100xf32> to vector<64x100xf32>
    %cst_116 = arith.constant dense<0.000000e+00> : vector<4x100xf32>
    %143 = tpu.matmul %140, %142, %cst_116 {dimension_numbers = #tpu.dot_dimension_numbers<[1], [0], [0], [1], [0, 0, 1, 1], [], []>} : vector<4x64xf32>, vector<64x100xf32>, vector<4x100xf32> -> vector<4x100xf32>
    %144 = arith.addf %138, %143 : vector<4x100xf32>
    %145 = vector.extract_strided_slice %118 {offsets = [0, 4, 0], sizes = [4, 1, 64], strides = [1, 1, 1]} : vector<4x12x64xf32> to vector<4x1x64xf32>
    %146 = vector.shape_cast %145 : vector<4x1x64xf32> to vector<4x64xf32>
    %c4 = arith.constant 4 : index
    %c0_117 = arith.constant 0 : index
    %c0_118 = arith.constant 0 : index
    %147 = vector.load %arg11[%c4, %c0_117, %c0_118] : memref<12x64x100xf32, #tpu.memory_space<vmem>>, vector<1x64x100xf32>
    %148 = vector.shape_cast %147 : vector<1x64x100xf32> to vector<64x100xf32>
    %cst_119 = arith.constant dense<0.000000e+00> : vector<4x100xf32>
    %149 = tpu.matmul %146, %148, %cst_119 {dimension_numbers = #tpu.dot_dimension_numbers<[1], [0], [0], [1], [0, 0, 1, 1], [], []>} : vector<4x64xf32>, vector<64x100xf32>, vector<4x100xf32> -> vector<4x100xf32>
    %150 = arith.addf %144, %149 : vector<4x100xf32>
    %151 = vector.extract_strided_slice %118 {offsets = [0, 5, 0], sizes = [4, 1, 64], strides = [1, 1, 1]} : vector<4x12x64xf32> to vector<4x1x64xf32>
    %152 = vector.shape_cast %151 : vector<4x1x64xf32> to vector<4x64xf32>
    %c5 = arith.constant 5 : index
    %c0_120 = arith.constant 0 : index
    %c0_121 = arith.constant 0 : index
    %153 = vector.load %arg11[%c5, %c0_120, %c0_121] : memref<12x64x100xf32, #tpu.memory_space<vmem>>, vector<1x64x100xf32>
    %154 = vector.shape_cast %153 : vector<1x64x100xf32> to vector<64x100xf32>
    %cst_122 = arith.constant dense<0.000000e+00> : vector<4x100xf32>
    %155 = tpu.matmul %152, %154, %cst_122 {dimension_numbers = #tpu.dot_dimension_numbers<[1], [0], [0], [1], [0, 0, 1, 1], [], []>} : vector<4x64xf32>, vector<64x100xf32>, vector<4x100xf32> -> vector<4x100xf32>
    %156 = arith.addf %150, %155 : vector<4x100xf32>
    %157 = vector.extract_strided_slice %118 {offsets = [0, 6, 0], sizes = [4, 1, 64], strides = [1, 1, 1]} : vector<4x12x64xf32> to vector<4x1x64xf32>
    %158 = vector.shape_cast %157 : vector<4x1x64xf32> to vector<4x64xf32>
    %c6 = arith.constant 6 : index
    %c0_123 = arith.constant 0 : index
    %c0_124 = arith.constant 0 : index
    %159 = vector.load %arg11[%c6, %c0_123, %c0_124] : memref<12x64x100xf32, #tpu.memory_space<vmem>>, vector<1x64x100xf32>
    %160 = vector.shape_cast %159 : vector<1x64x100xf32> to vector<64x100xf32>
    %cst_125 = arith.constant dense<0.000000e+00> : vector<4x100xf32>
    %161 = tpu.matmul %158, %160, %cst_125 {dimension_numbers = #tpu.dot_dimension_numbers<[1], [0], [0], [1], [0, 0, 1, 1], [], []>} : vector<4x64xf32>, vector<64x100xf32>, vector<4x100xf32> -> vector<4x100xf32>
    %162 = arith.addf %156, %161 : vector<4x100xf32>
    %163 = vector.extract_strided_slice %118 {offsets = [0, 7, 0], sizes = [4, 1, 64], strides = [1, 1, 1]} : vector<4x12x64xf32> to vector<4x1x64xf32>
    %164 = vector.shape_cast %163 : vector<4x1x64xf32> to vector<4x64xf32>
    %c7_126 = arith.constant 7 : index
    %c0_127 = arith.constant 0 : index
    %c0_128 = arith.constant 0 : index
    %165 = vector.load %arg11[%c7_126, %c0_127, %c0_128] : memref<12x64x100xf32, #tpu.memory_space<vmem>>, vector<1x64x100xf32>
    %166 = vector.shape_cast %165 : vector<1x64x100xf32> to vector<64x100xf32>
    %cst_129 = arith.constant dense<0.000000e+00> : vector<4x100xf32>
    %167 = tpu.matmul %164, %166, %cst_129 {dimension_numbers = #tpu.dot_dimension_numbers<[1], [0], [0], [1], [0, 0, 1, 1], [], []>} : vector<4x64xf32>, vector<64x100xf32>, vector<4x100xf32> -> vector<4x100xf32>
    %168 = arith.addf %162, %167 : vector<4x100xf32>
    %169 = vector.extract_strided_slice %118 {offsets = [0, 8, 0], sizes = [4, 1, 64], strides = [1, 1, 1]} : vector<4x12x64xf32> to vector<4x1x64xf32>
    %170 = vector.shape_cast %169 : vector<4x1x64xf32> to vector<4x64xf32>
    %c8_130 = arith.constant 8 : index
    %c0_131 = arith.constant 0 : index
    %c0_132 = arith.constant 0 : index
    %171 = vector.load %arg11[%c8_130, %c0_131, %c0_132] : memref<12x64x100xf32, #tpu.memory_space<vmem>>, vector<1x64x100xf32>
    %172 = vector.shape_cast %171 : vector<1x64x100xf32> to vector<64x100xf32>
    %cst_133 = arith.constant dense<0.000000e+00> : vector<4x100xf32>
    %173 = tpu.matmul %170, %172, %cst_133 {dimension_numbers = #tpu.dot_dimension_numbers<[1], [0], [0], [1], [0, 0, 1, 1], [], []>} : vector<4x64xf32>, vector<64x100xf32>, vector<4x100xf32> -> vector<4x100xf32>
    %174 = arith.addf %168, %173 : vector<4x100xf32>
    %175 = vector.extract_strided_slice %118 {offsets = [0, 9, 0], sizes = [4, 1, 64], strides = [1, 1, 1]} : vector<4x12x64xf32> to vector<4x1x64xf32>
    %176 = vector.shape_cast %175 : vector<4x1x64xf32> to vector<4x64xf32>
    %c9_134 = arith.constant 9 : index
    %c0_135 = arith.constant 0 : index
    %c0_136 = arith.constant 0 : index
    %177 = vector.load %arg11[%c9_134, %c0_135, %c0_136] : memref<12x64x100xf32, #tpu.memory_space<vmem>>, vector<1x64x100xf32>
    %178 = vector.shape_cast %177 : vector<1x64x100xf32> to vector<64x100xf32>
    %cst_137 = arith.constant dense<0.000000e+00> : vector<4x100xf32>
    %179 = tpu.matmul %176, %178, %cst_137 {dimension_numbers = #tpu.dot_dimension_numbers<[1], [0], [0], [1], [0, 0, 1, 1], [], []>} : vector<4x64xf32>, vector<64x100xf32>, vector<4x100xf32> -> vector<4x100xf32>
    %180 = arith.addf %174, %179 : vector<4x100xf32>
    %181 = vector.extract_strided_slice %118 {offsets = [0, 10, 0], sizes = [4, 1, 64], strides = [1, 1, 1]} : vector<4x12x64xf32> to vector<4x1x64xf32>
    %182 = vector.shape_cast %181 : vector<4x1x64xf32> to vector<4x64xf32>
    %c10 = arith.constant 10 : index
    %c0_138 = arith.constant 0 : index
    %c0_139 = arith.constant 0 : index
    %183 = vector.load %arg11[%c10, %c0_138, %c0_139] : memref<12x64x100xf32, #tpu.memory_space<vmem>>, vector<1x64x100xf32>
    %184 = vector.shape_cast %183 : vector<1x64x100xf32> to vector<64x100xf32>
    %cst_140 = arith.constant dense<0.000000e+00> : vector<4x100xf32>
    %185 = tpu.matmul %182, %184, %cst_140 {dimension_numbers = #tpu.dot_dimension_numbers<[1], [0], [0], [1], [0, 0, 1, 1], [], []>} : vector<4x64xf32>, vector<64x100xf32>, vector<4x100xf32> -> vector<4x100xf32>
    %186 = arith.addf %180, %185 : vector<4x100xf32>
    %187 = vector.extract_strided_slice %118 {offsets = [0, 11, 0], sizes = [4, 1, 64], strides = [1, 1, 1]} : vector<4x12x64xf32> to vector<4x1x64xf32>
    %188 = vector.shape_cast %187 : vector<4x1x64xf32> to vector<4x64xf32>
    %c11 = arith.constant 11 : index
    %c0_141 = arith.constant 0 : index
    %c0_142 = arith.constant 0 : index
    %189 = vector.load %arg11[%c11, %c0_141, %c0_142] : memref<12x64x100xf32, #tpu.memory_space<vmem>>, vector<1x64x100xf32>
    %190 = vector.shape_cast %189 : vector<1x64x100xf32> to vector<64x100xf32>
    %cst_143 = arith.constant dense<0.000000e+00> : vector<4x100xf32>
    %191 = tpu.matmul %188, %190, %cst_143 {dimension_numbers = #tpu.dot_dimension_numbers<[1], [0], [0], [1], [0, 0, 1, 1], [], []>} : vector<4x64xf32>, vector<64x100xf32>, vector<4x100xf32> -> vector<4x100xf32>
    %192 = arith.addf %186, %191 : vector<4x100xf32>
    %cst_144 = arith.constant 0.000000e+00 : f32
    %193 = vector.broadcast %cst_144 : f32 to vector<4x100xf32>
    %194 = arith.cmpf ogt, %192, %193 : vector<4x100xf32>
    %cst_145 = arith.constant 0.000000e+00 : f32
    %195 = vector.broadcast %cst_145 : f32 to vector<4x100xf32>
    %196 = arith.minimumf %192, %195 : vector<4x100xf32>
    %197 = math.exp %196 : vector<4x100xf32>
    %cst_146 = arith.constant 1.000000e+00 : f32
    %198 = vector.broadcast %cst_146 : f32 to vector<4x100xf32>
    %199 = arith.subf %197, %198 : vector<4x100xf32>
    %200 = arith.select %194, %192, %199 : vector<4x100xi1>, vector<4x100xf32>
    %c0_147 = arith.constant 0 : index
    %c0_148 = arith.constant 0 : index
    %201 = vector.load %arg13[%c0_147, %c0_148] : memref<1x100xf32, #tpu.memory_space<vmem>>, vector<1x100xf32>
    %202 = vector.broadcast %201 : vector<1x100xf32> to vector<4x100xf32>
    %203 = arith.mulf %200, %202 : vector<4x100xf32>
    %c0_149 = arith.constant 0 : index
    %c0_150 = arith.constant 0 : index
    %204 = vector.load %arg14[%c0_149, %c0_150] : memref<1x100xf32, #tpu.memory_space<vmem>>, vector<1x100xf32>
    %205 = vector.broadcast %204 : vector<1x100xf32> to vector<4x100xf32>
    %206 = arith.addf %203, %205 : vector<4x100xf32>
    %c0_151 = arith.constant 0 : index
    %c0_152 = arith.constant 0 : index
    %207 = vector.load %arg15[%c0_151, %c0_152] : memref<100x30xf32, #tpu.memory_space<vmem>>, vector<100x30xf32>
    %cst_153 = arith.constant dense<0.000000e+00> : vector<4x30xf32>
    %208 = tpu.matmul %206, %207, %cst_153 {dimension_numbers = #tpu.dot_dimension_numbers<[1], [0], [0], [1], [0, 0, 1, 1], [], []>} : vector<4x100xf32>, vector<100x30xf32>, vector<4x30xf32> -> vector<4x30xf32>
    %c0_154 = arith.constant 0 : index
    %c0_155 = arith.constant 0 : index
    %209 = vector.load %arg16[%c0_154, %c0_155] : memref<1x30xf32, #tpu.memory_space<vmem>>, vector<1x30xf32>
    %210 = vector.broadcast %209 : vector<1x30xf32> to vector<4x30xf32>
    %211 = arith.addf %208, %210 : vector<4x30xf32>
    %cst_156 = arith.constant 0.000000e+00 : f32
    %212 = vector.broadcast %cst_156 : f32 to vector<4x30xf32>
    %213 = arith.cmpf ogt, %211, %212 : vector<4x30xf32>
    %cst_157 = arith.constant 0.000000e+00 : f32
    %214 = vector.broadcast %cst_157 : f32 to vector<4x30xf32>
    %215 = arith.minimumf %211, %214 : vector<4x30xf32>
    %216 = math.exp %215 : vector<4x30xf32>
    %cst_158 = arith.constant 1.000000e+00 : f32
    %217 = vector.broadcast %cst_158 : f32 to vector<4x30xf32>
    %218 = arith.subf %216, %217 : vector<4x30xf32>
    %219 = arith.select %213, %211, %218 : vector<4x30xi1>, vector<4x30xf32>
    %c0_159 = arith.constant 0 : index
    %c0_160 = arith.constant 0 : index
    %220 = vector.load %arg17[%c0_159, %c0_160] : memref<1x30xf32, #tpu.memory_space<vmem>>, vector<1x30xf32>
    %221 = vector.broadcast %220 : vector<1x30xf32> to vector<4x30xf32>
    %222 = arith.mulf %219, %221 : vector<4x30xf32>
    %c0_161 = arith.constant 0 : index
    %c0_162 = arith.constant 0 : index
    %223 = vector.load %arg18[%c0_161, %c0_162] : memref<1x30xf32, #tpu.memory_space<vmem>>, vector<1x30xf32>
    %224 = vector.broadcast %223 : vector<1x30xf32> to vector<4x30xf32>
    %225 = arith.addf %222, %224 : vector<4x30xf32>
    %c0_163 = arith.constant 0 : index
    %c0_164 = arith.constant 0 : index
    %226 = vector.load %arg19[%c0_163, %c0_164] : memref<30x1xf32, #tpu.memory_space<vmem>>, vector<30x1xf32>
    %cst_165 = arith.constant dense<0.000000e+00> : vector<4x1xf32>
    %227 = tpu.matmul %225, %226, %cst_165 {dimension_numbers = #tpu.dot_dimension_numbers<[1], [0], [0], [1], [0, 0, 1, 1], [], []>} : vector<4x30xf32>, vector<30x1xf32>, vector<4x1xf32> -> vector<4x1xf32>
    %c0_166 = arith.constant 0 : index
    %c0_167 = arith.constant 0 : index
    %228 = vector.load %arg20[%c0_166, %c0_167] : memref<1x1xf32, #tpu.memory_space<vmem>>, vector<1x1xf32>
    %229 = vector.broadcast %228 : vector<1x1xf32> to vector<4x1xf32>
    %230 = arith.addf %227, %229 : vector<4x1xf32>
    %cst_168 = arith.constant 0.000000e+00 : f32
    %231 = vector.broadcast %cst_168 : f32 to vector<4x1xf32>
    %232 = arith.cmpf ogt, %230, %231 : vector<4x1xf32>
    %cst_169 = arith.constant 0.000000e+00 : f32
    %233 = vector.broadcast %cst_169 : f32 to vector<4x1xf32>
    %234 = arith.minimumf %230, %233 : vector<4x1xf32>
    %235 = math.exp %234 : vector<4x1xf32>
    %cst_170 = arith.constant 1.000000e+00 : f32
    %236 = vector.broadcast %cst_170 : f32 to vector<4x1xf32>
    %237 = arith.subf %235, %236 : vector<4x1xf32>
    %238 = arith.select %232, %230, %237 : vector<4x1xi1>, vector<4x1xf32>
    %c0_171 = arith.constant 0 : index
    %c0_172 = arith.constant 0 : index
    %239 = vector.load %arg21[%c0_171, %c0_172] : memref<4x1xf32, #tpu.memory_space<vmem>>, vector<4x1xf32>
    tpu.vector_store %arg21[%c0_171, %c0_172], %238 {strides = array<i32>} : memref<4x1xf32, #tpu.memory_space<vmem>>, vector<4x1xf32>,
    return
  }
  func.func @transform_0(%arg0: i32) -> (i32, i32) {
    %c0_i32 = arith.constant 0 : i32
    %c0_i32_0 = arith.constant 0 : i32
    %c0_i32_1 = arith.constant 0 : i32
    return %c0_i32, %c0_i32_0 : i32, i32
  }
  func.func @transform_1(%arg0: i32) -> (i32, i32) {
    %c0_i32 = arith.constant 0 : i32
    %c0_i32_0 = arith.constant 0 : i32
    %c0_i32_1 = arith.constant 0 : i32
    return %c0_i32, %c0_i32_0 : i32, i32
  }
  func.func @transform_2(%arg0: i32) -> (i32, i32) {
    %c0_i32 = arith.constant 0 : i32
    %c0_i32_0 = arith.constant 0 : i32
    %c0_i32_1 = arith.constant 0 : i32
    return %c0_i32, %c0_i32_0 : i32, i32
  }
  func.func @transform_3(%arg0: i32) -> (i32, i32) {
    %c0_i32 = arith.constant 0 : i32
    %c0_i32_0 = arith.constant 0 : i32
    %c0_i32_1 = arith.constant 0 : i32
    return %c0_i32, %c0_i32_0 : i32, i32
  }
  func.func @transform_4(%arg0: i32) -> (i32, i32) {
    %c0_i32 = arith.constant 0 : i32
    %c0_i32_0 = arith.constant 0 : i32
    %c0_i32_1 = arith.constant 0 : i32
    return %c0_i32, %c0_i32_0 : i32, i32
  }
  func.func @transform_5(%arg0: i32) -> (i32, i32) {
    %c0_i32 = arith.constant 0 : i32
    %c0_i32_0 = arith.constant 0 : i32
    %c0_i32_1 = arith.constant 0 : i32
    return %c0_i32, %c0_i32_0 : i32, i32
  }
  func.func @transform_6(%arg0: i32) -> (i32, i32) {
    %c0_i32 = arith.constant 0 : i32
    %c0_i32_0 = arith.constant 0 : i32
    %c0_i32_1 = arith.constant 0 : i32
    return %c0_i32, %c0_i32_0 : i32, i32
  }
  func.func @transform_7(%arg0: i32) -> (i32, i32) {
    %c0_i32 = arith.constant 0 : i32
    %c0_i32_0 = arith.constant 0 : i32
    %c0_i32_1 = arith.constant 0 : i32
    return %c0_i32, %c0_i32_0 : i32, i32
  }
  func.func @transform_8(%arg0: i32) -> (i32, i32) {
    %c0_i32 = arith.constant 0 : i32
    %c0_i32_0 = arith.constant 0 : i32
    %c0_i32_1 = arith.constant 0 : i32
    return %c0_i32, %c0_i32_0 : i32, i32
  }
  func.func @transform_9(%arg0: i32) -> (i32, i32) {
    %c0_i32 = arith.constant 0 : i32
    %c0_i32_0 = arith.constant 0 : i32
    %c0_i32_1 = arith.constant 0 : i32
    return %c0_i32, %c0_i32_0 : i32, i32
  }
  func.func @transform_10(%arg0: i32) -> (i32, i32, i32) {
    %c0_i32 = arith.constant 0 : i32
    %c0_i32_0 = arith.constant 0 : i32
    %c0_i32_1 = arith.constant 0 : i32
    %c0_i32_2 = arith.constant 0 : i32
    return %c0_i32, %c0_i32_0, %c0_i32_1 : i32, i32, i32
  }
  func.func @transform_11(%arg0: i32) -> (i32, i32) {
    %c0_i32 = arith.constant 0 : i32
    %c0_i32_0 = arith.constant 0 : i32
    %c0_i32_1 = arith.constant 0 : i32
    return %c0_i32, %c0_i32_0 : i32, i32
  }
  func.func @transform_12(%arg0: i32) -> (i32, i32) {
    %c0_i32 = arith.constant 0 : i32
    %c0_i32_0 = arith.constant 0 : i32
    %c0_i32_1 = arith.constant 0 : i32
    return %c0_i32, %c0_i32_0 : i32, i32
  }
  func.func @transform_13(%arg0: i32) -> (i32, i32) {
    %c0_i32 = arith.constant 0 : i32
    %c0_i32_0 = arith.constant 0 : i32
    %c0_i32_1 = arith.constant 0 : i32
    return %c0_i32, %c0_i32_0 : i32, i32
  }
  func.func @transform_14(%arg0: i32) -> (i32, i32) {
    %c0_i32 = arith.constant 0 : i32
    %c0_i32_0 = arith.constant 0 : i32
    %c0_i32_1 = arith.constant 0 : i32
    return %c0_i32, %c0_i32_0 : i32, i32
  }
  func.func @transform_15(%arg0: i32) -> (i32, i32) {
    %c0_i32 = arith.constant 0 : i32
    %c0_i32_0 = arith.constant 0 : i32
    %c0_i32_1 = arith.constant 0 : i32
    return %c0_i32, %c0_i32_0 : i32, i32
  }
  func.func @transform_16(%arg0: i32) -> (i32, i32) {
    %c0_i32 = arith.constant 0 : i32
    %c0_i32_0 = arith.constant 0 : i32
    %c0_i32_1 = arith.constant 0 : i32
    return %c0_i32, %c0_i32_0 : i32, i32
  }
  func.func @transform_17(%arg0: i32) -> (i32, i32) {
    %c0_i32 = arith.constant 0 : i32
    %c0_i32_0 = arith.constant 0 : i32
    %c0_i32_1 = arith.constant 0 : i32
    return %c0_i32, %c0_i32_0 : i32, i32
  }
  func.func @transform_18(%arg0: i32) -> (i32, i32) {
    %c0_i32 = arith.constant 0 : i32
    %c0_i32_0 = arith.constant 0 : i32
    %c0_i32_1 = arith.constant 0 : i32
    return %c0_i32, %c0_i32_0 : i32, i32
  }
  func.func @transform_19(%arg0: i32) -> (i32, i32) {
    %c0_i32 = arith.constant 0 : i32
    %c0_i32_0 = arith.constant 0 : i32
    %c0_i32_1 = arith.constant 0 : i32
    return %c0_i32, %c0_i32_0 : i32, i32
  }
  func.func @transform_20(%arg0: i32) -> (i32, i32) {
    %c0_i32 = arith.constant 0 : i32
    %c0_i32_0 = arith.constant 0 : i32
    %c0_i32_1 = arith.constant 0 : i32
    return %c0_i32, %c0_i32_0 : i32, i32
  }
}

</mosaic_0001>

<llo_original>
// kernel: mfe_forward.1
$region0: #{mfe_forward.1}
  #allocation0 [shape = 'u32[]', space=smem, size = 0x4, offset = 0x4, fixed_abs, tag = 'smem constant byte address 0x4 - core index']
  #allocation1 [shape = 'u32[144,128]{1,0:T(1,128)}', space=vmem, size = 0x12000, scoped, tag = 'internal scratch']
  #allocation2 [shape = 'f32[232,192]{1,0:T(8,128)}', space=vmem, size = 0x3a000, scoped, tag = 'scratch operand']
  #allocation3 [shape = 'f32[136,192]{1,0:T(8,128)}', space=vmem, size = 0x22000, scoped, tag = 'scratch operand']
  #allocation4 [shape = 'f32[4,12,64]{2,1,0:T(8,128)}', space=vmem, size = 0x8000, scoped, tag = 'scratch operand']
  #allocation5 [shape = 'f32[1,1]{1,0:T(1,128)S(1)}', space=vmem, size = 0x200, scoped, tag = 'scoped memory for mfe_forward.1']
  %s0 = inlined_call_operand.vmem [shape: f32[416,15], index: 0, kind: input, shape index: {}]
  %s1 = inlined_call_operand.vmem [shape: f32[15,64], index: 1, kind: input, shape index: {}]
  %s2 = inlined_call_operand.vmem [shape: f32[1,64], index: 2, kind: input, shape index: {}]
  %s3 = inlined_call_operand.vmem [shape: f32[1,64], index: 3, kind: input, shape index: {}]
  %s4 = inlined_call_operand.vmem [shape: f32[192,64], index: 4, kind: input, shape index: {}]
  %s5 = inlined_call_operand.vmem [shape: f32[1,64], index: 5, kind: input, shape index: {}]
  %s6 = inlined_call_operand.vmem [shape: f32[1,64], index: 6, kind: input, shape index: {}]
  %s7 = inlined_call_operand.vmem [shape: f32[192,64], index: 7, kind: input, shape index: {}]
  %s8 = inlined_call_operand.vmem [shape: f32[1,64], index: 8, kind: input, shape index: {}]
  %s9 = inlined_call_operand.vmem [shape: f32[1,64], index: 9, kind: input, shape index: {}]
  %s10 = inlined_call_operand.vmem [shape: f32[12,64,100], index: 10, kind: input, shape index: {}]
  %s11 = inlined_call_operand.vmem [shape: f32[1,100], index: 11, kind: input, shape index: {}]
  %s12 = inlined_call_operand.vmem [shape: f32[1,100], index: 12, kind: input, shape index: {}]
  %s13 = inlined_call_operand.vmem [shape: f32[1,100], index: 13, kind: input, shape index: {}]
  %s14 = inlined_call_operand.vmem [shape: f32[100,30], index: 14, kind: input, shape index: {}]
  %s15 = inlined_call_operand.vmem [shape: f32[1,30], index: 15, kind: input, shape index: {}]
  %s16 = inlined_call_operand.vmem [shape: f32[1,30], index: 16, kind: input, shape index: {}]
  %s17 = inlined_call_operand.vmem [shape: f32[1,30], index: 17, kind: input, shape index: {}]
  %s18 = inlined_call_operand.vmem [shape: f32[30,1], index: 18, kind: input, shape index: {}]
  %s19 = inlined_call_operand.<no memory space> [shape: f32[1,1], index: 19, kind: input, shape index: {}]
  %s20 = inlined_call_operand.vmem [shape: f32[4,1], index: 20, kind: output, shape index: {}]
  %s21 = sld [smem:[#allocation0]]
  $region90: #{mfe_forward.1} parent=0
    _
  %s23 = ssub.s32 1, %s21
  %s24 = scalar_select 0, %s23, %s21
  %v25 = vstv %s19
  %26 = vst [vmem:[#allocation5] sm:$0x1] %v25
  // Predicated region
  $region2: #{mfe_forward.1} parent=0 // pred_check
    _
  $region3: #{mfe_forward.1} parent=0 // pred_check_branch
    %28 = sbr.rel (0) target = $region5
  $region4: #{mfe_forward.1} parent=0 // pred_region
    _
  $region5: #{mfe_forward.1} parent=0 // pred_fallthru
    _
  // Predicated region
  $region6: #{mfe_forward.1} parent=0 // pred_check
    _
  $region7: #{mfe_forward.1} parent=0 // pred_check_branch
    %30 = sbr.rel (0) target = $region9
  $region8: #{mfe_forward.1} parent=0 // pred_region
    _
  $region9: #{mfe_forward.1} parent=0 // pred_fallthru
    _
  // Predicated region
  $region10: #{mfe_forward.1} parent=0 // pred_check
    _
  $region11: #{mfe_forward.1} parent=0 // pred_check_branch
    %32 = sbr.rel (0) target = $region13
  $region12: #{mfe_forward.1} parent=0 // pred_region
    _
  $region13: #{mfe_forward.1} parent=0 // pred_fallthru
    _
  // Predicated region
  $region14: #{mfe_forward.1} parent=0 // pred_check
    _
  $region15: #{mfe_forward.1} parent=0 // pred_check_branch
    %34 = sbr.rel (0) target = $region17
  $region16: #{mfe_forward.1} parent=0 // pred_region
    _
  $region17: #{mfe_forward.1} parent=0 // pred_fallthru
    _
  // Predicated region
  $region18: #{mfe_forward.1} parent=0 // pred_check
    _
  $region19: #{mfe_forward.1} parent=0 // pred_check_branch
    %36 = sbr.rel (0) target = $region21
  $region20: #{mfe_forward.1} parent=0 // pred_region
    _
  $region21: #{mfe_forward.1} parent=0 // pred_fallthru
    _
  // Predicated region
  $region22: #{mfe_forward.1} parent=0 // pred_check
    _
  $region23: #{mfe_forward.1} parent=0 // pred_check_branch
    %38 = sbr.rel (0) target = $region25
  $region24: #{mfe_forward.1} parent=0 // pred_region
    _
  $region25: #{mfe_forward.1} parent=0 // pred_fallthru
    _
  // Predicated region
  $region26: #{mfe_forward.1} parent=0 // pred_check
    _
  $region27: #{mfe_forward.1} parent=0 // pred_check_branch
    %40 = sbr.rel (0) target = $region29
  $region28: #{mfe_forward.1} parent=0 // pred_region
    _
  $region29: #{mfe_forward.1} parent=0 // pred_fallthru
    _
  // Predicated region
  $region30: #{mfe_forward.1} parent=0 // pred_check
    _
  $region31: #{mfe_forward.1} parent=0 // pred_check_branch
    %42 = sbr.rel (0) target = $region33
  $region32: #{mfe_forward.1} parent=0 // pred_region
    _
  $region33: #{mfe_forward.1} parent=0 // pred_fallthru
    _
  // Predicated region
  $region34: #{mfe_forward.1} parent=0 // pred_check
    _
  $region35: #{mfe_forward.1} parent=0 // pred_check_branch
    %44 = sbr.rel (0) target = $region37
  $region36: #{mfe_forward.1} parent=0 // pred_region
    _
  $region37: #{mfe_forward.1} parent=0 // pred_fallthru
    _
  // Predicated region
  $region38: #{mfe_forward.1} parent=0 // pred_check
    _
  $region39: #{mfe_forward.1} parent=0 // pred_check_branch
    %46 = sbr.rel (0) target = $region41
  $region40: #{mfe_forward.1} parent=0 // pred_region
    _
  $region41: #{mfe_forward.1} parent=0 // pred_fallthru
    _
  // Predicated region
  $region42: #{mfe_forward.1} parent=0 // pred_check
    _
  $region43: #{mfe_forward.1} parent=0 // pred_check_branch
    %48 = sbr.rel (0) target = $region45
  $region44: #{mfe_forward.1} parent=0 // pred_region
    _
  $region45: #{mfe_forward.1} parent=0 // pred_fallthru
    _
  // Predicated region
  $region46: #{mfe_forward.1} parent=0 // pred_check
    _
  $region47: #{mfe_forward.1} parent=0 // pred_check_branch
    %50 = sbr.rel (0) target = $region49
  $region48: #{mfe_forward.1} parent=0 // pred_region
    _
  $region49: #{mfe_forward.1} parent=0 // pred_fallthru
    _
  // Predicated region
  $region50: #{mfe_forward.1} parent=0 // pred_check
    _
  $region51: #{mfe_forward.1} parent=0 // pred_check_branch
    %52 = sbr.rel (0) target = $region53
  $region52: #{mfe_forward.1} parent=0 // pred_region
    _
  $region53: #{mfe_forward.1} parent=0 // pred_fallthru
    _
  // Predicated region
  $region54: #{mfe_forward.1} parent=0 // pred_check
    _
  $region55: #{mfe_forward.1} parent=0 // pred_check_branch
    %54 = sbr.rel (0) target = $region57
  $region56: #{mfe_forward.1} parent=0 // pred_region
    _
  $region57: #{mfe_forward.1} parent=0 // pred_fallthru
    _
  // Predicated region
  $region58: #{mfe_forward.1} parent=0 // pred_check
    _
  $region59: #{mfe_forward.1} parent=0 // pred_check_branch
    %56 = sbr.rel (0) target = $region61
  $region60: #{mfe_forward.1} parent=0 // pred_region
    _
  $region61: #{mfe_forward.1} parent=0 // pred_fallthru
    _
  // Predicated region
  $region62: #{mfe_forward.1} parent=0 // pred_check
    _
  $region63: #{mfe_forward.1} parent=0 // pred_check_branch
    %58 = sbr.rel (0) target = $region65
  $region64: #{mfe_forward.1} parent=0 // pred_region
    _
  $region65: #{mfe_forward.1} parent=0 // pred_fallthru
    _
  // Predicated region
  $region66: #{mfe_forward.1} parent=0 // pred_check
    _
  $region67: #{mfe_forward.1} parent=0 // pred_check_branch
    %60 = sbr.rel (0) target = $region69
  $region68: #{mfe_forward.1} parent=0 // pred_region
    _
  $region69: #{mfe_forward.1} parent=0 // pred_fallthru
    _
  // Predicated region
  $region70: #{mfe_forward.1} parent=0 // pred_check
    _
  $region71: #{mfe_forward.1} parent=0 // pred_check_branch
    %62 = sbr.rel (0) target = $region73
  $region72: #{mfe_forward.1} parent=0 // pred_region
    _
  $region73: #{mfe_forward.1} parent=0 // pred_fallthru
    _
  // Predicated region
  $region74: #{mfe_forward.1} parent=0 // pred_check
    _
  $region75: #{mfe_forward.1} parent=0 // pred_check_branch
    %64 = sbr.rel (0) target = $region77
  $region76: #{mfe_forward.1} parent=0 // pred_region
    _
  $region77: #{mfe_forward.1} parent=0 // pred_fallthru
    _
  // Predicated region
  $region78: #{mfe_forward.1} parent=0 // pred_check
    _
  $region79: #{mfe_forward.1} parent=0 // pred_check_branch
    %66 = sbr.rel (0) target = $region81
  $region80: #{mfe_forward.1} parent=0 // pred_region
    _
  $region81: #{mfe_forward.1} parent=0 // pred_fallthru
    _
  %67 = vst [vmem:[#allocation2 + $0x10] sm:$0xff] 0.0
  %vm68 = vcmask 523264
  %69 = vst.msk [vmem:[#allocation2 + $0x18] sm:$0xff] %vm68, 0.0
  %70 = vst [vmem:[#allocation2 + $0x70] sm:$0xff] 0.0
  %71 = vst.msk [vmem:[#allocation2 + $0x78] sm:$0xff] %vm68, 0.0
  %72 = vst [vmem:[#allocation3 + $0x10] sm:$0xff] 0.0
  %73 = vst.msk [vmem:[#allocation3 + $0x18] sm:$0xff] %vm68, 0.0
  %74 = vst [vmem:[#allocation2 + $0x80] sm:$0xff] 0.0
  %75 = vst.msk [vmem:[#allocation2 + $0x88] sm:$0xff] %vm68, 0.0
  %76 = vst [vmem:[#allocation2 + $0xe0] sm:$0xff] 0.0
  %77 = vst.msk [vmem:[#allocation2 + $0xe8] sm:$0xff] %vm68, 0.0
  %78 = vst [vmem:[#allocation3 + $0x50] sm:$0xff] 0.0
  %79 = vst.msk [vmem:[#allocation3 + $0x58] sm:$0xff] %vm68, 0.0
  %80 = vst [vmem:[#allocation2 + $0xf0] sm:$0xff] 0.0
  %81 = vst.msk [vmem:[#allocation2 + $0xf8] sm:$0xff] %vm68, 0.0
  %82 = vst [vmem:[#allocation2 + $0x150] sm:$0xff] 0.0
  %83 = vst.msk [vmem:[#allocation2 + $0x158] sm:$0xff] %vm68, 0.0
  %84 = vst [vmem:[#allocation3 + $0x90] sm:$0xff] 0.0
  %85 = vst.msk [vmem:[#allocation3 + $0x98] sm:$0xff] %vm68, 0.0
  %86 = vst [vmem:[#allocation2 + $0x160] sm:$0xff] 0.0
  %87 = vst.msk [vmem:[#allocation2 + $0x168] sm:$0xff] %vm68, 0.0
  %88 = vst [vmem:[#allocation2 + $0x1c0] sm:$0xff] 0.0
  %89 = vst.msk [vmem:[#allocation2 + $0x1c8] sm:$0xff] %vm68, 0.0
  %90 = vst [vmem:[#allocation3 + $0xd0] sm:$0xff] 0.0
  %91 = vst.msk [vmem:[#allocation3 + $0xd8] sm:$0xff] %vm68, 0.0
  %v92 = vld [vmem:[%s0] sm:$0xff]
  %v93 = vld [vmem:[%s0 + $0x8] sm:$0xff]
  %v94 = vld [vmem:[%s0 + $0x10] sm:$0xff]
  %v95 = vld [vmem:[%s0 + $0x18] sm:$0xff]
  %v96 = vld [vmem:[%s0 + $0x20] sm:$0xff]
  %v97 = vld [vmem:[%s0 + $0x28] sm:$0xff]
  %v98 = vld [vmem:[%s0 + $0x30] sm:$0xff]
  %v99 = vld [vmem:[%s0 + $0x38] sm:$0xff]
  %v100 = vld [vmem:[%s0 + $0x40] sm:$0xff]
  %v101 = vld [vmem:[%s0 + $0x48] sm:$0xff]
  %v102 = vld [vmem:[%s0 + $0x50] sm:$0xff]
  %v103 = vld [vmem:[%s0 + $0x58] sm:$0xff]
  %v104 = vld [vmem:[%s0 + $0x60] sm:$0xff]
  %v105 = vld [vmem:[%s0 + $0x68] sm:$0xff]
  %v106 = vld [vmem:[%s0 + $0x70] sm:$0xff]
  %v107 = vld [vmem:[%s0 + $0x78] sm:$0xff]
  %v108 = vld [vmem:[%s0 + $0x80] sm:$0xff]
  %v109 = vld [vmem:[%s0 + $0x88] sm:$0xff]
  %v110 = vld [vmem:[%s0 + $0x90] sm:$0xff]
  %v111 = vld [vmem:[%s0 + $0x98] sm:$0xff]
  %v112 = vld [vmem:[%s0 + $0xa0] sm:$0xff]
  %v113 = vld [vmem:[%s0 + $0xa8] sm:$0xff]
  %v114 = vld [vmem:[%s0 + $0xb0] sm:$0xff]
  %v115 = vld [vmem:[%s0 + $0xb8] sm:$0xff]
  %v116 = vld [vmem:[%s0 + $0xc0] sm:$0xff]
  %v117 = vld [vmem:[%s0 + $0xc8] sm:$0xff]
  %v118 = vld [vmem:[%s0 + $0xd0] sm:$0xff]
  %v119 = vld [vmem:[%s0 + $0xd8] sm:$0xff]
  %v120 = vld [vmem:[%s0 + $0xe0] sm:$0xff]
  %v121 = vld [vmem:[%s0 + $0xe8] sm:$0xff]
  %v122 = vld [vmem:[%s0 + $0xf0] sm:$0xff]
  %v123 = vld [vmem:[%s0 + $0xf8] sm:$0xff]
  %v124 = vld [vmem:[%s0 + $0x100] sm:$0xff]
  %v125 = vld [vmem:[%s0 + $0x108] sm:$0xff]
  %v126 = vld [vmem:[%s0 + $0x110] sm:$0xff]
  %v127 = vld [vmem:[%s0 + $0x118] sm:$0xff]
  %v128 = vld [vmem:[%s0 + $0x120] sm:$0xff]
  %v129 = vld [vmem:[%s0 + $0x128] sm:$0xff]
  %v130 = vld [vmem:[%s0 + $0x130] sm:$0xff]
  %v131 = vld [vmem:[%s0 + $0x138] sm:$0xff]
  %v132 = vld [vmem:[%s0 + $0x140] sm:$0xff]
  %v133 = vld [vmem:[%s0 + $0x148] sm:$0xff]
  %v134 = vld [vmem:[%s0 + $0x150] sm:$0xff]
  %v135 = vld [vmem:[%s0 + $0x158] sm:$0xff]
  %v136 = vld [vmem:[%s0 + $0x160] sm:$0xff]
  %v137 = vld [vmem:[%s0 + $0x168] sm:$0xff]
  %v138 = vld [vmem:[%s0 + $0x170] sm:$0xff]
  %v139 = vld [vmem:[%s0 + $0x178] sm:$0xff]
  %v140 = vld [vmem:[%s0 + $0x180] sm:$0xff]
  %v141 = vld [vmem:[%s0 + $0x188] sm:$0xff]
  %v142 = vld [vmem:[%s0 + $0x190] sm:$0xff]
  %v143 = vld [vmem:[%s0 + $0x198] sm:$0xff]
  %v144 = vld [vmem:[%s1] sm:$0xff]
  %v145 = vld [vmem:[%s1 + $0x8] sm:$0x7f]
  %vm146 = vcmask 121856
  %v148 = vsel %vm146, %v92, 0
  %v151 = vsel %vm146, %v93, 0
  %v154 = vsel %vm146, %v94, 0
  %v157 = vsel %vm146, %v95, 0
  %v160 = vsel %vm146, %v96, 0
  %v163 = vsel %vm146, %v97, 0
  %v166 = vsel %vm146, %v98, 0
  %v169 = vsel %vm146, %v99, 0
  %v172 = vsel %vm146, %v100, 0
  %v175 = vsel %vm146, %v101, 0
  %v178 = vsel %vm146, %v102, 0
  %v181 = vsel %vm146, %v103, 0
  %v184 = vsel %vm146, %v104, 0
  %v187 = vsel %vm146, %v105, 0
  %v190 = vsel %vm146, %v106, 0
  %v193 = vsel %vm146, %v107, 0
  %v196 = vsel %vm146, %v108, 0
  %v199 = vsel %vm146, %v109, 0
  %v202 = vsel %vm146, %v110, 0
  %v205 = vsel %vm146, %v111, 0
  %v208 = vsel %vm146, %v112, 0
  %v211 = vsel %vm146, %v113, 0
  %v214 = vsel %vm146, %v114, 0
  %v217 = vsel %vm146, %v115, 0
  %v220 = vsel %vm146, %v116, 0
  %v223 = vsel %vm146, %v117, 0
  %v226 = vsel %vm146, %v118, 0
  %v229 = vsel %vm146, %v119, 0
  %v232 = vsel %vm146, %v120, 0
  %v235 = vsel %vm146, %v121, 0
  %v238 = vsel %vm146, %v122, 0
  %v241 = vsel %vm146, %v123, 0
  %v244 = vsel %vm146, %v124, 0
  %v247 = vsel %vm146, %v125, 0
  %v250 = vsel %vm146, %v126, 0
  %v253 = vsel %vm146, %v127, 0
  %v256 = vsel %vm146, %v128, 0
  %v259 = vsel %vm146, %v129, 0
  %v262 = vsel %vm146, %v130, 0
  %v265 = vsel %vm146, %v131, 0
  %v268 = vsel %vm146, %v132, 0
  %v271 = vsel %vm146, %v133, 0
  %v274 = vsel %vm146, %v134, 0
  %v277 = vsel %vm146, %v135, 0
  %v280 = vsel %vm146, %v136, 0
  %v283 = vsel %vm146, %v137, 0
  %v286 = vsel %vm146, %v138, 0
  %v289 = vsel %vm146, %v139, 0
  %v292 = vsel %vm146, %v140, 0
  %v295 = vsel %vm146, %v141, 0
  %v298 = vsel %vm146, %v142, 0
  %v301 = vsel %vm146, %v143, 0
  %vm303 = vcmask 1046528
  %v305 = vsel %vm303, %v145, 0
  %307 = vmatprep.subr.mxu0 0.0
  %308 = vmatpush1.msra.mxu0 %v144
  %309 = vmatprep.subr.mxu0 0.0
  %310 = vmatpush1.msra.mxu0 %v305
  %311 = vmatprep.subr.mxu0 0.0
  %312 = vmatpush1.msra.mxu0 0.0
  %313 = vmatprep.subr.mxu0 0.0
  %314 = vmatpush1.msra.mxu0 0.0
  %315 = vmatprep.subr.mxu0 0.0
  %316 = vmatpush1.msra.mxu0 0.0
  %317 = vmatprep.subr.mxu0 0.0
  %318 = vmatpush1.msra.mxu0 0.0
  %319 = vmatprep.subr.mxu0 0.0
  %320 = vmatpush1.msra.mxu0 0.0
  %321 = vmatprep.subr.mxu0 0.0
  %322 = vmatpush1.msra.mxu0 0.0
  %323 = vmatprep.subr.mxu0 0.0
  %324 = vmatpush1.msra.mxu0 0.0
  %325 = vmatprep.subr.mxu0 0.0
  %326 = vmatpush1.msra.mxu0 0.0
  %327 = vmatprep.subr.mxu0 0.0
  %328 = vmatpush1.msra.mxu0 0.0
  %329 = vmatprep.subr.mxu0 0.0
  %330 = vmatpush1.msra.mxu0 0.0
  %331 = vmatprep.subr.mxu0 0.0
  %332 = vmatpush1.msra.mxu0 0.0
  %333 = vmatprep.subr.mxu0 0.0
  %334 = vmatpush1.msra.mxu0 0.0
  %335 = vmatprep.subr.mxu0 0.0
  %336 = vmatpush1.msra.mxu0 0.0
  %337 = vmatprep.subr.mxu0 0.0
  %338 = vmatpush1.msra.mxu0 0.0
  %339 = vmatprep.subr.mxu0 0.0
  %340 = vmatpush1.msra.mxu0 0.0
  %341 = vmatprep.subr.mxu0 0.0
  %342 = vmatpush1.msra.mxu0 0.0
  %343 = vmatprep.subr.mxu0 0.0
  %344 = vmatpush1.msra.mxu0 0.0
  %345 = vmatprep.subr.mxu0 0.0
  %346 = vmatpush1.msra.mxu0 0.0
  %347 = vmatprep.subr.mxu0 0.0
  %348 = vmatpush1.msra.mxu0 0.0
  %349 = vmatprep.subr.mxu0 0.0
  %350 = vmatpush1.msra.mxu0 0.0
  %351 = vmatprep.subr.mxu0 0.0
  %352 = vmatpush1.msra.mxu0 0.0
  %353 = vmatprep.subr.mxu0 0.0
  %354 = vmatpush1.msra.mxu0 0.0
  %355 = vmatprep.subr.mxu0 0.0
  %356 = vmatpush1.msra.mxu0 0.0
  %357 = vmatprep.subr.mxu0 0.0
  %358 = vmatpush1.msra.mxu0 0.0
  %359 = vmatprep.subr.mxu0 0.0
  %360 = vmatpush1.msra.mxu0 0.0
  %361 = vmatprep.subr.mxu0 0.0
  %362 = vmatpush1.msra.mxu0 0.0
  %363 = vmatprep.subr.mxu0 0.0
  %364 = vmatpush1.msra.mxu0 0.0
  %365 = vmatprep.subr.mxu0 0.0
  %366 = vmatpush1.msra.mxu0 0.0
  %367 = vmatprep.subr.mxu0 0.0
  %368 = vmatpush1.msra.mxu0 0.0
  %369 = vmatprep.subr.mxu0 0.0
  %370 = vmatpush1.msra.mxu0 0.0
  %371 = vmatprep.mubr.f32.mxu0 0.0
  %372 = vmatmul.mubr.f32.gmra.mrb[0].mxu0 %v148
  %v373 = vpop.f32.mrb[0].mxu0
  %v374 = vadd.f32 0.0, %v373
  %v375 = vpop.f32.mrb[0].mxu0
  %376 = vmatprep.mubr.f32.mxu0 0.0
  %377 = vmatmul.mubr.f32.gmra.mrb[0].mxu0 %v151
  %v378 = vpop.f32.mrb[0].mxu0
  %v379 = vadd.f32 0.0, %v378
  %v380 = vpop.f32.mrb[0].mxu0
  %381 = vmatprep.mubr.f32.mxu0 0.0
  %382 = vmatmul.mubr.f32.gmra.mrb[0].mxu0 %v154
  %v383 = vpop.f32.mrb[0].mxu0
  %v384 = vadd.f32 0.0, %v383
  %v385 = vpop.f32.mrb[0].mxu0
  %386 = vmatprep.mubr.f32.mxu0 0.0
  %387 = vmatmul.mubr.f32.gmra.mrb[0].mxu0 %v157
  %v388 = vpop.f32.mrb[0].mxu0
  %v389 = vadd.f32 0.0, %v388
  %v390 = vpop.f32.mrb[0].mxu0
  %391 = vmatprep.mubr.f32.mxu0 0.0
  %392 = vmatmul.mubr.f32.gmra.mrb[0].mxu0 %v160
  %v393 = vpop.f32.mrb[0].mxu0
  %v394 = vadd.f32 0.0, %v393
  %v395 = vpop.f32.mrb[0].mxu0
  %396 = vmatprep.mubr.f32.mxu0 0.0
  %397 = vmatmul.mubr.f32.gmra.mrb[0].mxu0 %v163
  %v398 = vpop.f32.mrb[0].mxu0
  %v399 = vadd.f32 0.0, %v398
  %v400 = vpop.f32.mrb[0].mxu0
  %401 = vmatprep.mubr.f32.mxu0 0.0
  %402 = vmatmul.mubr.f32.gmra.mrb[0].mxu0 %v166
  %v403 = vpop.f32.mrb[0].mxu0
  %v404 = vadd.f32 0.0, %v403
  %v405 = vpop.f32.mrb[0].mxu0
  %406 = vmatprep.mubr.f32.mxu0 0.0
  %407 = vmatmul.mubr.f32.gmra.mrb[0].mxu0 %v169
  %v408 = vpop.f32.mrb[0].mxu0
  %v409 = vadd.f32 0.0, %v408
  %v410 = vpop.f32.mrb[0].mxu0
  %411 = vmatprep.mubr.f32.mxu0 0.0
  %412 = vmatmul.mubr.f32.gmra.mrb[0].mxu0 %v172
  %v413 = vpop.f32.mrb[0].mxu0
  %v414 = vadd.f32 0.0, %v413
  %v415 = vpop.f32.mrb[0].mxu0
  %416 = vmatprep.mubr.f32.mxu0 0.0
  %417 = vmatmul.mubr.f32.gmra.mrb[0].mxu0 %v175
  %v418 = vpop.f32.mrb[0].mxu0
  %v419 = vadd.f32 0.0, %v418
  %v420 = vpop.f32.mrb[0].mxu0
  %421 = vmatprep.mubr.f32.mxu0 0.0
  %422 = vmatmul.mubr.f32.gmra.mrb[0].mxu0 %v178
  %v423 = vpop.f32.mrb[0].mxu0
  %v424 = vadd.f32 0.0, %v423
  %v425 = vpop.f32.mrb[0].mxu0
  %426 = vmatprep.mubr.f32.mxu0 0.0
  %427 = vmatmul.mubr.f32.gmra.mrb[0].mxu0 %v181
  %v428 = vpop.f32.mrb[0].mxu0
  %v429 = vadd.f32 0.0, %v428
  %v430 = vpop.f32.mrb[0].mxu0
  %431 = vmatprep.mubr.f32.mxu0 0.0
  %432 = vmatmul.mubr.f32.gmra.mrb[0].mxu0 %v184
  %v433 = vpop.f32.mrb[0].mxu0
  %v434 = vadd.f32 0.0, %v433
  %v435 = vpop.f32.mrb[0].mxu0
  %436 = vmatprep.mubr.f32.mxu0 0.0
  %437 = vmatmul.mubr.f32.gmra.mrb[0].mxu0 %v187
  %v438 = vpop.f32.mrb[0].mxu0
  %v439 = vadd.f32 0.0, %v438
  %v440 = vpop.f32.mrb[0].mxu0
  %441 = vmatprep.mubr.f32.mxu0 0.0
  %442 = vmatmul.mubr.f32.gmra.mrb[0].mxu0 %v190
  %v443 = vpop.f32.mrb[0].mxu0
  %v444 = vadd.f32 0.0, %v443
  %v445 = vpop.f32.mrb[0].mxu0
  %446 = vmatprep.mubr.f32.mxu0 0.0
  %447 = vmatmul.mubr.f32.gmra.mrb[0].mxu0 %v193
  %v448 = vpop.f32.mrb[0].mxu0
  %v449 = vadd.f32 0.0, %v448
  %v450 = vpop.f32.mrb[0].mxu0
  %451 = vmatprep.mubr.f32.mxu0 0.0
  %452 = vmatmul.mubr.f32.gmra.mrb[0].mxu0 %v196
  %v453 = vpop.f32.mrb[0].mxu0
  %v454 = vadd.f32 0.0, %v453
  %v455 = vpop.f32.mrb[0].mxu0
  %456 = vmatprep.mubr.f32.mxu0 0.0
  %457 = vmatmul.mubr.f32.gmra.mrb[0].mxu0 %v199
  %v458 = vpop.f32.mrb[0].mxu0
  %v459 = vadd.f32 0.0, %v458
  %v460 = vpop.f32.mrb[0].mxu0
  %461 = vmatprep.mubr.f32.mxu0 0.0
  %462 = vmatmul.mubr.f32.gmra.mrb[0].mxu0 %v202
  %v463 = vpop.f32.mrb[0].mxu0
  %v464 = vadd.f32 0.0, %v463
  %v465 = vpop.f32.mrb[0].mxu0
  %466 = vmatprep.mubr.f32.mxu0 0.0
  %467 = vmatmul.mubr.f32.gmra.mrb[0].mxu0 %v205
  %v468 = vpop.f32.mrb[0].mxu0
  %v469 = vadd.f32 0.0, %v468
  %v470 = vpop.f32.mrb[0].mxu0
  %471 = vmatprep.mubr.f32.mxu0 0.0
  %472 = vmatmul.mubr.f32.gmra.mrb[0].mxu0 %v208
  %v473 = vpop.f32.mrb[0].mxu0
  %v474 = vadd.f32 0.0, %v473
  %v475 = vpop.f32.mrb[0].mxu0
  %476 = vmatprep.mubr.f32.mxu0 0.0
  %477 = vmatmul.mubr.f32.gmra.mrb[0].mxu0 %v211
  %v478 = vpop.f32.mrb[0].mxu0
  %v479 = vadd.f32 0.0, %v478
  %v480 = vpop.f32.mrb[0].mxu0
  %481 = vmatprep.mubr.f32.mxu0 0.0
  %482 = vmatmul.mubr.f32.gmra.mrb[0].mxu0 %v214
  %v483 = vpop.f32.mrb[0].mxu0
  %v484 = vadd.f32 0.0, %v483
  %v485 = vpop.f32.mrb[0].mxu0
  %486 = vmatprep.mubr.f32.mxu0 0.0
  %487 = vmatmul.mubr.f32.gmra.mrb[0].mxu0 %v217
  %v488 = vpop.f32.mrb[0].mxu0
  %v489 = vadd.f32 0.0, %v488
  %v490 = vpop.f32.mrb[0].mxu0
  %491 = vmatprep.mubr.f32.mxu0 0.0
  %492 = vmatmul.mubr.f32.gmra.mrb[0].mxu0 %v220
  %v493 = vpop.f32.mrb[0].mxu0
  %v494 = vadd.f32 0.0, %v493
  %v495 = vpop.f32.mrb[0].mxu0
  %496 = vmatprep.mubr.f32.mxu0 0.0
  %497 = vmatmul.mubr.f32.gmra.mrb[0].mxu0 %v223
  %v498 = vpop.f32.mrb[0].mxu0
  %v499 = vadd.f32 0.0, %v498
  %v500 = vpop.f32.mrb[0].mxu0
  %501 = vmatprep.mubr.f32.mxu0 0.0
  %502 = vmatmul.mubr.f32.gmra.mrb[0].mxu0 %v226
  %v503 = vpop.f32.mrb[0].mxu0
  %v504 = vadd.f32 0.0, %v503
  %v505 = vpop.f32.mrb[0].mxu0
  %506 = vmatprep.mubr.f32.mxu0 0.0
  %507 = vmatmul.mubr.f32.gmra.mrb[0].mxu0 %v229
  %v508 = vpop.f32.mrb[0].mxu0
  %v509 = vadd.f32 0.0, %v508
  %v510 = vpop.f32.mrb[0].mxu0
  %511 = vmatprep.mubr.f32.mxu0 0.0
  %512 = vmatmul.mubr.f32.gmra.mrb[0].mxu0 %v232
  %v513 = vpop.f32.mrb[0].mxu0
  %v514 = vadd.f32 0.0, %v513
  %v515 = vpop.f32.mrb[0].mxu0
  %516 = vmatprep.mubr.f32.mxu0 0.0
  %517 = vmatmul.mubr.f32.gmra.mrb[0].mxu0 %v235
  %v518 = vpop.f32.mrb[0].mxu0
  %v519 = vadd.f32 0.0, %v518
  %v520 = vpop.f32.mrb[0].mxu0
  %521 = vmatprep.mubr.f32.mxu0 0.0
  %522 = vmatmul.mubr.f32.gmra.mrb[0].mxu0 %v238
  %v523 = vpop.f32.mrb[0].mxu0
  %v524 = vadd.f32 0.0, %v523
  %v525 = vpop.f32.mrb[0].mxu0
  %526 = vmatprep.mubr.f32.mxu0 0.0
  %527 = vmatmul.mubr.f32.gmra.mrb[0].mxu0 %v241
  %v528 = vpop.f32.mrb[0].mxu0
  %v529 = vadd.f32 0.0, %v528
  %v530 = vpop.f32.mrb[0].mxu0
  %531 = vmatprep.mubr.f32.mxu0 0.0
  %532 = vmatmul.mubr.f32.gmra.mrb[0].mxu0 %v244
  %v533 = vpop.f32.mrb[0].mxu0
  %v534 = vadd.f32 0.0, %v533
  %v535 = vpop.f32.mrb[0].mxu0
  %536 = vmatprep.mubr.f32.mxu0 0.0
  %537 = vmatmul.mubr.f32.gmra.mrb[0].mxu0 %v247
  %v538 = vpop.f32.mrb[0].mxu0
  %v539 = vadd.f32 0.0, %v538
  %v540 = vpop.f32.mrb[0].mxu0
  %541 = vmatprep.mubr.f32.mxu0 0.0
  %542 = vmatmul.mubr.f32.gmra.mrb[0].mxu0 %v250
  %v543 = vpop.f32.mrb[0].mxu0
  %v544 = vadd.f32 0.0, %v543
  %v545 = vpop.f32.mrb[0].mxu0
  %546 = vmatprep.mubr.f32.mxu0 0.0
  %547 = vmatmul.mubr.f32.gmra.mrb[0].mxu0 %v253
  %v548 = vpop.f32.mrb[0].mxu0
  %v549 = vadd.f32 0.0, %v548
  %v550 = vpop.f32.mrb[0].mxu0
  %551 = vmatprep.mubr.f32.mxu0 0.0
  %552 = vmatmul.mubr.f32.gmra.mrb[0].mxu0 %v256
  %v553 = vpop.f32.mrb[0].mxu0
  %v554 = vadd.f32 0.0, %v553
  %v555 = vpop.f32.mrb[0].mxu0
  %556 = vmatprep.mubr.f32.mxu0 0.0
  %557 = vmatmul.mubr.f32.gmra.mrb[0].mxu0 %v259
  %v558 = vpop.f32.mrb[0].mxu0
  %v559 = vadd.f32 0.0, %v558
  %v560 = vpop.f32.mrb[0].mxu0
  %561 = vmatprep.mubr.f32.mxu0 0.0
  %562 = vmatmul.mubr.f32.gmra.mrb[0].mxu0 %v262
  %v563 = vpop.f32.mrb[0].mxu0
  %v564 = vadd.f32 0.0, %v563
  %v565 = vpop.f32.mrb[0].mxu0
  %566 = vmatprep.mubr.f32.mxu0 0.0
  %567 = vmatmul.mubr.f32.gmra.mrb[0].mxu0 %v265
  %v568 = vpop.f32.mrb[0].mxu0
  %v569 = vadd.f32 0.0, %v568
  %v570 = vpop.f32.mrb[0].mxu0
  %571 = vmatprep.mubr.f32.mxu0 0.0
  %572 = vmatmul.mubr.f32.gmra.mrb[0].mxu0 %v268
  %v573 = vpop.f32.mrb[0].mxu0
  %v574 = vadd.f32 0.0, %v573
  %v575 = vpop.f32.mrb[0].mxu0
  %576 = vmatprep.mubr.f32.mxu0 0.0
  %577 = vmatmul.mubr.f32.gmra.mrb[0].mxu0 %v271
  %v578 = vpop.f32.mrb[0].mxu0
  %v579 = vadd.f32 0.0, %v578
  %v580 = vpop.f32.mrb[0].mxu0
  %581 = vmatprep.mubr.f32.mxu0 0.0
  %582 = vmatmul.mubr.f32.gmra.mrb[0].mxu0 %v274
  %v583 = vpop.f32.mrb[0].mxu0
  %v584 = vadd.f32 0.0, %v583
  %v585 = vpop.f32.mrb[0].mxu0
  %586 = vmatprep.mubr.f32.mxu0 0.0
  %587 = vmatmul.mubr.f32.gmra.mrb[0].mxu0 %v277
  %v588 = vpop.f32.mrb[0].mxu0
  %v589 = vadd.f32 0.0, %v588
  %v590 = vpop.f32.mrb[0].mxu0
  %591 = vmatprep.mubr.f32.mxu0 0.0
  %592 = vmatmul.mubr.f32.gmra.mrb[0].mxu0 %v280
  %v593 = vpop.f32.mrb[0].mxu0
  %v594 = vadd.f32 0.0, %v593
  %v595 = vpop.f32.mrb[0].mxu0
  %596 = vmatprep.mubr.f32.mxu0 0.0
  %597 = vmatmul.mubr.f32.gmra.mrb[0].mxu0 %v283
  %v598 = vpop.f32.mrb[0].mxu0
  %v599 = vadd.f32 0.0, %v598
  %v600 = vpop.f32.mrb[0].mxu0
  %601 = vmatprep.mubr.f32.mxu0 0.0
  %602 = vmatmul.mubr.f32.gmra.mrb[0].mxu0 %v286
  %v603 = vpop.f32.mrb[0].mxu0
  %v604 = vadd.f32 0.0, %v603
  %v605 = vpop.f32.mrb[0].mxu0
  %606 = vmatprep.mubr.f32.mxu0 0.0
  %607 = vmatmul.mubr.f32.gmra.mrb[0].mxu0 %v289
  %v608 = vpop.f32.mrb[0].mxu0
  %v609 = vadd.f32 0.0, %v608
  %v610 = vpop.f32.mrb[0].mxu0
  %611 = vmatprep.mubr.f32.mxu0 0.0
  %612 = vmatmul.mubr.f32.gmra.mrb[0].mxu0 %v292
  %v613 = vpop.f32.mrb[0].mxu0
  %v614 = vadd.f32 0.0, %v613
  %v615 = vpop.f32.mrb[0].mxu0
  %616 = vmatprep.mubr.f32.mxu0 0.0
  %617 = vmatmul.mubr.f32.gmra.mrb[0].mxu0 %v295
  %v618 = vpop.f32.mrb[0].mxu0
  %v619 = vadd.f32 0.0, %v618
  %v620 = vpop.f32.mrb[0].mxu0
  %621 = vmatprep.mubr.f32.mxu0 0.0
  %622 = vmatmul.mubr.f32.gmra.mrb[0].mxu0 %v298
  %v623 = vpop.f32.mrb[0].mxu0
  %v624 = vadd.f32 0.0, %v623
  %v625 = vpop.f32.mrb[0].mxu0
  %626 = vmatprep.mubr.f32.mxu0 0.0
  %627 = vmatmul.mubr.f32.gmra.mrb[0].mxu0 %v301
  %v628 = vpop.f32.mrb[0].mxu0
  %v629 = vadd.f32 0.0, %v628
  %v630 = vpop.f32.mrb[0].mxu0
  %631 = vdwg.mxu0
  %v632 = vld [vmem:[%s2] sm:$0x1]
  %v634 = vlaneseq
  %v635 = vshrl.u32 %v634, 7
  %v636 = vsub.s32 0, %v635
  %v637 = vrot.slane %v632, %v636
  %v639 = vmul.f32 %v374, %v637
  %v640 = vmul.f32 %v379, %v637
  %v641 = vmul.f32 %v384, %v637
  %v642 = vmul.f32 %v389, %v637
  %v643 = vmul.f32 %v394, %v637
  %v644 = vmul.f32 %v399, %v637
  %v645 = vmul.f32 %v404, %v637
  %v646 = vmul.f32 %v409, %v637
  %v647 = vmul.f32 %v414, %v637
  %v648 = vmul.f32 %v419, %v637
  %v649 = vmul.f32 %v424, %v637
  %v650 = vmul.f32 %v429, %v637
  %v651 = vmul.f32 %v434, %v637
  %v652 = vmul.f32 %v439, %v637
  %v653 = vmul.f32 %v444, %v637
  %v654 = vmul.f32 %v449, %v637
  %v655 = vmul.f32 %v454, %v637
  %v656 = vmul.f32 %v459, %v637
  %v657 = vmul.f32 %v464, %v637
  %v658 = vmul.f32 %v469, %v637
  %v659 = vmul.f32 %v474, %v637
  %v660 = vmul.f32 %v479, %v637
  %v661 = vmul.f32 %v484, %v637
  %v662 = vmul.f32 %v489, %v637
  %v663 = vmul.f32 %v494, %v637
  %v664 = vmul.f32 %v499, %v637
  %v665 = vmul.f32 %v504, %v637
  %v666 = vmul.f32 %v509, %v637
  %v667 = vmul.f32 %v514, %v637
  %v668 = vmul.f32 %v519, %v637
  %v669 = vmul.f32 %v524, %v637
  %v670 = vmul.f32 %v529, %v637
  %v671 = vmul.f32 %v534, %v637
  %v672 = vmul.f32 %v539, %v637
  %v673 = vmul.f32 %v544, %v637
  %v674 = vmul.f32 %v549, %v637
  %v675 = vmul.f32 %v554, %v637
  %v676 = vmul.f32 %v559, %v637
  %v677 = vmul.f32 %v564, %v637
  %v678 = vmul.f32 %v569, %v637
  %v679 = vmul.f32 %v574, %v637
  %v680 = vmul.f32 %v579, %v637
  %v681 = vmul.f32 %v584, %v637
  %v682 = vmul.f32 %v589, %v637
  %v683 = vmul.f32 %v594, %v637
  %v684 = vmul.f32 %v599, %v637
  %v685 = vmul.f32 %v604, %v637
  %v686 = vmul.f32 %v609, %v637
  %v687 = vmul.f32 %v614, %v637
  %v688 = vmul.f32 %v619, %v637
  %v689 = vmul.f32 %v624, %v637
  %v690 = vmul.f32 %v629, %v637
  %v691 = vld [vmem:[%s3] sm:$0x1]
  %v693 = vlaneseq
  %v694 = vshrl.u32 %v693, 7
  %v695 = vsub.s32 0, %v694
  %v696 = vrot.slane %v691, %v695
  %v698 = vadd.f32 %v639, %v696
  %v699 = vadd.f32 %v640, %v696
  %v700 = vadd.f32 %v641, %v696
  %v701 = vadd.f32 %v642, %v696
  %v702 = vadd.f32 %v643, %v696
  %v703 = vadd.f32 %v644, %v696
  %v704 = vadd.f32 %v645, %v696
  %v705 = vadd.f32 %v646, %v696
  %v706 = vadd.f32 %v647, %v696
  %v707 = vadd.f32 %v648, %v696
  %v708 = vadd.f32 %v649, %v696
  %v709 = vadd.f32 %v650, %v696
  %v710 = vadd.f32 %v651, %v696
  %v711 = vadd.f32 %v652, %v696
  %v712 = vadd.f32 %v653, %v696
  %v713 = vadd.f32 %v654, %v696
  %v714 = vadd.f32 %v655, %v696
  %v715 = vadd.f32 %v656, %v696
  %v716 = vadd.f32 %v657, %v696
  %v717 = vadd.f32 %v658, %v696
  %v718 = vadd.f32 %v659, %v696
  %v719 = vadd.f32 %v660, %v696
  %v720 = vadd.f32 %v661, %v696
  %v721 = vadd.f32 %v662, %v696
  %v722 = vadd.f32 %v663, %v696
  %v723 = vadd.f32 %v664, %v696
  %v724 = vadd.f32 %v665, %v696
  %v725 = vadd.f32 %v666, %v696
  %v726 = vadd.f32 %v667, %v696
  %v727 = vadd.f32 %v668, %v696
  %v728 = vadd.f32 %v669, %v696
  %v729 = vadd.f32 %v670, %v696
  %v730 = vadd.f32 %v671, %v696
  %v731 = vadd.f32 %v672, %v696
  %v732 = vadd.f32 %v673, %v696
  %v733 = vadd.f32 %v674, %v696
  %v734 = vadd.f32 %v675, %v696
  %v735 = vadd.f32 %v676, %v696
  %v736 = vadd.f32 %v677, %v696
  %v737 = vadd.f32 %v678, %v696
  %v738 = vadd.f32 %v679, %v696
  %v739 = vadd.f32 %v680, %v696
  %v740 = vadd.f32 %v681, %v696
  %v741 = vadd.f32 %v682, %v696
  %v742 = vadd.f32 %v683, %v696
  %v743 = vadd.f32 %v684, %v696
  %v744 = vadd.f32 %v685, %v696
  %v745 = vadd.f32 %v686, %v696
  %v746 = vadd.f32 %v687, %v696
  %v747 = vadd.f32 %v688, %v696
  %v748 = vadd.f32 %v689, %v696
  %v749 = vadd.f32 %v690, %v696
  %v750 = vmax.f32 %v698, 0.0
  %v751 = vmax.f32 %v699, 0.0
  %v752 = vmax.f32 %v700, 0.0
  %v753 = vmax.f32 %v701, 0.0
  %v754 = vmax.f32 %v702, 0.0
  %v755 = vmax.f32 %v703, 0.0
  %v756 = vmax.f32 %v704, 0.0
  %v757 = vmax.f32 %v705, 0.0
  %v758 = vmax.f32 %v706, 0.0
  %v759 = vmax.f32 %v707, 0.0
  %v760 = vmax.f32 %v708, 0.0
  %v761 = vmax.f32 %v709, 0.0
  %v762 = vmax.f32 %v710, 0.0
  %v763 = vmax.f32 %v711, 0.0
  %v764 = vmax.f32 %v712, 0.0
  %v765 = vmax.f32 %v713, 0.0
  %v766 = vmax.f32 %v714, 0.0
  %v767 = vmax.f32 %v715, 0.0
  %v768 = vmax.f32 %v716, 0.0
  %v769 = vmax.f32 %v717, 0.0
  %v770 = vmax.f32 %v718, 0.0
  %v771 = vmax.f32 %v719, 0.0
  %v772 = vmax.f32 %v720, 0.0
  %v773 = vmax.f32 %v721, 0.0
  %v774 = vmax.f32 %v722, 0.0
  %v775 = vmax.f32 %v723, 0.0
  %v776 = vmax.f32 %v724, 0.0
  %v777 = vmax.f32 %v725, 0.0
  %v778 = vmax.f32 %v726, 0.0
  %v779 = vmax.f32 %v727, 0.0
  %v780 = vmax.f32 %v728, 0.0
  %v781 = vmax.f32 %v729, 0.0
  %v782 = vmax.f32 %v730, 0.0
  %v783 = vmax.f32 %v731, 0.0
  %v784 = vmax.f32 %v732, 0.0
  %v785 = vmax.f32 %v733, 0.0
  %v786 = vmax.f32 %v734, 0.0
  %v787 = vmax.f32 %v735, 0.0
  %v788 = vmax.f32 %v736, 0.0
  %v789 = vmax.f32 %v737, 0.0
  %v790 = vmax.f32 %v738, 0.0
  %v791 = vmax.f32 %v739, 0.0
  %v792 = vmax.f32 %v740, 0.0
  %v793 = vmax.f32 %v741, 0.0
  %v794 = vmax.f32 %v742, 0.0
  %v795 = vmax.f32 %v743, 0.0
  %v796 = vmax.f32 %v744, 0.0
  %v797 = vmax.f32 %v745, 0.0
  %v798 = vmax.f32 %v746, 0.0
  %v799 = vmax.f32 %v747, 0.0
  %v800 = vmax.f32 %v748, 0.0
  %v801 = vmax.f32 %v749, 0.0
  %v815 = vcombine.high %v750, %v750
  %v817 = vunpack.c.l.s4 1983009808
  %v818 = vunpack.c.0.s8 %v817
  %v819 = vlaneseq
  %v820 = vshrl.u32 %v819, 7
  %v821 = vsub.s32 %v818, %v820
  %v822 = vrot.slane %v750, %v821
  %v824 = vunpack.c.l.s4 1983009808
  %v825 = vunpack.c.0.s8 %v824
  %v826 = vlaneseq
  %v827 = vshrl.u32 %v826, 7
  %v828 = vsub.s32 %v825, %v827
  %v829 = vrot.slane %v815, %v828
  %v830 = vcombine.high %v822, %v822
  %v831 = vcombine.high %v829, %v829
  %v832 = vcombine.high %v751, %v751
  %v834 = vunpack.c.l.s4 1983009808
  %v835 = vunpack.c.0.s8 %v834
  %v836 = vlaneseq
  %v837 = vshrl.u32 %v836, 7
  %v838 = vsub.s32 %v835, %v837
  %v839 = vrot.slane %v751, %v838
  %v841 = vunpack.c.l.s4 1983009808
  %v842 = vunpack.c.0.s8 %v841
  %v843 = vlaneseq
  %v844 = vshrl.u32 %v843, 7
  %v845 = vsub.s32 %v842, %v844
  %v846 = vrot.slane %v832, %v845
  %v847 = vcombine.high %v839, %v839
  %v848 = vcombine.high %v846, %v846
  %v849 = vcombine.high %v752, %v752
  %v851 = vunpack.c.l.s4 1983009808
  %v852 = vunpack.c.0.s8 %v851
  %v853 = vlaneseq
  %v854 = vshrl.u32 %v853, 7
  %v855 = vsub.s32 %v852, %v854
  %v856 = vrot.slane %v752, %v855
  %v858 = vunpack.c.l.s4 1983009808
  %v859 = vunpack.c.0.s8 %v858
  %v860 = vlaneseq
  %v861 = vshrl.u32 %v860, 7
  %v862 = vsub.s32 %v859, %v861
  %v863 = vrot.slane %v849, %v862
  %v864 = vcombine.high %v856, %v856
  %v865 = vcombine.high %v863, %v863
  %v866 = vcombine.high %v753, %v753
  %v868 = vunpack.c.l.s4 1983009808
  %v869 = vunpack.c.0.s8 %v868
  %v870 = vlaneseq
  %v871 = vshrl.u32 %v870, 7
  %v872 = vsub.s32 %v869, %v871
  %v873 = vrot.slane %v753, %v872
  %v875 = vunpack.c.l.s4 1983009808
  %v876 = vunpack.c.0.s8 %v875
  %v877 = vlaneseq
  %v878 = vshrl.u32 %v877, 7
  %v879 = vsub.s32 %v876, %v878
  %v880 = vrot.slane %v866, %v879
  %v881 = vcombine.high %v873, %v873
  %v882 = vcombine.high %v880, %v880
  %v883 = vcombine.high %v754, %v754
  %v885 = vunpack.c.l.s4 1983009808
  %v886 = vunpack.c.0.s8 %v885
  %v887 = vlaneseq
  %v888 = vshrl.u32 %v887, 7
  %v889 = vsub.s32 %v886, %v888
  %v890 = vrot.slane %v754, %v889
  %v892 = vunpack.c.l.s4 1983009808
  %v893 = vunpack.c.0.s8 %v892
  %v894 = vlaneseq
  %v895 = vshrl.u32 %v894, 7
  %v896 = vsub.s32 %v893, %v895
  %v897 = vrot.slane %v883, %v896
  %v898 = vcombine.high %v890, %v890
  %v899 = vcombine.high %v897, %v897
  %v900 = vcombine.high %v755, %v755
  %v902 = vunpack.c.l.s4 1983009808
  %v903 = vunpack.c.0.s8 %v902
  %v904 = vlaneseq
  %v905 = vshrl.u32 %v904, 7
  %v906 = vsub.s32 %v903, %v905
  %v907 = vrot.slane %v755, %v906
  %v909 = vunpack.c.l.s4 1983009808
  %v910 = vunpack.c.0.s8 %v909
  %v911 = vlaneseq
  %v912 = vshrl.u32 %v911, 7
  %v913 = vsub.s32 %v910, %v912
  %v914 = vrot.slane %v900, %v913
  %v915 = vcombine.high %v907, %v907
  %v916 = vcombine.high %v914, %v914
  %v917 = vcombine.high %v756, %v756
  %v919 = vunpack.c.l.s4 1983009808
  %v920 = vunpack.c.0.s8 %v919
  %v921 = vlaneseq
  %v922 = vshrl.u32 %v921, 7
  %v923 = vsub.s32 %v920, %v922
  %v924 = vrot.slane %v756, %v923
  %v926 = vunpack.c.l.s4 1983009808
  %v927 = vunpack.c.0.s8 %v926
  %v928 = vlaneseq
  %v929 = vshrl.u32 %v928, 7
  %v930 = vsub.s32 %v927, %v929
  %v931 = vrot.slane %v917, %v930
  %v932 = vcombine.high %v924, %v924
  %v933 = vcombine.high %v931, %v931
  %v934 = vcombine.high %v757, %v757
  %v936 = vunpack.c.l.s4 1983009808
  %v937 = vunpack.c.0.s8 %v936
  %v938 = vlaneseq
  %v939 = vshrl.u32 %v938, 7
  %v940 = vsub.s32 %v937, %v939
  %v941 = vrot.slane %v757, %v940
  %v943 = vunpack.c.l.s4 1983009808
  %v944 = vunpack.c.0.s8 %v943
  %v945 = vlaneseq
  %v946 = vshrl.u32 %v945, 7
  %v947 = vsub.s32 %v944, %v946
  %v948 = vrot.slane %v934, %v947
  %v949 = vcombine.high %v941, %v941
  %v950 = vcombine.high %v948, %v948
  %v951 = vcombine.high %v758, %v758
  %v953 = vunpack.c.l.s4 1983009808
  %v954 = vunpack.c.0.s8 %v953
  %v955 = vlaneseq
  %v956 = vshrl.u32 %v955, 7
  %v957 = vsub.s32 %v954, %v956
  %v958 = vrot.slane %v758, %v957
  %v960 = vunpack.c.l.s4 1983009808
  %v961 = vunpack.c.0.s8 %v960
  %v962 = vlaneseq
  %v963 = vshrl.u32 %v962, 7
  %v964 = vsub.s32 %v961, %v963
  %v965 = vrot.slane %v951, %v964
  %v966 = vcombine.high %v958, %v958
  %v967 = vcombine.high %v965, %v965
  %v968 = vcombine.high %v759, %v759
  %v970 = vunpack.c.l.s4 1983009808
  %v971 = vunpack.c.0.s8 %v970
  %v972 = vlaneseq
  %v973 = vshrl.u32 %v972, 7
  %v974 = vsub.s32 %v971, %v973
  %v975 = vrot.slane %v759, %v974
  %v977 = vunpack.c.l.s4 1983009808
  %v978 = vunpack.c.0.s8 %v977
  %v979 = vlaneseq
  %v980 = vshrl.u32 %v979, 7
  %v981 = vsub.s32 %v978, %v980
  %v982 = vrot.slane %v968, %v981
  %v983 = vcombine.high %v975, %v975
  %v984 = vcombine.high %v982, %v982
  %v985 = vcombine.high %v760, %v760
  %v987 = vunpack.c.l.s4 1983009808
  %v988 = vunpack.c.0.s8 %v987
  %v989 = vlaneseq
  %v990 = vshrl.u32 %v989, 7
  %v991 = vsub.s32 %v988, %v990
  %v992 = vrot.slane %v760, %v991
  %v994 = vunpack.c.l.s4 1983009808
  %v995 = vunpack.c.0.s8 %v994
  %v996 = vlaneseq
  %v997 = vshrl.u32 %v996, 7
  %v998 = vsub.s32 %v995, %v997
  %v999 = vrot.slane %v985, %v998
  %v1000 = vcombine.high %v992, %v992
  %v1001 = vcombine.high %v999, %v999
  %v1002 = vcombine.high %v761, %v761
  %v1004 = vunpack.c.l.s4 1983009808
  %v1005 = vunpack.c.0.s8 %v1004
  %v1006 = vlaneseq
  %v1007 = vshrl.u32 %v1006, 7
  %v1008 = vsub.s32 %v1005, %v1007
  %v1009 = vrot.slane %v761, %v1008
  %v1011 = vunpack.c.l.s4 1983009808
  %v1012 = vunpack.c.0.s8 %v1011
  %v1013 = vlaneseq
  %v1014 = vshrl.u32 %v1013, 7
  %v1015 = vsub.s32 %v1012, %v1014
  %v1016 = vrot.slane %v1002, %v1015
  %v1017 = vcombine.high %v1009, %v1009
  %v1018 = vcombine.high %v1016, %v1016
  %v1020 = vunpack.c.l.s4 1983009808
  %v1021 = vunpack.c.0.s8 %v1020
  %v1022 = vlaneseq
  %v1023 = vshrl.u32 %v1022, 7
  %v1024 = vsub.s32 %v1021, %v1023
  %v1025 = vrot.slane %v762, %v1024
  %v1026 = vcombine.high %v1025, %v1025
  %vm1077 = vcmask 517120
  %v1078 = vsel %vm1077, %v822, -inf
  %v1079 = vrot.slane %v1078, 4
  %v1080 = vmax.f32 %v1078, %v1079
  %v1081 = vrot.slane %v1080, 2
  %v1082 = vmax.f32 %v1080, %v1081
  %v1083 = vrot.slane %v1082, 1
  %v1084 = vmax.f32 %v1082, %v1083
  %v1085 = vsel %vm1077, %v830, -inf
  %v1086 = vrot.slane %v1085, 4
  %v1087 = vmax.f32 %v1085, %v1086
  %v1088 = vrot.slane %v1087, 2
  %v1089 = vmax.f32 %v1087, %v1088
  %v1090 = vrot.slane %v1089, 1
  %v1091 = vmax.f32 %v1089, %v1090
  %v1092 = vsel %vm1077, %v829, -inf
  %v1093 = vrot.slane %v1092, 4
  %v1094 = vmax.f32 %v1092, %v1093
  %v1095 = vrot.slane %v1094, 2
  %v1096 = vmax.f32 %v1094, %v1095
  %v1097 = vrot.slane %v1096, 1
  %v1098 = vmax.f32 %v1096, %v1097
  %v1099 = vsel %vm1077, %v831, -inf
  %v1100 = vrot.slane %v1099, 4
  %v1101 = vmax.f32 %v1099, %v1100
  %v1102 = vrot.slane %v1101, 2
  %v1103 = vmax.f32 %v1101, %v1102
  %v1104 = vrot.slane %v1103, 1
  %v1105 = vmax.f32 %v1103, %v1104
  %v1106 = vsel %vm1077, %v839, -inf
  %v1107 = vrot.slane %v1106, 4
  %v1108 = vmax.f32 %v1106, %v1107
  %v1109 = vrot.slane %v1108, 2
  %v1110 = vmax.f32 %v1108, %v1109
  %v1111 = vrot.slane %v1110, 1
  %v1112 = vmax.f32 %v1110, %v1111
  %v1113 = vsel %vm1077, %v847, -inf
  %v1114 = vrot.slane %v1113, 4
  %v1115 = vmax.f32 %v1113, %v1114
  %v1116 = vrot.slane %v1115, 2
  %v1117 = vmax.f32 %v1115, %v1116
  %v1118 = vrot.slane %v1117, 1
  %v1119 = vmax.f32 %v1117, %v1118
  %v1120 = vsel %vm1077, %v846, -inf
  %v1121 = vrot.slane %v1120, 4
  %v1122 = vmax.f32 %v1120, %v1121
  %v1123 = vrot.slane %v1122, 2
  %v1124 = vmax.f32 %v1122, %v1123
  %v1125 = vrot.slane %v1124, 1
  %v1126 = vmax.f32 %v1124, %v1125
  %v1127 = vsel %vm1077, %v848, -inf
  %v1128 = vrot.slane %v1127, 4
  %v1129 = vmax.f32 %v1127, %v1128
  %v1130 = vrot.slane %v1129, 2
  %v1131 = vmax.f32 %v1129, %v1130
  %v1132 = vrot.slane %v1131, 1
  %v1133 = vmax.f32 %v1131, %v1132
  %v1134 = vsel %vm1077, %v856, -inf
  %v1135 = vrot.slane %v1134, 4
  %v1136 = vmax.f32 %v1134, %v1135
  %v1137 = vrot.slane %v1136, 2
  %v1138 = vmax.f32 %v1136, %v1137
  %v1139 = vrot.slane %v1138, 1
  %v1140 = vmax.f32 %v1138, %v1139
  %v1141 = vsel %vm1077, %v864, -inf
  %v1142 = vrot.slane %v1141, 4
  %v1143 = vmax.f32 %v1141, %v1142
  %v1144 = vrot.slane %v1143, 2
  %v1145 = vmax.f32 %v1143, %v1144
  %v1146 = vrot.slane %v1145, 1
  %v1147 = vmax.f32 %v1145, %v1146
  %v1148 = vsel %vm1077, %v863, -inf
  %v1149 = vrot.slane %v1148, 4
  %v1150 = vmax.f32 %v1148, %v1149
  %v1151 = vrot.slane %v1150, 2
  %v1152 = vmax.f32 %v1150, %v1151
  %v1153 = vrot.slane %v1152, 1
  %v1154 = vmax.f32 %v1152, %v1153
  %v1155 = vsel %vm1077, %v865, -inf
  %v1156 = vrot.slane %v1155, 4
  %v1157 = vmax.f32 %v1155, %v1156
  %v1158 = vrot.slane %v1157, 2
  %v1159 = vmax.f32 %v1157, %v1158
  %v1160 = vrot.slane %v1159, 1
  %v1161 = vmax.f32 %v1159, %v1160
  %v1162 = vsel %vm1077, %v873, -inf
  %v1163 = vrot.slane %v1162, 4
  %v1164 = vmax.f32 %v1162, %v1163
  %v1165 = vrot.slane %v1164, 2
  %v1166 = vmax.f32 %v1164, %v1165
  %v1167 = vrot.slane %v1166, 1
  %v1168 = vmax.f32 %v1166, %v1167
  %v1169 = vsel %vm1077, %v881, -inf
  %v1170 = vrot.slane %v1169, 4
  %v1171 = vmax.f32 %v1169, %v1170
  %v1172 = vrot.slane %v1171, 2
  %v1173 = vmax.f32 %v1171, %v1172
  %v1174 = vrot.slane %v1173, 1
  %v1175 = vmax.f32 %v1173, %v1174
  %v1176 = vsel %vm1077, %v880, -inf
  %v1177 = vrot.slane %v1176, 4
  %v1178 = vmax.f32 %v1176, %v1177
  %v1179 = vrot.slane %v1178, 2
  %v1180 = vmax.f32 %v1178, %v1179
  %v1181 = vrot.slane %v1180, 1
  %v1182 = vmax.f32 %v1180, %v1181
  %v1183 = vsel %vm1077, %v882, -inf
  %v1184 = vrot.slane %v1183, 4
  %v1185 = vmax.f32 %v1183, %v1184
  %v1186 = vrot.slane %v1185, 2
  %v1187 = vmax.f32 %v1185, %v1186
  %v1188 = vrot.slane %v1187, 1
  %v1189 = vmax.f32 %v1187, %v1188
  %v1190 = vsel %vm1077, %v890, -inf
  %v1191 = vrot.slane %v1190, 4
  %v1192 = vmax.f32 %v1190, %v1191
  %v1193 = vrot.slane %v1192, 2
  %v1194 = vmax.f32 %v1192, %v1193
  %v1195 = vrot.slane %v1194, 1
  %v1196 = vmax.f32 %v1194, %v1195
  %v1197 = vsel %vm1077, %v898, -inf
  %v1198 = vrot.slane %v1197, 4
  %v1199 = vmax.f32 %v1197, %v1198
  %v1200 = vrot.slane %v1199, 2
  %v1201 = vmax.f32 %v1199, %v1200
  %v1202 = vrot.slane %v1201, 1
  %v1203 = vmax.f32 %v1201, %v1202
  %v1204 = vsel %vm1077, %v897, -inf
  %v1205 = vrot.slane %v1204, 4
  %v1206 = vmax.f32 %v1204, %v1205
  %v1207 = vrot.slane %v1206, 2
  %v1208 = vmax.f32 %v1206, %v1207
  %v1209 = vrot.slane %v1208, 1
  %v1210 = vmax.f32 %v1208, %v1209
  %v1211 = vsel %vm1077, %v899, -inf
  %v1212 = vrot.slane %v1211, 4
  %v1213 = vmax.f32 %v1211, %v1212
  %v1214 = vrot.slane %v1213, 2
  %v1215 = vmax.f32 %v1213, %v1214
  %v1216 = vrot.slane %v1215, 1
  %v1217 = vmax.f32 %v1215, %v1216
  %v1218 = vsel %vm1077, %v907, -inf
  %v1219 = vrot.slane %v1218, 4
  %v1220 = vmax.f32 %v1218, %v1219
  %v1221 = vrot.slane %v1220, 2
  %v1222 = vmax.f32 %v1220, %v1221
  %v1223 = vrot.slane %v1222, 1
  %v1224 = vmax.f32 %v1222, %v1223
  %v1225 = vsel %vm1077, %v915, -inf
  %v1226 = vrot.slane %v1225, 4
  %v1227 = vmax.f32 %v1225, %v1226
  %v1228 = vrot.slane %v1227, 2
  %v1229 = vmax.f32 %v1227, %v1228
  %v1230 = vrot.slane %v1229, 1
  %v1231 = vmax.f32 %v1229, %v1230
  %v1232 = vsel %vm1077, %v914, -inf
  %v1233 = vrot.slane %v1232, 4
  %v1234 = vmax.f32 %v1232, %v1233
  %v1235 = vrot.slane %v1234, 2
  %v1236 = vmax.f32 %v1234, %v1235
  %v1237 = vrot.slane %v1236, 1
  %v1238 = vmax.f32 %v1236, %v1237
  %v1239 = vsel %vm1077, %v916, -inf
  %v1240 = vrot.slane %v1239, 4
  %v1241 = vmax.f32 %v1239, %v1240
  %v1242 = vrot.slane %v1241, 2
  %v1243 = vmax.f32 %v1241, %v1242
  %v1244 = vrot.slane %v1243, 1
  %v1245 = vmax.f32 %v1243, %v1244
  %v1246 = vsel %vm1077, %v924, -inf
  %v1247 = vrot.slane %v1246, 4
  %v1248 = vmax.f32 %v1246, %v1247
  %v1249 = vrot.slane %v1248, 2
  %v1250 = vmax.f32 %v1248, %v1249
  %v1251 = vrot.slane %v1250, 1
  %v1252 = vmax.f32 %v1250, %v1251
  %v1253 = vsel %vm1077, %v932, -inf
  %v1254 = vrot.slane %v1253, 4
  %v1255 = vmax.f32 %v1253, %v1254
  %v1256 = vrot.slane %v1255, 2
  %v1257 = vmax.f32 %v1255, %v1256
  %v1258 = vrot.slane %v1257, 1
  %v1259 = vmax.f32 %v1257, %v1258
  %v1260 = vsel %vm1077, %v931, -inf
  %v1261 = vrot.slane %v1260, 4
  %v1262 = vmax.f32 %v1260, %v1261
  %v1263 = vrot.slane %v1262, 2
  %v1264 = vmax.f32 %v1262, %v1263
  %v1265 = vrot.slane %v1264, 1
  %v1266 = vmax.f32 %v1264, %v1265
  %v1267 = vsel %vm1077, %v933, -inf
  %v1268 = vrot.slane %v1267, 4
  %v1269 = vmax.f32 %v1267, %v1268
  %v1270 = vrot.slane %v1269, 2
  %v1271 = vmax.f32 %v1269, %v1270
  %v1272 = vrot.slane %v1271, 1
  %v1273 = vmax.f32 %v1271, %v1272
  %v1274 = vsel %vm1077, %v941, -inf
  %v1275 = vrot.slane %v1274, 4
  %v1276 = vmax.f32 %v1274, %v1275
  %v1277 = vrot.slane %v1276, 2
  %v1278 = vmax.f32 %v1276, %v1277
  %v1279 = vrot.slane %v1278, 1
  %v1280 = vmax.f32 %v1278, %v1279
  %v1281 = vsel %vm1077, %v949, -inf
  %v1282 = vrot.slane %v1281, 4
  %v1283 = vmax.f32 %v1281, %v1282
  %v1284 = vrot.slane %v1283, 2
  %v1285 = vmax.f32 %v1283, %v1284
  %v1286 = vrot.slane %v1285, 1
  %v1287 = vmax.f32 %v1285, %v1286
  %v1288 = vsel %vm1077, %v948, -inf
  %v1289 = vrot.slane %v1288, 4
  %v1290 = vmax.f32 %v1288, %v1289
  %v1291 = vrot.slane %v1290, 2
  %v1292 = vmax.f32 %v1290, %v1291
  %v1293 = vrot.slane %v1292, 1
  %v1294 = vmax.f32 %v1292, %v1293
  %v1295 = vsel %vm1077, %v950, -inf
  %v1296 = vrot.slane %v1295, 4
  %v1297 = vmax.f32 %v1295, %v1296
  %v1298 = vrot.slane %v1297, 2
  %v1299 = vmax.f32 %v1297, %v1298
  %v1300 = vrot.slane %v1299, 1
  %v1301 = vmax.f32 %v1299, %v1300
  %v1302 = vsel %vm1077, %v958, -inf
  %v1303 = vrot.slane %v1302, 4
  %v1304 = vmax.f32 %v1302, %v1303
  %v1305 = vrot.slane %v1304, 2
  %v1306 = vmax.f32 %v1304, %v1305
  %v1307 = vrot.slane %v1306, 1
  %v1308 = vmax.f32 %v1306, %v1307
  %v1309 = vsel %vm1077, %v966, -inf
  %v1310 = vrot.slane %v1309, 4
  %v1311 = vmax.f32 %v1309, %v1310
  %v1312 = vrot.slane %v1311, 2
  %v1313 = vmax.f32 %v1311, %v1312
  %v1314 = vrot.slane %v1313, 1
  %v1315 = vmax.f32 %v1313, %v1314
  %v1316 = vsel %vm1077, %v965, -inf
  %v1317 = vrot.slane %v1316, 4
  %v1318 = vmax.f32 %v1316, %v1317
  %v1319 = vrot.slane %v1318, 2
  %v1320 = vmax.f32 %v1318, %v1319
  %v1321 = vrot.slane %v1320, 1
  %v1322 = vmax.f32 %v1320, %v1321
  %v1323 = vsel %vm1077, %v967, -inf
  %v1324 = vrot.slane %v1323, 4
  %v1325 = vmax.f32 %v1323, %v1324
  %v1326 = vrot.slane %v1325, 2
  %v1327 = vmax.f32 %v1325, %v1326
  %v1328 = vrot.slane %v1327, 1
  %v1329 = vmax.f32 %v1327, %v1328
  %v1330 = vsel %vm1077, %v975, -inf
  %v1331 = vrot.slane %v1330, 4
  %v1332 = vmax.f32 %v1330, %v1331
  %v1333 = vrot.slane %v1332, 2
  %v1334 = vmax.f32 %v1332, %v1333
  %v1335 = vrot.slane %v1334, 1
  %v1336 = vmax.f32 %v1334, %v1335
  %v1337 = vsel %vm1077, %v983, -inf
  %v1338 = vrot.slane %v1337, 4
  %v1339 = vmax.f32 %v1337, %v1338
  %v1340 = vrot.slane %v1339, 2
  %v1341 = vmax.f32 %v1339, %v1340
  %v1342 = vrot.slane %v1341, 1
  %v1343 = vmax.f32 %v1341, %v1342
  %v1344 = vsel %vm1077, %v982, -inf
  %v1345 = vrot.slane %v1344, 4
  %v1346 = vmax.f32 %v1344, %v1345
  %v1347 = vrot.slane %v1346, 2
  %v1348 = vmax.f32 %v1346, %v1347
  %v1349 = vrot.slane %v1348, 1
  %v1350 = vmax.f32 %v1348, %v1349
  %v1351 = vsel %vm1077, %v984, -inf
  %v1352 = vrot.slane %v1351, 4
  %v1353 = vmax.f32 %v1351, %v1352
  %v1354 = vrot.slane %v1353, 2
  %v1355 = vmax.f32 %v1353, %v1354
  %v1356 = vrot.slane %v1355, 1
  %v1357 = vmax.f32 %v1355, %v1356
  %v1358 = vsel %vm1077, %v992, -inf
  %v1359 = vrot.slane %v1358, 4
  %v1360 = vmax.f32 %v1358, %v1359
  %v1361 = vrot.slane %v1360, 2
  %v1362 = vmax.f32 %v1360, %v1361
  %v1363 = vrot.slane %v1362, 1
  %v1364 = vmax.f32 %v1362, %v1363
  %v1365 = vsel %vm1077, %v1000, -inf
  %v1366 = vrot.slane %v1365, 4
  %v1367 = vmax.f32 %v1365, %v1366
  %v1368 = vrot.slane %v1367, 2
  %v1369 = vmax.f32 %v1367, %v1368
  %v1370 = vrot.slane %v1369, 1
  %v1371 = vmax.f32 %v1369, %v1370
  %v1372 = vsel %vm1077, %v999, -inf
  %v1373 = vrot.slane %v1372, 4
  %v1374 = vmax.f32 %v1372, %v1373
  %v1375 = vrot.slane %v1374, 2
  %v1376 = vmax.f32 %v1374, %v1375
  %v1377 = vrot.slane %v1376, 1
  %v1378 = vmax.f32 %v1376, %v1377
  %v1379 = vsel %vm1077, %v1001, -inf
  %v1380 = vrot.slane %v1379, 4
  %v1381 = vmax.f32 %v1379, %v1380
  %v1382 = vrot.slane %v1381, 2
  %v1383 = vmax.f32 %v1381, %v1382
  %v1384 = vrot.slane %v1383, 1
  %v1385 = vmax.f32 %v1383, %v1384
  %v1386 = vsel %vm1077, %v1009, -inf
  %v1387 = vrot.slane %v1386, 4
  %v1388 = vmax.f32 %v1386, %v1387
  %v1389 = vrot.slane %v1388, 2
  %v1390 = vmax.f32 %v1388, %v1389
  %v1391 = vrot.slane %v1390, 1
  %v1392 = vmax.f32 %v1390, %v1391
  %v1393 = vsel %vm1077, %v1017, -inf
  %v1394 = vrot.slane %v1393, 4
  %v1395 = vmax.f32 %v1393, %v1394
  %v1396 = vrot.slane %v1395, 2
  %v1397 = vmax.f32 %v1395, %v1396
  %v1398 = vrot.slane %v1397, 1
  %v1399 = vmax.f32 %v1397, %v1398
  %v1400 = vsel %vm1077, %v1016, -inf
  %v1401 = vrot.slane %v1400, 4
  %v1402 = vmax.f32 %v1400, %v1401
  %v1403 = vrot.slane %v1402, 2
  %v1404 = vmax.f32 %v1402, %v1403
  %v1405 = vrot.slane %v1404, 1
  %v1406 = vmax.f32 %v1404, %v1405
  %v1407 = vsel %vm1077, %v1018, -inf
  %v1408 = vrot.slane %v1407, 4
  %v1409 = vmax.f32 %v1407, %v1408
  %v1410 = vrot.slane %v1409, 2
  %v1411 = vmax.f32 %v1409, %v1410
  %v1412 = vrot.slane %v1411, 1
  %v1413 = vmax.f32 %v1411, %v1412
  %v1414 = vsel %vm1077, %v1025, -inf
  %v1415 = vrot.slane %v1414, 4
  %v1416 = vmax.f32 %v1414, %v1415
  %v1417 = vrot.slane %v1416, 2
  %v1418 = vmax.f32 %v1416, %v1417
  %v1419 = vrot.slane %v1418, 1
  %v1420 = vmax.f32 %v1418, %v1419
  %v1421 = vsel %vm1077, %v1026, -inf
  %v1422 = vrot.slane %v1421, 4
  %v1423 = vmax.f32 %v1421, %v1422
  %v1424 = vrot.slane %v1423, 2
  %v1425 = vmax.f32 %v1423, %v1424
  %v1426 = vrot.slane %v1425, 1
  %v1427 = vmax.f32 %v1425, %v1426
  %vm1478 = vcmask 1042434
  %v1479 = vsel %vm1478, %v1091, %v1084
  %vm1480 = vcmask 1043459
  %v1481 = vsel %vm1480, %v1098, %v1479
  %vm1482 = vcmask 1044484
  %v1483 = vsel %vm1482, %v1105, %v1481
  %vm1484 = vcmask 1045509
  %v1485 = vsel %vm1484, %v1112, %v1483
  %vm1486 = vcmask 1046534
  %v1487 = vsel %vm1486, %v1119, %v1485
  %vm1488 = vcmask 1047559
  %v1489 = vsel %vm1488, %v1126, %v1487
  %vm1490 = vcmask 1041409
  %v1491 = vsel %vm1490, %v1140, %v1133
  %v1492 = vsel %vm1478, %v1147, %v1491
  %v1493 = vsel %vm1480, %v1154, %v1492
  %v1494 = vsel %vm1482, %v1161, %v1493
  %v1495 = vsel %vm1484, %v1168, %v1494
  %v1496 = vsel %vm1486, %v1175, %v1495
  %v1497 = vsel %vm1488, %v1182, %v1496
  %v1498 = vsel %vm1490, %v1196, %v1189
  %v1499 = vsel %vm1478, %v1203, %v1498
  %v1500 = vsel %vm1480, %v1210, %v1499
  %v1501 = vsel %vm1482, %v1217, %v1500
  %v1502 = vsel %vm1484, %v1224, %v1501
  %v1503 = vsel %vm1486, %v1231, %v1502
  %v1504 = vsel %vm1488, %v1238, %v1503
  %v1505 = vsel %vm1490, %v1252, %v1245
  %v1506 = vsel %vm1478, %v1259, %v1505
  %v1507 = vsel %vm1480, %v1266, %v1506
  %v1508 = vsel %vm1482, %v1273, %v1507
  %v1509 = vsel %vm1484, %v1280, %v1508
  %v1510 = vsel %vm1486, %v1287, %v1509
  %v1511 = vsel %vm1488, %v1294, %v1510
  %v1512 = vsel %vm1490, %v1308, %v1301
  %v1513 = vsel %vm1478, %v1315, %v1512
  %v1514 = vsel %vm1480, %v1322, %v1513
  %v1515 = vsel %vm1482, %v1329, %v1514
  %v1516 = vsel %vm1484, %v1336, %v1515
  %v1517 = vsel %vm1486, %v1343, %v1516
  %v1518 = vsel %vm1488, %v1350, %v1517
  %v1519 = vsel %vm1490, %v1364, %v1357
  %v1520 = vsel %vm1478, %v1371, %v1519
  %v1521 = vsel %vm1480, %v1378, %v1520
  %v1522 = vsel %vm1482, %v1385, %v1521
  %v1523 = vsel %vm1484, %v1392, %v1522
  %v1524 = vsel %vm1486, %v1399, %v1523
  %v1525 = vsel %vm1488, %v1406, %v1524
  %v1526 = vsel %vm1490, %v1420, %v1413
  %v1527 = vsel %vm1478, %v1427, %v1526
  %vm1535 = vcmask 523265
  %1536 = vst.msk [vmem:[#allocation2 + $0x10] sm:$0xfe] %vm1535, %v1489
  %1537 = vst.msk [vmem:[#allocation2 + $0x20] sm:$0xff] %vm68, %v1497
  %1538 = vst.msk [vmem:[#allocation2 + $0x30] sm:$0xff] %vm68, %v1504
  %1539 = vst.msk [vmem:[#allocation2 + $0x40] sm:$0xff] %vm68, %v1511
  %1540 = vst.msk [vmem:[#allocation2 + $0x50] sm:$0xff] %vm68, %v1518
  %1541 = vst.msk [vmem:[#allocation2 + $0x60] sm:$0xff] %vm68, %v1525
  %vm1542 = vcmask 518144
  %1543 = vst.msk [vmem:[#allocation2 + $0x70] sm:$0x7] %vm1542, %v1527
  %v1544 = vsel %vm1490, %v1091, %v1084
  %v1545 = vsel %vm1478, %v1098, %v1544
  %v1546 = vsel %vm1480, %v1105, %v1545
  %v1547 = vsel %vm1482, %v1112, %v1546
  %v1548 = vsel %vm1484, %v1119, %v1547
  %v1549 = vsel %vm1486, %v1126, %v1548
  %v1550 = vsel %vm1488, %v1133, %v1549
  %v1551 = vsel %vm1490, %v1147, %v1140
  %v1552 = vsel %vm1478, %v1154, %v1551
  %v1553 = vsel %vm1480, %v1161, %v1552
  %v1554 = vsel %vm1482, %v1168, %v1553
  %v1555 = vsel %vm1484, %v1175, %v1554
  %v1556 = vsel %vm1486, %v1182, %v1555
  %v1557 = vsel %vm1488, %v1189, %v1556
  %v1558 = vsel %vm1490, %v1203, %v1196
  %v1559 = vsel %vm1478, %v1210, %v1558
  %v1560 = vsel %vm1480, %v1217, %v1559
  %v1561 = vsel %vm1482, %v1224, %v1560
  %v1562 = vsel %vm1484, %v1231, %v1561
  %v1563 = vsel %vm1486, %v1238, %v1562
  %v1564 = vsel %vm1488, %v1245, %v1563
  %v1565 = vsel %vm1490, %v1259, %v1252
  %v1566 = vsel %vm1478, %v1266, %v1565
  %v1567 = vsel %vm1480, %v1273, %v1566
  %v1568 = vsel %vm1482, %v1280, %v1567
  %v1569 = vsel %vm1484, %v1287, %v1568
  %v1570 = vsel %vm1486, %v1294, %v1569
  %v1571 = vsel %vm1488, %v1301, %v1570
  %v1572 = vsel %vm1490, %v1315, %v1308
  %v1573 = vsel %vm1478, %v1322, %v1572
  %v1574 = vsel %vm1480, %v1329, %v1573
  %v1575 = vsel %vm1482, %v1336, %v1574
  %v1576 = vsel %vm1484, %v1343, %v1575
  %v1577 = vsel %vm1486, %v1350, %v1576
  %v1578 = vsel %vm1488, %v1357, %v1577
  %v1579 = vsel %vm1490, %v1371, %v1364
  %v1580 = vsel %vm1478, %v1378, %v1579
  %v1581 = vsel %vm1480, %v1385, %v1580
  %v1582 = vsel %vm1482, %v1392, %v1581
  %v1583 = vsel %vm1484, %v1399, %v1582
  %v1584 = vsel %vm1486, %v1406, %v1583
  %v1585 = vsel %vm1488, %v1413, %v1584
  %v1586 = vsel %vm1490, %v1427, %v1420
  %1587 = vrot.lane.b32.xlu0 %v1550, 64
  %v1588 = vpop.permute.xlu0 %1587
  %1589 = vrot.lane.b32.xlu0 %v1557, 64
  %v1590 = vpop.permute.xlu0 %1589
  %1591 = vrot.lane.b32.xlu0 %v1564, 64
  %v1592 = vpop.permute.xlu0 %1591
  %1593 = vrot.lane.b32.xlu0 %v1571, 64
  %v1594 = vpop.permute.xlu0 %1593
  %1595 = vrot.lane.b32.xlu0 %v1578, 64
  %v1596 = vpop.permute.xlu0 %1595
  %1597 = vrot.lane.b32.xlu0 %v1585, 64
  %v1598 = vpop.permute.xlu0 %1597
  %1599 = vrot.lane.b32.xlu0 %v1586, 64
  %v1600 = vpop.permute.xlu0 %1599
  %vm1608 = vcmask 1048064
  %1609 = vst.msk [vmem:[#allocation2 + $0x10] sm:$0xff] %vm1608, %v1588
  %1610 = vst.msk [vmem:[#allocation2 + $0x20] sm:$0xff] %vm1608, %v1590
  %1611 = vst.msk [vmem:[#allocation2 + $0x30] sm:$0xff] %vm1608, %v1592
  %1612 = vst.msk [vmem:[#allocation2 + $0x40] sm:$0xff] %vm1608, %v1594
  %1613 = vst.msk [vmem:[#allocation2 + $0x50] sm:$0xff] %vm1608, %v1596
  %1614 = vst.msk [vmem:[#allocation2 + $0x60] sm:$0xff] %vm1608, %v1598
  %vm1615 = vcmask 1041920
  %1616 = vst.msk [vmem:[#allocation2 + $0x70] sm:$0x3] %vm1615, %v1600
  %v1617 = vsel %vm1490, %v1098, %v1091
  %v1618 = vsel %vm1478, %v1105, %v1617
  %v1619 = vsel %vm1480, %v1112, %v1618
  %v1620 = vsel %vm1482, %v1119, %v1619
  %v1621 = vsel %vm1484, %v1126, %v1620
  %v1622 = vsel %vm1486, %v1133, %v1621
  %v1623 = vsel %vm1488, %v1140, %v1622
  %v1624 = vsel %vm1490, %v1154, %v1147
  %v1625 = vsel %vm1478, %v1161, %v1624
  %v1626 = vsel %vm1480, %v1168, %v1625
  %v1627 = vsel %vm1482, %v1175, %v1626
  %v1628 = vsel %vm1484, %v1182, %v1627
  %v1629 = vsel %vm1486, %v1189, %v1628
  %v1630 = vsel %vm1488, %v1196, %v1629
  %v1631 = vsel %vm1490, %v1210, %v1203
  %v1632 = vsel %vm1478, %v1217, %v1631
  %v1633 = vsel %vm1480, %v1224, %v1632
  %v1634 = vsel %vm1482, %v1231, %v1633
  %v1635 = vsel %vm1484, %v1238, %v1634
  %v1636 = vsel %vm1486, %v1245, %v1635
  %v1637 = vsel %vm1488, %v1252, %v1636
  %v1638 = vsel %vm1490, %v1266, %v1259
  %v1639 = vsel %vm1478, %v1273, %v1638
  %v1640 = vsel %vm1480, %v1280, %v1639
  %v1641 = vsel %vm1482, %v1287, %v1640
  %v1642 = vsel %vm1484, %v1294, %v1641
  %v1643 = vsel %vm1486, %v1301, %v1642
  %v1644 = vsel %vm1488, %v1308, %v1643
  %v1645 = vsel %vm1490, %v1322, %v1315
  %v1646 = vsel %vm1478, %v1329, %v1645
  %v1647 = vsel %vm1480, %v1336, %v1646
  %v1648 = vsel %vm1482, %v1343, %v1647
  %v1649 = vsel %vm1484, %v1350, %v1648
  %v1650 = vsel %vm1486, %v1357, %v1649
  %v1651 = vsel %vm1488, %v1364, %v1650
  %v1652 = vsel %vm1490, %v1378, %v1371
  %v1653 = vsel %vm1478, %v1385, %v1652
  %v1654 = vsel %vm1480, %v1392, %v1653
  %v1655 = vsel %vm1482, %v1399, %v1654
  %v1656 = vsel %vm1484, %v1406, %v1655
  %v1657 = vsel %vm1486, %v1413, %v1656
  %v1658 = vsel %vm1488, %v1420, %v1657
  %vm1667 = vcmask 523271
  %1668 = vst.msk [vmem:[#allocation2 + $0x8] sm:$0x80] %vm1667, %v1084
  %1669 = vst.msk [vmem:[#allocation2 + $0x18] sm:$0xff] %vm68, %v1623
  %1670 = vst.msk [vmem:[#allocation2 + $0x28] sm:$0xff] %vm68, %v1630
  %1671 = vst.msk [vmem:[#allocation2 + $0x38] sm:$0xff] %vm68, %v1637
  %1672 = vst.msk [vmem:[#allocation2 + $0x48] sm:$0xff] %vm68, %v1644
  %1673 = vst.msk [vmem:[#allocation2 + $0x58] sm:$0xff] %vm68, %v1651
  %1674 = vst.msk [vmem:[#allocation2 + $0x68] sm:$0xff] %vm68, %v1658
  %vm1675 = vcmask 516096
  %1676 = vst.msk [vmem:[#allocation2 + $0x78] sm:$0x1] %vm1675, %v1427
  %v1690 = vcombine.high %v763, %v763
  %v1692 = vunpack.c.l.s4 1983009808
  %v1693 = vunpack.c.0.s8 %v1692
  %v1694 = vlaneseq
  %v1695 = vshrl.u32 %v1694, 7
  %v1696 = vsub.s32 %v1693, %v1695
  %v1697 = vrot.slane %v763, %v1696
  %v1699 = vunpack.c.l.s4 1983009808
  %v1700 = vunpack.c.0.s8 %v1699
  %v1701 = vlaneseq
  %v1702 = vshrl.u32 %v1701, 7
  %v1703 = vsub.s32 %v1700, %v1702
  %v1704 = vrot.slane %v1690, %v1703
  %v1705 = vcombine.high %v1697, %v1697
  %v1706 = vcombine.high %v1704, %v1704
  %v1707 = vcombine.high %v764, %v764
  %v1709 = vunpack.c.l.s4 1983009808
  %v1710 = vunpack.c.0.s8 %v1709
  %v1711 = vlaneseq
  %v1712 = vshrl.u32 %v1711, 7
  %v1713 = vsub.s32 %v1710, %v1712
  %v1714 = vrot.slane %v764, %v1713
  %v1716 = vunpack.c.l.s4 1983009808
  %v1717 = vunpack.c.0.s8 %v1716
  %v1718 = vlaneseq
  %v1719 = vshrl.u32 %v1718, 7
  %v1720 = vsub.s32 %v1717, %v1719
  %v1721 = vrot.slane %v1707, %v1720
  %v1722 = vcombine.high %v1714, %v1714
  %v1723 = vcombine.high %v1721, %v1721
  %v1724 = vcombine.high %v765, %v765
  %v1726 = vunpack.c.l.s4 1983009808
  %v1727 = vunpack.c.0.s8 %v1726
  %v1728 = vlaneseq
  %v1729 = vshrl.u32 %v1728, 7
  %v1730 = vsub.s32 %v1727, %v1729
  %v1731 = vrot.slane %v765, %v1730
  %v1733 = vunpack.c.l.s4 1983009808
  %v1734 = vunpack.c.0.s8 %v1733
  %v1735 = vlaneseq
  %v1736 = vshrl.u32 %v1735, 7
  %v1737 = vsub.s32 %v1734, %v1736
  %v1738 = vrot.slane %v1724, %v1737
  %v1739 = vcombine.high %v1731, %v1731
  %v1740 = vcombine.high %v1738, %v1738
  %v1741 = vcombine.high %v766, %v766
  %v1743 = vunpack.c.l.s4 1983009808
  %v1744 = vunpack.c.0.s8 %v1743
  %v1745 = vlaneseq
  %v1746 = vshrl.u32 %v1745, 7
  %v1747 = vsub.s32 %v1744, %v1746
  %v1748 = vrot.slane %v766, %v1747
  %v1750 = vunpack.c.l.s4 1983009808
  %v1751 = vunpack.c.0.s8 %v1750
  %v1752 = vlaneseq
  %v1753 = vshrl.u32 %v1752, 7
  %v1754 = vsub.s32 %v1751, %v1753
  %v1755 = vrot.slane %v1741, %v1754
  %v1756 = vcombine.high %v1748, %v1748
  %v1757 = vcombine.high %v1755, %v1755
  %v1758 = vcombine.high %v767, %v767
  %v1760 = vunpack.c.l.s4 1983009808
  %v1761 = vunpack.c.0.s8 %v1760
  %v1762 = vlaneseq
  %v1763 = vshrl.u32 %v1762, 7
  %v1764 = vsub.s32 %v1761, %v1763
  %v1765 = vrot.slane %v767, %v1764
  %v1767 = vunpack.c.l.s4 1983009808
  %v1768 = vunpack.c.0.s8 %v1767
  %v1769 = vlaneseq
  %v1770 = vshrl.u32 %v1769, 7
  %v1771 = vsub.s32 %v1768, %v1770
  %v1772 = vrot.slane %v1758, %v1771
  %v1773 = vcombine.high %v1765, %v1765
  %v1774 = vcombine.high %v1772, %v1772
  %v1775 = vcombine.high %v768, %v768
  %v1777 = vunpack.c.l.s4 1983009808
  %v1778 = vunpack.c.0.s8 %v1777
  %v1779 = vlaneseq
  %v1780 = vshrl.u32 %v1779, 7
  %v1781 = vsub.s32 %v1778, %v1780
  %v1782 = vrot.slane %v768, %v1781
  %v1784 = vunpack.c.l.s4 1983009808
  %v1785 = vunpack.c.0.s8 %v1784
  %v1786 = vlaneseq
  %v1787 = vshrl.u32 %v1786, 7
  %v1788 = vsub.s32 %v1785, %v1787
  %v1789 = vrot.slane %v1775, %v1788
  %v1790 = vcombine.high %v1782, %v1782
  %v1791 = vcombine.high %v1789, %v1789
  %v1792 = vcombine.high %v769, %v769
  %v1794 = vunpack.c.l.s4 1983009808
  %v1795 = vunpack.c.0.s8 %v1794
  %v1796 = vlaneseq
  %v1797 = vshrl.u32 %v1796, 7
  %v1798 = vsub.s32 %v1795, %v1797
  %v1799 = vrot.slane %v769, %v1798
  %v1801 = vunpack.c.l.s4 1983009808
  %v1802 = vunpack.c.0.s8 %v1801
  %v1803 = vlaneseq
  %v1804 = vshrl.u32 %v1803, 7
  %v1805 = vsub.s32 %v1802, %v1804
  %v1806 = vrot.slane %v1792, %v1805
  %v1807 = vcombine.high %v1799, %v1799
  %v1808 = vcombine.high %v1806, %v1806
  %v1809 = vcombine.high %v770, %v770
  %v1811 = vunpack.c.l.s4 1983009808
  %v1812 = vunpack.c.0.s8 %v1811
  %v1813 = vlaneseq
  %v1814 = vshrl.u32 %v1813, 7
  %v1815 = vsub.s32 %v1812, %v1814
  %v1816 = vrot.slane %v770, %v1815
  %v1818 = vunpack.c.l.s4 1983009808
  %v1819 = vunpack.c.0.s8 %v1818
  %v1820 = vlaneseq
  %v1821 = vshrl.u32 %v1820, 7
  %v1822 = vsub.s32 %v1819, %v1821
  %v1823 = vrot.slane %v1809, %v1822
  %v1824 = vcombine.high %v1816, %v1816
  %v1825 = vcombine.high %v1823, %v1823
  %v1826 = vcombine.high %v771, %v771
  %v1828 = vunpack.c.l.s4 1983009808
  %v1829 = vunpack.c.0.s8 %v1828
  %v1830 = vlaneseq
  %v1831 = vshrl.u32 %v1830, 7
  %v1832 = vsub.s32 %v1829, %v1831
  %v1833 = vrot.slane %v771, %v1832
  %v1835 = vunpack.c.l.s4 1983009808
  %v1836 = vunpack.c.0.s8 %v1835
  %v1837 = vlaneseq
  %v1838 = vshrl.u32 %v1837, 7
  %v1839 = vsub.s32 %v1836, %v1838
  %v1840 = vrot.slane %v1826, %v1839
  %v1841 = vcombine.high %v1833, %v1833
  %v1842 = vcombine.high %v1840, %v1840
  %v1843 = vcombine.high %v772, %v772
  %v1845 = vunpack.c.l.s4 1983009808
  %v1846 = vunpack.c.0.s8 %v1845
  %v1847 = vlaneseq
  %v1848 = vshrl.u32 %v1847, 7
  %v1849 = vsub.s32 %v1846, %v1848
  %v1850 = vrot.slane %v772, %v1849
  %v1852 = vunpack.c.l.s4 1983009808
  %v1853 = vunpack.c.0.s8 %v1852
  %v1854 = vlaneseq
  %v1855 = vshrl.u32 %v1854, 7
  %v1856 = vsub.s32 %v1853, %v1855
  %v1857 = vrot.slane %v1843, %v1856
  %v1858 = vcombine.high %v1850, %v1850
  %v1859 = vcombine.high %v1857, %v1857
  %v1860 = vcombine.high %v773, %v773
  %v1862 = vunpack.c.l.s4 1983009808
  %v1863 = vunpack.c.0.s8 %v1862
  %v1864 = vlaneseq
  %v1865 = vshrl.u32 %v1864, 7
  %v1866 = vsub.s32 %v1863, %v1865
  %v1867 = vrot.slane %v773, %v1866
  %v1869 = vunpack.c.l.s4 1983009808
  %v1870 = vunpack.c.0.s8 %v1869
  %v1871 = vlaneseq
  %v1872 = vshrl.u32 %v1871, 7
  %v1873 = vsub.s32 %v1870, %v1872
  %v1874 = vrot.slane %v1860, %v1873
  %v1875 = vcombine.high %v1867, %v1867
  %v1876 = vcombine.high %v1874, %v1874
  %v1877 = vcombine.high %v774, %v774
  %v1879 = vunpack.c.l.s4 1983009808
  %v1880 = vunpack.c.0.s8 %v1879
  %v1881 = vlaneseq
  %v1882 = vshrl.u32 %v1881, 7
  %v1883 = vsub.s32 %v1880, %v1882
  %v1884 = vrot.slane %v774, %v1883
  %v1886 = vunpack.c.l.s4 1983009808
  %v1887 = vunpack.c.0.s8 %v1886
  %v1888 = vlaneseq
  %v1889 = vshrl.u32 %v1888, 7
  %v1890 = vsub.s32 %v1887, %v1889
  %v1891 = vrot.slane %v1877, %v1890
  %v1892 = vcombine.high %v1884, %v1884
  %v1893 = vcombine.high %v1891, %v1891
  %v1895 = vunpack.c.l.s4 1983009808
  %v1896 = vunpack.c.0.s8 %v1895
  %v1897 = vlaneseq
  %v1898 = vshrl.u32 %v1897, 7
  %v1899 = vsub.s32 %v1896, %v1898
  %v1900 = vrot.slane %v775, %v1899
  %v1901 = vcombine.high %v1900, %v1900
  %v1952 = vsel %vm1077, %v1697, -inf
  %v1953 = vrot.slane %v1952, 4
  %v1954 = vmax.f32 %v1952, %v1953
  %v1955 = vrot.slane %v1954, 2
  %v1956 = vmax.f32 %v1954, %v1955
  %v1957 = vrot.slane %v1956, 1
  %v1958 = vmax.f32 %v1956, %v1957
  %v1959 = vsel %vm1077, %v1705, -inf
  %v1960 = vrot.slane %v1959, 4
  %v1961 = vmax.f32 %v1959, %v1960
  %v1962 = vrot.slane %v1961, 2
  %v1963 = vmax.f32 %v1961, %v1962
  %v1964 = vrot.slane %v1963, 1
  %v1965 = vmax.f32 %v1963, %v1964
  %v1966 = vsel %vm1077, %v1704, -inf
  %v1967 = vrot.slane %v1966, 4
  %v1968 = vmax.f32 %v1966, %v1967
  %v1969 = vrot.slane %v1968, 2
  %v1970 = vmax.f32 %v1968, %v1969
  %v1971 = vrot.slane %v1970, 1
  %v1972 = vmax.f32 %v1970, %v1971
  %v1973 = vsel %vm1077, %v1706, -inf
  %v1974 = vrot.slane %v1973, 4
  %v1975 = vmax.f32 %v1973, %v1974
  %v1976 = vrot.slane %v1975, 2
  %v1977 = vmax.f32 %v1975, %v1976
  %v1978 = vrot.slane %v1977, 1
  %v1979 = vmax.f32 %v1977, %v1978
  %v1980 = vsel %vm1077, %v1714, -inf
  %v1981 = vrot.slane %v1980, 4
  %v1982 = vmax.f32 %v1980, %v1981
  %v1983 = vrot.slane %v1982, 2
  %v1984 = vmax.f32 %v1982, %v1983
  %v1985 = vrot.slane %v1984, 1
  %v1986 = vmax.f32 %v1984, %v1985
  %v1987 = vsel %vm1077, %v1722, -inf
  %v1988 = vrot.slane %v1987, 4
  %v1989 = vmax.f32 %v1987, %v1988
  %v1990 = vrot.slane %v1989, 2
  %v1991 = vmax.f32 %v1989, %v1990
  %v1992 = vrot.slane %v1991, 1
  %v1993 = vmax.f32 %v1991, %v1992
  %v1994 = vsel %vm1077, %v1721, -inf
  %v1995 = vrot.slane %v1994, 4
  %v1996 = vmax.f32 %v1994, %v1995
  %v1997 = vrot.slane %v1996, 2
  %v1998 = vmax.f32 %v1996, %v1997
  %v1999 = vrot.slane %v1998, 1
  %v2000 = vmax.f32 %v1998, %v1999
  %v2001 = vsel %vm1077, %v1723, -inf
  %v2002 = vrot.slane %v2001, 4
  %v2003 = vmax.f32 %v2001, %v2002
  %v2004 = vrot.slane %v2003, 2
  %v2005 = vmax.f32 %v2003, %v2004
  %v2006 = vrot.slane %v2005, 1
  %v2007 = vmax.f32 %v2005, %v2006
  %v2008 = vsel %vm1077, %v1731, -inf
  %v2009 = vrot.slane %v2008, 4
  %v2010 = vmax.f32 %v2008, %v2009
  %v2011 = vrot.slane %v2010, 2
  %v2012 = vmax.f32 %v2010, %v2011
  %v2013 = vrot.slane %v2012, 1
  %v2014 = vmax.f32 %v2012, %v2013
  %v2015 = vsel %vm1077, %v1739, -inf
  %v2016 = vrot.slane %v2015, 4
  %v2017 = vmax.f32 %v2015, %v2016
  %v2018 = vrot.slane %v2017, 2
  %v2019 = vmax.f32 %v2017, %v2018
  %v2020 = vrot.slane %v2019, 1
  %v2021 = vmax.f32 %v2019, %v2020
  %v2022 = vsel %vm1077, %v1738, -inf
  %v2023 = vrot.slane %v2022, 4
  %v2024 = vmax.f32 %v2022, %v2023
  %v2025 = vrot.slane %v2024, 2
  %v2026 = vmax.f32 %v2024, %v2025
  %v2027 = vrot.slane %v2026, 1
  %v2028 = vmax.f32 %v2026, %v2027
  %v2029 = vsel %vm1077, %v1740, -inf
  %v2030 = vrot.slane %v2029, 4
  %v2031 = vmax.f32 %v2029, %v2030
  %v2032 = vrot.slane %v2031, 2
  %v2033 = vmax.f32 %v2031, %v2032
  %v2034 = vrot.slane %v2033, 1
  %v2035 = vmax.f32 %v2033, %v2034
  %v2036 = vsel %vm1077, %v1748, -inf
  %v2037 = vrot.slane %v2036, 4
  %v2038 = vmax.f32 %v2036, %v2037
  %v2039 = vrot.slane %v2038, 2
  %v2040 = vmax.f32 %v2038, %v2039
  %v2041 = vrot.slane %v2040, 1
  %v2042 = vmax.f32 %v2040, %v2041
  %v2043 = vsel %vm1077, %v1756, -inf
  %v2044 = vrot.slane %v2043, 4
  %v2045 = vmax.f32 %v2043, %v2044
  %v2046 = vrot.slane %v2045, 2
  %v2047 = vmax.f32 %v2045, %v2046
  %v2048 = vrot.slane %v2047, 1
  %v2049 = vmax.f32 %v2047, %v2048
  %v2050 = vsel %vm1077, %v1755, -inf
  %v2051 = vrot.slane %v2050, 4
  %v2052 = vmax.f32 %v2050, %v2051
  %v2053 = vrot.slane %v2052, 2
  %v2054 = vmax.f32 %v2052, %v2053
  %v2055 = vrot.slane %v2054, 1
  %v2056 = vmax.f32 %v2054, %v2055
  %v2057 = vsel %vm1077, %v1757, -inf
  %v2058 = vrot.slane %v2057, 4
  %v2059 = vmax.f32 %v2057, %v2058
  %v2060 = vrot.slane %v2059, 2
  %v2061 = vmax.f32 %v2059, %v2060
  %v2062 = vrot.slane %v2061, 1
  %v2063 = vmax.f32 %v2061, %v2062
  %v2064 = vsel %vm1077, %v1765, -inf
  %v2065 = vrot.slane %v2064, 4
  %v2066 = vmax.f32 %v2064, %v2065
  %v2067 = vrot.slane %v2066, 2
  %v2068 = vmax.f32 %v2066, %v2067
  %v2069 = vrot.slane %v2068, 1
  %v2070 = vmax.f32 %v2068, %v2069
  %v2071 = vsel %vm1077, %v1773, -inf
  %v2072 = vrot.slane %v2071, 4
  %v2073 = vmax.f32 %v2071, %v2072
  %v2074 = vrot.slane %v2073, 2
  %v2075 = vmax.f32 %v2073, %v2074
  %v2076 = vrot.slane %v2075, 1
  %v2077 = vmax.f32 %v2075, %v2076
  %v2078 = vsel %vm1077, %v1772, -inf
  %v2079 = vrot.slane %v2078, 4
  %v2080 = vmax.f32 %v2078, %v2079
  %v2081 = vrot.slane %v2080, 2
  %v2082 = vmax.f32 %v2080, %v2081
  %v2083 = vrot.slane %v2082, 1
  %v2084 = vmax.f32 %v2082, %v2083
  %v2085 = vsel %vm1077, %v1774, -inf
  %v2086 = vrot.slane %v2085, 4
  %v2087 = vmax.f32 %v2085, %v2086
  %v2088 = vrot.slane %v2087, 2
  %v2089 = vmax.f32 %v2087, %v2088
  %v2090 = vrot.slane %v2089, 1
  %v2091 = vmax.f32 %v2089, %v2090
  %v2092 = vsel %vm1077, %v1782, -inf
  %v2093 = vrot.slane %v2092, 4
  %v2094 = vmax.f32 %v2092, %v2093
  %v2095 = vrot.slane %v2094, 2
  %v2096 = vmax.f32 %v2094, %v2095
  %v2097 = vrot.slane %v2096, 1
  %v2098 = vmax.f32 %v2096, %v2097
  %v2099 = vsel %vm1077, %v1790, -inf
  %v2100 = vrot.slane %v2099, 4
  %v2101 = vmax.f32 %v2099, %v2100
  %v2102 = vrot.slane %v2101, 2
  %v2103 = vmax.f32 %v2101, %v2102
  %v2104 = vrot.slane %v2103, 1
  %v2105 = vmax.f32 %v2103, %v2104
  %v2106 = vsel %vm1077, %v1789, -inf
  %v2107 = vrot.slane %v2106, 4
  %v2108 = vmax.f32 %v2106, %v2107
  %v2109 = vrot.slane %v2108, 2
  %v2110 = vmax.f32 %v2108, %v2109
  %v2111 = vrot.slane %v2110, 1
  %v2112 = vmax.f32 %v2110, %v2111
  %v2113 = vsel %vm1077, %v1791, -inf
  %v2114 = vrot.slane %v2113, 4
  %v2115 = vmax.f32 %v2113, %v2114
  %v2116 = vrot.slane %v2115, 2
  %v2117 = vmax.f32 %v2115, %v2116
  %v2118 = vrot.slane %v2117, 1
  %v2119 = vmax.f32 %v2117, %v2118
  %v2120 = vsel %vm1077, %v1799, -inf
  %v2121 = vrot.slane %v2120, 4
  %v2122 = vmax.f32 %v2120, %v2121
  %v2123 = vrot.slane %v2122, 2
  %v2124 = vmax.f32 %v2122, %v2123
  %v2125 = vrot.slane %v2124, 1
  %v2126 = vmax.f32 %v2124, %v2125
  %v2127 = vsel %vm1077, %v1807, -inf
  %v2128 = vrot.slane %v2127, 4
  %v2129 = vmax.f32 %v2127, %v2128
  %v2130 = vrot.slane %v2129, 2
  %v2131 = vmax.f32 %v2129, %v2130
  %v2132 = vrot.slane %v2131, 1
  %v2133 = vmax.f32 %v2131, %v2132
  %v2134 = vsel %vm1077, %v1806, -inf
  %v2135 = vrot.slane %v2134, 4
  %v2136 = vmax.f32 %v2134, %v2135
  %v2137 = vrot.slane %v2136, 2
  %v2138 = vmax.f32 %v2136, %v2137
  %v2139 = vrot.slane %v2138, 1
  %v2140 = vmax.f32 %v2138, %v2139
  %v2141 = vsel %vm1077, %v1808, -inf
  %v2142 = vrot.slane %v2141, 4
  %v2143 = vmax.f32 %v2141, %v2142
  %v2144 = vrot.slane %v2143, 2
  %v2145 = vmax.f32 %v2143, %v2144
  %v2146 = vrot.slane %v2145, 1
  %v2147 = vmax.f32 %v2145, %v2146
  %v2148 = vsel %vm1077, %v1816, -inf
  %v2149 = vrot.slane %v2148, 4
  %v2150 = vmax.f32 %v2148, %v2149
  %v2151 = vrot.slane %v2150, 2
  %v2152 = vmax.f32 %v2150, %v2151
  %v2153 = vrot.slane %v2152, 1
  %v2154 = vmax.f32 %v2152, %v2153
  %v2155 = vsel %vm1077, %v1824, -inf
  %v2156 = vrot.slane %v2155, 4
  %v2157 = vmax.f32 %v2155, %v2156
  %v2158 = vrot.slane %v2157, 2
  %v2159 = vmax.f32 %v2157, %v2158
  %v2160 = vrot.slane %v2159, 1
  %v2161 = vmax.f32 %v2159, %v2160
  %v2162 = vsel %vm1077, %v1823, -inf
  %v2163 = vrot.slane %v2162, 4
  %v2164 = vmax.f32 %v2162, %v2163
  %v2165 = vrot.slane %v2164, 2
  %v2166 = vmax.f32 %v2164, %v2165
  %v2167 = vrot.slane %v2166, 1
  %v2168 = vmax.f32 %v2166, %v2167
  %v2169 = vsel %vm1077, %v1825, -inf
  %v2170 = vrot.slane %v2169, 4
  %v2171 = vmax.f32 %v2169, %v2170
  %v2172 = vrot.slane %v2171, 2
  %v2173 = vmax.f32 %v2171, %v2172
  %v2174 = vrot.slane %v2173, 1
  %v2175 = vmax.f32 %v2173, %v2174
  %v2176 = vsel %vm1077, %v1833, -inf
  %v2177 = vrot.slane %v2176, 4
  %v2178 = vmax.f32 %v2176, %v2177
  %v2179 = vrot.slane %v2178, 2
  %v2180 = vmax.f32 %v2178, %v2179
  %v2181 = vrot.slane %v2180, 1
  %v2182 = vmax.f32 %v2180, %v2181
  %v2183 = vsel %vm1077, %v1841, -inf
  %v2184 = vrot.slane %v2183, 4
  %v2185 = vmax.f32 %v2183, %v2184
  %v2186 = vrot.slane %v2185, 2
  %v2187 = vmax.f32 %v2185, %v2186
  %v2188 = vrot.slane %v2187, 1
  %v2189 = vmax.f32 %v2187, %v2188
  %v2190 = vsel %vm1077, %v1840, -inf
  %v2191 = vrot.slane %v2190, 4
  %v2192 = vmax.f32 %v2190, %v2191
  %v2193 = vrot.slane %v2192, 2
  %v2194 = vmax.f32 %v2192, %v2193
  %v2195 = vrot.slane %v2194, 1
  %v2196 = vmax.f32 %v2194, %v2195
  %v2197 = vsel %vm1077, %v1842, -inf
  %v2198 = vrot.slane %v2197, 4
  %v2199 = vmax.f32 %v2197, %v2198
  %v2200 = vrot.slane %v2199, 2
  %v2201 = vmax.f32 %v2199, %v2200
  %v2202 = vrot.slane %v2201, 1
  %v2203 = vmax.f32 %v2201, %v2202
  %v2204 = vsel %vm1077, %v1850, -inf
  %v2205 = vrot.slane %v2204, 4
  %v2206 = vmax.f32 %v2204, %v2205
  %v2207 = vrot.slane %v2206, 2
  %v2208 = vmax.f32 %v2206, %v2207
  %v2209 = vrot.slane %v2208, 1
  %v2210 = vmax.f32 %v2208, %v2209
  %v2211 = vsel %vm1077, %v1858, -inf
  %v2212 = vrot.slane %v2211, 4
  %v2213 = vmax.f32 %v2211, %v2212
  %v2214 = vrot.slane %v2213, 2
  %v2215 = vmax.f32 %v2213, %v2214
  %v2216 = vrot.slane %v2215, 1
  %v2217 = vmax.f32 %v2215, %v2216
  %v2218 = vsel %vm1077, %v1857, -inf
  %v2219 = vrot.slane %v2218, 4
  %v2220 = vmax.f32 %v2218, %v2219
  %v2221 = vrot.slane %v2220, 2
  %v2222 = vmax.f32 %v2220, %v2221
  %v2223 = vrot.slane %v2222, 1
  %v2224 = vmax.f32 %v2222, %v2223
  %v2225 = vsel %vm1077, %v1859, -inf
  %v2226 = vrot.slane %v2225, 4
  %v2227 = vmax.f32 %v2225, %v2226
  %v2228 = vrot.slane %v2227, 2
  %v2229 = vmax.f32 %v2227, %v2228
  %v2230 = vrot.slane %v2229, 1
  %v2231 = vmax.f32 %v2229, %v2230
  %v2232 = vsel %vm1077, %v1867, -inf
  %v2233 = vrot.slane %v2232, 4
  %v2234 = vmax.f32 %v2232, %v2233
  %v2235 = vrot.slane %v2234, 2
  %v2236 = vmax.f32 %v2234, %v2235
  %v2237 = vrot.slane %v2236, 1
  %v2238 = vmax.f32 %v2236, %v2237
  %v2239 = vsel %vm1077, %v1875, -inf
  %v2240 = vrot.slane %v2239, 4
  %v2241 = vmax.f32 %v2239, %v2240
  %v2242 = vrot.slane %v2241, 2
  %v2243 = vmax.f32 %v2241, %v2242
  %v2244 = vrot.slane %v2243, 1
  %v2245 = vmax.f32 %v2243, %v2244
  %v2246 = vsel %vm1077, %v1874, -inf
  %v2247 = vrot.slane %v2246, 4
  %v2248 = vmax.f32 %v2246, %v2247
  %v2249 = vrot.slane %v2248, 2
  %v2250 = vmax.f32 %v2248, %v2249
  %v2251 = vrot.slane %v2250, 1
  %v2252 = vmax.f32 %v2250, %v2251
  %v2253 = vsel %vm1077, %v1876, -inf
  %v2254 = vrot.slane %v2253, 4
  %v2255 = vmax.f32 %v2253, %v2254
  %v2256 = vrot.slane %v2255, 2
  %v2257 = vmax.f32 %v2255, %v2256
  %v2258 = vrot.slane %v2257, 1
  %v2259 = vmax.f32 %v2257, %v2258
  %v2260 = vsel %vm1077, %v1884, -inf
  %v2261 = vrot.slane %v2260, 4
  %v2262 = vmax.f32 %v2260, %v2261
  %v2263 = vrot.slane %v2262, 2
  %v2264 = vmax.f32 %v2262, %v2263
  %v2265 = vrot.slane %v2264, 1
  %v2266 = vmax.f32 %v2264, %v2265
  %v2267 = vsel %vm1077, %v1892, -inf
  %v2268 = vrot.slane %v2267, 4
  %v2269 = vmax.f32 %v2267, %v2268
  %v2270 = vrot.slane %v2269, 2
  %v2271 = vmax.f32 %v2269, %v2270
  %v2272 = vrot.slane %v2271, 1
  %v2273 = vmax.f32 %v2271, %v2272
  %v2274 = vsel %vm1077, %v1891, -inf
  %v2275 = vrot.slane %v2274, 4
  %v2276 = vmax.f32 %v2274, %v2275
  %v2277 = vrot.slane %v2276, 2
  %v2278 = vmax.f32 %v2276, %v2277
  %v2279 = vrot.slane %v2278, 1
  %v2280 = vmax.f32 %v2278, %v2279
  %v2281 = vsel %vm1077, %v1893, -inf
  %v2282 = vrot.slane %v2281, 4
  %v2283 = vmax.f32 %v2281, %v2282
  %v2284 = vrot.slane %v2283, 2
  %v2285 = vmax.f32 %v2283, %v2284
  %v2286 = vrot.slane %v2285, 1
  %v2287 = vmax.f32 %v2285, %v2286
  %v2288 = vsel %vm1077, %v1900, -inf
  %v2289 = vrot.slane %v2288, 4
  %v2290 = vmax.f32 %v2288, %v2289
  %v2291 = vrot.slane %v2290, 2
  %v2292 = vmax.f32 %v2290, %v2291
  %v2293 = vrot.slane %v2292, 1
  %v2294 = vmax.f32 %v2292, %v2293
  %v2295 = vsel %vm1077, %v1901, -inf
  %v2296 = vrot.slane %v2295, 4
  %v2297 = vmax.f32 %v2295, %v2296
  %v2298 = vrot.slane %v2297, 2
  %v2299 = vmax.f32 %v2297, %v2298
  %v2300 = vrot.slane %v2299, 1
  %v2301 = vmax.f32 %v2299, %v2300
  %v2352 = vsel %vm1478, %v1965, %v1958
  %v2353 = vsel %vm1480, %v1972, %v2352
  %v2354 = vsel %vm1482, %v1979, %v2353
  %v2355 = vsel %vm1484, %v1986, %v2354
  %v2356 = vsel %vm1486, %v1993, %v2355
  %v2357 = vsel %vm1488, %v2000, %v2356
  %v2358 = vsel %vm1490, %v2014, %v2007
  %v2359 = vsel %vm1478, %v2021, %v2358
  %v2360 = vsel %vm1480, %v2028, %v2359
  %v2361 = vsel %vm1482, %v2035, %v2360
  %v2362 = vsel %vm1484, %v2042, %v2361
  %v2363 = vsel %vm1486, %v2049, %v2362
  %v2364 = vsel %vm1488, %v2056, %v2363
  %v2365 = vsel %vm1490, %v2070, %v2063
  %v2366 = vsel %vm1478, %v2077, %v2365
  %v2367 = vsel %vm1480, %v2084, %v2366
  %v2368 = vsel %vm1482, %v2091, %v2367
  %v2369 = vsel %vm1484, %v2098, %v2368
  %v2370 = vsel %vm1486, %v2105, %v2369
  %v2371 = vsel %vm1488, %v2112, %v2370
  %v2372 = vsel %vm1490, %v2126, %v2119
  %v2373 = vsel %vm1478, %v2133, %v2372
  %v2374 = vsel %vm1480, %v2140, %v2373
  %v2375 = vsel %vm1482, %v2147, %v2374
  %v2376 = vsel %vm1484, %v2154, %v2375
  %v2377 = vsel %vm1486, %v2161, %v2376
  %v2378 = vsel %vm1488, %v2168, %v2377
  %v2379 = vsel %vm1490, %v2182, %v2175
  %v2380 = vsel %vm1478, %v2189, %v2379
  %v2381 = vsel %vm1480, %v2196, %v2380
  %v2382 = vsel %vm1482, %v2203, %v2381
  %v2383 = vsel %vm1484, %v2210, %v2382
  %v2384 = vsel %vm1486, %v2217, %v2383
  %v2385 = vsel %vm1488, %v2224, %v2384
  %v2386 = vsel %vm1490, %v2238, %v2231
  %v2387 = vsel %vm1478, %v2245, %v2386
  %v2388 = vsel %vm1480, %v2252, %v2387
  %v2389 = vsel %vm1482, %v2259, %v2388
  %v2390 = vsel %vm1484, %v2266, %v2389
  %v2391 = vsel %vm1486, %v2273, %v2390
  %v2392 = vsel %vm1488, %v2280, %v2391
  %v2393 = vsel %vm1490, %v2294, %v2287
  %v2394 = vsel %vm1478, %v2301, %v2393
  %2402 = vst.msk [vmem:[#allocation2 + $0x80] sm:$0xfe] %vm1535, %v2357
  %2403 = vst.msk [vmem:[#allocation2 + $0x90] sm:$0xff] %vm68, %v2364
  %2404 = vst.msk [vmem:[#allocation2 + $0xa0] sm:$0xff] %vm68, %v2371
  %2405 = vst.msk [vmem:[#allocation2 + $0xb0] sm:$0xff] %vm68, %v2378
  %2406 = vst.msk [vmem:[#allocation2 + $0xc0] sm:$0xff] %vm68, %v2385
  %2407 = vst.msk [vmem:[#allocation2 + $0xd0] sm:$0xff] %vm68, %v2392
  %2408 = vst.msk [vmem:[#allocation2 + $0xe0] sm:$0x7] %vm1542, %v2394
  %v2409 = vsel %vm1490, %v1965, %v1958
  %v2410 = vsel %vm1478, %v1972, %v2409
  %v2411 = vsel %vm1480, %v1979, %v2410
  %v2412 = vsel %vm1482, %v1986, %v2411
  %v2413 = vsel %vm1484, %v1993, %v2412
  %v2414 = vsel %vm1486, %v2000, %v2413
  %v2415 = vsel %vm1488, %v2007, %v2414
  %v2416 = vsel %vm1490, %v2021, %v2014
  %v2417 = vsel %vm1478, %v2028, %v2416
  %v2418 = vsel %vm1480, %v2035, %v2417
  %v2419 = vsel %vm1482, %v2042, %v2418
  %v2420 = vsel %vm1484, %v2049, %v2419
  %v2421 = vsel %vm1486, %v2056, %v2420
  %v2422 = vsel %vm1488, %v2063, %v2421
  %v2423 = vsel %vm1490, %v2077, %v2070
  %v2424 = vsel %vm1478, %v2084, %v2423
  %v2425 = vsel %vm1480, %v2091, %v2424
  %v2426 = vsel %vm1482, %v2098, %v2425
  %v2427 = vsel %vm1484, %v2105, %v2426
  %v2428 = vsel %vm1486, %v2112, %v2427
  %v2429 = vsel %vm1488, %v2119, %v2428
  %v2430 = vsel %vm1490, %v2133, %v2126
  %v2431 = vsel %vm1478, %v2140, %v2430
  %v2432 = vsel %vm1480, %v2147, %v2431
  %v2433 = vsel %vm1482, %v2154, %v2432
  %v2434 = vsel %vm1484, %v2161, %v2433
  %v2435 = vsel %vm1486, %v2168, %v2434
  %v2436 = vsel %vm1488, %v2175, %v2435
  %v2437 = vsel %vm1490, %v2189, %v2182
  %v2438 = vsel %vm1478, %v2196, %v2437
  %v2439 = vsel %vm1480, %v2203, %v2438
  %v2440 = vsel %vm1482, %v2210, %v2439
  %v2441 = vsel %vm1484, %v2217, %v2440
  %v2442 = vsel %vm1486, %v2224, %v2441
  %v2443 = vsel %vm1488, %v2231, %v2442
  %v2444 = vsel %vm1490, %v2245, %v2238
  %v2445 = vsel %vm1478, %v2252, %v2444
  %v2446 = vsel %vm1480, %v2259, %v2445
  %v2447 = vsel %vm1482, %v2266, %v2446
  %v2448 = vsel %vm1484, %v2273, %v2447
  %v2449 = vsel %vm1486, %v2280, %v2448
  %v2450 = vsel %vm1488, %v2287, %v2449
  %v2451 = vsel %vm1490, %v2301, %v2294
  %2452 = vrot.lane.b32.xlu0 %v2415, 64
  %v2453 = vpop.permute.xlu0 %2452
  %2454 = vrot.lane.b32.xlu0 %v2422, 64
  %v2455 = vpop.permute.xlu0 %2454
  %2456 = vrot.lane.b32.xlu0 %v2429, 64
  %v2457 = vpop.permute.xlu0 %2456
  %2458 = vrot.lane.b32.xlu0 %v2436, 64
  %v2459 = vpop.permute.xlu0 %2458
  %2460 = vrot.lane.b32.xlu0 %v2443, 64
  %v2461 = vpop.permute.xlu0 %2460
  %2462 = vrot.lane.b32.xlu0 %v2450, 64
  %v2463 = vpop.permute.xlu0 %2462
  %2464 = vrot.lane.b32.xlu0 %v2451, 64
  %v2465 = vpop.permute.xlu0 %2464
  %2473 = vst.msk [vmem:[#allocation2 + $0x80] sm:$0xff] %vm1608, %v2453
  %2474 = vst.msk [vmem:[#allocation2 + $0x90] sm:$0xff] %vm1608, %v2455
  %2475 = vst.msk [vmem:[#allocation2 + $0xa0] sm:$0xff] %vm1608, %v2457
  %2476 = vst.msk [vmem:[#allocation2 + $0xb0] sm:$0xff] %vm1608, %v2459
  %2477 = vst.msk [vmem:[#allocation2 + $0xc0] sm:$0xff] %vm1608, %v2461
  %2478 = vst.msk [vmem:[#allocation2 + $0xd0] sm:$0xff] %vm1608, %v2463
  %2479 = vst.msk [vmem:[#allocation2 + $0xe0] sm:$0x3] %vm1615, %v2465
  %v2480 = vsel %vm1490, %v1972, %v1965
  %v2481 = vsel %vm1478, %v1979, %v2480
  %v2482 = vsel %vm1480, %v1986, %v2481
  %v2483 = vsel %vm1482, %v1993, %v2482
  %v2484 = vsel %vm1484, %v2000, %v2483
  %v2485 = vsel %vm1486, %v2007, %v2484
  %v2486 = vsel %vm1488, %v2014, %v2485
  %v2487 = vsel %vm1490, %v2028, %v2021
  %v2488 = vsel %vm1478, %v2035, %v2487
  %v2489 = vsel %vm1480, %v2042, %v2488
  %v2490 = vsel %vm1482, %v2049, %v2489
  %v2491 = vsel %vm1484, %v2056, %v2490
  %v2492 = vsel %vm1486, %v2063, %v2491
  %v2493 = vsel %vm1488, %v2070, %v2492
  %v2494 = vsel %vm1490, %v2084, %v2077
  %v2495 = vsel %vm1478, %v2091, %v2494
  %v2496 = vsel %vm1480, %v2098, %v2495
  %v2497 = vsel %vm1482, %v2105, %v2496
  %v2498 = vsel %vm1484, %v2112, %v2497
  %v2499 = vsel %vm1486, %v2119, %v2498
  %v2500 = vsel %vm1488, %v2126, %v2499
  %v2501 = vsel %vm1490, %v2140, %v2133
  %v2502 = vsel %vm1478, %v2147, %v2501
  %v2503 = vsel %vm1480, %v2154, %v2502
  %v2504 = vsel %vm1482, %v2161, %v2503
  %v2505 = vsel %vm1484, %v2168, %v2504
  %v2506 = vsel %vm1486, %v2175, %v2505
  %v2507 = vsel %vm1488, %v2182, %v2506
  %v2508 = vsel %vm1490, %v2196, %v2189
  %v2509 = vsel %vm1478, %v2203, %v2508
  %v2510 = vsel %vm1480, %v2210, %v2509
  %v2511 = vsel %vm1482, %v2217, %v2510
  %v2512 = vsel %vm1484, %v2224, %v2511
  %v2513 = vsel %vm1486, %v2231, %v2512
  %v2514 = vsel %vm1488, %v2238, %v2513
  %v2515 = vsel %vm1490, %v2252, %v2245
  %v2516 = vsel %vm1478, %v2259, %v2515
  %v2517 = vsel %vm1480, %v2266, %v2516
  %v2518 = vsel %vm1482, %v2273, %v2517
  %v2519 = vsel %vm1484, %v2280, %v2518
  %v2520 = vsel %vm1486, %v2287, %v2519
  %v2521 = vsel %vm1488, %v2294, %v2520
  %2530 = vst.msk [vmem:[#allocation2 + $0x78] sm:$0x80] %vm1667, %v1958
  %2531 = vst.msk [vmem:[#allocation2 + $0x88] sm:$0xff] %vm68, %v2486
  %2532 = vst.msk [vmem:[#allocation2 + $0x98] sm:$0xff] %vm68, %v2493
  %2533 = vst.msk [vmem:[#allocation2 + $0xa8] sm:$0xff] %vm68, %v2500
  %2534 = vst.msk [vmem:[#allocation2 + $0xb8] sm:$0xff] %vm68, %v2507
  %2535 = vst.msk [vmem:[#allocation2 + $0xc8] sm:$0xff] %vm68, %v2514
  %2536 = vst.msk [vmem:[#allocation2 + $0xd8] sm:$0xff] %vm68, %v2521
  %2537 = vst.msk [vmem:[#allocation2 + $0xe8] sm:$0x1] %vm1675, %v2301
  %v2551 = vcombine.high %v776, %v776
  %v2553 = vunpack.c.l.s4 1983009808
  %v2554 = vunpack.c.0.s8 %v2553
  %v2555 = vlaneseq
  %v2556 = vshrl.u32 %v2555, 7
  %v2557 = vsub.s32 %v2554, %v2556
  %v2558 = vrot.slane %v776, %v2557
  %v2560 = vunpack.c.l.s4 1983009808
  %v2561 = vunpack.c.0.s8 %v2560
  %v2562 = vlaneseq
  %v2563 = vshrl.u32 %v2562, 7
  %v2564 = vsub.s32 %v2561, %v2563
  %v2565 = vrot.slane %v2551, %v2564
  %v2566 = vcombine.high %v2558, %v2558
  %v2567 = vcombine.high %v2565, %v2565
  %v2568 = vcombine.high %v777, %v777
  %v2570 = vunpack.c.l.s4 1983009808
  %v2571 = vunpack.c.0.s8 %v2570
  %v2572 = vlaneseq
  %v2573 = vshrl.u32 %v2572, 7
  %v2574 = vsub.s32 %v2571, %v2573
  %v2575 = vrot.slane %v777, %v2574
  %v2577 = vunpack.c.l.s4 1983009808
  %v2578 = vunpack.c.0.s8 %v2577
  %v2579 = vlaneseq
  %v2580 = vshrl.u32 %v2579, 7
  %v2581 = vsub.s32 %v2578, %v2580
  %v2582 = vrot.slane %v2568, %v2581
  %v2583 = vcombine.high %v2575, %v2575
  %v2584 = vcombine.high %v2582, %v2582
  %v2585 = vcombine.high %v778, %v778
  %v2587 = vunpack.c.l.s4 1983009808
  %v2588 = vunpack.c.0.s8 %v2587
  %v2589 = vlaneseq
  %v2590 = vshrl.u32 %v2589, 7
  %v2591 = vsub.s32 %v2588, %v2590
  %v2592 = vrot.slane %v778, %v2591
  %v2594 = vunpack.c.l.s4 1983009808
  %v2595 = vunpack.c.0.s8 %v2594
  %v2596 = vlaneseq
  %v2597 = vshrl.u32 %v2596, 7
  %v2598 = vsub.s32 %v2595, %v2597
  %v2599 = vrot.slane %v2585, %v2598
  %v2600 = vcombine.high %v2592, %v2592
  %v2601 = vcombine.high %v2599, %v2599
  %v2602 = vcombine.high %v779, %v779
  %v2604 = vunpack.c.l.s4 1983009808
  %v2605 = vunpack.c.0.s8 %v2604
  %v2606 = vlaneseq
  %v2607 = vshrl.u32 %v2606, 7
  %v2608 = vsub.s32 %v2605, %v2607
  %v2609 = vrot.slane %v779, %v2608
  %v2611 = vunpack.c.l.s4 1983009808
  %v2612 = vunpack.c.0.s8 %v2611
  %v2613 = vlaneseq
  %v2614 = vshrl.u32 %v2613, 7
  %v2615 = vsub.s32 %v2612, %v2614
  %v2616 = vrot.slane %v2602, %v2615
  %v2617 = vcombine.high %v2609, %v2609
  %v2618 = vcombine.high %v2616, %v2616
  %v2619 = vcombine.high %v780, %v780
  %v2621 = vunpack.c.l.s4 1983009808
  %v2622 = vunpack.c.0.s8 %v2621
  %v2623 = vlaneseq
  %v2624 = vshrl.u32 %v2623, 7
  %v2625 = vsub.s32 %v2622, %v2624
  %v2626 = vrot.slane %v780, %v2625
  %v2628 = vunpack.c.l.s4 1983009808
  %v2629 = vunpack.c.0.s8 %v2628
  %v2630 = vlaneseq
  %v2631 = vshrl.u32 %v2630, 7
  %v2632 = vsub.s32 %v2629, %v2631
  %v2633 = vrot.slane %v2619, %v2632
  %v2634 = vcombine.high %v2626, %v2626
  %v2635 = vcombine.high %v2633, %v2633
  %v2636 = vcombine.high %v781, %v781
  %v2638 = vunpack.c.l.s4 1983009808
  %v2639 = vunpack.c.0.s8 %v2638
  %v2640 = vlaneseq
  %v2641 = vshrl.u32 %v2640, 7
  %v2642 = vsub.s32 %v2639, %v2641
  %v2643 = vrot.slane %v781, %v2642
  %v2645 = vunpack.c.l.s4 1983009808
  %v2646 = vunpack.c.0.s8 %v2645
  %v2647 = vlaneseq
  %v2648 = vshrl.u32 %v2647, 7
  %v2649 = vsub.s32 %v2646, %v2648
  %v2650 = vrot.slane %v2636, %v2649
  %v2651 = vcombine.high %v2643, %v2643
  %v2652 = vcombine.high %v2650, %v2650
  %v2653 = vcombine.high %v782, %v782
  %v2655 = vunpack.c.l.s4 1983009808
  %v2656 = vunpack.c.0.s8 %v2655
  %v2657 = vlaneseq
  %v2658 = vshrl.u32 %v2657, 7
  %v2659 = vsub.s32 %v2656, %v2658
  %v2660 = vrot.slane %v782, %v2659
  %v2662 = vunpack.c.l.s4 1983009808
  %v2663 = vunpack.c.0.s8 %v2662
  %v2664 = vlaneseq
  %v2665 = vshrl.u32 %v2664, 7
  %v2666 = vsub.s32 %v2663, %v2665
  %v2667 = vrot.slane %v2653, %v2666
  %v2668 = vcombine.high %v2660, %v2660
  %v2669 = vcombine.high %v2667, %v2667
  %v2670 = vcombine.high %v783, %v783
  %v2672 = vunpack.c.l.s4 1983009808
  %v2673 = vunpack.c.0.s8 %v2672
  %v2674 = vlaneseq
  %v2675 = vshrl.u32 %v2674, 7
  %v2676 = vsub.s32 %v2673, %v2675
  %v2677 = vrot.slane %v783, %v2676
  %v2679 = vunpack.c.l.s4 1983009808
  %v2680 = vunpack.c.0.s8 %v2679
  %v2681 = vlaneseq
  %v2682 = vshrl.u32 %v2681, 7
  %v2683 = vsub.s32 %v2680, %v2682
  %v2684 = vrot.slane %v2670, %v2683
  %v2685 = vcombine.high %v2677, %v2677
  %v2686 = vcombine.high %v2684, %v2684
  %v2687 = vcombine.high %v784, %v784
  %v2689 = vunpack.c.l.s4 1983009808
  %v2690 = vunpack.c.0.s8 %v2689
  %v2691 = vlaneseq
  %v2692 = vshrl.u32 %v2691, 7
  %v2693 = vsub.s32 %v2690, %v2692
  %v2694 = vrot.slane %v784, %v2693
  %v2696 = vunpack.c.l.s4 1983009808
  %v2697 = vunpack.c.0.s8 %v2696
  %v2698 = vlaneseq
  %v2699 = vshrl.u32 %v2698, 7
  %v2700 = vsub.s32 %v2697, %v2699
  %v2701 = vrot.slane %v2687, %v2700
  %v2702 = vcombine.high %v2694, %v2694
  %v2703 = vcombine.high %v2701, %v2701
  %v2704 = vcombine.high %v785, %v785
  %v2706 = vunpack.c.l.s4 1983009808
  %v2707 = vunpack.c.0.s8 %v2706
  %v2708 = vlaneseq
  %v2709 = vshrl.u32 %v2708, 7
  %v2710 = vsub.s32 %v2707, %v2709
  %v2711 = vrot.slane %v785, %v2710
  %v2713 = vunpack.c.l.s4 1983009808
  %v2714 = vunpack.c.0.s8 %v2713
  %v2715 = vlaneseq
  %v2716 = vshrl.u32 %v2715, 7
  %v2717 = vsub.s32 %v2714, %v2716
  %v2718 = vrot.slane %v2704, %v2717
  %v2719 = vcombine.high %v2711, %v2711
  %v2720 = vcombine.high %v2718, %v2718
  %v2721 = vcombine.high %v786, %v786
  %v2723 = vunpack.c.l.s4 1983009808
  %v2724 = vunpack.c.0.s8 %v2723
  %v2725 = vlaneseq
  %v2726 = vshrl.u32 %v2725, 7
  %v2727 = vsub.s32 %v2724, %v2726
  %v2728 = vrot.slane %v786, %v2727
  %v2730 = vunpack.c.l.s4 1983009808
  %v2731 = vunpack.c.0.s8 %v2730
  %v2732 = vlaneseq
  %v2733 = vshrl.u32 %v2732, 7
  %v2734 = vsub.s32 %v2731, %v2733
  %v2735 = vrot.slane %v2721, %v2734
  %v2736 = vcombine.high %v2728, %v2728
  %v2737 = vcombine.high %v2735, %v2735
  %v2738 = vcombine.high %v787, %v787
  %v2740 = vunpack.c.l.s4 1983009808
  %v2741 = vunpack.c.0.s8 %v2740
  %v2742 = vlaneseq
  %v2743 = vshrl.u32 %v2742, 7
  %v2744 = vsub.s32 %v2741, %v2743
  %v2745 = vrot.slane %v787, %v2744
  %v2747 = vunpack.c.l.s4 1983009808
  %v2748 = vunpack.c.0.s8 %v2747
  %v2749 = vlaneseq
  %v2750 = vshrl.u32 %v2749, 7
  %v2751 = vsub.s32 %v2748, %v2750
  %v2752 = vrot.slane %v2738, %v2751
  %v2753 = vcombine.high %v2745, %v2745
  %v2754 = vcombine.high %v2752, %v2752
  %v2756 = vunpack.c.l.s4 1983009808
  %v2757 = vunpack.c.0.s8 %v2756
  %v2758 = vlaneseq
  %v2759 = vshrl.u32 %v2758, 7
  %v2760 = vsub.s32 %v2757, %v2759
  %v2761 = vrot.slane %v788, %v2760
  %v2762 = vcombine.high %v2761, %v2761
  %v2813 = vsel %vm1077, %v2558, -inf
  %v2814 = vrot.slane %v2813, 4
  %v2815 = vmax.f32 %v2813, %v2814
  %v2816 = vrot.slane %v2815, 2
  %v2817 = vmax.f32 %v2815, %v2816
  %v2818 = vrot.slane %v2817, 1
  %v2819 = vmax.f32 %v2817, %v2818
  %v2820 = vsel %vm1077, %v2566, -inf
  %v2821 = vrot.slane %v2820, 4
  %v2822 = vmax.f32 %v2820, %v2821
  %v2823 = vrot.slane %v2822, 2
  %v2824 = vmax.f32 %v2822, %v2823
  %v2825 = vrot.slane %v2824, 1
  %v2826 = vmax.f32 %v2824, %v2825
  %v2827 = vsel %vm1077, %v2565, -inf
  %v2828 = vrot.slane %v2827, 4
  %v2829 = vmax.f32 %v2827, %v2828
  %v2830 = vrot.slane %v2829, 2
  %v2831 = vmax.f32 %v2829, %v2830
  %v2832 = vrot.slane %v2831, 1
  %v2833 = vmax.f32 %v2831, %v2832
  %v2834 = vsel %vm1077, %v2567, -inf
  %v2835 = vrot.slane %v2834, 4
  %v2836 = vmax.f32 %v2834, %v2835
  %v2837 = vrot.slane %v2836, 2
  %v2838 = vmax.f32 %v2836, %v2837
  %v2839 = vrot.slane %v2838, 1
  %v2840 = vmax.f32 %v2838, %v2839
  %v2841 = vsel %vm1077, %v2575, -inf
  %v2842 = vrot.slane %v2841, 4
  %v2843 = vmax.f32 %v2841, %v2842
  %v2844 = vrot.slane %v2843, 2
  %v2845 = vmax.f32 %v2843, %v2844
  %v2846 = vrot.slane %v2845, 1
  %v2847 = vmax.f32 %v2845, %v2846
  %v2848 = vsel %vm1077, %v2583, -inf
  %v2849 = vrot.slane %v2848, 4
  %v2850 = vmax.f32 %v2848, %v2849
  %v2851 = vrot.slane %v2850, 2
  %v2852 = vmax.f32 %v2850, %v2851
  %v2853 = vrot.slane %v2852, 1
  %v2854 = vmax.f32 %v2852, %v2853
  %v2855 = vsel %vm1077, %v2582, -inf
  %v2856 = vrot.slane %v2855, 4
  %v2857 = vmax.f32 %v2855, %v2856
  %v2858 = vrot.slane %v2857, 2
  %v2859 = vmax.f32 %v2857, %v2858
  %v2860 = vrot.slane %v2859, 1
  %v2861 = vmax.f32 %v2859, %v2860
  %v2862 = vsel %vm1077, %v2584, -inf
  %v2863 = vrot.slane %v2862, 4
  %v2864 = vmax.f32 %v2862, %v2863
  %v2865 = vrot.slane %v2864, 2
  %v2866 = vmax.f32 %v2864, %v2865
  %v2867 = vrot.slane %v2866, 1
  %v2868 = vmax.f32 %v2866, %v2867
  %v2869 = vsel %vm1077, %v2592, -inf
  %v2870 = vrot.slane %v2869, 4
  %v2871 = vmax.f32 %v2869, %v2870
  %v2872 = vrot.slane %v2871, 2
  %v2873 = vmax.f32 %v2871, %v2872
  %v2874 = vrot.slane %v2873, 1
  %v2875 = vmax.f32 %v2873, %v2874
  %v2876 = vsel %vm1077, %v2600, -inf
  %v2877 = vrot.slane %v2876, 4
  %v2878 = vmax.f32 %v2876, %v2877
  %v2879 = vrot.slane %v2878, 2
  %v2880 = vmax.f32 %v2878, %v2879
  %v2881 = vrot.slane %v2880, 1
  %v2882 = vmax.f32 %v2880, %v2881
  %v2883 = vsel %vm1077, %v2599, -inf
  %v2884 = vrot.slane %v2883, 4
  %v2885 = vmax.f32 %v2883, %v2884
  %v2886 = vrot.slane %v2885, 2
  %v2887 = vmax.f32 %v2885, %v2886
  %v2888 = vrot.slane %v2887, 1
  %v2889 = vmax.f32 %v2887, %v2888
  %v2890 = vsel %vm1077, %v2601, -inf
  %v2891 = vrot.slane %v2890, 4
  %v2892 = vmax.f32 %v2890, %v2891
  %v2893 = vrot.slane %v2892, 2
  %v2894 = vmax.f32 %v2892, %v2893
  %v2895 = vrot.slane %v2894, 1
  %v2896 = vmax.f32 %v2894, %v2895
  %v2897 = vsel %vm1077, %v2609, -inf
  %v2898 = vrot.slane %v2897, 4
  %v2899 = vmax.f32 %v2897, %v2898
  %v2900 = vrot.slane %v2899, 2
  %v2901 = vmax.f32 %v2899, %v2900
  %v2902 = vrot.slane %v2901, 1
  %v2903 = vmax.f32 %v2901, %v2902
  %v2904 = vsel %vm1077, %v2617, -inf
  %v2905 = vrot.slane %v2904, 4
  %v2906 = vmax.f32 %v2904, %v2905
  %v2907 = vrot.slane %v2906, 2
  %v2908 = vmax.f32 %v2906, %v2907
  %v2909 = vrot.slane %v2908, 1
  %v2910 = vmax.f32 %v2908, %v2909
  %v2911 = vsel %vm1077, %v2616, -inf
  %v2912 = vrot.slane %v2911, 4
  %v2913 = vmax.f32 %v2911, %v2912
  %v2914 = vrot.slane %v2913, 2
  %v2915 = vmax.f32 %v2913, %v2914
  %v2916 = vrot.slane %v2915, 1
  %v2917 = vmax.f32 %v2915, %v2916
  %v2918 = vsel %vm1077, %v2618, -inf
  %v2919 = vrot.slane %v2918, 4
  %v2920 = vmax.f32 %v2918, %v2919
  %v2921 = vrot.slane %v2920, 2
  %v2922 = vmax.f32 %v2920, %v2921
  %v2923 = vrot.slane %v2922, 1
  %v2924 = vmax.f32 %v2922, %v2923
  %v2925 = vsel %vm1077, %v2626, -inf
  %v2926 = vrot.slane %v2925, 4
  %v2927 = vmax.f32 %v2925, %v2926
  %v2928 = vrot.slane %v2927, 2
  %v2929 = vmax.f32 %v2927, %v2928
  %v2930 = vrot.slane %v2929, 1
  %v2931 = vmax.f32 %v2929, %v2930
  %v2932 = vsel %vm1077, %v2634, -inf
  %v2933 = vrot.slane %v2932, 4
  %v2934 = vmax.f32 %v2932, %v2933
  %v2935 = vrot.slane %v2934, 2
  %v2936 = vmax.f32 %v2934, %v2935
  %v2937 = vrot.slane %v2936, 1
  %v2938 = vmax.f32 %v2936, %v2937
  %v2939 = vsel %vm1077, %v2633, -inf
  %v2940 = vrot.slane %v2939, 4
  %v2941 = vmax.f32 %v2939, %v2940
  %v2942 = vrot.slane %v2941, 2
  %v2943 = vmax.f32 %v2941, %v2942
  %v2944 = vrot.slane %v2943, 1
  %v2945 = vmax.f32 %v2943, %v2944
  %v2946 = vsel %vm1077, %v2635, -inf
  %v2947 = vrot.slane %v2946, 4
  %v2948 = vmax.f32 %v2946, %v2947
  %v2949 = vrot.slane %v2948, 2
  %v2950 = vmax.f32 %v2948, %v2949
  %v2951 = vrot.slane %v2950, 1
  %v2952 = vmax.f32 %v2950, %v2951
  %v2953 = vsel %vm1077, %v2643, -inf
  %v2954 = vrot.slane %v2953, 4
  %v2955 = vmax.f32 %v2953, %v2954
  %v2956 = vrot.slane %v2955, 2
  %v2957 = vmax.f32 %v2955, %v2956
  %v2958 = vrot.slane %v2957, 1
  %v2959 = vmax.f32 %v2957, %v2958
  %v2960 = vsel %vm1077, %v2651, -inf
  %v2961 = vrot.slane %v2960, 4
  %v2962 = vmax.f32 %v2960, %v2961
  %v2963 = vrot.slane %v2962, 2
  %v2964 = vmax.f32 %v2962, %v2963
  %v2965 = vrot.slane %v2964, 1
  %v2966 = vmax.f32 %v2964, %v2965
  %v2967 = vsel %vm1077, %v2650, -inf
  %v2968 = vrot.slane %v2967, 4
  %v2969 = vmax.f32 %v2967, %v2968
  %v2970 = vrot.slane %v2969, 2
  %v2971 = vmax.f32 %v2969, %v2970
  %v2972 = vrot.slane %v2971, 1
  %v2973 = vmax.f32 %v2971, %v2972
  %v2974 = vsel %vm1077, %v2652, -inf
  %v2975 = vrot.slane %v2974, 4
  %v2976 = vmax.f32 %v2974, %v2975
  %v2977 = vrot.slane %v2976, 2
  %v2978 = vmax.f32 %v2976, %v2977
  %v2979 = vrot.slane %v2978, 1
  %v2980 = vmax.f32 %v2978, %v2979
  %v2981 = vsel %vm1077, %v2660, -inf
  %v2982 = vrot.slane %v2981, 4
  %v2983 = vmax.f32 %v2981, %v2982
  %v2984 = vrot.slane %v2983, 2
  %v2985 = vmax.f32 %v2983, %v2984
  %v2986 = vrot.slane %v2985, 1
  %v2987 = vmax.f32 %v2985, %v2986
  %v2988 = vsel %vm1077, %v2668, -inf
  %v2989 = vrot.slane %v2988, 4
  %v2990 = vmax.f32 %v2988, %v2989
  %v2991 = vrot.slane %v2990, 2
  %v2992 = vmax.f32 %v2990, %v2991
  %v2993 = vrot.slane %v2992, 1
  %v2994 = vmax.f32 %v2992, %v2993
  %v2995 = vsel %vm1077, %v2667, -inf
  %v2996 = vrot.slane %v2995, 4
  %v2997 = vmax.f32 %v2995, %v2996
  %v2998 = vrot.slane %v2997, 2
  %v2999 = vmax.f32 %v2997, %v2998
  %v3000 = vrot.slane %v2999, 1
  %v3001 = vmax.f32 %v2999, %v3000
  %v3002 = vsel %vm1077, %v2669, -inf
  %v3003 = vrot.slane %v3002, 4
  %v3004 = vmax.f32 %v3002, %v3003
  %v3005 = vrot.slane %v3004, 2
  %v3006 = vmax.f32 %v3004, %v3005
  %v3007 = vrot.slane %v3006, 1
  %v3008 = vmax.f32 %v3006, %v3007
  %v3009 = vsel %vm1077, %v2677, -inf
  %v3010 = vrot.slane %v3009, 4
  %v3011 = vmax.f32 %v3009, %v3010
  %v3012 = vrot.slane %v3011, 2
  %v3013 = vmax.f32 %v3011, %v3012
  %v3014 = vrot.slane %v3013, 1
  %v3015 = vmax.f32 %v3013, %v3014
  %v3016 = vsel %vm1077, %v2685, -inf
  %v3017 = vrot.slane %v3016, 4
  %v3018 = vmax.f32 %v3016, %v3017
  %v3019 = vrot.slane %v3018, 2
  %v3020 = vmax.f32 %v3018, %v3019
  %v3021 = vrot.slane %v3020, 1
  %v3022 = vmax.f32 %v3020, %v3021
  %v3023 = vsel %vm1077, %v2684, -inf
  %v3024 = vrot.slane %v3023, 4
  %v3025 = vmax.f32 %v3023, %v3024
  %v3026 = vrot.slane %v3025, 2
  %v3027 = vmax.f32 %v3025, %v3026
  %v3028 = vrot.slane %v3027, 1
  %v3029 = vmax.f32 %v3027, %v3028
  %v3030 = vsel %vm1077, %v2686, -inf
  %v3031 = vrot.slane %v3030, 4
  %v3032 = vmax.f32 %v3030, %v3031
  %v3033 = vrot.slane %v3032, 2
  %v3034 = vmax.f32 %v3032, %v3033
  %v3035 = vrot.slane %v3034, 1
  %v3036 = vmax.f32 %v3034, %v3035
  %v3037 = vsel %vm1077, %v2694, -inf
  %v3038 = vrot.slane %v3037, 4
  %v3039 = vmax.f32 %v3037, %v3038
  %v3040 = vrot.slane %v3039, 2
  %v3041 = vmax.f32 %v3039, %v3040
  %v3042 = vrot.slane %v3041, 1
  %v3043 = vmax.f32 %v3041, %v3042
  %v3044 = vsel %vm1077, %v2702, -inf
  %v3045 = vrot.slane %v3044, 4
  %v3046 = vmax.f32 %v3044, %v3045
  %v3047 = vrot.slane %v3046, 2
  %v3048 = vmax.f32 %v3046, %v3047
  %v3049 = vrot.slane %v3048, 1
  %v3050 = vmax.f32 %v3048, %v3049
  %v3051 = vsel %vm1077, %v2701, -inf
  %v3052 = vrot.slane %v3051, 4
  %v3053 = vmax.f32 %v3051, %v3052
  %v3054 = vrot.slane %v3053, 2
  %v3055 = vmax.f32 %v3053, %v3054
  %v3056 = vrot.slane %v3055, 1
  %v3057 = vmax.f32 %v3055, %v3056
  %v3058 = vsel %vm1077, %v2703, -inf
  %v3059 = vrot.slane %v3058, 4
  %v3060 = vmax.f32 %v3058, %v3059
  %v3061 = vrot.slane %v3060, 2
  %v3062 = vmax.f32 %v3060, %v3061
  %v3063 = vrot.slane %v3062, 1
  %v3064 = vmax.f32 %v3062, %v3063
  %v3065 = vsel %vm1077, %v2711, -inf
  %v3066 = vrot.slane %v3065, 4
  %v3067 = vmax.f32 %v3065, %v3066
  %v3068 = vrot.slane %v3067, 2
  %v3069 = vmax.f32 %v3067, %v3068
  %v3070 = vrot.slane %v3069, 1
  %v3071 = vmax.f32 %v3069, %v3070
  %v3072 = vsel %vm1077, %v2719, -inf
  %v3073 = vrot.slane %v3072, 4
  %v3074 = vmax.f32 %v3072, %v3073
  %v3075 = vrot.slane %v3074, 2
  %v3076 = vmax.f32 %v3074, %v3075
  %v3077 = vrot.slane %v3076, 1
  %v3078 = vmax.f32 %v3076, %v3077
  %v3079 = vsel %vm1077, %v2718, -inf
  %v3080 = vrot.slane %v3079, 4
  %v3081 = vmax.f32 %v3079, %v3080
  %v3082 = vrot.slane %v3081, 2
  %v3083 = vmax.f32 %v3081, %v3082
  %v3084 = vrot.slane %v3083, 1
  %v3085 = vmax.f32 %v3083, %v3084
  %v3086 = vsel %vm1077, %v2720, -inf
  %v3087 = vrot.slane %v3086, 4
  %v3088 = vmax.f32 %v3086, %v3087
  %v3089 = vrot.slane %v3088, 2
  %v3090 = vmax.f32 %v3088, %v3089
  %v3091 = vrot.slane %v3090, 1
  %v3092 = vmax.f32 %v3090, %v3091
  %v3093 = vsel %vm1077, %v2728, -inf
  %v3094 = vrot.slane %v3093, 4
  %v3095 = vmax.f32 %v3093, %v3094
  %v3096 = vrot.slane %v3095, 2
  %v3097 = vmax.f32 %v3095, %v3096
  %v3098 = vrot.slane %v3097, 1
  %v3099 = vmax.f32 %v3097, %v3098
  %v3100 = vsel %vm1077, %v2736, -inf
  %v3101 = vrot.slane %v3100, 4
  %v3102 = vmax.f32 %v3100, %v3101
  %v3103 = vrot.slane %v3102, 2
  %v3104 = vmax.f32 %v3102, %v3103
  %v3105 = vrot.slane %v3104, 1
  %v3106 = vmax.f32 %v3104, %v3105
  %v3107 = vsel %vm1077, %v2735, -inf
  %v3108 = vrot.slane %v3107, 4
  %v3109 = vmax.f32 %v3107, %v3108
  %v3110 = vrot.slane %v3109, 2
  %v3111 = vmax.f32 %v3109, %v3110
  %v3112 = vrot.slane %v3111, 1
  %v3113 = vmax.f32 %v3111, %v3112
  %v3114 = vsel %vm1077, %v2737, -inf
  %v3115 = vrot.slane %v3114, 4
  %v3116 = vmax.f32 %v3114, %v3115
  %v3117 = vrot.slane %v3116, 2
  %v3118 = vmax.f32 %v3116, %v3117
  %v3119 = vrot.slane %v3118, 1
  %v3120 = vmax.f32 %v3118, %v3119
  %v3121 = vsel %vm1077, %v2745, -inf
  %v3122 = vrot.slane %v3121, 4
  %v3123 = vmax.f32 %v3121, %v3122
  %v3124 = vrot.slane %v3123, 2
  %v3125 = vmax.f32 %v3123, %v3124
  %v3126 = vrot.slane %v3125, 1
  %v3127 = vmax.f32 %v3125, %v3126
  %v3128 = vsel %vm1077, %v2753, -inf
  %v3129 = vrot.slane %v3128, 4
  %v3130 = vmax.f32 %v3128, %v3129
  %v3131 = vrot.slane %v3130, 2
  %v3132 = vmax.f32 %v3130, %v3131
  %v3133 = vrot.slane %v3132, 1
  %v3134 = vmax.f32 %v3132, %v3133
  %v3135 = vsel %vm1077, %v2752, -inf
  %v3136 = vrot.slane %v3135, 4
  %v3137 = vmax.f32 %v3135, %v3136
  %v3138 = vrot.slane %v3137, 2
  %v3139 = vmax.f32 %v3137, %v3138
  %v3140 = vrot.slane %v3139, 1
  %v3141 = vmax.f32 %v3139, %v3140
  %v3142 = vsel %vm1077, %v2754, -inf
  %v3143 = vrot.slane %v3142, 4
  %v3144 = vmax.f32 %v3142, %v3143
  %v3145 = vrot.slane %v3144, 2
  %v3146 = vmax.f32 %v3144, %v3145
  %v3147 = vrot.slane %v3146, 1
  %v3148 = vmax.f32 %v3146, %v3147
  %v3149 = vsel %vm1077, %v2761, -inf
  %v3150 = vrot.slane %v3149, 4
  %v3151 = vmax.f32 %v3149, %v3150
  %v3152 = vrot.slane %v3151, 2
  %v3153 = vmax.f32 %v3151, %v3152
  %v3154 = vrot.slane %v3153, 1
  %v3155 = vmax.f32 %v3153, %v3154
  %v3156 = vsel %vm1077, %v2762, -inf
  %v3157 = vrot.slane %v3156, 4
  %v3158 = vmax.f32 %v3156, %v3157
  %v3159 = vrot.slane %v3158, 2
  %v3160 = vmax.f32 %v3158, %v3159
  %v3161 = vrot.slane %v3160, 1
  %v3162 = vmax.f32 %v3160, %v3161
  %v3213 = vsel %vm1478, %v2826, %v2819
  %v3214 = vsel %vm1480, %v2833, %v3213
  %v3215 = vsel %vm1482, %v2840, %v3214
  %v3216 = vsel %vm1484, %v2847, %v3215
  %v3217 = vsel %vm1486, %v2854, %v3216
  %v3218 = vsel %vm1488, %v2861, %v3217
  %v3219 = vsel %vm1490, %v2875, %v2868
  %v3220 = vsel %vm1478, %v2882, %v3219
  %v3221 = vsel %vm1480, %v2889, %v3220
  %v3222 = vsel %vm1482, %v2896, %v3221
  %v3223 = vsel %vm1484, %v2903, %v3222
  %v3224 = vsel %vm1486, %v2910, %v3223
  %v3225 = vsel %vm1488, %v2917, %v3224
  %v3226 = vsel %vm1490, %v2931, %v2924
  %v3227 = vsel %vm1478, %v2938, %v3226
  %v3228 = vsel %vm1480, %v2945, %v3227
  %v3229 = vsel %vm1482, %v2952, %v3228
  %v3230 = vsel %vm1484, %v2959, %v3229
  %v3231 = vsel %vm1486, %v2966, %v3230
  %v3232 = vsel %vm1488, %v2973, %v3231
  %v3233 = vsel %vm1490, %v2987, %v2980
  %v3234 = vsel %vm1478, %v2994, %v3233
  %v3235 = vsel %vm1480, %v3001, %v3234
  %v3236 = vsel %vm1482, %v3008, %v3235
  %v3237 = vsel %vm1484, %v3015, %v3236
  %v3238 = vsel %vm1486, %v3022, %v3237
  %v3239 = vsel %vm1488, %v3029, %v3238
  %v3240 = vsel %vm1490, %v3043, %v3036
  %v3241 = vsel %vm1478, %v3050, %v3240
  %v3242 = vsel %vm1480, %v3057, %v3241
  %v3243 = vsel %vm1482, %v3064, %v3242
  %v3244 = vsel %vm1484, %v3071, %v3243
  %v3245 = vsel %vm1486, %v3078, %v3244
  %v3246 = vsel %vm1488, %v3085, %v3245
  %v3247 = vsel %vm1490, %v3099, %v3092
  %v3248 = vsel %vm1478, %v3106, %v3247
  %v3249 = vsel %vm1480, %v3113, %v3248
  %v3250 = vsel %vm1482, %v3120, %v3249
  %v3251 = vsel %vm1484, %v3127, %v3250
  %v3252 = vsel %vm1486, %v3134, %v3251
  %v3253 = vsel %vm1488, %v3141, %v3252
  %v3254 = vsel %vm1490, %v3155, %v3148
  %v3255 = vsel %vm1478, %v3162, %v3254
  %3263 = vst.msk [vmem:[#allocation2 + $0xf0] sm:$0xfe] %vm1535, %v3218
  %3264 = vst.msk [vmem:[#allocation2 + $0x100] sm:$0xff] %vm68, %v3225
  %3265 = vst.msk [vmem:[#allocation2 + $0x110] sm:$0xff] %vm68, %v3232
  %3266 = vst.msk [vmem:[#allocation2 + $0x120] sm:$0xff] %vm68, %v3239
  %3267 = vst.msk [vmem:[#allocation2 + $0x130] sm:$0xff] %vm68, %v3246
  %3268 = vst.msk [vmem:[#allocation2 + $0x140] sm:$0xff] %vm68, %v3253
  %3269 = vst.msk [vmem:[#allocation2 + $0x150] sm:$0x7] %vm1542, %v3255
  %v3270 = vsel %vm1490, %v2826, %v2819
  %v3271 = vsel %vm1478, %v2833, %v3270
  %v3272 = vsel %vm1480, %v2840, %v3271
  %v3273 = vsel %vm1482, %v2847, %v3272
  %v3274 = vsel %vm1484, %v2854, %v3273
  %v3275 = vsel %vm1486, %v2861, %v3274
  %v3276 = vsel %vm1488, %v2868, %v3275
  %v3277 = vsel %vm1490, %v2882, %v2875
  %v3278 = vsel %vm1478, %v2889, %v3277
  %v3279 = vsel %vm1480, %v2896, %v3278
  %v3280 = vsel %vm1482, %v2903, %v3279
  %v3281 = vsel %vm1484, %v2910, %v3280
  %v3282 = vsel %vm1486, %v2917, %v3281
  %v3283 = vsel %vm1488, %v2924, %v3282
  %v3284 = vsel %vm1490, %v2938, %v2931
  %v3285 = vsel %vm1478, %v2945, %v3284
  %v3286 = vsel %vm1480, %v2952, %v3285
  %v3287 = vsel %vm1482, %v2959, %v3286
  %v3288 = vsel %vm1484, %v2966, %v3287
  %v3289 = vsel %vm1486, %v2973, %v3288
  %v3290 = vsel %vm1488, %v2980, %v3289
  %v3291 = vsel %vm1490, %v2994, %v2987
  %v3292 = vsel %vm1478, %v3001, %v3291
  %v3293 = vsel %vm1480, %v3008, %v3292
  %v3294 = vsel %vm1482, %v3015, %v3293
  %v3295 = vsel %vm1484, %v3022, %v3294
  %v3296 = vsel %vm1486, %v3029, %v3295
  %v3297 = vsel %vm1488, %v3036, %v3296
  %v3298 = vsel %vm1490, %v3050, %v3043
  %v3299 = vsel %vm1478, %v3057, %v3298
  %v3300 = vsel %vm1480, %v3064, %v3299
  %v3301 = vsel %vm1482, %v3071, %v3300
  %v3302 = vsel %vm1484, %v3078, %v3301
  %v3303 = vsel %vm1486, %v3085, %v3302
  %v3304 = vsel %vm1488, %v3092, %v3303
  %v3305 = vsel %vm1490, %v3106, %v3099
  %v3306 = vsel %vm1478, %v3113, %v3305
  %v3307 = vsel %vm1480, %v3120, %v3306
  %v3308 = vsel %vm1482, %v3127, %v3307
  %v3309 = vsel %vm1484, %v3134, %v3308
  %v3310 = vsel %vm1486, %v3141, %v3309
  %v3311 = vsel %vm1488, %v3148, %v3310
  %v3312 = vsel %vm1490, %v3162, %v3155
  %3313 = vrot.lane.b32.xlu0 %v3276, 64
  %v3314 = vpop.permute.xlu0 %3313
  %3315 = vrot.lane.b32.xlu0 %v3283, 64
  %v3316 = vpop.permute.xlu0 %3315
  %3317 = vrot.lane.b32.xlu0 %v3290, 64
  %v3318 = vpop.permute.xlu0 %3317
  %3319 = vrot.lane.b32.xlu0 %v3297, 64
  %v3320 = vpop.permute.xlu0 %3319
  %3321 = vrot.lane.b32.xlu0 %v3304, 64
  %v3322 = vpop.permute.xlu0 %3321
  %3323 = vrot.lane.b32.xlu0 %v3311, 64
  %v3324 = vpop.permute.xlu0 %3323
  %3325 = vrot.lane.b32.xlu0 %v3312, 64
  %v3326 = vpop.permute.xlu0 %3325
  %3334 = vst.msk [vmem:[#allocation2 + $0xf0] sm:$0xff] %vm1608, %v3314
  %3335 = vst.msk [vmem:[#allocation2 + $0x100] sm:$0xff] %vm1608, %v3316
  %3336 = vst.msk [vmem:[#allocation2 + $0x110] sm:$0xff] %vm1608, %v3318
  %3337 = vst.msk [vmem:[#allocation2 + $0x120] sm:$0xff] %vm1608, %v3320
  %3338 = vst.msk [vmem:[#allocation2 + $0x130] sm:$0xff] %vm1608, %v3322
  %3339 = vst.msk [vmem:[#allocation2 + $0x140] sm:$0xff] %vm1608, %v3324
  %3340 = vst.msk [vmem:[#allocation2 + $0x150] sm:$0x3] %vm1615, %v3326
  %v3341 = vsel %vm1490, %v2833, %v2826
  %v3342 = vsel %vm1478, %v2840, %v3341
  %v3343 = vsel %vm1480, %v2847, %v3342
  %v3344 = vsel %vm1482, %v2854, %v3343
  %v3345 = vsel %vm1484, %v2861, %v3344
  %v3346 = vsel %vm1486, %v2868, %v3345
  %v3347 = vsel %vm1488, %v2875, %v3346
  %v3348 = vsel %vm1490, %v2889, %v2882
  %v3349 = vsel %vm1478, %v2896, %v3348
  %v3350 = vsel %vm1480, %v2903, %v3349
  %v3351 = vsel %vm1482, %v2910, %v3350
  %v3352 = vsel %vm1484, %v2917, %v3351
  %v3353 = vsel %vm1486, %v2924, %v3352
  %v3354 = vsel %vm1488, %v2931, %v3353
  %v3355 = vsel %vm1490, %v2945, %v2938
  %v3356 = vsel %vm1478, %v2952, %v3355
  %v3357 = vsel %vm1480, %v2959, %v3356
  %v3358 = vsel %vm1482, %v2966, %v3357
  %v3359 = vsel %vm1484, %v2973, %v3358
  %v3360 = vsel %vm1486, %v2980, %v3359
  %v3361 = vsel %vm1488, %v2987, %v3360
  %v3362 = vsel %vm1490, %v3001, %v2994
  %v3363 = vsel %vm1478, %v3008, %v3362
  %v3364 = vsel %vm1480, %v3015, %v3363
  %v3365 = vsel %vm1482, %v3022, %v3364
  %v3366 = vsel %vm1484, %v3029, %v3365
  %v3367 = vsel %vm1486, %v3036, %v3366
  %v3368 = vsel %vm1488, %v3043, %v3367
  %v3369 = vsel %vm1490, %v3057, %v3050
  %v3370 = vsel %vm1478, %v3064, %v3369
  %v3371 = vsel %vm1480, %v3071, %v3370
  %v3372 = vsel %vm1482, %v3078, %v3371
  %v3373 = vsel %vm1484, %v3085, %v3372
  %v3374 = vsel %vm1486, %v3092, %v3373
  %v3375 = vsel %vm1488, %v3099, %v3374
  %v3376 = vsel %vm1490, %v3113, %v3106
  %v3377 = vsel %vm1478, %v3120, %v3376
  %v3378 = vsel %vm1480, %v3127, %v3377
  %v3379 = vsel %vm1482, %v3134, %v3378
  %v3380 = vsel %vm1484, %v3141, %v3379
  %v3381 = vsel %vm1486, %v3148, %v3380
  %v3382 = vsel %vm1488, %v3155, %v3381
  %3391 = vst.msk [vmem:[#allocation2 + $0xe8] sm:$0x80] %vm1667, %v2819
  %3392 = vst.msk [vmem:[#allocation2 + $0xf8] sm:$0xff] %vm68, %v3347
  %3393 = vst.msk [vmem:[#allocation2 + $0x108] sm:$0xff] %vm68, %v3354
  %3394 = vst.msk [vmem:[#allocation2 + $0x118] sm:$0xff] %vm68, %v3361
  %3395 = vst.msk [vmem:[#allocation2 + $0x128] sm:$0xff] %vm68, %v3368
  %3396 = vst.msk [vmem:[#allocation2 + $0x138] sm:$0xff] %vm68, %v3375
  %3397 = vst.msk [vmem:[#allocation2 + $0x148] sm:$0xff] %vm68, %v3382
  %3398 = vst.msk [vmem:[#allocation2 + $0x158] sm:$0x1] %vm1675, %v3162
  %v3412 = vcombine.high %v789, %v789
  %v3414 = vunpack.c.l.s4 1983009808
  %v3415 = vunpack.c.0.s8 %v3414
  %v3416 = vlaneseq
  %v3417 = vshrl.u32 %v3416, 7
  %v3418 = vsub.s32 %v3415, %v3417
  %v3419 = vrot.slane %v789, %v3418
  %v3421 = vunpack.c.l.s4 1983009808
  %v3422 = vunpack.c.0.s8 %v3421
  %v3423 = vlaneseq
  %v3424 = vshrl.u32 %v3423, 7
  %v3425 = vsub.s32 %v3422, %v3424
  %v3426 = vrot.slane %v3412, %v3425
  %v3427 = vcombine.high %v3419, %v3419
  %v3428 = vcombine.high %v3426, %v3426
  %v3429 = vcombine.high %v790, %v790
  %v3431 = vunpack.c.l.s4 1983009808
  %v3432 = vunpack.c.0.s8 %v3431
  %v3433 = vlaneseq
  %v3434 = vshrl.u32 %v3433, 7
  %v3435 = vsub.s32 %v3432, %v3434
  %v3436 = vrot.slane %v790, %v3435
  %v3438 = vunpack.c.l.s4 1983009808
  %v3439 = vunpack.c.0.s8 %v3438
  %v3440 = vlaneseq
  %v3441 = vshrl.u32 %v3440, 7
  %v3442 = vsub.s32 %v3439, %v3441
  %v3443 = vrot.slane %v3429, %v3442
  %v3444 = vcombine.high %v3436, %v3436
  %v3445 = vcombine.high %v3443, %v3443
  %v3446 = vcombine.high %v791, %v791
  %v3448 = vunpack.c.l.s4 1983009808
  %v3449 = vunpack.c.0.s8 %v3448
  %v3450 = vlaneseq
  %v3451 = vshrl.u32 %v3450, 7
  %v3452 = vsub.s32 %v3449, %v3451
  %v3453 = vrot.slane %v791, %v3452
  %v3455 = vunpack.c.l.s4 1983009808
  %v3456 = vunpack.c.0.s8 %v3455
  %v3457 = vlaneseq
  %v3458 = vshrl.u32 %v3457, 7
  %v3459 = vsub.s32 %v3456, %v3458
  %v3460 = vrot.slane %v3446, %v3459
  %v3461 = vcombine.high %v3453, %v3453
  %v3462 = vcombine.high %v3460, %v3460
  %v3463 = vcombine.high %v792, %v792
  %v3465 = vunpack.c.l.s4 1983009808
  %v3466 = vunpack.c.0.s8 %v3465
  %v3467 = vlaneseq
  %v3468 = vshrl.u32 %v3467, 7
  %v3469 = vsub.s32 %v3466, %v3468
  %v3470 = vrot.slane %v792, %v3469
  %v3472 = vunpack.c.l.s4 1983009808
  %v3473 = vunpack.c.0.s8 %v3472
  %v3474 = vlaneseq
  %v3475 = vshrl.u32 %v3474, 7
  %v3476 = vsub.s32 %v3473, %v3475
  %v3477 = vrot.slane %v3463, %v3476
  %v3478 = vcombine.high %v3470, %v3470
  %v3479 = vcombine.high %v3477, %v3477
  %v3480 = vcombine.high %v793, %v793
  %v3482 = vunpack.c.l.s4 1983009808
  %v3483 = vunpack.c.0.s8 %v3482
  %v3484 = vlaneseq
  %v3485 = vshrl.u32 %v3484, 7
  %v3486 = vsub.s32 %v3483, %v3485
  %v3487 = vrot.slane %v793, %v3486
  %v3489 = vunpack.c.l.s4 1983009808
  %v3490 = vunpack.c.0.s8 %v3489
  %v3491 = vlaneseq
  %v3492 = vshrl.u32 %v3491, 7
  %v3493 = vsub.s32 %v3490, %v3492
  %v3494 = vrot.slane %v3480, %v3493
  %v3495 = vcombine.high %v3487, %v3487
  %v3496 = vcombine.high %v3494, %v3494
  %v3497 = vcombine.high %v794, %v794
  %v3499 = vunpack.c.l.s4 1983009808
  %v3500 = vunpack.c.0.s8 %v3499
  %v3501 = vlaneseq
  %v3502 = vshrl.u32 %v3501, 7
  %v3503 = vsub.s32 %v3500, %v3502
  %v3504 = vrot.slane %v794, %v3503
  %v3506 = vunpack.c.l.s4 1983009808
  %v3507 = vunpack.c.0.s8 %v3506
  %v3508 = vlaneseq
  %v3509 = vshrl.u32 %v3508, 7
  %v3510 = vsub.s32 %v3507, %v3509
  %v3511 = vrot.slane %v3497, %v3510
  %v3512 = vcombine.high %v3504, %v3504
  %v3513 = vcombine.high %v3511, %v3511
  %v3514 = vcombine.high %v795, %v795
  %v3516 = vunpack.c.l.s4 1983009808
  %v3517 = vunpack.c.0.s8 %v3516
  %v3518 = vlaneseq
  %v3519 = vshrl.u32 %v3518, 7
  %v3520 = vsub.s32 %v3517, %v3519
  %v3521 = vrot.slane %v795, %v3520
  %v3523 = vunpack.c.l.s4 1983009808
  %v3524 = vunpack.c.0.s8 %v3523
  %v3525 = vlaneseq
  %v3526 = vshrl.u32 %v3525, 7
  %v3527 = vsub.s32 %v3524, %v3526
  %v3528 = vrot.slane %v3514, %v3527
  %v3529 = vcombine.high %v3521, %v3521
  %v3530 = vcombine.high %v3528, %v3528
  %v3531 = vcombine.high %v796, %v796
  %v3533 = vunpack.c.l.s4 1983009808
  %v3534 = vunpack.c.0.s8 %v3533
  %v3535 = vlaneseq
  %v3536 = vshrl.u32 %v3535, 7
  %v3537 = vsub.s32 %v3534, %v3536
  %v3538 = vrot.slane %v796, %v3537
  %v3540 = vunpack.c.l.s4 1983009808
  %v3541 = vunpack.c.0.s8 %v3540
  %v3542 = vlaneseq
  %v3543 = vshrl.u32 %v3542, 7
  %v3544 = vsub.s32 %v3541, %v3543
  %v3545 = vrot.slane %v3531, %v3544
  %v3546 = vcombine.high %v3538, %v3538
  %v3547 = vcombine.high %v3545, %v3545
  %v3548 = vcombine.high %v797, %v797
  %v3550 = vunpack.c.l.s4 1983009808
  %v3551 = vunpack.c.0.s8 %v3550
  %v3552 = vlaneseq
  %v3553 = vshrl.u32 %v3552, 7
  %v3554 = vsub.s32 %v3551, %v3553
  %v3555 = vrot.slane %v797, %v3554
  %v3557 = vunpack.c.l.s4 1983009808
  %v3558 = vunpack.c.0.s8 %v3557
  %v3559 = vlaneseq
  %v3560 = vshrl.u32 %v3559, 7
  %v3561 = vsub.s32 %v3558, %v3560
  %v3562 = vrot.slane %v3548, %v3561
  %v3563 = vcombine.high %v3555, %v3555
  %v3564 = vcombine.high %v3562, %v3562
  %v3565 = vcombine.high %v798, %v798
  %v3567 = vunpack.c.l.s4 1983009808
  %v3568 = vunpack.c.0.s8 %v3567
  %v3569 = vlaneseq
  %v3570 = vshrl.u32 %v3569, 7
  %v3571 = vsub.s32 %v3568, %v3570
  %v3572 = vrot.slane %v798, %v3571
  %v3574 = vunpack.c.l.s4 1983009808
  %v3575 = vunpack.c.0.s8 %v3574
  %v3576 = vlaneseq
  %v3577 = vshrl.u32 %v3576, 7
  %v3578 = vsub.s32 %v3575, %v3577
  %v3579 = vrot.slane %v3565, %v3578
  %v3580 = vcombine.high %v3572, %v3572
  %v3581 = vcombine.high %v3579, %v3579
  %v3582 = vcombine.high %v799, %v799
  %v3584 = vunpack.c.l.s4 1983009808
  %v3585 = vunpack.c.0.s8 %v3584
  %v3586 = vlaneseq
  %v3587 = vshrl.u32 %v3586, 7
  %v3588 = vsub.s32 %v3585, %v3587
  %v3589 = vrot.slane %v799, %v3588
  %v3591 = vunpack.c.l.s4 1983009808
  %v3592 = vunpack.c.0.s8 %v3591
  %v3593 = vlaneseq
  %v3594 = vshrl.u32 %v3593, 7
  %v3595 = vsub.s32 %v3592, %v3594
  %v3596 = vrot.slane %v3582, %v3595
  %v3597 = vcombine.high %v3589, %v3589
  %v3598 = vcombine.high %v3596, %v3596
  %v3599 = vcombine.high %v800, %v800
  %v3601 = vunpack.c.l.s4 1983009808
  %v3602 = vunpack.c.0.s8 %v3601
  %v3603 = vlaneseq
  %v3604 = vshrl.u32 %v3603, 7
  %v3605 = vsub.s32 %v3602, %v3604
  %v3606 = vrot.slane %v800, %v3605
  %v3608 = vunpack.c.l.s4 1983009808
  %v3609 = vunpack.c.0.s8 %v3608
  %v3610 = vlaneseq
  %v3611 = vshrl.u32 %v3610, 7
  %v3612 = vsub.s32 %v3609, %v3611
  %v3613 = vrot.slane %v3599, %v3612
  %v3614 = vcombine.high %v3606, %v3606
  %v3615 = vcombine.high %v3613, %v3613
  %v3617 = vunpack.c.l.s4 1983009808
  %v3618 = vunpack.c.0.s8 %v3617
  %v3619 = vlaneseq
  %v3620 = vshrl.u32 %v3619, 7
  %v3621 = vsub.s32 %v3618, %v3620
  %v3622 = vrot.slane %v801, %v3621
  %v3623 = vcombine.high %v3622, %v3622
  %v3674 = vsel %vm1077, %v3419, -inf
  %v3675 = vrot.slane %v3674, 4
  %v3676 = vmax.f32 %v3674, %v3675
  %v3677 = vrot.slane %v3676, 2
  %v3678 = vmax.f32 %v3676, %v3677
  %v3679 = vrot.slane %v3678, 1
  %v3680 = vmax.f32 %v3678, %v3679
  %v3681 = vsel %vm1077, %v3427, -inf
  %v3682 = vrot.slane %v3681, 4
  %v3683 = vmax.f32 %v3681, %v3682
  %v3684 = vrot.slane %v3683, 2
  %v3685 = vmax.f32 %v3683, %v3684
  %v3686 = vrot.slane %v3685, 1
  %v3687 = vmax.f32 %v3685, %v3686
  %v3688 = vsel %vm1077, %v3426, -inf
  %v3689 = vrot.slane %v3688, 4
  %v3690 = vmax.f32 %v3688, %v3689
  %v3691 = vrot.slane %v3690, 2
  %v3692 = vmax.f32 %v3690, %v3691
  %v3693 = vrot.slane %v3692, 1
  %v3694 = vmax.f32 %v3692, %v3693
  %v3695 = vsel %vm1077, %v3428, -inf
  %v3696 = vrot.slane %v3695, 4
  %v3697 = vmax.f32 %v3695, %v3696
  %v3698 = vrot.slane %v3697, 2
  %v3699 = vmax.f32 %v3697, %v3698
  %v3700 = vrot.slane %v3699, 1
  %v3701 = vmax.f32 %v3699, %v3700
  %v3702 = vsel %vm1077, %v3436, -inf
  %v3703 = vrot.slane %v3702, 4
  %v3704 = vmax.f32 %v3702, %v3703
  %v3705 = vrot.slane %v3704, 2
  %v3706 = vmax.f32 %v3704, %v3705
  %v3707 = vrot.slane %v3706, 1
  %v3708 = vmax.f32 %v3706, %v3707
  %v3709 = vsel %vm1077, %v3444, -inf
  %v3710 = vrot.slane %v3709, 4
  %v3711 = vmax.f32 %v3709, %v3710
  %v3712 = vrot.slane %v3711, 2
  %v3713 = vmax.f32 %v3711, %v3712
  %v3714 = vrot.slane %v3713, 1
  %v3715 = vmax.f32 %v3713, %v3714
  %v3716 = vsel %vm1077, %v3443, -inf
  %v3717 = vrot.slane %v3716, 4
  %v3718 = vmax.f32 %v3716, %v3717
  %v3719 = vrot.slane %v3718, 2
  %v3720 = vmax.f32 %v3718, %v3719
  %v3721 = vrot.slane %v3720, 1
  %v3722 = vmax.f32 %v3720, %v3721
  %v3723 = vsel %vm1077, %v3445, -inf
  %v3724 = vrot.slane %v3723, 4
  %v3725 = vmax.f32 %v3723, %v3724
  %v3726 = vrot.slane %v3725, 2
  %v3727 = vmax.f32 %v3725, %v3726
  %v3728 = vrot.slane %v3727, 1
  %v3729 = vmax.f32 %v3727, %v3728
  %v3730 = vsel %vm1077, %v3453, -inf
  %v3731 = vrot.slane %v3730, 4
  %v3732 = vmax.f32 %v3730, %v3731
  %v3733 = vrot.slane %v3732, 2
  %v3734 = vmax.f32 %v3732, %v3733
  %v3735 = vrot.slane %v3734, 1
  %v3736 = vmax.f32 %v3734, %v3735
  %v3737 = vsel %vm1077, %v3461, -inf
  %v3738 = vrot.slane %v3737, 4
  %v3739 = vmax.f32 %v3737, %v3738
  %v3740 = vrot.slane %v3739, 2
  %v3741 = vmax.f32 %v3739, %v3740
  %v3742 = vrot.slane %v3741, 1
  %v3743 = vmax.f32 %v3741, %v3742
  %v3744 = vsel %vm1077, %v3460, -inf
  %v3745 = vrot.slane %v3744, 4
  %v3746 = vmax.f32 %v3744, %v3745
  %v3747 = vrot.slane %v3746, 2
  %v3748 = vmax.f32 %v3746, %v3747
  %v3749 = vrot.slane %v3748, 1
  %v3750 = vmax.f32 %v3748, %v3749
  %v3751 = vsel %vm1077, %v3462, -inf
  %v3752 = vrot.slane %v3751, 4
  %v3753 = vmax.f32 %v3751, %v3752
  %v3754 = vrot.slane %v3753, 2
  %v3755 = vmax.f32 %v3753, %v3754
  %v3756 = vrot.slane %v3755, 1
  %v3757 = vmax.f32 %v3755, %v3756
  %v3758 = vsel %vm1077, %v3470, -inf
  %v3759 = vrot.slane %v3758, 4
  %v3760 = vmax.f32 %v3758, %v3759
  %v3761 = vrot.slane %v3760, 2
  %v3762 = vmax.f32 %v3760, %v3761
  %v3763 = vrot.slane %v3762, 1
  %v3764 = vmax.f32 %v3762, %v3763
  %v3765 = vsel %vm1077, %v3478, -inf
  %v3766 = vrot.slane %v3765, 4
  %v3767 = vmax.f32 %v3765, %v3766
  %v3768 = vrot.slane %v3767, 2
  %v3769 = vmax.f32 %v3767, %v3768
  %v3770 = vrot.slane %v3769, 1
  %v3771 = vmax.f32 %v3769, %v3770
  %v3772 = vsel %vm1077, %v3477, -inf
  %v3773 = vrot.slane %v3772, 4
  %v3774 = vmax.f32 %v3772, %v3773
  %v3775 = vrot.slane %v3774, 2
  %v3776 = vmax.f32 %v3774, %v3775
  %v3777 = vrot.slane %v3776, 1
  %v3778 = vmax.f32 %v3776, %v3777
  %v3779 = vsel %vm1077, %v3479, -inf
  %v3780 = vrot.slane %v3779, 4
  %v3781 = vmax.f32 %v3779, %v3780
  %v3782 = vrot.slane %v3781, 2
  %v3783 = vmax.f32 %v3781, %v3782
  %v3784 = vrot.slane %v3783, 1
  %v3785 = vmax.f32 %v3783, %v3784
  %v3786 = vsel %vm1077, %v3487, -inf
  %v3787 = vrot.slane %v3786, 4
  %v3788 = vmax.f32 %v3786, %v3787
  %v3789 = vrot.slane %v3788, 2
  %v3790 = vmax.f32 %v3788, %v3789
  %v3791 = vrot.slane %v3790, 1
  %v3792 = vmax.f32 %v3790, %v3791
  %v3793 = vsel %vm1077, %v3495, -inf
  %v3794 = vrot.slane %v3793, 4
  %v3795 = vmax.f32 %v3793, %v3794
  %v3796 = vrot.slane %v3795, 2
  %v3797 = vmax.f32 %v3795, %v3796
  %v3798 = vrot.slane %v3797, 1
  %v3799 = vmax.f32 %v3797, %v3798
  %v3800 = vsel %vm1077, %v3494, -inf
  %v3801 = vrot.slane %v3800, 4
  %v3802 = vmax.f32 %v3800, %v3801
  %v3803 = vrot.slane %v3802, 2
  %v3804 = vmax.f32 %v3802, %v3803
  %v3805 = vrot.slane %v3804, 1
  %v3806 = vmax.f32 %v3804, %v3805
  %v3807 = vsel %vm1077, %v3496, -inf
  %v3808 = vrot.slane %v3807, 4
  %v3809 = vmax.f32 %v3807, %v3808
  %v3810 = vrot.slane %v3809, 2
  %v3811 = vmax.f32 %v3809, %v3810
  %v3812 = vrot.slane %v3811, 1
  %v3813 = vmax.f32 %v3811, %v3812
  %v3814 = vsel %vm1077, %v3504, -inf
  %v3815 = vrot.slane %v3814, 4
  %v3816 = vmax.f32 %v3814, %v3815
  %v3817 = vrot.slane %v3816, 2
  %v3818 = vmax.f32 %v3816, %v3817
  %v3819 = vrot.slane %v3818, 1
  %v3820 = vmax.f32 %v3818, %v3819
  %v3821 = vsel %vm1077, %v3512, -inf
  %v3822 = vrot.slane %v3821, 4
  %v3823 = vmax.f32 %v3821, %v3822
  %v3824 = vrot.slane %v3823, 2
  %v3825 = vmax.f32 %v3823, %v3824
  %v3826 = vrot.slane %v3825, 1
  %v3827 = vmax.f32 %v3825, %v3826
  %v3828 = vsel %vm1077, %v3511, -inf
  %v3829 = vrot.slane %v3828, 4
  %v3830 = vmax.f32 %v3828, %v3829
  %v3831 = vrot.slane %v3830, 2
  %v3832 = vmax.f32 %v3830, %v3831
  %v3833 = vrot.slane %v3832, 1
  %v3834 = vmax.f32 %v3832, %v3833
  %v3835 = vsel %vm1077, %v3513, -inf
  %v3836 = vrot.slane %v3835, 4
  %v3837 = vmax.f32 %v3835, %v3836
  %v3838 = vrot.slane %v3837, 2
  %v3839 = vmax.f32 %v3837, %v3838
  %v3840 = vrot.slane %v3839, 1
  %v3841 = vmax.f32 %v3839, %v3840
  %v3842 = vsel %vm1077, %v3521, -inf
  %v3843 = vrot.slane %v3842, 4
  %v3844 = vmax.f32 %v3842, %v3843
  %v3845 = vrot.slane %v3844, 2
  %v3846 = vmax.f32 %v3844, %v3845
  %v3847 = vrot.slane %v3846, 1
  %v3848 = vmax.f32 %v3846, %v3847
  %v3849 = vsel %vm1077, %v3529, -inf
  %v3850 = vrot.slane %v3849, 4
  %v3851 = vmax.f32 %v3849, %v3850
  %v3852 = vrot.slane %v3851, 2
  %v3853 = vmax.f32 %v3851, %v3852
  %v3854 = vrot.slane %v3853, 1
  %v3855 = vmax.f32 %v3853, %v3854
  %v3856 = vsel %vm1077, %v3528, -inf
  %v3857 = vrot.slane %v3856, 4
  %v3858 = vmax.f32 %v3856, %v3857
  %v3859 = vrot.slane %v3858, 2
  %v3860 = vmax.f32 %v3858, %v3859
  %v3861 = vrot.slane %v3860, 1
  %v3862 = vmax.f32 %v3860, %v3861
  %v3863 = vsel %vm1077, %v3530, -inf
  %v3864 = vrot.slane %v3863, 4
  %v3865 = vmax.f32 %v3863, %v3864
  %v3866 = vrot.slane %v3865, 2
  %v3867 = vmax.f32 %v3865, %v3866
  %v3868 = vrot.slane %v3867, 1
  %v3869 = vmax.f32 %v3867, %v3868
  %v3870 = vsel %vm1077, %v3538, -inf
  %v3871 = vrot.slane %v3870, 4
  %v3872 = vmax.f32 %v3870, %v3871
  %v3873 = vrot.slane %v3872, 2
  %v3874 = vmax.f32 %v3872, %v3873
  %v3875 = vrot.slane %v3874, 1
  %v3876 = vmax.f32 %v3874, %v3875
  %v3877 = vsel %vm1077, %v3546, -inf
  %v3878 = vrot.slane %v3877, 4
  %v3879 = vmax.f32 %v3877, %v3878
  %v3880 = vrot.slane %v3879, 2
  %v3881 = vmax.f32 %v3879, %v3880
  %v3882 = vrot.slane %v3881, 1
  %v3883 = vmax.f32 %v3881, %v3882
  %v3884 = vsel %vm1077, %v3545, -inf
  %v3885 = vrot.slane %v3884, 4
  %v3886 = vmax.f32 %v3884, %v3885
  %v3887 = vrot.slane %v3886, 2
  %v3888 = vmax.f32 %v3886, %v3887
  %v3889 = vrot.slane %v3888, 1
  %v3890 = vmax.f32 %v3888, %v3889
  %v3891 = vsel %vm1077, %v3547, -inf
  %v3892 = vrot.slane %v3891, 4
  %v3893 = vmax.f32 %v3891, %v3892
  %v3894 = vrot.slane %v3893, 2
  %v3895 = vmax.f32 %v3893, %v3894
  %v3896 = vrot.slane %v3895, 1
  %v3897 = vmax.f32 %v3895, %v3896
  %v3898 = vsel %vm1077, %v3555, -inf
  %v3899 = vrot.slane %v3898, 4
  %v3900 = vmax.f32 %v3898, %v3899
  %v3901 = vrot.slane %v3900, 2
  %v3902 = vmax.f32 %v3900, %v3901
  %v3903 = vrot.slane %v3902, 1
  %v3904 = vmax.f32 %v3902, %v3903
  %v3905 = vsel %vm1077, %v3563, -inf
  %v3906 = vrot.slane %v3905, 4
  %v3907 = vmax.f32 %v3905, %v3906
  %v3908 = vrot.slane %v3907, 2
  %v3909 = vmax.f32 %v3907, %v3908
  %v3910 = vrot.slane %v3909, 1
  %v3911 = vmax.f32 %v3909, %v3910
  %v3912 = vsel %vm1077, %v3562, -inf
  %v3913 = vrot.slane %v3912, 4
  %v3914 = vmax.f32 %v3912, %v3913
  %v3915 = vrot.slane %v3914, 2
  %v3916 = vmax.f32 %v3914, %v3915
  %v3917 = vrot.slane %v3916, 1
  %v3918 = vmax.f32 %v3916, %v3917
  %v3919 = vsel %vm1077, %v3564, -inf
  %v3920 = vrot.slane %v3919, 4
  %v3921 = vmax.f32 %v3919, %v3920
  %v3922 = vrot.slane %v3921, 2
  %v3923 = vmax.f32 %v3921, %v3922
  %v3924 = vrot.slane %v3923, 1
  %v3925 = vmax.f32 %v3923, %v3924
  %v3926 = vsel %vm1077, %v3572, -inf
  %v3927 = vrot.slane %v3926, 4
  %v3928 = vmax.f32 %v3926, %v3927
  %v3929 = vrot.slane %v3928, 2
  %v3930 = vmax.f32 %v3928, %v3929
  %v3931 = vrot.slane %v3930, 1
  %v3932 = vmax.f32 %v3930, %v3931
  %v3933 = vsel %vm1077, %v3580, -inf
  %v3934 = vrot.slane %v3933, 4
  %v3935 = vmax.f32 %v3933, %v3934
  %v3936 = vrot.slane %v3935, 2
  %v3937 = vmax.f32 %v3935, %v3936
  %v3938 = vrot.slane %v3937, 1
  %v3939 = vmax.f32 %v3937, %v3938
  %v3940 = vsel %vm1077, %v3579, -inf
  %v3941 = vrot.slane %v3940, 4
  %v3942 = vmax.f32 %v3940, %v3941
  %v3943 = vrot.slane %v3942, 2
  %v3944 = vmax.f32 %v3942, %v3943
  %v3945 = vrot.slane %v3944, 1
  %v3946 = vmax.f32 %v3944, %v3945
  %v3947 = vsel %vm1077, %v3581, -inf
  %v3948 = vrot.slane %v3947, 4
  %v3949 = vmax.f32 %v3947, %v3948
  %v3950 = vrot.slane %v3949, 2
  %v3951 = vmax.f32 %v3949, %v3950
  %v3952 = vrot.slane %v3951, 1
  %v3953 = vmax.f32 %v3951, %v3952
  %v3954 = vsel %vm1077, %v3589, -inf
  %v3955 = vrot.slane %v3954, 4
  %v3956 = vmax.f32 %v3954, %v3955
  %v3957 = vrot.slane %v3956, 2
  %v3958 = vmax.f32 %v3956, %v3957
  %v3959 = vrot.slane %v3958, 1
  %v3960 = vmax.f32 %v3958, %v3959
  %v3961 = vsel %vm1077, %v3597, -inf
  %v3962 = vrot.slane %v3961, 4
  %v3963 = vmax.f32 %v3961, %v3962
  %v3964 = vrot.slane %v3963, 2
  %v3965 = vmax.f32 %v3963, %v3964
  %v3966 = vrot.slane %v3965, 1
  %v3967 = vmax.f32 %v3965, %v3966
  %v3968 = vsel %vm1077, %v3596, -inf
  %v3969 = vrot.slane %v3968, 4
  %v3970 = vmax.f32 %v3968, %v3969
  %v3971 = vrot.slane %v3970, 2
  %v3972 = vmax.f32 %v3970, %v3971
  %v3973 = vrot.slane %v3972, 1
  %v3974 = vmax.f32 %v3972, %v3973
  %v3975 = vsel %vm1077, %v3598, -inf
  %v3976 = vrot.slane %v3975, 4
  %v3977 = vmax.f32 %v3975, %v3976
  %v3978 = vrot.slane %v3977, 2
  %v3979 = vmax.f32 %v3977, %v3978
  %v3980 = vrot.slane %v3979, 1
  %v3981 = vmax.f32 %v3979, %v3980
  %v3982 = vsel %vm1077, %v3606, -inf
  %v3983 = vrot.slane %v3982, 4
  %v3984 = vmax.f32 %v3982, %v3983
  %v3985 = vrot.slane %v3984, 2
  %v3986 = vmax.f32 %v3984, %v3985
  %v3987 = vrot.slane %v3986, 1
  %v3988 = vmax.f32 %v3986, %v3987
  %v3989 = vsel %vm1077, %v3614, -inf
  %v3990 = vrot.slane %v3989, 4
  %v3991 = vmax.f32 %v3989, %v3990
  %v3992 = vrot.slane %v3991, 2
  %v3993 = vmax.f32 %v3991, %v3992
  %v3994 = vrot.slane %v3993, 1
  %v3995 = vmax.f32 %v3993, %v3994
  %v3996 = vsel %vm1077, %v3613, -inf
  %v3997 = vrot.slane %v3996, 4
  %v3998 = vmax.f32 %v3996, %v3997
  %v3999 = vrot.slane %v3998, 2
  %v4000 = vmax.f32 %v3998, %v3999
  %v4001 = vrot.slane %v4000, 1
  %v4002 = vmax.f32 %v4000, %v4001
  %v4003 = vsel %vm1077, %v3615, -inf
  %v4004 = vrot.slane %v4003, 4
  %v4005 = vmax.f32 %v4003, %v4004
  %v4006 = vrot.slane %v4005, 2
  %v4007 = vmax.f32 %v4005, %v4006
  %v4008 = vrot.slane %v4007, 1
  %v4009 = vmax.f32 %v4007, %v4008
  %v4010 = vsel %vm1077, %v3622, -inf
  %v4011 = vrot.slane %v4010, 4
  %v4012 = vmax.f32 %v4010, %v4011
  %v4013 = vrot.slane %v4012, 2
  %v4014 = vmax.f32 %v4012, %v4013
  %v4015 = vrot.slane %v4014, 1
  %v4016 = vmax.f32 %v4014, %v4015
  %v4017 = vsel %vm1077, %v3623, -inf
  %v4018 = vrot.slane %v4017, 4
  %v4019 = vmax.f32 %v4017, %v4018
  %v4020 = vrot.slane %v4019, 2
  %v4021 = vmax.f32 %v4019, %v4020
  %v4022 = vrot.slane %v4021, 1
  %v4023 = vmax.f32 %v4021, %v4022
  %v4074 = vsel %vm1478, %v3687, %v3680
  %v4075 = vsel %vm1480, %v3694, %v4074
  %v4076 = vsel %vm1482, %v3701, %v4075
  %v4077 = vsel %vm1484, %v3708, %v4076
  %v4078 = vsel %vm1486, %v3715, %v4077
  %v4079 = vsel %vm1488, %v3722, %v4078
  %v4080 = vsel %vm1490, %v3736, %v3729
  %v4081 = vsel %vm1478, %v3743, %v4080
  %v4082 = vsel %vm1480, %v3750, %v4081
  %v4083 = vsel %vm1482, %v3757, %v4082
  %v4084 = vsel %vm1484, %v3764, %v4083
  %v4085 = vsel %vm1486, %v3771, %v4084
  %v4086 = vsel %vm1488, %v3778, %v4085
  %v4087 = vsel %vm1490, %v3792, %v3785
  %v4088 = vsel %vm1478, %v3799, %v4087
  %v4089 = vsel %vm1480, %v3806, %v4088
  %v4090 = vsel %vm1482, %v3813, %v4089
  %v4091 = vsel %vm1484, %v3820, %v4090
  %v4092 = vsel %vm1486, %v3827, %v4091
  %v4093 = vsel %vm1488, %v3834, %v4092
  %v4094 = vsel %vm1490, %v3848, %v3841
  %v4095 = vsel %vm1478, %v3855, %v4094
  %v4096 = vsel %vm1480, %v3862, %v4095
  %v4097 = vsel %vm1482, %v3869, %v4096
  %v4098 = vsel %vm1484, %v3876, %v4097
  %v4099 = vsel %vm1486, %v3883, %v4098
  %v4100 = vsel %vm1488, %v3890, %v4099
  %v4101 = vsel %vm1490, %v3904, %v3897
  %v4102 = vsel %vm1478, %v3911, %v4101
  %v4103 = vsel %vm1480, %v3918, %v4102
  %v4104 = vsel %vm1482, %v3925, %v4103
  %v4105 = vsel %vm1484, %v3932, %v4104
  %v4106 = vsel %vm1486, %v3939, %v4105
  %v4107 = vsel %vm1488, %v3946, %v4106
  %v4108 = vsel %vm1490, %v3960, %v3953
  %v4109 = vsel %vm1478, %v3967, %v4108
  %v4110 = vsel %vm1480, %v3974, %v4109
  %v4111 = vsel %vm1482, %v3981, %v4110
  %v4112 = vsel %vm1484, %v3988, %v4111
  %v4113 = vsel %vm1486, %v3995, %v4112
  %v4114 = vsel %vm1488, %v4002, %v4113
  %v4115 = vsel %vm1490, %v4016, %v4009
  %v4116 = vsel %vm1478, %v4023, %v4115
  %4124 = vst.msk [vmem:[#allocation2 + $0x160] sm:$0xfe] %vm1535, %v4079
  %4125 = vst.msk [vmem:[#allocation2 + $0x170] sm:$0xff] %vm68, %v4086
  %4126 = vst.msk [vmem:[#allocation2 + $0x180] sm:$0xff] %vm68, %v4093
  %4127 = vst.msk [vmem:[#allocation2 + $0x190] sm:$0xff] %vm68, %v4100
  %4128 = vst.msk [vmem:[#allocation2 + $0x1a0] sm:$0xff] %vm68, %v4107
  %4129 = vst.msk [vmem:[#allocation2 + $0x1b0] sm:$0xff] %vm68, %v4114
  %4130 = vst.msk [vmem:[#allocation2 + $0x1c0] sm:$0x7] %vm1542, %v4116
  %v4131 = vsel %vm1490, %v3687, %v3680
  %v4132 = vsel %vm1478, %v3694, %v4131
  %v4133 = vsel %vm1480, %v3701, %v4132
  %v4134 = vsel %vm1482, %v3708, %v4133
  %v4135 = vsel %vm1484, %v3715, %v4134
  %v4136 = vsel %vm1486, %v3722, %v4135
  %v4137 = vsel %vm1488, %v3729, %v4136
  %v4138 = vsel %vm1490, %v3743, %v3736
  %v4139 = vsel %vm1478, %v3750, %v4138
  %v4140 = vsel %vm1480, %v3757, %v4139
  %v4141 = vsel %vm1482, %v3764, %v4140
  %v4142 = vsel %vm1484, %v3771, %v4141
  %v4143 = vsel %vm1486, %v3778, %v4142
  %v4144 = vsel %vm1488, %v3785, %v4143
  %v4145 = vsel %vm1490, %v3799, %v3792
  %v4146 = vsel %vm1478, %v3806, %v4145
  %v4147 = vsel %vm1480, %v3813, %v4146
  %v4148 = vsel %vm1482, %v3820, %v4147
  %v4149 = vsel %vm1484, %v3827, %v4148
  %v4150 = vsel %vm1486, %v3834, %v4149
  %v4151 = vsel %vm1488, %v3841, %v4150
  %v4152 = vsel %vm1490, %v3855, %v3848
  %v4153 = vsel %vm1478, %v3862, %v4152
  %v4154 = vsel %vm1480, %v3869, %v4153
  %v4155 = vsel %vm1482, %v3876, %v4154
  %v4156 = vsel %vm1484, %v3883, %v4155
  %v4157 = vsel %vm1486, %v3890, %v4156
  %v4158 = vsel %vm1488, %v3897, %v4157
  %v4159 = vsel %vm1490, %v3911, %v3904
  %v4160 = vsel %vm1478, %v3918, %v4159
  %v4161 = vsel %vm1480, %v3925, %v4160
  %v4162 = vsel %vm1482, %v3932, %v4161
  %v4163 = vsel %vm1484, %v3939, %v4162
  %v4164 = vsel %vm1486, %v3946, %v4163
  %v4165 = vsel %vm1488, %v3953, %v4164
  %v4166 = vsel %vm1490, %v3967, %v3960
  %v4167 = vsel %vm1478, %v3974, %v4166
  %v4168 = vsel %vm1480, %v3981, %v4167
  %v4169 = vsel %vm1482, %v3988, %v4168
  %v4170 = vsel %vm1484, %v3995, %v4169
  %v4171 = vsel %vm1486, %v4002, %v4170
  %v4172 = vsel %vm1488, %v4009, %v4171
  %v4173 = vsel %vm1490, %v4023, %v4016
  %4174 = vrot.lane.b32.xlu0 %v4137, 64
  %v4175 = vpop.permute.xlu0 %4174
  %4176 = vrot.lane.b32.xlu0 %v4144, 64
  %v4177 = vpop.permute.xlu0 %4176
  %4178 = vrot.lane.b32.xlu0 %v4151, 64
  %v4179 = vpop.permute.xlu0 %4178
  %4180 = vrot.lane.b32.xlu0 %v4158, 64
  %v4181 = vpop.permute.xlu0 %4180
  %4182 = vrot.lane.b32.xlu0 %v4165, 64
  %v4183 = vpop.permute.xlu0 %4182
  %4184 = vrot.lane.b32.xlu0 %v4172, 64
  %v4185 = vpop.permute.xlu0 %4184
  %4186 = vrot.lane.b32.xlu0 %v4173, 64
  %v4187 = vpop.permute.xlu0 %4186
  %4195 = vst.msk [vmem:[#allocation2 + $0x160] sm:$0xff] %vm1608, %v4175
  %4196 = vst.msk [vmem:[#allocation2 + $0x170] sm:$0xff] %vm1608, %v4177
  %4197 = vst.msk [vmem:[#allocation2 + $0x180] sm:$0xff] %vm1608, %v4179
  %4198 = vst.msk [vmem:[#allocation2 + $0x190] sm:$0xff] %vm1608, %v4181
  %4199 = vst.msk [vmem:[#allocation2 + $0x1a0] sm:$0xff] %vm1608, %v4183
  %4200 = vst.msk [vmem:[#allocation2 + $0x1b0] sm:$0xff] %vm1608, %v4185
  %4201 = vst.msk [vmem:[#allocation2 + $0x1c0] sm:$0x3] %vm1615, %v4187
  %v4202 = vsel %vm1490, %v3694, %v3687
  %v4203 = vsel %vm1478, %v3701, %v4202
  %v4204 = vsel %vm1480, %v3708, %v4203
  %v4205 = vsel %vm1482, %v3715, %v4204
  %v4206 = vsel %vm1484, %v3722, %v4205
  %v4207 = vsel %vm1486, %v3729, %v4206
  %v4208 = vsel %vm1488, %v3736, %v4207
  %v4209 = vsel %vm1490, %v3750, %v3743
  %v4210 = vsel %vm1478, %v3757, %v4209
  %v4211 = vsel %vm1480, %v3764, %v4210
  %v4212 = vsel %vm1482, %v3771, %v4211
  %v4213 = vsel %vm1484, %v3778, %v4212
  %v4214 = vsel %vm1486, %v3785, %v4213
  %v4215 = vsel %vm1488, %v3792, %v4214
  %v4216 = vsel %vm1490, %v3806, %v3799
  %v4217 = vsel %vm1478, %v3813, %v4216
  %v4218 = vsel %vm1480, %v3820, %v4217
  %v4219 = vsel %vm1482, %v3827, %v4218
  %v4220 = vsel %vm1484, %v3834, %v4219
  %v4221 = vsel %vm1486, %v3841, %v4220
  %v4222 = vsel %vm1488, %v3848, %v4221
  %v4223 = vsel %vm1490, %v3862, %v3855
  %v4224 = vsel %vm1478, %v3869, %v4223
  %v4225 = vsel %vm1480, %v3876, %v4224
  %v4226 = vsel %vm1482, %v3883, %v4225
  %v4227 = vsel %vm1484, %v3890, %v4226
  %v4228 = vsel %vm1486, %v3897, %v4227
  %v4229 = vsel %vm1488, %v3904, %v4228
  %v4230 = vsel %vm1490, %v3918, %v3911
  %v4231 = vsel %vm1478, %v3925, %v4230
  %v4232 = vsel %vm1480, %v3932, %v4231
  %v4233 = vsel %vm1482, %v3939, %v4232
  %v4234 = vsel %vm1484, %v3946, %v4233
  %v4235 = vsel %vm1486, %v3953, %v4234
  %v4236 = vsel %vm1488, %v3960, %v4235
  %v4237 = vsel %vm1490, %v3974, %v3967
  %v4238 = vsel %vm1478, %v3981, %v4237
  %v4239 = vsel %vm1480, %v3988, %v4238
  %v4240 = vsel %vm1482, %v3995, %v4239
  %v4241 = vsel %vm1484, %v4002, %v4240
  %v4242 = vsel %vm1486, %v4009, %v4241
  %v4243 = vsel %vm1488, %v4016, %v4242
  %4252 = vst.msk [vmem:[#allocation2 + $0x158] sm:$0x80] %vm1667, %v3680
  %4253 = vst.msk [vmem:[#allocation2 + $0x168] sm:$0xff] %vm68, %v4208
  %4254 = vst.msk [vmem:[#allocation2 + $0x178] sm:$0xff] %vm68, %v4215
  %4255 = vst.msk [vmem:[#allocation2 + $0x188] sm:$0xff] %vm68, %v4222
  %4256 = vst.msk [vmem:[#allocation2 + $0x198] sm:$0xff] %vm68, %v4229
  %4257 = vst.msk [vmem:[#allocation2 + $0x1a8] sm:$0xff] %vm68, %v4236
  %4258 = vst.msk [vmem:[#allocation2 + $0x1b8] sm:$0xff] %vm68, %v4243
  %4259 = vst.msk [vmem:[#allocation2 + $0x1c8] sm:$0x1] %vm1675, %v4023
  %v4260 = vld [vmem:[#allocation2 + $0x10] sm:$0xff]
  %v4261 = vld [vmem:[#allocation2 + $0x18] sm:$0xff]
  %v4262 = vld [vmem:[#allocation2 + $0x20] sm:$0xff]
  %v4263 = vld [vmem:[#allocation2 + $0x28] sm:$0xff]
  %v4264 = vld [vmem:[#allocation2 + $0x30] sm:$0xff]
  %v4265 = vld [vmem:[#allocation2 + $0x38] sm:$0xff]
  %v4266 = vld [vmem:[#allocation2 + $0x40] sm:$0xff]
  %v4267 = vld [vmem:[#allocation2 + $0x48] sm:$0xff]
  %v4268 = vld [vmem:[#allocation2 + $0x50] sm:$0xff]
  %v4269 = vld [vmem:[#allocation2 + $0x58] sm:$0xff]
  %v4270 = vld [vmem:[#allocation2 + $0x60] sm:$0xff]
  %v4271 = vld [vmem:[#allocation2 + $0x68] sm:$0xff]
  %v4272 = vld [vmem:[#allocation2 + $0x70] sm:$0xff]
  %v4273 = vld [vmem:[#allocation2 + $0x78] sm:$0xff]
  %v4274 = vld [vmem:[#allocation2 + $0x80] sm:$0xff]
  %v4275 = vld [vmem:[#allocation2 + $0x88] sm:$0xff]
  %v4276 = vld [vmem:[#allocation2 + $0x90] sm:$0xff]
  %v4277 = vld [vmem:[#allocation2 + $0x98] sm:$0xff]
  %v4278 = vld [vmem:[#allocation2 + $0xa0] sm:$0xff]
  %v4279 = vld [vmem:[#allocation2 + $0xa8] sm:$0xff]
  %v4280 = vld [vmem:[#allocation2 + $0xb0] sm:$0xff]
  %v4281 = vld [vmem:[#allocation2 + $0xb8] sm:$0xff]
  %v4282 = vld [vmem:[#allocation2 + $0xc0] sm:$0xff]
  %v4283 = vld [vmem:[#allocation2 + $0xc8] sm:$0xff]
  %v4284 = vld [vmem:[#allocation2 + $0xd0] sm:$0xff]
  %v4285 = vld [vmem:[#allocation2 + $0xd8] sm:$0xff]
  %v4286 = vld [vmem:[#allocation2 + $0xe0] sm:$0xff]
  %v4287 = vld [vmem:[#allocation2 + $0xe8] sm:$0xff]
  %v4288 = vld [vmem:[#allocation2 + $0xf0] sm:$0xff]
  %v4289 = vld [vmem:[#allocation2 + $0xf8] sm:$0xff]
  %v4290 = vld [vmem:[#allocation2 + $0x100] sm:$0xff]
  %v4291 = vld [vmem:[#allocation2 + $0x108] sm:$0xff]
  %v4292 = vld [vmem:[#allocation2 + $0x110] sm:$0xff]
  %v4293 = vld [vmem:[#allocation2 + $0x118] sm:$0xff]
  %v4294 = vld [vmem:[#allocation2 + $0x120] sm:$0xff]
  %v4295 = vld [vmem:[#allocation2 + $0x128] sm:$0xff]
  %v4296 = vld [vmem:[#allocation2 + $0x130] sm:$0xff]
  %v4297 = vld [vmem:[#allocation2 + $0x138] sm:$0xff]
  %v4298 = vld [vmem:[#allocation2 + $0x140] sm:$0xff]
  %v4299 = vld [vmem:[#allocation2 + $0x148] sm:$0xff]
  %v4300 = vld [vmem:[#allocation2 + $0x150] sm:$0xff]
  %v4301 = vld [vmem:[#allocation2 + $0x158] sm:$0xff]
  %v4302 = vld [vmem:[#allocation2 + $0x160] sm:$0xff]
  %v4303 = vld [vmem:[#allocation2 + $0x168] sm:$0xff]
  %v4304 = vld [vmem:[#allocation2 + $0x170] sm:$0xff]
  %v4305 = vld [vmem:[#allocation2 + $0x178] sm:$0xff]
  %v4306 = vld [vmem:[#allocation2 + $0x180] sm:$0xff]
  %v4307 = vld [vmem:[#allocation2 + $0x188] sm:$0xff]
  %v4308 = vld [vmem:[#allocation2 + $0x190] sm:$0xff]
  %v4309 = vld [vmem:[#allocation2 + $0x198] sm:$0xff]
  %v4310 = vld [vmem:[#allocation2 + $0x1a0] sm:$0xff]
  %v4311 = vld [vmem:[#allocation2 + $0x1a8] sm:$0xff]
  %v4312 = vld [vmem:[#allocation2 + $0x1b0] sm:$0xff]
  %v4313 = vld [vmem:[#allocation2 + $0x1b8] sm:$0xff]
  %v4314 = vld [vmem:[#allocation2 + $0x1c0] sm:$0xff]
  %v4315 = vld [vmem:[#allocation2 + $0x1c8] sm:$0xff]
  %v4316 = vld [vmem:[%s4] sm:$0xff]
  %v4317 = vld [vmem:[%s4 + $0x8] sm:$0xff]
  %v4318 = vld [vmem:[%s4 + $0x10] sm:$0xff]
  %v4319 = vld [vmem:[%s4 + $0x18] sm:$0xff]
  %v4320 = vld [vmem:[%s4 + $0x20] sm:$0xff]
  %v4321 = vld [vmem:[%s4 + $0x28] sm:$0xff]
  %v4322 = vld [vmem:[%s4 + $0x30] sm:$0xff]
  %v4323 = vld [vmem:[%s4 + $0x38] sm:$0xff]
  %v4324 = vld [vmem:[%s4 + $0x40] sm:$0xff]
  %v4325 = vld [vmem:[%s4 + $0x48] sm:$0xff]
  %v4326 = vld [vmem:[%s4 + $0x50] sm:$0xff]
  %v4327 = vld [vmem:[%s4 + $0x58] sm:$0xff]
  %v4328 = vld [vmem:[%s4 + $0x60] sm:$0xff]
  %v4329 = vld [vmem:[%s4 + $0x68] sm:$0xff]
  %v4330 = vld [vmem:[%s4 + $0x70] sm:$0xff]
  %v4331 = vld [vmem:[%s4 + $0x78] sm:$0xff]
  %v4332 = vld [vmem:[%s4 + $0x80] sm:$0xff]
  %v4333 = vld [vmem:[%s4 + $0x88] sm:$0xff]
  %v4334 = vld [vmem:[%s4 + $0x90] sm:$0xff]
  %v4335 = vld [vmem:[%s4 + $0x98] sm:$0xff]
  %v4336 = vld [vmem:[%s4 + $0xa0] sm:$0xff]
  %v4337 = vld [vmem:[%s4 + $0xa8] sm:$0xff]
  %v4338 = vld [vmem:[%s4 + $0xb0] sm:$0xff]
  %v4339 = vld [vmem:[%s4 + $0xb8] sm:$0xff]
  %v4341 = vsel %vm68, %v4261, 0
  %v4344 = vsel %vm68, %v4263, 0
  %v4347 = vsel %vm68, %v4265, 0
  %v4350 = vsel %vm68, %v4267, 0
  %v4353 = vsel %vm68, %v4269, 0
  %v4356 = vsel %vm68, %v4271, 0
  %v4359 = vsel %vm68, %v4273, 0
  %v4362 = vsel %vm68, %v4275, 0
  %v4365 = vsel %vm68, %v4277, 0
  %v4368 = vsel %vm68, %v4279, 0
  %v4371 = vsel %vm68, %v4281, 0
  %v4374 = vsel %vm68, %v4283, 0
  %v4377 = vsel %vm68, %v4285, 0
  %v4380 = vsel %vm68, %v4287, 0
  %v4383 = vsel %vm68, %v4289, 0
  %v4386 = vsel %vm68, %v4291, 0
  %v4389 = vsel %vm68, %v4293, 0
  %v4392 = vsel %vm68, %v4295, 0
  %v4395 = vsel %vm68, %v4297, 0
  %v4398 = vsel %vm68, %v4299, 0
  %v4401 = vsel %vm68, %v4301, 0
  %v4404 = vsel %vm68, %v4303, 0
  %v4407 = vsel %vm68, %v4305, 0
  %v4410 = vsel %vm68, %v4307, 0
  %v4413 = vsel %vm68, %v4309, 0
  %v4416 = vsel %vm68, %v4311, 0
  %v4419 = vsel %vm68, %v4313, 0
  %v4422 = vsel %vm68, %v4315, 0
  %4424 = vmatprep.subr.mxu0 0.0
  %4425 = vmatpush1.msra.mxu0 %v4316
  %4426 = vmatprep.subr.mxu0 0.0
  %4427 = vmatpush1.msra.mxu0 %v4317
  %4428 = vmatprep.subr.mxu0 0.0
  %4429 = vmatpush1.msra.mxu0 %v4318
  %4430 = vmatprep.subr.mxu0 0.0
  %4431 = vmatpush1.msra.mxu0 %v4319
  %4432 = vmatprep.subr.mxu0 0.0
  %4433 = vmatpush1.msra.mxu0 %v4320
  %4434 = vmatprep.subr.mxu0 0.0
  %4435 = vmatpush1.msra.mxu0 %v4321
  %4436 = vmatprep.subr.mxu0 0.0
  %4437 = vmatpush1.msra.mxu0 %v4322
  %4438 = vmatprep.subr.mxu0 0.0
  %4439 = vmatpush1.msra.mxu0 %v4323
  %4440 = vmatprep.subr.mxu0 0.0
  %4441 = vmatpush1.msra.mxu0 %v4324
  %4442 = vmatprep.subr.mxu0 0.0
  %4443 = vmatpush1.msra.mxu0 %v4325
  %4444 = vmatprep.subr.mxu0 0.0
  %4445 = vmatpush1.msra.mxu0 %v4326
  %4446 = vmatprep.subr.mxu0 0.0
  %4447 = vmatpush1.msra.mxu0 %v4327
  %4448 = vmatprep.subr.mxu0 0.0
  %4449 = vmatpush1.msra.mxu0 %v4328
  %4450 = vmatprep.subr.mxu0 0.0
  %4451 = vmatpush1.msra.mxu0 %v4329
  %4452 = vmatprep.subr.mxu0 0.0
  %4453 = vmatpush1.msra.mxu0 %v4330
  %4454 = vmatprep.subr.mxu0 0.0
  %4455 = vmatpush1.msra.mxu0 %v4331
  %4456 = vmatprep.subr.mxu0 0.0
  %4457 = vmatpush1.msra.mxu0 %v4332
  %4458 = vmatprep.subr.mxu0 0.0
  %4459 = vmatpush1.msra.mxu0 %v4333
  %4460 = vmatprep.subr.mxu0 0.0
  %4461 = vmatpush1.msra.mxu0 %v4334
  %4462 = vmatprep.subr.mxu0 0.0
  %4463 = vmatpush1.msra.mxu0 %v4335
  %4464 = vmatprep.subr.mxu0 0.0
  %4465 = vmatpush1.msra.mxu0 %v4336
  %4466 = vmatprep.subr.mxu0 0.0
  %4467 = vmatpush1.msra.mxu0 %v4337
  %4468 = vmatprep.subr.mxu0 0.0
  %4469 = vmatpush1.msra.mxu0 %v4338
  %4470 = vmatprep.subr.mxu0 0.0
  %4471 = vmatpush1.msra.mxu0 %v4339
  %4472 = vmatprep.subr.mxu0 0.0
  %4473 = vmatpush1.msra.mxu0 0.0
  %4474 = vmatprep.subr.mxu0 0.0
  %4475 = vmatpush1.msra.mxu0 0.0
  %4476 = vmatprep.subr.mxu0 0.0
  %4477 = vmatpush1.msra.mxu0 0.0
  %4478 = vmatprep.subr.mxu0 0.0
  %4479 = vmatpush1.msra.mxu0 0.0
  %4480 = vmatprep.subr.mxu0 0.0
  %4481 = vmatpush1.msra.mxu0 0.0
  %4482 = vmatprep.subr.mxu0 0.0
  %4483 = vmatpush1.msra.mxu0 0.0
  %4484 = vmatprep.subr.mxu0 0.0
  %4485 = vmatpush1.msra.mxu0 0.0
  %4486 = vmatprep.subr.mxu0 0.0
  %4487 = vmatpush1.msra.mxu0 0.0
  %4488 = vmatprep.mubr.f32.mxu0 %v4341
  %4489 = vmatmul.mubr.f32.gmra.mrb[0].mxu0 %v4260
  %v4490 = vpop.f32.mrb[0].mxu0
  %v4491 = vadd.f32 0.0, %v4490
  %v4492 = vpop.f32.mrb[0].mxu0
  %4493 = vmatprep.mubr.f32.mxu0 %v4344
  %4494 = vmatmul.mubr.f32.gmra.mrb[0].mxu0 %v4262
  %v4495 = vpop.f32.mrb[0].mxu0
  %v4496 = vadd.f32 0.0, %v4495
  %v4497 = vpop.f32.mrb[0].mxu0
  %4498 = vmatprep.mubr.f32.mxu0 %v4347
  %4499 = vmatmul.mubr.f32.gmra.mrb[0].mxu0 %v4264
  %v4500 = vpop.f32.mrb[0].mxu0
  %v4501 = vadd.f32 0.0, %v4500
  %v4502 = vpop.f32.mrb[0].mxu0
  %4503 = vmatprep.mubr.f32.mxu0 %v4350
  %4504 = vmatmul.mubr.f32.gmra.mrb[0].mxu0 %v4266
  %v4505 = vpop.f32.mrb[0].mxu0
  %v4506 = vadd.f32 0.0, %v4505
  %v4507 = vpop.f32.mrb[0].mxu0
  %4508 = vmatprep.mubr.f32.mxu0 %v4353
  %4509 = vmatmul.mubr.f32.gmra.mrb[0].mxu0 %v4268
  %v4510 = vpop.f32.mrb[0].mxu0
  %v4511 = vadd.f32 0.0, %v4510
  %v4512 = vpop.f32.mrb[0].mxu0
  %4513 = vmatprep.mubr.f32.mxu0 %v4356
  %4514 = vmatmul.mubr.f32.gmra.mrb[0].mxu0 %v4270
  %v4515 = vpop.f32.mrb[0].mxu0
  %v4516 = vadd.f32 0.0, %v4515
  %v4517 = vpop.f32.mrb[0].mxu0
  %4518 = vmatprep.mubr.f32.mxu0 %v4359
  %4519 = vmatmul.mubr.f32.gmra.mrb[0].mxu0 %v4272
  %v4520 = vpop.f32.mrb[0].mxu0
  %v4521 = vadd.f32 0.0, %v4520
  %v4522 = vpop.f32.mrb[0].mxu0
  %4523 = vmatprep.mubr.f32.mxu0 %v4362
  %4524 = vmatmul.mubr.f32.gmra.mrb[0].mxu0 %v4274
  %v4525 = vpop.f32.mrb[0].mxu0
  %v4526 = vadd.f32 0.0, %v4525
  %v4527 = vpop.f32.mrb[0].mxu0
  %4528 = vmatprep.mubr.f32.mxu0 %v4365
  %4529 = vmatmul.mubr.f32.gmra.mrb[0].mxu0 %v4276
  %v4530 = vpop.f32.mrb[0].mxu0
  %v4531 = vadd.f32 0.0, %v4530
  %v4532 = vpop.f32.mrb[0].mxu0
  %4533 = vmatprep.mubr.f32.mxu0 %v4368
  %4534 = vmatmul.mubr.f32.gmra.mrb[0].mxu0 %v4278
  %v4535 = vpop.f32.mrb[0].mxu0
  %v4536 = vadd.f32 0.0, %v4535
  %v4537 = vpop.f32.mrb[0].mxu0
  %4538 = vmatprep.mubr.f32.mxu0 %v4371
  %4539 = vmatmul.mubr.f32.gmra.mrb[0].mxu0 %v4280
  %v4540 = vpop.f32.mrb[0].mxu0
  %v4541 = vadd.f32 0.0, %v4540
  %v4542 = vpop.f32.mrb[0].mxu0
  %4543 = vmatprep.mubr.f32.mxu0 %v4374
  %4544 = vmatmul.mubr.f32.gmra.mrb[0].mxu0 %v4282
  %v4545 = vpop.f32.mrb[0].mxu0
  %v4546 = vadd.f32 0.0, %v4545
  %v4547 = vpop.f32.mrb[0].mxu0
  %4548 = vmatprep.mubr.f32.mxu0 %v4377
  %4549 = vmatmul.mubr.f32.gmra.mrb[0].mxu0 %v4284
  %v4550 = vpop.f32.mrb[0].mxu0
  %v4551 = vadd.f32 0.0, %v4550
  %v4552 = vpop.f32.mrb[0].mxu0
  %4553 = vmatprep.mubr.f32.mxu0 %v4380
  %4554 = vmatmul.mubr.f32.gmra.mrb[0].mxu0 %v4286
  %v4555 = vpop.f32.mrb[0].mxu0
  %v4556 = vadd.f32 0.0, %v4555
  %v4557 = vpop.f32.mrb[0].mxu0
  %4558 = vmatprep.mubr.f32.mxu0 %v4383
  %4559 = vmatmul.mubr.f32.gmra.mrb[0].mxu0 %v4288
  %v4560 = vpop.f32.mrb[0].mxu0
  %v4561 = vadd.f32 0.0, %v4560
  %v4562 = vpop.f32.mrb[0].mxu0
  %4563 = vmatprep.mubr.f32.mxu0 %v4386
  %4564 = vmatmul.mubr.f32.gmra.mrb[0].mxu0 %v4290
  %v4565 = vpop.f32.mrb[0].mxu0
  %v4566 = vadd.f32 0.0, %v4565
  %v4567 = vpop.f32.mrb[0].mxu0
  %4568 = vmatprep.mubr.f32.mxu0 %v4389
  %4569 = vmatmul.mubr.f32.gmra.mrb[0].mxu0 %v4292
  %v4570 = vpop.f32.mrb[0].mxu0
  %v4571 = vadd.f32 0.0, %v4570
  %v4572 = vpop.f32.mrb[0].mxu0
  %4573 = vmatprep.mubr.f32.mxu0 %v4392
  %4574 = vmatmul.mubr.f32.gmra.mrb[0].mxu0 %v4294
  %v4575 = vpop.f32.mrb[0].mxu0
  %v4576 = vadd.f32 0.0, %v4575
  %v4577 = vpop.f32.mrb[0].mxu0
  %4578 = vmatprep.mubr.f32.mxu0 %v4395
  %4579 = vmatmul.mubr.f32.gmra.mrb[0].mxu0 %v4296
  %v4580 = vpop.f32.mrb[0].mxu0
  %v4581 = vadd.f32 0.0, %v4580
  %v4582 = vpop.f32.mrb[0].mxu0
  %4583 = vmatprep.mubr.f32.mxu0 %v4398
  %4584 = vmatmul.mubr.f32.gmra.mrb[0].mxu0 %v4298
  %v4585 = vpop.f32.mrb[0].mxu0
  %v4586 = vadd.f32 0.0, %v4585
  %v4587 = vpop.f32.mrb[0].mxu0
  %4588 = vmatprep.mubr.f32.mxu0 %v4401
  %4589 = vmatmul.mubr.f32.gmra.mrb[0].mxu0 %v4300
  %v4590 = vpop.f32.mrb[0].mxu0
  %v4591 = vadd.f32 0.0, %v4590
  %v4592 = vpop.f32.mrb[0].mxu0
  %4593 = vmatprep.mubr.f32.mxu0 %v4404
  %4594 = vmatmul.mubr.f32.gmra.mrb[0].mxu0 %v4302
  %v4595 = vpop.f32.mrb[0].mxu0
  %v4596 = vadd.f32 0.0, %v4595
  %v4597 = vpop.f32.mrb[0].mxu0
  %4598 = vmatprep.mubr.f32.mxu0 %v4407
  %4599 = vmatmul.mubr.f32.gmra.mrb[0].mxu0 %v4304
  %v4600 = vpop.f32.mrb[0].mxu0
  %v4601 = vadd.f32 0.0, %v4600
  %v4602 = vpop.f32.mrb[0].mxu0
  %4603 = vmatprep.mubr.f32.mxu0 %v4410
  %4604 = vmatmul.mubr.f32.gmra.mrb[0].mxu0 %v4306
  %v4605 = vpop.f32.mrb[0].mxu0
  %v4606 = vadd.f32 0.0, %v4605
  %v4607 = vpop.f32.mrb[0].mxu0
  %4608 = vmatprep.mubr.f32.mxu0 %v4413
  %4609 = vmatmul.mubr.f32.gmra.mrb[0].mxu0 %v4308
  %v4610 = vpop.f32.mrb[0].mxu0
  %v4611 = vadd.f32 0.0, %v4610
  %v4612 = vpop.f32.mrb[0].mxu0
  %4613 = vmatprep.mubr.f32.mxu0 %v4416
  %4614 = vmatmul.mubr.f32.gmra.mrb[0].mxu0 %v4310
  %v4615 = vpop.f32.mrb[0].mxu0
  %v4616 = vadd.f32 0.0, %v4615
  %v4617 = vpop.f32.mrb[0].mxu0
  %4618 = vmatprep.mubr.f32.mxu0 %v4419
  %4619 = vmatmul.mubr.f32.gmra.mrb[0].mxu0 %v4312
  %v4620 = vpop.f32.mrb[0].mxu0
  %v4621 = vadd.f32 0.0, %v4620
  %v4622 = vpop.f32.mrb[0].mxu0
  %4623 = vmatprep.mubr.f32.mxu0 %v4422
  %4624 = vmatmul.mubr.f32.gmra.mrb[0].mxu0 %v4314
  %v4625 = vpop.f32.mrb[0].mxu0
  %v4626 = vadd.f32 0.0, %v4625
  %v4627 = vpop.f32.mrb[0].mxu0
  %4628 = vdwg.mxu0
  %v4629 = vld [vmem:[%s5] sm:$0x1]
  %v4631 = vlaneseq
  %v4632 = vshrl.u32 %v4631, 7
  %v4633 = vsub.s32 0, %v4632
  %v4634 = vrot.slane %v4629, %v4633
  %v4636 = vmul.f32 %v4491, %v4634
  %v4637 = vmul.f32 %v4496, %v4634
  %v4638 = vmul.f32 %v4501, %v4634
  %v4639 = vmul.f32 %v4506, %v4634
  %v4640 = vmul.f32 %v4511, %v4634
  %v4641 = vmul.f32 %v4516, %v4634
  %v4642 = vmul.f32 %v4521, %v4634
  %v4643 = vmul.f32 %v4526, %v4634
  %v4644 = vmul.f32 %v4531, %v4634
  %v4645 = vmul.f32 %v4536, %v4634
  %v4646 = vmul.f32 %v4541, %v4634
  %v4647 = vmul.f32 %v4546, %v4634
  %v4648 = vmul.f32 %v4551, %v4634
  %v4649 = vmul.f32 %v4556, %v4634
  %v4650 = vmul.f32 %v4561, %v4634
  %v4651 = vmul.f32 %v4566, %v4634
  %v4652 = vmul.f32 %v4571, %v4634
  %v4653 = vmul.f32 %v4576, %v4634
  %v4654 = vmul.f32 %v4581, %v4634
  %v4655 = vmul.f32 %v4586, %v4634
  %v4656 = vmul.f32 %v4591, %v4634
  %v4657 = vmul.f32 %v4596, %v4634
  %v4658 = vmul.f32 %v4601, %v4634
  %v4659 = vmul.f32 %v4606, %v4634
  %v4660 = vmul.f32 %v4611, %v4634
  %v4661 = vmul.f32 %v4616, %v4634
  %v4662 = vmul.f32 %v4621, %v4634
  %v4663 = vmul.f32 %v4626, %v4634
  %v4664 = vld [vmem:[%s6] sm:$0x1]
  %v4666 = vlaneseq
  %v4667 = vshrl.u32 %v4666, 7
  %v4668 = vsub.s32 0, %v4667
  %v4669 = vrot.slane %v4664, %v4668
  %v4671 = vadd.f32 %v4636, %v4669
  %v4672 = vadd.f32 %v4637, %v4669
  %v4673 = vadd.f32 %v4638, %v4669
  %v4674 = vadd.f32 %v4639, %v4669
  %v4675 = vadd.f32 %v4640, %v4669
  %v4676 = vadd.f32 %v4641, %v4669
  %v4677 = vadd.f32 %v4642, %v4669
  %v4678 = vadd.f32 %v4643, %v4669
  %v4679 = vadd.f32 %v4644, %v4669
  %v4680 = vadd.f32 %v4645, %v4669
  %v4681 = vadd.f32 %v4646, %v4669
  %v4682 = vadd.f32 %v4647, %v4669
  %v4683 = vadd.f32 %v4648, %v4669
  %v4684 = vadd.f32 %v4649, %v4669
  %v4685 = vadd.f32 %v4650, %v4669
  %v4686 = vadd.f32 %v4651, %v4669
  %v4687 = vadd.f32 %v4652, %v4669
  %v4688 = vadd.f32 %v4653, %v4669
  %v4689 = vadd.f32 %v4654, %v4669
  %v4690 = vadd.f32 %v4655, %v4669
  %v4691 = vadd.f32 %v4656, %v4669
  %v4692 = vadd.f32 %v4657, %v4669
  %v4693 = vadd.f32 %v4658, %v4669
  %v4694 = vadd.f32 %v4659, %v4669
  %v4695 = vadd.f32 %v4660, %v4669
  %v4696 = vadd.f32 %v4661, %v4669
  %v4697 = vadd.f32 %v4662, %v4669
  %v4698 = vadd.f32 %v4663, %v4669
  %v4699 = vmax.f32 %v4671, 0.0
  %v4700 = vmax.f32 %v4672, 0.0
  %v4701 = vmax.f32 %v4673, 0.0
  %v4702 = vmax.f32 %v4674, 0.0
  %v4703 = vmax.f32 %v4675, 0.0
  %v4704 = vmax.f32 %v4676, 0.0
  %v4705 = vmax.f32 %v4677, 0.0
  %v4706 = vmax.f32 %v4678, 0.0
  %v4707 = vmax.f32 %v4679, 0.0
  %v4708 = vmax.f32 %v4680, 0.0
  %v4709 = vmax.f32 %v4681, 0.0
  %v4710 = vmax.f32 %v4682, 0.0
  %v4711 = vmax.f32 %v4683, 0.0
  %v4712 = vmax.f32 %v4684, 0.0
  %v4713 = vmax.f32 %v4685, 0.0
  %v4714 = vmax.f32 %v4686, 0.0
  %v4715 = vmax.f32 %v4687, 0.0
  %v4716 = vmax.f32 %v4688, 0.0
  %v4717 = vmax.f32 %v4689, 0.0
  %v4718 = vmax.f32 %v4690, 0.0
  %v4719 = vmax.f32 %v4691, 0.0
  %v4720 = vmax.f32 %v4692, 0.0
  %v4721 = vmax.f32 %v4693, 0.0
  %v4722 = vmax.f32 %v4694, 0.0
  %v4723 = vmax.f32 %v4695, 0.0
  %v4724 = vmax.f32 %v4696, 0.0
  %v4725 = vmax.f32 %v4697, 0.0
  %v4726 = vmax.f32 %v4698, 0.0
  %v4734 = vcombine.high %v4699, %v4699
  %v4736 = vunpack.c.l.s4 1983009808
  %v4737 = vunpack.c.0.s8 %v4736
  %v4738 = vlaneseq
  %v4739 = vshrl.u32 %v4738, 7
  %v4740 = vsub.s32 %v4737, %v4739
  %v4741 = vrot.slane %v4699, %v4740
  %v4743 = vunpack.c.l.s4 1983009808
  %v4744 = vunpack.c.0.s8 %v4743
  %v4745 = vlaneseq
  %v4746 = vshrl.u32 %v4745, 7
  %v4747 = vsub.s32 %v4744, %v4746
  %v4748 = vrot.slane %v4734, %v4747
  %v4749 = vcombine.high %v4741, %v4741
  %v4750 = vcombine.high %v4748, %v4748
  %v4751 = vcombine.high %v4700, %v4700
  %v4753 = vunpack.c.l.s4 1983009808
  %v4754 = vunpack.c.0.s8 %v4753
  %v4755 = vlaneseq
  %v4756 = vshrl.u32 %v4755, 7
  %v4757 = vsub.s32 %v4754, %v4756
  %v4758 = vrot.slane %v4700, %v4757
  %v4760 = vunpack.c.l.s4 1983009808
  %v4761 = vunpack.c.0.s8 %v4760
  %v4762 = vlaneseq
  %v4763 = vshrl.u32 %v4762, 7
  %v4764 = vsub.s32 %v4761, %v4763
  %v4765 = vrot.slane %v4751, %v4764
  %v4766 = vcombine.high %v4758, %v4758
  %v4767 = vcombine.high %v4765, %v4765
  %v4768 = vcombine.high %v4701, %v4701
  %v4770 = vunpack.c.l.s4 1983009808
  %v4771 = vunpack.c.0.s8 %v4770
  %v4772 = vlaneseq
  %v4773 = vshrl.u32 %v4772, 7
  %v4774 = vsub.s32 %v4771, %v4773
  %v4775 = vrot.slane %v4701, %v4774
  %v4777 = vunpack.c.l.s4 1983009808
  %v4778 = vunpack.c.0.s8 %v4777
  %v4779 = vlaneseq
  %v4780 = vshrl.u32 %v4779, 7
  %v4781 = vsub.s32 %v4778, %v4780
  %v4782 = vrot.slane %v4768, %v4781
  %v4783 = vcombine.high %v4775, %v4775
  %v4784 = vcombine.high %v4782, %v4782
  %v4785 = vcombine.high %v4702, %v4702
  %v4787 = vunpack.c.l.s4 1983009808
  %v4788 = vunpack.c.0.s8 %v4787
  %v4789 = vlaneseq
  %v4790 = vshrl.u32 %v4789, 7
  %v4791 = vsub.s32 %v4788, %v4790
  %v4792 = vrot.slane %v4702, %v4791
  %v4794 = vunpack.c.l.s4 1983009808
  %v4795 = vunpack.c.0.s8 %v4794
  %v4796 = vlaneseq
  %v4797 = vshrl.u32 %v4796, 7
  %v4798 = vsub.s32 %v4795, %v4797
  %v4799 = vrot.slane %v4785, %v4798
  %v4800 = vcombine.high %v4792, %v4792
  %v4801 = vcombine.high %v4799, %v4799
  %v4802 = vcombine.high %v4703, %v4703
  %v4804 = vunpack.c.l.s4 1983009808
  %v4805 = vunpack.c.0.s8 %v4804
  %v4806 = vlaneseq
  %v4807 = vshrl.u32 %v4806, 7
  %v4808 = vsub.s32 %v4805, %v4807
  %v4809 = vrot.slane %v4703, %v4808
  %v4811 = vunpack.c.l.s4 1983009808
  %v4812 = vunpack.c.0.s8 %v4811
  %v4813 = vlaneseq
  %v4814 = vshrl.u32 %v4813, 7
  %v4815 = vsub.s32 %v4812, %v4814
  %v4816 = vrot.slane %v4802, %v4815
  %v4817 = vcombine.high %v4809, %v4809
  %v4818 = vcombine.high %v4816, %v4816
  %v4819 = vcombine.high %v4704, %v4704
  %v4821 = vunpack.c.l.s4 1983009808
  %v4822 = vunpack.c.0.s8 %v4821
  %v4823 = vlaneseq
  %v4824 = vshrl.u32 %v4823, 7
  %v4825 = vsub.s32 %v4822, %v4824
  %v4826 = vrot.slane %v4704, %v4825
  %v4828 = vunpack.c.l.s4 1983009808
  %v4829 = vunpack.c.0.s8 %v4828
  %v4830 = vlaneseq
  %v4831 = vshrl.u32 %v4830, 7
  %v4832 = vsub.s32 %v4829, %v4831
  %v4833 = vrot.slane %v4819, %v4832
  %v4834 = vcombine.high %v4826, %v4826
  %v4835 = vcombine.high %v4833, %v4833
  %v4837 = vunpack.c.l.s4 1983009808
  %v4838 = vunpack.c.0.s8 %v4837
  %v4839 = vlaneseq
  %v4840 = vshrl.u32 %v4839, 7
  %v4841 = vsub.s32 %v4838, %v4840
  %v4842 = vrot.slane %v4705, %v4841
  %v4868 = vsel %vm1077, %v4741, -inf
  %v4869 = vrot.slane %v4868, 4
  %v4870 = vmax.f32 %v4868, %v4869
  %v4871 = vrot.slane %v4870, 2
  %v4872 = vmax.f32 %v4870, %v4871
  %v4873 = vrot.slane %v4872, 1
  %v4874 = vmax.f32 %v4872, %v4873
  %v4875 = vsel %vm1077, %v4749, -inf
  %v4876 = vrot.slane %v4875, 4
  %v4877 = vmax.f32 %v4875, %v4876
  %v4878 = vrot.slane %v4877, 2
  %v4879 = vmax.f32 %v4877, %v4878
  %v4880 = vrot.slane %v4879, 1
  %v4881 = vmax.f32 %v4879, %v4880
  %v4882 = vsel %vm1077, %v4748, -inf
  %v4883 = vrot.slane %v4882, 4
  %v4884 = vmax.f32 %v4882, %v4883
  %v4885 = vrot.slane %v4884, 2
  %v4886 = vmax.f32 %v4884, %v4885
  %v4887 = vrot.slane %v4886, 1
  %v4888 = vmax.f32 %v4886, %v4887
  %v4889 = vsel %vm1077, %v4750, -inf
  %v4890 = vrot.slane %v4889, 4
  %v4891 = vmax.f32 %v4889, %v4890
  %v4892 = vrot.slane %v4891, 2
  %v4893 = vmax.f32 %v4891, %v4892
  %v4894 = vrot.slane %v4893, 1
  %v4895 = vmax.f32 %v4893, %v4894
  %v4896 = vsel %vm1077, %v4758, -inf
  %v4897 = vrot.slane %v4896, 4
  %v4898 = vmax.f32 %v4896, %v4897
  %v4899 = vrot.slane %v4898, 2
  %v4900 = vmax.f32 %v4898, %v4899
  %v4901 = vrot.slane %v4900, 1
  %v4902 = vmax.f32 %v4900, %v4901
  %v4903 = vsel %vm1077, %v4766, -inf
  %v4904 = vrot.slane %v4903, 4
  %v4905 = vmax.f32 %v4903, %v4904
  %v4906 = vrot.slane %v4905, 2
  %v4907 = vmax.f32 %v4905, %v4906
  %v4908 = vrot.slane %v4907, 1
  %v4909 = vmax.f32 %v4907, %v4908
  %v4910 = vsel %vm1077, %v4765, -inf
  %v4911 = vrot.slane %v4910, 4
  %v4912 = vmax.f32 %v4910, %v4911
  %v4913 = vrot.slane %v4912, 2
  %v4914 = vmax.f32 %v4912, %v4913
  %v4915 = vrot.slane %v4914, 1
  %v4916 = vmax.f32 %v4914, %v4915
  %v4917 = vsel %vm1077, %v4767, -inf
  %v4918 = vrot.slane %v4917, 4
  %v4919 = vmax.f32 %v4917, %v4918
  %v4920 = vrot.slane %v4919, 2
  %v4921 = vmax.f32 %v4919, %v4920
  %v4922 = vrot.slane %v4921, 1
  %v4923 = vmax.f32 %v4921, %v4922
  %v4924 = vsel %vm1077, %v4775, -inf
  %v4925 = vrot.slane %v4924, 4
  %v4926 = vmax.f32 %v4924, %v4925
  %v4927 = vrot.slane %v4926, 2
  %v4928 = vmax.f32 %v4926, %v4927
  %v4929 = vrot.slane %v4928, 1
  %v4930 = vmax.f32 %v4928, %v4929
  %v4931 = vsel %vm1077, %v4783, -inf
  %v4932 = vrot.slane %v4931, 4
  %v4933 = vmax.f32 %v4931, %v4932
  %v4934 = vrot.slane %v4933, 2
  %v4935 = vmax.f32 %v4933, %v4934
  %v4936 = vrot.slane %v4935, 1
  %v4937 = vmax.f32 %v4935, %v4936
  %v4938 = vsel %vm1077, %v4782, -inf
  %v4939 = vrot.slane %v4938, 4
  %v4940 = vmax.f32 %v4938, %v4939
  %v4941 = vrot.slane %v4940, 2
  %v4942 = vmax.f32 %v4940, %v4941
  %v4943 = vrot.slane %v4942, 1
  %v4944 = vmax.f32 %v4942, %v4943
  %v4945 = vsel %vm1077, %v4784, -inf
  %v4946 = vrot.slane %v4945, 4
  %v4947 = vmax.f32 %v4945, %v4946
  %v4948 = vrot.slane %v4947, 2
  %v4949 = vmax.f32 %v4947, %v4948
  %v4950 = vrot.slane %v4949, 1
  %v4951 = vmax.f32 %v4949, %v4950
  %v4952 = vsel %vm1077, %v4792, -inf
  %v4953 = vrot.slane %v4952, 4
  %v4954 = vmax.f32 %v4952, %v4953
  %v4955 = vrot.slane %v4954, 2
  %v4956 = vmax.f32 %v4954, %v4955
  %v4957 = vrot.slane %v4956, 1
  %v4958 = vmax.f32 %v4956, %v4957
  %v4959 = vsel %vm1077, %v4800, -inf
  %v4960 = vrot.slane %v4959, 4
  %v4961 = vmax.f32 %v4959, %v4960
  %v4962 = vrot.slane %v4961, 2
  %v4963 = vmax.f32 %v4961, %v4962
  %v4964 = vrot.slane %v4963, 1
  %v4965 = vmax.f32 %v4963, %v4964
  %v4966 = vsel %vm1077, %v4799, -inf
  %v4967 = vrot.slane %v4966, 4
  %v4968 = vmax.f32 %v4966, %v4967
  %v4969 = vrot.slane %v4968, 2
  %v4970 = vmax.f32 %v4968, %v4969
  %v4971 = vrot.slane %v4970, 1
  %v4972 = vmax.f32 %v4970, %v4971
  %v4973 = vsel %vm1077, %v4801, -inf
  %v4974 = vrot.slane %v4973, 4
  %v4975 = vmax.f32 %v4973, %v4974
  %v4976 = vrot.slane %v4975, 2
  %v4977 = vmax.f32 %v4975, %v4976
  %v4978 = vrot.slane %v4977, 1
  %v4979 = vmax.f32 %v4977, %v4978
  %v4980 = vsel %vm1077, %v4809, -inf
  %v4981 = vrot.slane %v4980, 4
  %v4982 = vmax.f32 %v4980, %v4981
  %v4983 = vrot.slane %v4982, 2
  %v4984 = vmax.f32 %v4982, %v4983
  %v4985 = vrot.slane %v4984, 1
  %v4986 = vmax.f32 %v4984, %v4985
  %v4987 = vsel %vm1077, %v4817, -inf
  %v4988 = vrot.slane %v4987, 4
  %v4989 = vmax.f32 %v4987, %v4988
  %v4990 = vrot.slane %v4989, 2
  %v4991 = vmax.f32 %v4989, %v4990
  %v4992 = vrot.slane %v4991, 1
  %v4993 = vmax.f32 %v4991, %v4992
  %v4994 = vsel %vm1077, %v4816, -inf
  %v4995 = vrot.slane %v4994, 4
  %v4996 = vmax.f32 %v4994, %v4995
  %v4997 = vrot.slane %v4996, 2
  %v4998 = vmax.f32 %v4996, %v4997
  %v4999 = vrot.slane %v4998, 1
  %v5000 = vmax.f32 %v4998, %v4999
  %v5001 = vsel %vm1077, %v4818, -inf
  %v5002 = vrot.slane %v5001, 4
  %v5003 = vmax.f32 %v5001, %v5002
  %v5004 = vrot.slane %v5003, 2
  %v5005 = vmax.f32 %v5003, %v5004
  %v5006 = vrot.slane %v5005, 1
  %v5007 = vmax.f32 %v5005, %v5006
  %v5008 = vsel %vm1077, %v4826, -inf
  %v5009 = vrot.slane %v5008, 4
  %v5010 = vmax.f32 %v5008, %v5009
  %v5011 = vrot.slane %v5010, 2
  %v5012 = vmax.f32 %v5010, %v5011
  %v5013 = vrot.slane %v5012, 1
  %v5014 = vmax.f32 %v5012, %v5013
  %v5015 = vsel %vm1077, %v4834, -inf
  %v5016 = vrot.slane %v5015, 4
  %v5017 = vmax.f32 %v5015, %v5016
  %v5018 = vrot.slane %v5017, 2
  %v5019 = vmax.f32 %v5017, %v5018
  %v5020 = vrot.slane %v5019, 1
  %v5021 = vmax.f32 %v5019, %v5020
  %v5022 = vsel %vm1077, %v4833, -inf
  %v5023 = vrot.slane %v5022, 4
  %v5024 = vmax.f32 %v5022, %v5023
  %v5025 = vrot.slane %v5024, 2
  %v5026 = vmax.f32 %v5024, %v5025
  %v5027 = vrot.slane %v5026, 1
  %v5028 = vmax.f32 %v5026, %v5027
  %v5029 = vsel %vm1077, %v4835, -inf
  %v5030 = vrot.slane %v5029, 4
  %v5031 = vmax.f32 %v5029, %v5030
  %v5032 = vrot.slane %v5031, 2
  %v5033 = vmax.f32 %v5031, %v5032
  %v5034 = vrot.slane %v5033, 1
  %v5035 = vmax.f32 %v5033, %v5034
  %v5036 = vsel %vm1077, %v4842, -inf
  %v5037 = vrot.slane %v5036, 4
  %v5038 = vmax.f32 %v5036, %v5037
  %v5039 = vrot.slane %v5038, 2
  %v5040 = vmax.f32 %v5038, %v5039
  %v5041 = vrot.slane %v5040, 1
  %v5042 = vmax.f32 %v5040, %v5041
  %v5068 = vsel %vm1478, %v4881, %v4874
  %v5069 = vsel %vm1480, %v4888, %v5068
  %v5070 = vsel %vm1482, %v4895, %v5069
  %v5071 = vsel %vm1484, %v4902, %v5070
  %v5072 = vsel %vm1486, %v4909, %v5071
  %v5073 = vsel %vm1488, %v4916, %v5072
  %v5074 = vsel %vm1490, %v4930, %v4923
  %v5075 = vsel %vm1478, %v4937, %v5074
  %v5076 = vsel %vm1480, %v4944, %v5075
  %v5077 = vsel %vm1482, %v4951, %v5076
  %v5078 = vsel %vm1484, %v4958, %v5077
  %v5079 = vsel %vm1486, %v4965, %v5078
  %v5080 = vsel %vm1488, %v4972, %v5079
  %v5081 = vsel %vm1490, %v4986, %v4979
  %v5082 = vsel %vm1478, %v4993, %v5081
  %v5083 = vsel %vm1480, %v5000, %v5082
  %v5084 = vsel %vm1482, %v5007, %v5083
  %v5085 = vsel %vm1484, %v5014, %v5084
  %v5086 = vsel %vm1486, %v5021, %v5085
  %v5087 = vsel %vm1488, %v5028, %v5086
  %v5088 = vsel %vm1490, %v5042, %v5035
  %5093 = vst.msk [vmem:[#allocation3 + $0x10] sm:$0xfe] %vm1535, %v5073
  %5094 = vst.msk [vmem:[#allocation3 + $0x20] sm:$0xff] %vm68, %v5080
  %5095 = vst.msk [vmem:[#allocation3 + $0x30] sm:$0xff] %vm68, %v5087
  %5096 = vst.msk [vmem:[#allocation3 + $0x40] sm:$0x3] %vm1077, %v5088
  %v5097 = vsel %vm1490, %v4881, %v4874
  %v5098 = vsel %vm1478, %v4888, %v5097
  %v5099 = vsel %vm1480, %v4895, %v5098
  %v5100 = vsel %vm1482, %v4902, %v5099
  %v5101 = vsel %vm1484, %v4909, %v5100
  %v5102 = vsel %vm1486, %v4916, %v5101
  %v5103 = vsel %vm1488, %v4923, %v5102
  %v5104 = vsel %vm1490, %v4937, %v4930
  %v5105 = vsel %vm1478, %v4944, %v5104
  %v5106 = vsel %vm1480, %v4951, %v5105
  %v5107 = vsel %vm1482, %v4958, %v5106
  %v5108 = vsel %vm1484, %v4965, %v5107
  %v5109 = vsel %vm1486, %v4972, %v5108
  %v5110 = vsel %vm1488, %v4979, %v5109
  %v5111 = vsel %vm1490, %v4993, %v4986
  %v5112 = vsel %vm1478, %v5000, %v5111
  %v5113 = vsel %vm1480, %v5007, %v5112
  %v5114 = vsel %vm1482, %v5014, %v5113
  %v5115 = vsel %vm1484, %v5021, %v5114
  %v5116 = vsel %vm1486, %v5028, %v5115
  %v5117 = vsel %vm1488, %v5035, %v5116
  %5118 = vrot.lane.b32.xlu0 %v5103, 64
  %v5119 = vpop.permute.xlu0 %5118
  %5120 = vrot.lane.b32.xlu0 %v5110, 64
  %v5121 = vpop.permute.xlu0 %5120
  %5122 = vrot.lane.b32.xlu0 %v5117, 64
  %v5123 = vpop.permute.xlu0 %5122
  %5124 = vrot.lane.b32.xlu0 %v5042, 64
  %v5125 = vpop.permute.xlu0 %5124
  %5130 = vst.msk [vmem:[#allocation3 + $0x10] sm:$0xff] %vm1608, %v5119
  %5131 = vst.msk [vmem:[#allocation3 + $0x20] sm:$0xff] %vm1608, %v5121
  %5132 = vst.msk [vmem:[#allocation3 + $0x30] sm:$0xff] %vm1608, %v5123
  %vm5133 = vcmask 1040896
  %5134 = vst.msk [vmem:[#allocation3 + $0x40] sm:$0x1] %vm5133, %v5125
  %v5135 = vsel %vm1490, %v4888, %v4881
  %v5136 = vsel %vm1478, %v4895, %v5135
  %v5137 = vsel %vm1480, %v4902, %v5136
  %v5138 = vsel %vm1482, %v4909, %v5137
  %v5139 = vsel %vm1484, %v4916, %v5138
  %v5140 = vsel %vm1486, %v4923, %v5139
  %v5141 = vsel %vm1488, %v4930, %v5140
  %v5142 = vsel %vm1490, %v4944, %v4937
  %v5143 = vsel %vm1478, %v4951, %v5142
  %v5144 = vsel %vm1480, %v4958, %v5143
  %v5145 = vsel %vm1482, %v4965, %v5144
  %v5146 = vsel %vm1484, %v4972, %v5145
  %v5147 = vsel %vm1486, %v4979, %v5146
  %v5148 = vsel %vm1488, %v4986, %v5147
  %v5149 = vsel %vm1490, %v5000, %v4993
  %v5150 = vsel %vm1478, %v5007, %v5149
  %v5151 = vsel %vm1480, %v5014, %v5150
  %v5152 = vsel %vm1482, %v5021, %v5151
  %v5153 = vsel %vm1484, %v5028, %v5152
  %v5154 = vsel %vm1486, %v5035, %v5153
  %v5155 = vsel %vm1488, %v5042, %v5154
  %5160 = vst.msk [vmem:[#allocation3 + $0x8] sm:$0x80] %vm1667, %v4874
  %5161 = vst.msk [vmem:[#allocation3 + $0x18] sm:$0xff] %vm68, %v5141
  %5162 = vst.msk [vmem:[#allocation3 + $0x28] sm:$0xff] %vm68, %v5148
  %5163 = vst.msk [vmem:[#allocation3 + $0x38] sm:$0xff] %vm68, %v5155
  %v5171 = vcombine.high %v4706, %v4706
  %v5173 = vunpack.c.l.s4 1983009808
  %v5174 = vunpack.c.0.s8 %v5173
  %v5175 = vlaneseq
  %v5176 = vshrl.u32 %v5175, 7
  %v5177 = vsub.s32 %v5174, %v5176
  %v5178 = vrot.slane %v4706, %v5177
  %v5180 = vunpack.c.l.s4 1983009808
  %v5181 = vunpack.c.0.s8 %v5180
  %v5182 = vlaneseq
  %v5183 = vshrl.u32 %v5182, 7
  %v5184 = vsub.s32 %v5181, %v5183
  %v5185 = vrot.slane %v5171, %v5184
  %v5186 = vcombine.high %v5178, %v5178
  %v5187 = vcombine.high %v5185, %v5185
  %v5188 = vcombine.high %v4707, %v4707
  %v5190 = vunpack.c.l.s4 1983009808
  %v5191 = vunpack.c.0.s8 %v5190
  %v5192 = vlaneseq
  %v5193 = vshrl.u32 %v5192, 7
  %v5194 = vsub.s32 %v5191, %v5193
  %v5195 = vrot.slane %v4707, %v5194
  %v5197 = vunpack.c.l.s4 1983009808
  %v5198 = vunpack.c.0.s8 %v5197
  %v5199 = vlaneseq
  %v5200 = vshrl.u32 %v5199, 7
  %v5201 = vsub.s32 %v5198, %v5200
  %v5202 = vrot.slane %v5188, %v5201
  %v5203 = vcombine.high %v5195, %v5195
  %v5204 = vcombine.high %v5202, %v5202
  %v5205 = vcombine.high %v4708, %v4708
  %v5207 = vunpack.c.l.s4 1983009808
  %v5208 = vunpack.c.0.s8 %v5207
  %v5209 = vlaneseq
  %v5210 = vshrl.u32 %v5209, 7
  %v5211 = vsub.s32 %v5208, %v5210
  %v5212 = vrot.slane %v4708, %v5211
  %v5214 = vunpack.c.l.s4 1983009808
  %v5215 = vunpack.c.0.s8 %v5214
  %v5216 = vlaneseq
  %v5217 = vshrl.u32 %v5216, 7
  %v5218 = vsub.s32 %v5215, %v5217
  %v5219 = vrot.slane %v5205, %v5218
  %v5220 = vcombine.high %v5212, %v5212
  %v5221 = vcombine.high %v5219, %v5219
  %v5222 = vcombine.high %v4709, %v4709
  %v5224 = vunpack.c.l.s4 1983009808
  %v5225 = vunpack.c.0.s8 %v5224
  %v5226 = vlaneseq
  %v5227 = vshrl.u32 %v5226, 7
  %v5228 = vsub.s32 %v5225, %v5227
  %v5229 = vrot.slane %v4709, %v5228
  %v5231 = vunpack.c.l.s4 1983009808
  %v5232 = vunpack.c.0.s8 %v5231
  %v5233 = vlaneseq
  %v5234 = vshrl.u32 %v5233, 7
  %v5235 = vsub.s32 %v5232, %v5234
  %v5236 = vrot.slane %v5222, %v5235
  %v5237 = vcombine.high %v5229, %v5229
  %v5238 = vcombine.high %v5236, %v5236
  %v5239 = vcombine.high %v4710, %v4710
  %v5241 = vunpack.c.l.s4 1983009808
  %v5242 = vunpack.c.0.s8 %v5241
  %v5243 = vlaneseq
  %v5244 = vshrl.u32 %v5243, 7
  %v5245 = vsub.s32 %v5242, %v5244
  %v5246 = vrot.slane %v4710, %v5245
  %v5248 = vunpack.c.l.s4 1983009808
  %v5249 = vunpack.c.0.s8 %v5248
  %v5250 = vlaneseq
  %v5251 = vshrl.u32 %v5250, 7
  %v5252 = vsub.s32 %v5249, %v5251
  %v5253 = vrot.slane %v5239, %v5252
  %v5254 = vcombine.high %v5246, %v5246
  %v5255 = vcombine.high %v5253, %v5253
  %v5256 = vcombine.high %v4711, %v4711
  %v5258 = vunpack.c.l.s4 1983009808
  %v5259 = vunpack.c.0.s8 %v5258
  %v5260 = vlaneseq
  %v5261 = vshrl.u32 %v5260, 7
  %v5262 = vsub.s32 %v5259, %v5261
  %v5263 = vrot.slane %v4711, %v5262
  %v5265 = vunpack.c.l.s4 1983009808
  %v5266 = vunpack.c.0.s8 %v5265
  %v5267 = vlaneseq
  %v5268 = vshrl.u32 %v5267, 7
  %v5269 = vsub.s32 %v5266, %v5268
  %v5270 = vrot.slane %v5256, %v5269
  %v5271 = vcombine.high %v5263, %v5263
  %v5272 = vcombine.high %v5270, %v5270
  %v5274 = vunpack.c.l.s4 1983009808
  %v5275 = vunpack.c.0.s8 %v5274
  %v5276 = vlaneseq
  %v5277 = vshrl.u32 %v5276, 7
  %v5278 = vsub.s32 %v5275, %v5277
  %v5279 = vrot.slane %v4712, %v5278
  %v5305 = vsel %vm1077, %v5178, -inf
  %v5306 = vrot.slane %v5305, 4
  %v5307 = vmax.f32 %v5305, %v5306
  %v5308 = vrot.slane %v5307, 2
  %v5309 = vmax.f32 %v5307, %v5308
  %v5310 = vrot.slane %v5309, 1
  %v5311 = vmax.f32 %v5309, %v5310
  %v5312 = vsel %vm1077, %v5186, -inf
  %v5313 = vrot.slane %v5312, 4
  %v5314 = vmax.f32 %v5312, %v5313
  %v5315 = vrot.slane %v5314, 2
  %v5316 = vmax.f32 %v5314, %v5315
  %v5317 = vrot.slane %v5316, 1
  %v5318 = vmax.f32 %v5316, %v5317
  %v5319 = vsel %vm1077, %v5185, -inf
  %v5320 = vrot.slane %v5319, 4
  %v5321 = vmax.f32 %v5319, %v5320
  %v5322 = vrot.slane %v5321, 2
  %v5323 = vmax.f32 %v5321, %v5322
  %v5324 = vrot.slane %v5323, 1
  %v5325 = vmax.f32 %v5323, %v5324
  %v5326 = vsel %vm1077, %v5187, -inf
  %v5327 = vrot.slane %v5326, 4
  %v5328 = vmax.f32 %v5326, %v5327
  %v5329 = vrot.slane %v5328, 2
  %v5330 = vmax.f32 %v5328, %v5329
  %v5331 = vrot.slane %v5330, 1
  %v5332 = vmax.f32 %v5330, %v5331
  %v5333 = vsel %vm1077, %v5195, -inf
  %v5334 = vrot.slane %v5333, 4
  %v5335 = vmax.f32 %v5333, %v5334
  %v5336 = vrot.slane %v5335, 2
  %v5337 = vmax.f32 %v5335, %v5336
  %v5338 = vrot.slane %v5337, 1
  %v5339 = vmax.f32 %v5337, %v5338
  %v5340 = vsel %vm1077, %v5203, -inf
  %v5341 = vrot.slane %v5340, 4
  %v5342 = vmax.f32 %v5340, %v5341
  %v5343 = vrot.slane %v5342, 2
  %v5344 = vmax.f32 %v5342, %v5343
  %v5345 = vrot.slane %v5344, 1
  %v5346 = vmax.f32 %v5344, %v5345
  %v5347 = vsel %vm1077, %v5202, -inf
  %v5348 = vrot.slane %v5347, 4
  %v5349 = vmax.f32 %v5347, %v5348
  %v5350 = vrot.slane %v5349, 2
  %v5351 = vmax.f32 %v5349, %v5350
  %v5352 = vrot.slane %v5351, 1
  %v5353 = vmax.f32 %v5351, %v5352
  %v5354 = vsel %vm1077, %v5204, -inf
  %v5355 = vrot.slane %v5354, 4
  %v5356 = vmax.f32 %v5354, %v5355
  %v5357 = vrot.slane %v5356, 2
  %v5358 = vmax.f32 %v5356, %v5357
  %v5359 = vrot.slane %v5358, 1
  %v5360 = vmax.f32 %v5358, %v5359
  %v5361 = vsel %vm1077, %v5212, -inf
  %v5362 = vrot.slane %v5361, 4
  %v5363 = vmax.f32 %v5361, %v5362
  %v5364 = vrot.slane %v5363, 2
  %v5365 = vmax.f32 %v5363, %v5364
  %v5366 = vrot.slane %v5365, 1
  %v5367 = vmax.f32 %v5365, %v5366
  %v5368 = vsel %vm1077, %v5220, -inf
  %v5369 = vrot.slane %v5368, 4
  %v5370 = vmax.f32 %v5368, %v5369
  %v5371 = vrot.slane %v5370, 2
  %v5372 = vmax.f32 %v5370, %v5371
  %v5373 = vrot.slane %v5372, 1
  %v5374 = vmax.f32 %v5372, %v5373
  %v5375 = vsel %vm1077, %v5219, -inf
  %v5376 = vrot.slane %v5375, 4
  %v5377 = vmax.f32 %v5375, %v5376
  %v5378 = vrot.slane %v5377, 2
  %v5379 = vmax.f32 %v5377, %v5378
  %v5380 = vrot.slane %v5379, 1
  %v5381 = vmax.f32 %v5379, %v5380
  %v5382 = vsel %vm1077, %v5221, -inf
  %v5383 = vrot.slane %v5382, 4
  %v5384 = vmax.f32 %v5382, %v5383
  %v5385 = vrot.slane %v5384, 2
  %v5386 = vmax.f32 %v5384, %v5385
  %v5387 = vrot.slane %v5386, 1
  %v5388 = vmax.f32 %v5386, %v5387
  %v5389 = vsel %vm1077, %v5229, -inf
  %v5390 = vrot.slane %v5389, 4
  %v5391 = vmax.f32 %v5389, %v5390
  %v5392 = vrot.slane %v5391, 2
  %v5393 = vmax.f32 %v5391, %v5392
  %v5394 = vrot.slane %v5393, 1
  %v5395 = vmax.f32 %v5393, %v5394
  %v5396 = vsel %vm1077, %v5237, -inf
  %v5397 = vrot.slane %v5396, 4
  %v5398 = vmax.f32 %v5396, %v5397
  %v5399 = vrot.slane %v5398, 2
  %v5400 = vmax.f32 %v5398, %v5399
  %v5401 = vrot.slane %v5400, 1
  %v5402 = vmax.f32 %v5400, %v5401
  %v5403 = vsel %vm1077, %v5236, -inf
  %v5404 = vrot.slane %v5403, 4
  %v5405 = vmax.f32 %v5403, %v5404
  %v5406 = vrot.slane %v5405, 2
  %v5407 = vmax.f32 %v5405, %v5406
  %v5408 = vrot.slane %v5407, 1
  %v5409 = vmax.f32 %v5407, %v5408
  %v5410 = vsel %vm1077, %v5238, -inf
  %v5411 = vrot.slane %v5410, 4
  %v5412 = vmax.f32 %v5410, %v5411
  %v5413 = vrot.slane %v5412, 2
  %v5414 = vmax.f32 %v5412, %v5413
  %v5415 = vrot.slane %v5414, 1
  %v5416 = vmax.f32 %v5414, %v5415
  %v5417 = vsel %vm1077, %v5246, -inf
  %v5418 = vrot.slane %v5417, 4
  %v5419 = vmax.f32 %v5417, %v5418
  %v5420 = vrot.slane %v5419, 2
  %v5421 = vmax.f32 %v5419, %v5420
  %v5422 = vrot.slane %v5421, 1
  %v5423 = vmax.f32 %v5421, %v5422
  %v5424 = vsel %vm1077, %v5254, -inf
  %v5425 = vrot.slane %v5424, 4
  %v5426 = vmax.f32 %v5424, %v5425
  %v5427 = vrot.slane %v5426, 2
  %v5428 = vmax.f32 %v5426, %v5427
  %v5429 = vrot.slane %v5428, 1
  %v5430 = vmax.f32 %v5428, %v5429
  %v5431 = vsel %vm1077, %v5253, -inf
  %v5432 = vrot.slane %v5431, 4
  %v5433 = vmax.f32 %v5431, %v5432
  %v5434 = vrot.slane %v5433, 2
  %v5435 = vmax.f32 %v5433, %v5434
  %v5436 = vrot.slane %v5435, 1
  %v5437 = vmax.f32 %v5435, %v5436
  %v5438 = vsel %vm1077, %v5255, -inf
  %v5439 = vrot.slane %v5438, 4
  %v5440 = vmax.f32 %v5438, %v5439
  %v5441 = vrot.slane %v5440, 2
  %v5442 = vmax.f32 %v5440, %v5441
  %v5443 = vrot.slane %v5442, 1
  %v5444 = vmax.f32 %v5442, %v5443
  %v5445 = vsel %vm1077, %v5263, -inf
  %v5446 = vrot.slane %v5445, 4
  %v5447 = vmax.f32 %v5445, %v5446
  %v5448 = vrot.slane %v5447, 2
  %v5449 = vmax.f32 %v5447, %v5448
  %v5450 = vrot.slane %v5449, 1
  %v5451 = vmax.f32 %v5449, %v5450
  %v5452 = vsel %vm1077, %v5271, -inf
  %v5453 = vrot.slane %v5452, 4
  %v5454 = vmax.f32 %v5452, %v5453
  %v5455 = vrot.slane %v5454, 2
  %v5456 = vmax.f32 %v5454, %v5455
  %v5457 = vrot.slane %v5456, 1
  %v5458 = vmax.f32 %v5456, %v5457
  %v5459 = vsel %vm1077, %v5270, -inf
  %v5460 = vrot.slane %v5459, 4
  %v5461 = vmax.f32 %v5459, %v5460
  %v5462 = vrot.slane %v5461, 2
  %v5463 = vmax.f32 %v5461, %v5462
  %v5464 = vrot.slane %v5463, 1
  %v5465 = vmax.f32 %v5463, %v5464
  %v5466 = vsel %vm1077, %v5272, -inf
  %v5467 = vrot.slane %v5466, 4
  %v5468 = vmax.f32 %v5466, %v5467
  %v5469 = vrot.slane %v5468, 2
  %v5470 = vmax.f32 %v5468, %v5469
  %v5471 = vrot.slane %v5470, 1
  %v5472 = vmax.f32 %v5470, %v5471
  %v5473 = vsel %vm1077, %v5279, -inf
  %v5474 = vrot.slane %v5473, 4
  %v5475 = vmax.f32 %v5473, %v5474
  %v5476 = vrot.slane %v5475, 2
  %v5477 = vmax.f32 %v5475, %v5476
  %v5478 = vrot.slane %v5477, 1
  %v5479 = vmax.f32 %v5477, %v5478
  %v5505 = vsel %vm1478, %v5318, %v5311
  %v5506 = vsel %vm1480, %v5325, %v5505
  %v5507 = vsel %vm1482, %v5332, %v5506
  %v5508 = vsel %vm1484, %v5339, %v5507
  %v5509 = vsel %vm1486, %v5346, %v5508
  %v5510 = vsel %vm1488, %v5353, %v5509
  %v5511 = vsel %vm1490, %v5367, %v5360
  %v5512 = vsel %vm1478, %v5374, %v5511
  %v5513 = vsel %vm1480, %v5381, %v5512
  %v5514 = vsel %vm1482, %v5388, %v5513
  %v5515 = vsel %vm1484, %v5395, %v5514
  %v5516 = vsel %vm1486, %v5402, %v5515
  %v5517 = vsel %vm1488, %v5409, %v5516
  %v5518 = vsel %vm1490, %v5423, %v5416
  %v5519 = vsel %vm1478, %v5430, %v5518
  %v5520 = vsel %vm1480, %v5437, %v5519
  %v5521 = vsel %vm1482, %v5444, %v5520
  %v5522 = vsel %vm1484, %v5451, %v5521
  %v5523 = vsel %vm1486, %v5458, %v5522
  %v5524 = vsel %vm1488, %v5465, %v5523
  %v5525 = vsel %vm1490, %v5479, %v5472
  %5530 = vst.msk [vmem:[#allocation3 + $0x50] sm:$0xfe] %vm1535, %v5510
  %5531 = vst.msk [vmem:[#allocation3 + $0x60] sm:$0xff] %vm68, %v5517
  %5532 = vst.msk [vmem:[#allocation3 + $0x70] sm:$0xff] %vm68, %v5524
  %5533 = vst.msk [vmem:[#allocation3 + $0x80] sm:$0x3] %vm1077, %v5525
  %v5534 = vsel %vm1490, %v5318, %v5311
  %v5535 = vsel %vm1478, %v5325, %v5534
  %v5536 = vsel %vm1480, %v5332, %v5535
  %v5537 = vsel %vm1482, %v5339, %v5536
  %v5538 = vsel %vm1484, %v5346, %v5537
  %v5539 = vsel %vm1486, %v5353, %v5538
  %v5540 = vsel %vm1488, %v5360, %v5539
  %v5541 = vsel %vm1490, %v5374, %v5367
  %v5542 = vsel %vm1478, %v5381, %v5541
  %v5543 = vsel %vm1480, %v5388, %v5542
  %v5544 = vsel %vm1482, %v5395, %v5543
  %v5545 = vsel %vm1484, %v5402, %v5544
  %v5546 = vsel %vm1486, %v5409, %v5545
  %v5547 = vsel %vm1488, %v5416, %v5546
  %v5548 = vsel %vm1490, %v5430, %v5423
  %v5549 = vsel %vm1478, %v5437, %v5548
  %v5550 = vsel %vm1480, %v5444, %v5549
  %v5551 = vsel %vm1482, %v5451, %v5550
  %v5552 = vsel %vm1484, %v5458, %v5551
  %v5553 = vsel %vm1486, %v5465, %v5552
  %v5554 = vsel %vm1488, %v5472, %v5553
  %5555 = vrot.lane.b32.xlu0 %v5540, 64
  %v5556 = vpop.permute.xlu0 %5555
  %5557 = vrot.lane.b32.xlu0 %v5547, 64
  %v5558 = vpop.permute.xlu0 %5557
  %5559 = vrot.lane.b32.xlu0 %v5554, 64
  %v5560 = vpop.permute.xlu0 %5559
  %5561 = vrot.lane.b32.xlu0 %v5479, 64
  %v5562 = vpop.permute.xlu0 %5561
  %5567 = vst.msk [vmem:[#allocation3 + $0x50] sm:$0xff] %vm1608, %v5556
  %5568 = vst.msk [vmem:[#allocation3 + $0x60] sm:$0xff] %vm1608, %v5558
  %5569 = vst.msk [vmem:[#allocation3 + $0x70] sm:$0xff] %vm1608, %v5560
  %5570 = vst.msk [vmem:[#allocation3 + $0x80] sm:$0x1] %vm5133, %v5562
  %v5571 = vsel %vm1490, %v5325, %v5318
  %v5572 = vsel %vm1478, %v5332, %v5571
  %v5573 = vsel %vm1480, %v5339, %v5572
  %v5574 = vsel %vm1482, %v5346, %v5573
  %v5575 = vsel %vm1484, %v5353, %v5574
  %v5576 = vsel %vm1486, %v5360, %v5575
  %v5577 = vsel %vm1488, %v5367, %v5576
  %v5578 = vsel %vm1490, %v5381, %v5374
  %v5579 = vsel %vm1478, %v5388, %v5578
  %v5580 = vsel %vm1480, %v5395, %v5579
  %v5581 = vsel %vm1482, %v5402, %v5580
  %v5582 = vsel %vm1484, %v5409, %v5581
  %v5583 = vsel %vm1486, %v5416, %v5582
  %v5584 = vsel %vm1488, %v5423, %v5583
  %v5585 = vsel %vm1490, %v5437, %v5430
  %v5586 = vsel %vm1478, %v5444, %v5585
  %v5587 = vsel %vm1480, %v5451, %v5586
  %v5588 = vsel %vm1482, %v5458, %v5587
  %v5589 = vsel %vm1484, %v5465, %v5588
  %v5590 = vsel %vm1486, %v5472, %v5589
  %v5591 = vsel %vm1488, %v5479, %v5590
  %5596 = vst.msk [vmem:[#allocation3 + $0x48] sm:$0x80] %vm1667, %v5311
  %5597 = vst.msk [vmem:[#allocation3 + $0x58] sm:$0xff] %vm68, %v5577
  %5598 = vst.msk [vmem:[#allocation3 + $0x68] sm:$0xff] %vm68, %v5584
  %5599 = vst.msk [vmem:[#allocation3 + $0x78] sm:$0xff] %vm68, %v5591
  %v5607 = vcombine.high %v4713, %v4713
  %v5609 = vunpack.c.l.s4 1983009808
  %v5610 = vunpack.c.0.s8 %v5609
  %v5611 = vlaneseq
  %v5612 = vshrl.u32 %v5611, 7
  %v5613 = vsub.s32 %v5610, %v5612
  %v5614 = vrot.slane %v4713, %v5613
  %v5616 = vunpack.c.l.s4 1983009808
  %v5617 = vunpack.c.0.s8 %v5616
  %v5618 = vlaneseq
  %v5619 = vshrl.u32 %v5618, 7
  %v5620 = vsub.s32 %v5617, %v5619
  %v5621 = vrot.slane %v5607, %v5620
  %v5622 = vcombine.high %v5614, %v5614
  %v5623 = vcombine.high %v5621, %v5621
  %v5624 = vcombine.high %v4714, %v4714
  %v5626 = vunpack.c.l.s4 1983009808
  %v5627 = vunpack.c.0.s8 %v5626
  %v5628 = vlaneseq
  %v5629 = vshrl.u32 %v5628, 7
  %v5630 = vsub.s32 %v5627, %v5629
  %v5631 = vrot.slane %v4714, %v5630
  %v5633 = vunpack.c.l.s4 1983009808
  %v5634 = vunpack.c.0.s8 %v5633
  %v5635 = vlaneseq
  %v5636 = vshrl.u32 %v5635, 7
  %v5637 = vsub.s32 %v5634, %v5636
  %v5638 = vrot.slane %v5624, %v5637
  %v5639 = vcombine.high %v5631, %v5631
  %v5640 = vcombine.high %v5638, %v5638
  %v5641 = vcombine.high %v4715, %v4715
  %v5643 = vunpack.c.l.s4 1983009808
  %v5644 = vunpack.c.0.s8 %v5643
  %v5645 = vlaneseq
  %v5646 = vshrl.u32 %v5645, 7
  %v5647 = vsub.s32 %v5644, %v5646
  %v5648 = vrot.slane %v4715, %v5647
  %v5650 = vunpack.c.l.s4 1983009808
  %v5651 = vunpack.c.0.s8 %v5650
  %v5652 = vlaneseq
  %v5653 = vshrl.u32 %v5652, 7
  %v5654 = vsub.s32 %v5651, %v5653
  %v5655 = vrot.slane %v5641, %v5654
  %v5656 = vcombine.high %v5648, %v5648
  %v5657 = vcombine.high %v5655, %v5655
  %v5658 = vcombine.high %v4716, %v4716
  %v5660 = vunpack.c.l.s4 1983009808
  %v5661 = vunpack.c.0.s8 %v5660
  %v5662 = vlaneseq
  %v5663 = vshrl.u32 %v5662, 7
  %v5664 = vsub.s32 %v5661, %v5663
  %v5665 = vrot.slane %v4716, %v5664
  %v5667 = vunpack.c.l.s4 1983009808
  %v5668 = vunpack.c.0.s8 %v5667
  %v5669 = vlaneseq
  %v5670 = vshrl.u32 %v5669, 7
  %v5671 = vsub.s32 %v5668, %v5670
  %v5672 = vrot.slane %v5658, %v5671
  %v5673 = vcombine.high %v5665, %v5665
  %v5674 = vcombine.high %v5672, %v5672
  %v5675 = vcombine.high %v4717, %v4717
  %v5677 = vunpack.c.l.s4 1983009808
  %v5678 = vunpack.c.0.s8 %v5677
  %v5679 = vlaneseq
  %v5680 = vshrl.u32 %v5679, 7
  %v5681 = vsub.s32 %v5678, %v5680
  %v5682 = vrot.slane %v4717, %v5681
  %v5684 = vunpack.c.l.s4 1983009808
  %v5685 = vunpack.c.0.s8 %v5684
  %v5686 = vlaneseq
  %v5687 = vshrl.u32 %v5686, 7
  %v5688 = vsub.s32 %v5685, %v5687
  %v5689 = vrot.slane %v5675, %v5688
  %v5690 = vcombine.high %v5682, %v5682
  %v5691 = vcombine.high %v5689, %v5689
  %v5692 = vcombine.high %v4718, %v4718
  %v5694 = vunpack.c.l.s4 1983009808
  %v5695 = vunpack.c.0.s8 %v5694
  %v5696 = vlaneseq
  %v5697 = vshrl.u32 %v5696, 7
  %v5698 = vsub.s32 %v5695, %v5697
  %v5699 = vrot.slane %v4718, %v5698
  %v5701 = vunpack.c.l.s4 1983009808
  %v5702 = vunpack.c.0.s8 %v5701
  %v5703 = vlaneseq
  %v5704 = vshrl.u32 %v5703, 7
  %v5705 = vsub.s32 %v5702, %v5704
  %v5706 = vrot.slane %v5692, %v5705
  %v5707 = vcombine.high %v5699, %v5699
  %v5708 = vcombine.high %v5706, %v5706
  %v5710 = vunpack.c.l.s4 1983009808
  %v5711 = vunpack.c.0.s8 %v5710
  %v5712 = vlaneseq
  %v5713 = vshrl.u32 %v5712, 7
  %v5714 = vsub.s32 %v5711, %v5713
  %v5715 = vrot.slane %v4719, %v5714
  %v5741 = vsel %vm1077, %v5614, -inf
  %v5742 = vrot.slane %v5741, 4
  %v5743 = vmax.f32 %v5741, %v5742
  %v5744 = vrot.slane %v5743, 2
  %v5745 = vmax.f32 %v5743, %v5744
  %v5746 = vrot.slane %v5745, 1
  %v5747 = vmax.f32 %v5745, %v5746
  %v5748 = vsel %vm1077, %v5622, -inf
  %v5749 = vrot.slane %v5748, 4
  %v5750 = vmax.f32 %v5748, %v5749
  %v5751 = vrot.slane %v5750, 2
  %v5752 = vmax.f32 %v5750, %v5751
  %v5753 = vrot.slane %v5752, 1
  %v5754 = vmax.f32 %v5752, %v5753
  %v5755 = vsel %vm1077, %v5621, -inf
  %v5756 = vrot.slane %v5755, 4
  %v5757 = vmax.f32 %v5755, %v5756
  %v5758 = vrot.slane %v5757, 2
  %v5759 = vmax.f32 %v5757, %v5758
  %v5760 = vrot.slane %v5759, 1
  %v5761 = vmax.f32 %v5759, %v5760
  %v5762 = vsel %vm1077, %v5623, -inf
  %v5763 = vrot.slane %v5762, 4
  %v5764 = vmax.f32 %v5762, %v5763
  %v5765 = vrot.slane %v5764, 2
  %v5766 = vmax.f32 %v5764, %v5765
  %v5767 = vrot.slane %v5766, 1
  %v5768 = vmax.f32 %v5766, %v5767
  %v5769 = vsel %vm1077, %v5631, -inf
  %v5770 = vrot.slane %v5769, 4
  %v5771 = vmax.f32 %v5769, %v5770
  %v5772 = vrot.slane %v5771, 2
  %v5773 = vmax.f32 %v5771, %v5772
  %v5774 = vrot.slane %v5773, 1
  %v5775 = vmax.f32 %v5773, %v5774
  %v5776 = vsel %vm1077, %v5639, -inf
  %v5777 = vrot.slane %v5776, 4
  %v5778 = vmax.f32 %v5776, %v5777
  %v5779 = vrot.slane %v5778, 2
  %v5780 = vmax.f32 %v5778, %v5779
  %v5781 = vrot.slane %v5780, 1
  %v5782 = vmax.f32 %v5780, %v5781
  %v5783 = vsel %vm1077, %v5638, -inf
  %v5784 = vrot.slane %v5783, 4
  %v5785 = vmax.f32 %v5783, %v5784
  %v5786 = vrot.slane %v5785, 2
  %v5787 = vmax.f32 %v5785, %v5786
  %v5788 = vrot.slane %v5787, 1
  %v5789 = vmax.f32 %v5787, %v5788
  %v5790 = vsel %vm1077, %v5640, -inf
  %v5791 = vrot.slane %v5790, 4
  %v5792 = vmax.f32 %v5790, %v5791
  %v5793 = vrot.slane %v5792, 2
  %v5794 = vmax.f32 %v5792, %v5793
  %v5795 = vrot.slane %v5794, 1
  %v5796 = vmax.f32 %v5794, %v5795
  %v5797 = vsel %vm1077, %v5648, -inf
  %v5798 = vrot.slane %v5797, 4
  %v5799 = vmax.f32 %v5797, %v5798
  %v5800 = vrot.slane %v5799, 2
  %v5801 = vmax.f32 %v5799, %v5800
  %v5802 = vrot.slane %v5801, 1
  %v5803 = vmax.f32 %v5801, %v5802
  %v5804 = vsel %vm1077, %v5656, -inf
  %v5805 = vrot.slane %v5804, 4
  %v5806 = vmax.f32 %v5804, %v5805
  %v5807 = vrot.slane %v5806, 2
  %v5808 = vmax.f32 %v5806, %v5807
  %v5809 = vrot.slane %v5808, 1
  %v5810 = vmax.f32 %v5808, %v5809
  %v5811 = vsel %vm1077, %v5655, -inf
  %v5812 = vrot.slane %v5811, 4
  %v5813 = vmax.f32 %v5811, %v5812
  %v5814 = vrot.slane %v5813, 2
  %v5815 = vmax.f32 %v5813, %v5814
  %v5816 = vrot.slane %v5815, 1
  %v5817 = vmax.f32 %v5815, %v5816
  %v5818 = vsel %vm1077, %v5657, -inf
  %v5819 = vrot.slane %v5818, 4
  %v5820 = vmax.f32 %v5818, %v5819
  %v5821 = vrot.slane %v5820, 2
  %v5822 = vmax.f32 %v5820, %v5821
  %v5823 = vrot.slane %v5822, 1
  %v5824 = vmax.f32 %v5822, %v5823
  %v5825 = vsel %vm1077, %v5665, -inf
  %v5826 = vrot.slane %v5825, 4
  %v5827 = vmax.f32 %v5825, %v5826
  %v5828 = vrot.slane %v5827, 2
  %v5829 = vmax.f32 %v5827, %v5828
  %v5830 = vrot.slane %v5829, 1
  %v5831 = vmax.f32 %v5829, %v5830
  %v5832 = vsel %vm1077, %v5673, -inf
  %v5833 = vrot.slane %v5832, 4
  %v5834 = vmax.f32 %v5832, %v5833
  %v5835 = vrot.slane %v5834, 2
  %v5836 = vmax.f32 %v5834, %v5835
  %v5837 = vrot.slane %v5836, 1
  %v5838 = vmax.f32 %v5836, %v5837
  %v5839 = vsel %vm1077, %v5672, -inf
  %v5840 = vrot.slane %v5839, 4
  %v5841 = vmax.f32 %v5839, %v5840
  %v5842 = vrot.slane %v5841, 2
  %v5843 = vmax.f32 %v5841, %v5842
  %v5844 = vrot.slane %v5843, 1
  %v5845 = vmax.f32 %v5843, %v5844
  %v5846 = vsel %vm1077, %v5674, -inf
  %v5847 = vrot.slane %v5846, 4
  %v5848 = vmax.f32 %v5846, %v5847
  %v5849 = vrot.slane %v5848, 2
  %v5850 = vmax.f32 %v5848, %v5849
  %v5851 = vrot.slane %v5850, 1
  %v5852 = vmax.f32 %v5850, %v5851
  %v5853 = vsel %vm1077, %v5682, -inf
  %v5854 = vrot.slane %v5853, 4
  %v5855 = vmax.f32 %v5853, %v5854
  %v5856 = vrot.slane %v5855, 2
  %v5857 = vmax.f32 %v5855, %v5856
  %v5858 = vrot.slane %v5857, 1
  %v5859 = vmax.f32 %v5857, %v5858
  %v5860 = vsel %vm1077, %v5690, -inf
  %v5861 = vrot.slane %v5860, 4
  %v5862 = vmax.f32 %v5860, %v5861
  %v5863 = vrot.slane %v5862, 2
  %v5864 = vmax.f32 %v5862, %v5863
  %v5865 = vrot.slane %v5864, 1
  %v5866 = vmax.f32 %v5864, %v5865
  %v5867 = vsel %vm1077, %v5689, -inf
  %v5868 = vrot.slane %v5867, 4
  %v5869 = vmax.f32 %v5867, %v5868
  %v5870 = vrot.slane %v5869, 2
  %v5871 = vmax.f32 %v5869, %v5870
  %v5872 = vrot.slane %v5871, 1
  %v5873 = vmax.f32 %v5871, %v5872
  %v5874 = vsel %vm1077, %v5691, -inf
  %v5875 = vrot.slane %v5874, 4
  %v5876 = vmax.f32 %v5874, %v5875
  %v5877 = vrot.slane %v5876, 2
  %v5878 = vmax.f32 %v5876, %v5877
  %v5879 = vrot.slane %v5878, 1
  %v5880 = vmax.f32 %v5878, %v5879
  %v5881 = vsel %vm1077, %v5699, -inf
  %v5882 = vrot.slane %v5881, 4
  %v5883 = vmax.f32 %v5881, %v5882
  %v5884 = vrot.slane %v5883, 2
  %v5885 = vmax.f32 %v5883, %v5884
  %v5886 = vrot.slane %v5885, 1
  %v5887 = vmax.f32 %v5885, %v5886
  %v5888 = vsel %vm1077, %v5707, -inf
  %v5889 = vrot.slane %v5888, 4
  %v5890 = vmax.f32 %v5888, %v5889
  %v5891 = vrot.slane %v5890, 2
  %v5892 = vmax.f32 %v5890, %v5891
  %v5893 = vrot.slane %v5892, 1
  %v5894 = vmax.f32 %v5892, %v5893
  %v5895 = vsel %vm1077, %v5706, -inf
  %v5896 = vrot.slane %v5895, 4
  %v5897 = vmax.f32 %v5895, %v5896
  %v5898 = vrot.slane %v5897, 2
  %v5899 = vmax.f32 %v5897, %v5898
  %v5900 = vrot.slane %v5899, 1
  %v5901 = vmax.f32 %v5899, %v5900
  %v5902 = vsel %vm1077, %v5708, -inf
  %v5903 = vrot.slane %v5902, 4
  %v5904 = vmax.f32 %v5902, %v5903
  %v5905 = vrot.slane %v5904, 2
  %v5906 = vmax.f32 %v5904, %v5905
  %v5907 = vrot.slane %v5906, 1
  %v5908 = vmax.f32 %v5906, %v5907
  %v5909 = vsel %vm1077, %v5715, -inf
  %v5910 = vrot.slane %v5909, 4
  %v5911 = vmax.f32 %v5909, %v5910
  %v5912 = vrot.slane %v5911, 2
  %v5913 = vmax.f32 %v5911, %v5912
  %v5914 = vrot.slane %v5913, 1
  %v5915 = vmax.f32 %v5913, %v5914
  %v5941 = vsel %vm1478, %v5754, %v5747
  %v5942 = vsel %vm1480, %v5761, %v5941
  %v5943 = vsel %vm1482, %v5768, %v5942
  %v5944 = vsel %vm1484, %v5775, %v5943
  %v5945 = vsel %vm1486, %v5782, %v5944
  %v5946 = vsel %vm1488, %v5789, %v5945
  %v5947 = vsel %vm1490, %v5803, %v5796
  %v5948 = vsel %vm1478, %v5810, %v5947
  %v5949 = vsel %vm1480, %v5817, %v5948
  %v5950 = vsel %vm1482, %v5824, %v5949
  %v5951 = vsel %vm1484, %v5831, %v5950
  %v5952 = vsel %vm1486, %v5838, %v5951
  %v5953 = vsel %vm1488, %v5845, %v5952
  %v5954 = vsel %vm1490, %v5859, %v5852
  %v5955 = vsel %vm1478, %v5866, %v5954
  %v5956 = vsel %vm1480, %v5873, %v5955
  %v5957 = vsel %vm1482, %v5880, %v5956
  %v5958 = vsel %vm1484, %v5887, %v5957
  %v5959 = vsel %vm1486, %v5894, %v5958
  %v5960 = vsel %vm1488, %v5901, %v5959
  %v5961 = vsel %vm1490, %v5915, %v5908
  %5966 = vst.msk [vmem:[#allocation3 + $0x90] sm:$0xfe] %vm1535, %v5946
  %5967 = vst.msk [vmem:[#allocation3 + $0xa0] sm:$0xff] %vm68, %v5953
  %5968 = vst.msk [vmem:[#allocation3 + $0xb0] sm:$0xff] %vm68, %v5960
  %5969 = vst.msk [vmem:[#allocation3 + $0xc0] sm:$0x3] %vm1077, %v5961
  %v5970 = vsel %vm1490, %v5754, %v5747
  %v5971 = vsel %vm1478, %v5761, %v5970
  %v5972 = vsel %vm1480, %v5768, %v5971
  %v5973 = vsel %vm1482, %v5775, %v5972
  %v5974 = vsel %vm1484, %v5782, %v5973
  %v5975 = vsel %vm1486, %v5789, %v5974
  %v5976 = vsel %vm1488, %v5796, %v5975
  %v5977 = vsel %vm1490, %v5810, %v5803
  %v5978 = vsel %vm1478, %v5817, %v5977
  %v5979 = vsel %vm1480, %v5824, %v5978
  %v5980 = vsel %vm1482, %v5831, %v5979
  %v5981 = vsel %vm1484, %v5838, %v5980
  %v5982 = vsel %vm1486, %v5845, %v5981
  %v5983 = vsel %vm1488, %v5852, %v5982
  %v5984 = vsel %vm1490, %v5866, %v5859
  %v5985 = vsel %vm1478, %v5873, %v5984
  %v5986 = vsel %vm1480, %v5880, %v5985
  %v5987 = vsel %vm1482, %v5887, %v5986
  %v5988 = vsel %vm1484, %v5894, %v5987
  %v5989 = vsel %vm1486, %v5901, %v5988
  %v5990 = vsel %vm1488, %v5908, %v5989
  %5991 = vrot.lane.b32.xlu0 %v5976, 64
  %v5992 = vpop.permute.xlu0 %5991
  %5993 = vrot.lane.b32.xlu0 %v5983, 64
  %v5994 = vpop.permute.xlu0 %5993
  %5995 = vrot.lane.b32.xlu0 %v5990, 64
  %v5996 = vpop.permute.xlu0 %5995
  %5997 = vrot.lane.b32.xlu0 %v5915, 64
  %v5998 = vpop.permute.xlu0 %5997
  %6003 = vst.msk [vmem:[#allocation3 + $0x90] sm:$0xff] %vm1608, %v5992
  %6004 = vst.msk [vmem:[#allocation3 + $0xa0] sm:$0xff] %vm1608, %v5994
  %6005 = vst.msk [vmem:[#allocation3 + $0xb0] sm:$0xff] %vm1608, %v5996
  %6006 = vst.msk [vmem:[#allocation3 + $0xc0] sm:$0x1] %vm5133, %v5998
  %v6007 = vsel %vm1490, %v5761, %v5754
  %v6008 = vsel %vm1478, %v5768, %v6007
  %v6009 = vsel %vm1480, %v5775, %v6008
  %v6010 = vsel %vm1482, %v5782, %v6009
  %v6011 = vsel %vm1484, %v5789, %v6010
  %v6012 = vsel %vm1486, %v5796, %v6011
  %v6013 = vsel %vm1488, %v5803, %v6012
  %v6014 = vsel %vm1490, %v5817, %v5810
  %v6015 = vsel %vm1478, %v5824, %v6014
  %v6016 = vsel %vm1480, %v5831, %v6015
  %v6017 = vsel %vm1482, %v5838, %v6016
  %v6018 = vsel %vm1484, %v5845, %v6017
  %v6019 = vsel %vm1486, %v5852, %v6018
  %v6020 = vsel %vm1488, %v5859, %v6019
  %v6021 = vsel %vm1490, %v5873, %v5866
  %v6022 = vsel %vm1478, %v5880, %v6021
  %v6023 = vsel %vm1480, %v5887, %v6022
  %v6024 = vsel %vm1482, %v5894, %v6023
  %v6025 = vsel %vm1484, %v5901, %v6024
  %v6026 = vsel %vm1486, %v5908, %v6025
  %v6027 = vsel %vm1488, %v5915, %v6026
  %6032 = vst.msk [vmem:[#allocation3 + $0x88] sm:$0x80] %vm1667, %v5747
  %6033 = vst.msk [vmem:[#allocation3 + $0x98] sm:$0xff] %vm68, %v6013
  %6034 = vst.msk [vmem:[#allocation3 + $0xa8] sm:$0xff] %vm68, %v6020
  %6035 = vst.msk [vmem:[#allocation3 + $0xb8] sm:$0xff] %vm68, %v6027
  %v6043 = vcombine.high %v4720, %v4720
  %v6045 = vunpack.c.l.s4 1983009808
  %v6046 = vunpack.c.0.s8 %v6045
  %v6047 = vlaneseq
  %v6048 = vshrl.u32 %v6047, 7
  %v6049 = vsub.s32 %v6046, %v6048
  %v6050 = vrot.slane %v4720, %v6049
  %v6052 = vunpack.c.l.s4 1983009808
  %v6053 = vunpack.c.0.s8 %v6052
  %v6054 = vlaneseq
  %v6055 = vshrl.u32 %v6054, 7
  %v6056 = vsub.s32 %v6053, %v6055
  %v6057 = vrot.slane %v6043, %v6056
  %v6058 = vcombine.high %v6050, %v6050
  %v6059 = vcombine.high %v6057, %v6057
  %v6060 = vcombine.high %v4721, %v4721
  %v6062 = vunpack.c.l.s4 1983009808
  %v6063 = vunpack.c.0.s8 %v6062
  %v6064 = vlaneseq
  %v6065 = vshrl.u32 %v6064, 7
  %v6066 = vsub.s32 %v6063, %v6065
  %v6067 = vrot.slane %v4721, %v6066
  %v6069 = vunpack.c.l.s4 1983009808
  %v6070 = vunpack.c.0.s8 %v6069
  %v6071 = vlaneseq
  %v6072 = vshrl.u32 %v6071, 7
  %v6073 = vsub.s32 %v6070, %v6072
  %v6074 = vrot.slane %v6060, %v6073
  %v6075 = vcombine.high %v6067, %v6067
  %v6076 = vcombine.high %v6074, %v6074
  %v6077 = vcombine.high %v4722, %v4722
  %v6079 = vunpack.c.l.s4 1983009808
  %v6080 = vunpack.c.0.s8 %v6079
  %v6081 = vlaneseq
  %v6082 = vshrl.u32 %v6081, 7
  %v6083 = vsub.s32 %v6080, %v6082
  %v6084 = vrot.slane %v4722, %v6083
  %v6086 = vunpack.c.l.s4 1983009808
  %v6087 = vunpack.c.0.s8 %v6086
  %v6088 = vlaneseq
  %v6089 = vshrl.u32 %v6088, 7
  %v6090 = vsub.s32 %v6087, %v6089
  %v6091 = vrot.slane %v6077, %v6090
  %v6092 = vcombine.high %v6084, %v6084
  %v6093 = vcombine.high %v6091, %v6091
  %v6094 = vcombine.high %v4723, %v4723
  %v6096 = vunpack.c.l.s4 1983009808
  %v6097 = vunpack.c.0.s8 %v6096
  %v6098 = vlaneseq
  %v6099 = vshrl.u32 %v6098, 7
  %v6100 = vsub.s32 %v6097, %v6099
  %v6101 = vrot.slane %v4723, %v6100
  %v6103 = vunpack.c.l.s4 1983009808
  %v6104 = vunpack.c.0.s8 %v6103
  %v6105 = vlaneseq
  %v6106 = vshrl.u32 %v6105, 7
  %v6107 = vsub.s32 %v6104, %v6106
  %v6108 = vrot.slane %v6094, %v6107
  %v6109 = vcombine.high %v6101, %v6101
  %v6110 = vcombine.high %v6108, %v6108
  %v6111 = vcombine.high %v4724, %v4724
  %v6113 = vunpack.c.l.s4 1983009808
  %v6114 = vunpack.c.0.s8 %v6113
  %v6115 = vlaneseq
  %v6116 = vshrl.u32 %v6115, 7
  %v6117 = vsub.s32 %v6114, %v6116
  %v6118 = vrot.slane %v4724, %v6117
  %v6120 = vunpack.c.l.s4 1983009808
  %v6121 = vunpack.c.0.s8 %v6120
  %v6122 = vlaneseq
  %v6123 = vshrl.u32 %v6122, 7
  %v6124 = vsub.s32 %v6121, %v6123
  %v6125 = vrot.slane %v6111, %v6124
  %v6126 = vcombine.high %v6118, %v6118
  %v6127 = vcombine.high %v6125, %v6125
  %v6128 = vcombine.high %v4725, %v4725
  %v6130 = vunpack.c.l.s4 1983009808
  %v6131 = vunpack.c.0.s8 %v6130
  %v6132 = vlaneseq
  %v6133 = vshrl.u32 %v6132, 7
  %v6134 = vsub.s32 %v6131, %v6133
  %v6135 = vrot.slane %v4725, %v6134
  %v6137 = vunpack.c.l.s4 1983009808
  %v6138 = vunpack.c.0.s8 %v6137
  %v6139 = vlaneseq
  %v6140 = vshrl.u32 %v6139, 7
  %v6141 = vsub.s32 %v6138, %v6140
  %v6142 = vrot.slane %v6128, %v6141
  %v6143 = vcombine.high %v6135, %v6135
  %v6144 = vcombine.high %v6142, %v6142
  %v6146 = vunpack.c.l.s4 1983009808
  %v6147 = vunpack.c.0.s8 %v6146
  %v6148 = vlaneseq
  %v6149 = vshrl.u32 %v6148, 7
  %v6150 = vsub.s32 %v6147, %v6149
  %v6151 = vrot.slane %v4726, %v6150
  %v6177 = vsel %vm1077, %v6050, -inf
  %v6178 = vrot.slane %v6177, 4
  %v6179 = vmax.f32 %v6177, %v6178
  %v6180 = vrot.slane %v6179, 2
  %v6181 = vmax.f32 %v6179, %v6180
  %v6182 = vrot.slane %v6181, 1
  %v6183 = vmax.f32 %v6181, %v6182
  %v6184 = vsel %vm1077, %v6058, -inf
  %v6185 = vrot.slane %v6184, 4
  %v6186 = vmax.f32 %v6184, %v6185
  %v6187 = vrot.slane %v6186, 2
  %v6188 = vmax.f32 %v6186, %v6187
  %v6189 = vrot.slane %v6188, 1
  %v6190 = vmax.f32 %v6188, %v6189
  %v6191 = vsel %vm1077, %v6057, -inf
  %v6192 = vrot.slane %v6191, 4
  %v6193 = vmax.f32 %v6191, %v6192
  %v6194 = vrot.slane %v6193, 2
  %v6195 = vmax.f32 %v6193, %v6194
  %v6196 = vrot.slane %v6195, 1
  %v6197 = vmax.f32 %v6195, %v6196
  %v6198 = vsel %vm1077, %v6059, -inf
  %v6199 = vrot.slane %v6198, 4
  %v6200 = vmax.f32 %v6198, %v6199
  %v6201 = vrot.slane %v6200, 2
  %v6202 = vmax.f32 %v6200, %v6201
  %v6203 = vrot.slane %v6202, 1
  %v6204 = vmax.f32 %v6202, %v6203
  %v6205 = vsel %vm1077, %v6067, -inf
  %v6206 = vrot.slane %v6205, 4
  %v6207 = vmax.f32 %v6205, %v6206
  %v6208 = vrot.slane %v6207, 2
  %v6209 = vmax.f32 %v6207, %v6208
  %v6210 = vrot.slane %v6209, 1
  %v6211 = vmax.f32 %v6209, %v6210
  %v6212 = vsel %vm1077, %v6075, -inf
  %v6213 = vrot.slane %v6212, 4
  %v6214 = vmax.f32 %v6212, %v6213
  %v6215 = vrot.slane %v6214, 2
  %v6216 = vmax.f32 %v6214, %v6215
  %v6217 = vrot.slane %v6216, 1
  %v6218 = vmax.f32 %v6216, %v6217
  %v6219 = vsel %vm1077, %v6074, -inf
  %v6220 = vrot.slane %v6219, 4
  %v6221 = vmax.f32 %v6219, %v6220
  %v6222 = vrot.slane %v6221, 2
  %v6223 = vmax.f32 %v6221, %v6222
  %v6224 = vrot.slane %v6223, 1
  %v6225 = vmax.f32 %v6223, %v6224
  %v6226 = vsel %vm1077, %v6076, -inf
  %v6227 = vrot.slane %v6226, 4
  %v6228 = vmax.f32 %v6226, %v6227
  %v6229 = vrot.slane %v6228, 2
  %v6230 = vmax.f32 %v6228, %v6229
  %v6231 = vrot.slane %v6230, 1
  %v6232 = vmax.f32 %v6230, %v6231
  %v6233 = vsel %vm1077, %v6084, -inf
  %v6234 = vrot.slane %v6233, 4
  %v6235 = vmax.f32 %v6233, %v6234
  %v6236 = vrot.slane %v6235, 2
  %v6237 = vmax.f32 %v6235, %v6236
  %v6238 = vrot.slane %v6237, 1
  %v6239 = vmax.f32 %v6237, %v6238
  %v6240 = vsel %vm1077, %v6092, -inf
  %v6241 = vrot.slane %v6240, 4
  %v6242 = vmax.f32 %v6240, %v6241
  %v6243 = vrot.slane %v6242, 2
  %v6244 = vmax.f32 %v6242, %v6243
  %v6245 = vrot.slane %v6244, 1
  %v6246 = vmax.f32 %v6244, %v6245
  %v6247 = vsel %vm1077, %v6091, -inf
  %v6248 = vrot.slane %v6247, 4
  %v6249 = vmax.f32 %v6247, %v6248
  %v6250 = vrot.slane %v6249, 2
  %v6251 = vmax.f32 %v6249, %v6250
  %v6252 = vrot.slane %v6251, 1
  %v6253 = vmax.f32 %v6251, %v6252
  %v6254 = vsel %vm1077, %v6093, -inf
  %v6255 = vrot.slane %v6254, 4
  %v6256 = vmax.f32 %v6254, %v6255
  %v6257 = vrot.slane %v6256, 2
  %v6258 = vmax.f32 %v6256, %v6257
  %v6259 = vrot.slane %v6258, 1
  %v6260 = vmax.f32 %v6258, %v6259
  %v6261 = vsel %vm1077, %v6101, -inf
  %v6262 = vrot.slane %v6261, 4
  %v6263 = vmax.f32 %v6261, %v6262
  %v6264 = vrot.slane %v6263, 2
  %v6265 = vmax.f32 %v6263, %v6264
  %v6266 = vrot.slane %v6265, 1
  %v6267 = vmax.f32 %v6265, %v6266
  %v6268 = vsel %vm1077, %v6109, -inf
  %v6269 = vrot.slane %v6268, 4
  %v6270 = vmax.f32 %v6268, %v6269
  %v6271 = vrot.slane %v6270, 2
  %v6272 = vmax.f32 %v6270, %v6271
  %v6273 = vrot.slane %v6272, 1
  %v6274 = vmax.f32 %v6272, %v6273
  %v6275 = vsel %vm1077, %v6108, -inf
  %v6276 = vrot.slane %v6275, 4
  %v6277 = vmax.f32 %v6275, %v6276
  %v6278 = vrot.slane %v6277, 2
  %v6279 = vmax.f32 %v6277, %v6278
  %v6280 = vrot.slane %v6279, 1
  %v6281 = vmax.f32 %v6279, %v6280
  %v6282 = vsel %vm1077, %v6110, -inf
  %v6283 = vrot.slane %v6282, 4
  %v6284 = vmax.f32 %v6282, %v6283
  %v6285 = vrot.slane %v6284, 2
  %v6286 = vmax.f32 %v6284, %v6285
  %v6287 = vrot.slane %v6286, 1
  %v6288 = vmax.f32 %v6286, %v6287
  %v6289 = vsel %vm1077, %v6118, -inf
  %v6290 = vrot.slane %v6289, 4
  %v6291 = vmax.f32 %v6289, %v6290
  %v6292 = vrot.slane %v6291, 2
  %v6293 = vmax.f32 %v6291, %v6292
  %v6294 = vrot.slane %v6293, 1
  %v6295 = vmax.f32 %v6293, %v6294
  %v6296 = vsel %vm1077, %v6126, -inf
  %v6297 = vrot.slane %v6296, 4
  %v6298 = vmax.f32 %v6296, %v6297
  %v6299 = vrot.slane %v6298, 2
  %v6300 = vmax.f32 %v6298, %v6299
  %v6301 = vrot.slane %v6300, 1
  %v6302 = vmax.f32 %v6300, %v6301
  %v6303 = vsel %vm1077, %v6125, -inf
  %v6304 = vrot.slane %v6303, 4
  %v6305 = vmax.f32 %v6303, %v6304
  %v6306 = vrot.slane %v6305, 2
  %v6307 = vmax.f32 %v6305, %v6306
  %v6308 = vrot.slane %v6307, 1
  %v6309 = vmax.f32 %v6307, %v6308
  %v6310 = vsel %vm1077, %v6127, -inf
  %v6311 = vrot.slane %v6310, 4
  %v6312 = vmax.f32 %v6310, %v6311
  %v6313 = vrot.slane %v6312, 2
  %v6314 = vmax.f32 %v6312, %v6313
  %v6315 = vrot.slane %v6314, 1
  %v6316 = vmax.f32 %v6314, %v6315
  %v6317 = vsel %vm1077, %v6135, -inf
  %v6318 = vrot.slane %v6317, 4
  %v6319 = vmax.f32 %v6317, %v6318
  %v6320 = vrot.slane %v6319, 2
  %v6321 = vmax.f32 %v6319, %v6320
  %v6322 = vrot.slane %v6321, 1
  %v6323 = vmax.f32 %v6321, %v6322
  %v6324 = vsel %vm1077, %v6143, -inf
  %v6325 = vrot.slane %v6324, 4
  %v6326 = vmax.f32 %v6324, %v6325
  %v6327 = vrot.slane %v6326, 2
  %v6328 = vmax.f32 %v6326, %v6327
  %v6329 = vrot.slane %v6328, 1
  %v6330 = vmax.f32 %v6328, %v6329
  %v6331 = vsel %vm1077, %v6142, -inf
  %v6332 = vrot.slane %v6331, 4
  %v6333 = vmax.f32 %v6331, %v6332
  %v6334 = vrot.slane %v6333, 2
  %v6335 = vmax.f32 %v6333, %v6334
  %v6336 = vrot.slane %v6335, 1
  %v6337 = vmax.f32 %v6335, %v6336
  %v6338 = vsel %vm1077, %v6144, -inf
  %v6339 = vrot.slane %v6338, 4
  %v6340 = vmax.f32 %v6338, %v6339
  %v6341 = vrot.slane %v6340, 2
  %v6342 = vmax.f32 %v6340, %v6341
  %v6343 = vrot.slane %v6342, 1
  %v6344 = vmax.f32 %v6342, %v6343
  %v6345 = vsel %vm1077, %v6151, -inf
  %v6346 = vrot.slane %v6345, 4
  %v6347 = vmax.f32 %v6345, %v6346
  %v6348 = vrot.slane %v6347, 2
  %v6349 = vmax.f32 %v6347, %v6348
  %v6350 = vrot.slane %v6349, 1
  %v6351 = vmax.f32 %v6349, %v6350
  %v6377 = vsel %vm1478, %v6190, %v6183
  %v6378 = vsel %vm1480, %v6197, %v6377
  %v6379 = vsel %vm1482, %v6204, %v6378
  %v6380 = vsel %vm1484, %v6211, %v6379
  %v6381 = vsel %vm1486, %v6218, %v6380
  %v6382 = vsel %vm1488, %v6225, %v6381
  %v6383 = vsel %vm1490, %v6239, %v6232
  %v6384 = vsel %vm1478, %v6246, %v6383
  %v6385 = vsel %vm1480, %v6253, %v6384
  %v6386 = vsel %vm1482, %v6260, %v6385
  %v6387 = vsel %vm1484, %v6267, %v6386
  %v6388 = vsel %vm1486, %v6274, %v6387
  %v6389 = vsel %vm1488, %v6281, %v6388
  %v6390 = vsel %vm1490, %v6295, %v6288
  %v6391 = vsel %vm1478, %v6302, %v6390
  %v6392 = vsel %vm1480, %v6309, %v6391
  %v6393 = vsel %vm1482, %v6316, %v6392
  %v6394 = vsel %vm1484, %v6323, %v6393
  %v6395 = vsel %vm1486, %v6330, %v6394
  %v6396 = vsel %vm1488, %v6337, %v6395
  %v6397 = vsel %vm1490, %v6351, %v6344
  %6402 = vst.msk [vmem:[#allocation3 + $0xd0] sm:$0xfe] %vm1535, %v6382
  %6403 = vst.msk [vmem:[#allocation3 + $0xe0] sm:$0xff] %vm68, %v6389
  %6404 = vst.msk [vmem:[#allocation3 + $0xf0] sm:$0xff] %vm68, %v6396
  %6405 = vst.msk [vmem:[#allocation3 + $0x100] sm:$0x3] %vm1077, %v6397
  %v6406 = vsel %vm1490, %v6190, %v6183
  %v6407 = vsel %vm1478, %v6197, %v6406
  %v6408 = vsel %vm1480, %v6204, %v6407
  %v6409 = vsel %vm1482, %v6211, %v6408
  %v6410 = vsel %vm1484, %v6218, %v6409
  %v6411 = vsel %vm1486, %v6225, %v6410
  %v6412 = vsel %vm1488, %v6232, %v6411
  %v6413 = vsel %vm1490, %v6246, %v6239
  %v6414 = vsel %vm1478, %v6253, %v6413
  %v6415 = vsel %vm1480, %v6260, %v6414
  %v6416 = vsel %vm1482, %v6267, %v6415
  %v6417 = vsel %vm1484, %v6274, %v6416
  %v6418 = vsel %vm1486, %v6281, %v6417
  %v6419 = vsel %vm1488, %v6288, %v6418
  %v6420 = vsel %vm1490, %v6302, %v6295
  %v6421 = vsel %vm1478, %v6309, %v6420
  %v6422 = vsel %vm1480, %v6316, %v6421
  %v6423 = vsel %vm1482, %v6323, %v6422
  %v6424 = vsel %vm1484, %v6330, %v6423
  %v6425 = vsel %vm1486, %v6337, %v6424
  %v6426 = vsel %vm1488, %v6344, %v6425
  %6427 = vrot.lane.b32.xlu0 %v6412, 64
  %v6428 = vpop.permute.xlu0 %6427
  %6429 = vrot.lane.b32.xlu0 %v6419, 64
  %v6430 = vpop.permute.xlu0 %6429
  %6431 = vrot.lane.b32.xlu0 %v6426, 64
  %v6432 = vpop.permute.xlu0 %6431
  %6433 = vrot.lane.b32.xlu0 %v6351, 64
  %v6434 = vpop.permute.xlu0 %6433
  %6439 = vst.msk [vmem:[#allocation3 + $0xd0] sm:$0xff] %vm1608, %v6428
  %6440 = vst.msk [vmem:[#allocation3 + $0xe0] sm:$0xff] %vm1608, %v6430
  %6441 = vst.msk [vmem:[#allocation3 + $0xf0] sm:$0xff] %vm1608, %v6432
  %6442 = vst.msk [vmem:[#allocation3 + $0x100] sm:$0x1] %vm5133, %v6434
  %v6443 = vsel %vm1490, %v6197, %v6190
  %v6444 = vsel %vm1478, %v6204, %v6443
  %v6445 = vsel %vm1480, %v6211, %v6444
  %v6446 = vsel %vm1482, %v6218, %v6445
  %v6447 = vsel %vm1484, %v6225, %v6446
  %v6448 = vsel %vm1486, %v6232, %v6447
  %v6449 = vsel %vm1488, %v6239, %v6448
  %v6450 = vsel %vm1490, %v6253, %v6246
  %v6451 = vsel %vm1478, %v6260, %v6450
  %v6452 = vsel %vm1480, %v6267, %v6451
  %v6453 = vsel %vm1482, %v6274, %v6452
  %v6454 = vsel %vm1484, %v6281, %v6453
  %v6455 = vsel %vm1486, %v6288, %v6454
  %v6456 = vsel %vm1488, %v6295, %v6455
  %v6457 = vsel %vm1490, %v6309, %v6302
  %v6458 = vsel %vm1478, %v6316, %v6457
  %v6459 = vsel %vm1480, %v6323, %v6458
  %v6460 = vsel %vm1482, %v6330, %v6459
  %v6461 = vsel %vm1484, %v6337, %v6460
  %v6462 = vsel %vm1486, %v6344, %v6461
  %v6463 = vsel %vm1488, %v6351, %v6462
  %6468 = vst.msk [vmem:[#allocation3 + $0xc8] sm:$0x80] %vm1667, %v6183
  %6469 = vst.msk [vmem:[#allocation3 + $0xd8] sm:$0xff] %vm68, %v6449
  %6470 = vst.msk [vmem:[#allocation3 + $0xe8] sm:$0xff] %vm68, %v6456
  %6471 = vst.msk [vmem:[#allocation3 + $0xf8] sm:$0xff] %vm68, %v6463
  %v6472 = vld [vmem:[#allocation3 + $0x10] sm:$0xff]
  %v6473 = vld [vmem:[#allocation3 + $0x18] sm:$0xff]
  %v6474 = vld [vmem:[#allocation3 + $0x20] sm:$0xff]
  %v6475 = vld [vmem:[#allocation3 + $0x28] sm:$0xff]
  %v6476 = vld [vmem:[#allocation3 + $0x30] sm:$0xff]
  %v6477 = vld [vmem:[#allocation3 + $0x38] sm:$0xff]
  %v6478 = vld [vmem:[#allocation3 + $0x40] sm:$0xff]
  %v6479 = vld [vmem:[#allocation3 + $0x48] sm:$0xff]
  %v6480 = vld [vmem:[#allocation3 + $0x50] sm:$0xff]
  %v6481 = vld [vmem:[#allocation3 + $0x58] sm:$0xff]
  %v6482 = vld [vmem:[#allocation3 + $0x60] sm:$0xff]
  %v6483 = vld [vmem:[#allocation3 + $0x68] sm:$0xff]
  %v6484 = vld [vmem:[#allocation3 + $0x70] sm:$0xff]
  %v6485 = vld [vmem:[#allocation3 + $0x78] sm:$0xff]
  %v6486 = vld [vmem:[#allocation3 + $0x80] sm:$0xff]
  %v6487 = vld [vmem:[#allocation3 + $0x88] sm:$0xff]
  %v6488 = vld [vmem:[#allocation3 + $0x90] sm:$0xff]
  %v6489 = vld [vmem:[#allocation3 + $0x98] sm:$0xff]
  %v6490 = vld [vmem:[#allocation3 + $0xa0] sm:$0xff]
  %v6491 = vld [vmem:[#allocation3 + $0xa8] sm:$0xff]
  %v6492 = vld [vmem:[#allocation3 + $0xb0] sm:$0xff]
  %v6493 = vld [vmem:[#allocation3 + $0xb8] sm:$0xff]
  %v6494 = vld [vmem:[#allocation3 + $0xc0] sm:$0xff]
  %v6495 = vld [vmem:[#allocation3 + $0xc8] sm:$0xff]
  %v6496 = vld [vmem:[#allocation3 + $0xd0] sm:$0xff]
  %v6497 = vld [vmem:[#allocation3 + $0xd8] sm:$0xff]
  %v6498 = vld [vmem:[#allocation3 + $0xe0] sm:$0xff]
  %v6499 = vld [vmem:[#allocation3 + $0xe8] sm:$0xff]
  %v6500 = vld [vmem:[#allocation3 + $0xf0] sm:$0xff]
  %v6501 = vld [vmem:[#allocation3 + $0xf8] sm:$0xff]
  %v6502 = vld [vmem:[#allocation3 + $0x100] sm:$0xff]
  %v6503 = vld [vmem:[#allocation3 + $0x108] sm:$0xff]
  %v6504 = vld [vmem:[%s7] sm:$0xff]
  %v6505 = vld [vmem:[%s7 + $0x8] sm:$0xff]
  %v6506 = vld [vmem:[%s7 + $0x10] sm:$0xff]
  %v6507 = vld [vmem:[%s7 + $0x18] sm:$0xff]
  %v6508 = vld [vmem:[%s7 + $0x20] sm:$0xff]
  %v6509 = vld [vmem:[%s7 + $0x28] sm:$0xff]
  %v6510 = vld [vmem:[%s7 + $0x30] sm:$0xff]
  %v6511 = vld [vmem:[%s7 + $0x38] sm:$0xff]
  %v6512 = vld [vmem:[%s7 + $0x40] sm:$0xff]
  %v6513 = vld [vmem:[%s7 + $0x48] sm:$0xff]
  %v6514 = vld [vmem:[%s7 + $0x50] sm:$0xff]
  %v6515 = vld [vmem:[%s7 + $0x58] sm:$0xff]
  %v6516 = vld [vmem:[%s7 + $0x60] sm:$0xff]
  %v6517 = vld [vmem:[%s7 + $0x68] sm:$0xff]
  %v6518 = vld [vmem:[%s7 + $0x70] sm:$0xff]
  %v6519 = vld [vmem:[%s7 + $0x78] sm:$0xff]
  %v6520 = vld [vmem:[%s7 + $0x80] sm:$0xff]
  %v6521 = vld [vmem:[%s7 + $0x88] sm:$0xff]
  %v6522 = vld [vmem:[%s7 + $0x90] sm:$0xff]
  %v6523 = vld [vmem:[%s7 + $0x98] sm:$0xff]
  %v6524 = vld [vmem:[%s7 + $0xa0] sm:$0xff]
  %v6525 = vld [vmem:[%s7 + $0xa8] sm:$0xff]
  %v6526 = vld [vmem:[%s7 + $0xb0] sm:$0xff]
  %v6527 = vld [vmem:[%s7 + $0xb8] sm:$0xff]
  %v6529 = vsel %vm68, %v6473, 0
  %v6532 = vsel %vm68, %v6475, 0
  %v6535 = vsel %vm68, %v6477, 0
  %v6538 = vsel %vm68, %v6479, 0
  %v6541 = vsel %vm68, %v6481, 0
  %v6544 = vsel %vm68, %v6483, 0
  %v6547 = vsel %vm68, %v6485, 0
  %v6550 = vsel %vm68, %v6487, 0
  %v6553 = vsel %vm68, %v6489, 0
  %v6556 = vsel %vm68, %v6491, 0
  %v6559 = vsel %vm68, %v6493, 0
  %v6562 = vsel %vm68, %v6495, 0
  %v6565 = vsel %vm68, %v6497, 0
  %v6568 = vsel %vm68, %v6499, 0
  %v6571 = vsel %vm68, %v6501, 0
  %v6574 = vsel %vm68, %v6503, 0
  %6576 = vmatprep.subr.mxu0 0.0
  %6577 = vmatpush1.msra.mxu0 %v6504
  %6578 = vmatprep.subr.mxu0 0.0
  %6579 = vmatpush1.msra.mxu0 %v6505
  %6580 = vmatprep.subr.mxu0 0.0
  %6581 = vmatpush1.msra.mxu0 %v6506
  %6582 = vmatprep.subr.mxu0 0.0
  %6583 = vmatpush1.msra.mxu0 %v6507
  %6584 = vmatprep.subr.mxu0 0.0
  %6585 = vmatpush1.msra.mxu0 %v6508
  %6586 = vmatprep.subr.mxu0 0.0
  %6587 = vmatpush1.msra.mxu0 %v6509
  %6588 = vmatprep.subr.mxu0 0.0
  %6589 = vmatpush1.msra.mxu0 %v6510
  %6590 = vmatprep.subr.mxu0 0.0
  %6591 = vmatpush1.msra.mxu0 %v6511
  %6592 = vmatprep.subr.mxu0 0.0
  %6593 = vmatpush1.msra.mxu0 %v6512
  %6594 = vmatprep.subr.mxu0 0.0
  %6595 = vmatpush1.msra.mxu0 %v6513
  %6596 = vmatprep.subr.mxu0 0.0
  %6597 = vmatpush1.msra.mxu0 %v6514
  %6598 = vmatprep.subr.mxu0 0.0
  %6599 = vmatpush1.msra.mxu0 %v6515
  %6600 = vmatprep.subr.mxu0 0.0
  %6601 = vmatpush1.msra.mxu0 %v6516
  %6602 = vmatprep.subr.mxu0 0.0
  %6603 = vmatpush1.msra.mxu0 %v6517
  %6604 = vmatprep.subr.mxu0 0.0
  %6605 = vmatpush1.msra.mxu0 %v6518
  %6606 = vmatprep.subr.mxu0 0.0
  %6607 = vmatpush1.msra.mxu0 %v6519
  %6608 = vmatprep.subr.mxu0 0.0
  %6609 = vmatpush1.msra.mxu0 %v6520
  %6610 = vmatprep.subr.mxu0 0.0
  %6611 = vmatpush1.msra.mxu0 %v6521
  %6612 = vmatprep.subr.mxu0 0.0
  %6613 = vmatpush1.msra.mxu0 %v6522
  %6614 = vmatprep.subr.mxu0 0.0
  %6615 = vmatpush1.msra.mxu0 %v6523
  %6616 = vmatprep.subr.mxu0 0.0
  %6617 = vmatpush1.msra.mxu0 %v6524
  %6618 = vmatprep.subr.mxu0 0.0
  %6619 = vmatpush1.msra.mxu0 %v6525
  %6620 = vmatprep.subr.mxu0 0.0
  %6621 = vmatpush1.msra.mxu0 %v6526
  %6622 = vmatprep.subr.mxu0 0.0
  %6623 = vmatpush1.msra.mxu0 %v6527
  %6624 = vmatprep.subr.mxu0 0.0
  %6625 = vmatpush1.msra.mxu0 0.0
  %6626 = vmatprep.subr.mxu0 0.0
  %6627 = vmatpush1.msra.mxu0 0.0
  %6628 = vmatprep.subr.mxu0 0.0
  %6629 = vmatpush1.msra.mxu0 0.0
  %6630 = vmatprep.subr.mxu0 0.0
  %6631 = vmatpush1.msra.mxu0 0.0
  %6632 = vmatprep.subr.mxu0 0.0
  %6633 = vmatpush1.msra.mxu0 0.0
  %6634 = vmatprep.subr.mxu0 0.0
  %6635 = vmatpush1.msra.mxu0 0.0
  %6636 = vmatprep.subr.mxu0 0.0
  %6637 = vmatpush1.msra.mxu0 0.0
  %6638 = vmatprep.subr.mxu0 0.0
  %6639 = vmatpush1.msra.mxu0 0.0
  %6640 = vmatprep.mubr.f32.mxu0 %v6529
  %6641 = vmatmul.mubr.f32.gmra.mrb[0].mxu0 %v6472
  %v6642 = vpop.f32.mrb[0].mxu0
  %v6643 = vadd.f32 0.0, %v6642
  %v6644 = vpop.f32.mrb[0].mxu0
  %6645 = vmatprep.mubr.f32.mxu0 %v6532
  %6646 = vmatmul.mubr.f32.gmra.mrb[0].mxu0 %v6474
  %v6647 = vpop.f32.mrb[0].mxu0
  %v6648 = vadd.f32 0.0, %v6647
  %v6649 = vpop.f32.mrb[0].mxu0
  %6650 = vmatprep.mubr.f32.mxu0 %v6535
  %6651 = vmatmul.mubr.f32.gmra.mrb[0].mxu0 %v6476
  %v6652 = vpop.f32.mrb[0].mxu0
  %v6653 = vadd.f32 0.0, %v6652
  %v6654 = vpop.f32.mrb[0].mxu0
  %6655 = vmatprep.mubr.f32.mxu0 %v6538
  %6656 = vmatmul.mubr.f32.gmra.mrb[0].mxu0 %v6478
  %v6657 = vpop.f32.mrb[0].mxu0
  %v6658 = vpop.f32.mrb[0].mxu0
  %6659 = vmatprep.mubr.f32.mxu0 %v6541
  %6660 = vmatmul.mubr.f32.gmra.mrb[0].mxu0 %v6480
  %v6661 = vpop.f32.mrb[0].mxu0
  %v6662 = vadd.f32 0.0, %v6661
  %v6663 = vpop.f32.mrb[0].mxu0
  %6664 = vmatprep.mubr.f32.mxu0 %v6544
  %6665 = vmatmul.mubr.f32.gmra.mrb[0].mxu0 %v6482
  %v6666 = vpop.f32.mrb[0].mxu0
  %v6667 = vadd.f32 0.0, %v6666
  %v6668 = vpop.f32.mrb[0].mxu0
  %6669 = vmatprep.mubr.f32.mxu0 %v6547
  %6670 = vmatmul.mubr.f32.gmra.mrb[0].mxu0 %v6484
  %v6671 = vpop.f32.mrb[0].mxu0
  %v6672 = vadd.f32 0.0, %v6671
  %v6673 = vpop.f32.mrb[0].mxu0
  %6674 = vmatprep.mubr.f32.mxu0 %v6550
  %6675 = vmatmul.mubr.f32.gmra.mrb[0].mxu0 %v6486
  %v6676 = vpop.f32.mrb[0].mxu0
  %v6677 = vpop.f32.mrb[0].mxu0
  %6678 = vmatprep.mubr.f32.mxu0 %v6553
  %6679 = vmatmul.mubr.f32.gmra.mrb[0].mxu0 %v6488
  %v6680 = vpop.f32.mrb[0].mxu0
  %v6681 = vadd.f32 0.0, %v6680
  %v6682 = vpop.f32.mrb[0].mxu0
  %6683 = vmatprep.mubr.f32.mxu0 %v6556
  %6684 = vmatmul.mubr.f32.gmra.mrb[0].mxu0 %v6490
  %v6685 = vpop.f32.mrb[0].mxu0
  %v6686 = vadd.f32 0.0, %v6685
  %v6687 = vpop.f32.mrb[0].mxu0
  %6688 = vmatprep.mubr.f32.mxu0 %v6559
  %6689 = vmatmul.mubr.f32.gmra.mrb[0].mxu0 %v6492
  %v6690 = vpop.f32.mrb[0].mxu0
  %v6691 = vadd.f32 0.0, %v6690
  %v6692 = vpop.f32.mrb[0].mxu0
  %6693 = vmatprep.mubr.f32.mxu0 %v6562
  %6694 = vmatmul.mubr.f32.gmra.mrb[0].mxu0 %v6494
  %v6695 = vpop.f32.mrb[0].mxu0
  %v6696 = vpop.f32.mrb[0].mxu0
  %6697 = vmatprep.mubr.f32.mxu0 %v6565
  %6698 = vmatmul.mubr.f32.gmra.mrb[0].mxu0 %v6496
  %v6699 = vpop.f32.mrb[0].mxu0
  %v6700 = vadd.f32 0.0, %v6699
  %v6701 = vpop.f32.mrb[0].mxu0
  %6702 = vmatprep.mubr.f32.mxu0 %v6568
  %6703 = vmatmul.mubr.f32.gmra.mrb[0].mxu0 %v6498
  %v6704 = vpop.f32.mrb[0].mxu0
  %v6705 = vadd.f32 0.0, %v6704
  %v6706 = vpop.f32.mrb[0].mxu0
  %6707 = vmatprep.mubr.f32.mxu0 %v6571
  %6708 = vmatmul.mubr.f32.gmra.mrb[0].mxu0 %v6500
  %v6709 = vpop.f32.mrb[0].mxu0
  %v6710 = vadd.f32 0.0, %v6709
  %v6711 = vpop.f32.mrb[0].mxu0
  %6712 = vmatprep.mubr.f32.mxu0 %v6574
  %6713 = vmatmul.mubr.f32.gmra.mrb[0].mxu0 %v6502
  %v6714 = vpop.f32.mrb[0].mxu0
  %v6715 = vpop.f32.mrb[0].mxu0
  %6716 = vdwg.mxu0
  %v6717 = vld [vmem:[%s8] sm:$0x1]
  %v6719 = vlaneseq
  %v6720 = vshrl.u32 %v6719, 7
  %v6721 = vsub.s32 0, %v6720
  %v6722 = vrot.slane %v6717, %v6721
  %v6724 = vmul.f32 %v6643, %v6722
  %v6725 = vmul.f32 %v6648, %v6722
  %v6726 = vmul.f32 %v6653, %v6722
  %v6727 = vmul.f32 %v6662, %v6722
  %v6728 = vmul.f32 %v6667, %v6722
  %v6729 = vmul.f32 %v6672, %v6722
  %v6730 = vmul.f32 %v6681, %v6722
  %v6731 = vmul.f32 %v6686, %v6722
  %v6732 = vmul.f32 %v6691, %v6722
  %v6733 = vmul.f32 %v6700, %v6722
  %v6734 = vmul.f32 %v6705, %v6722
  %v6735 = vmul.f32 %v6710, %v6722
  %v6736 = vld [vmem:[%s9] sm:$0x1]
  %v6738 = vlaneseq
  %v6739 = vshrl.u32 %v6738, 7
  %v6740 = vsub.s32 0, %v6739
  %v6741 = vrot.slane %v6736, %v6740
  %v6743 = vadd.f32 %v6724, %v6741
  %v6744 = vadd.f32 %v6725, %v6741
  %v6745 = vadd.f32 %v6726, %v6741
  %v6746 = vadd.f32 %v6727, %v6741
  %v6747 = vadd.f32 %v6728, %v6741
  %v6748 = vadd.f32 %v6729, %v6741
  %v6749 = vadd.f32 %v6730, %v6741
  %v6750 = vadd.f32 %v6731, %v6741
  %v6751 = vadd.f32 %v6732, %v6741
  %v6752 = vadd.f32 %v6733, %v6741
  %v6753 = vadd.f32 %v6734, %v6741
  %v6754 = vadd.f32 %v6735, %v6741
  %v6755 = vmax.f32 %v6743, 0.0
  %v6756 = vmax.f32 %v6744, 0.0
  %v6757 = vmax.f32 %v6745, 0.0
  %v6758 = vmax.f32 %v6746, 0.0
  %v6759 = vmax.f32 %v6747, 0.0
  %v6760 = vmax.f32 %v6748, 0.0
  %v6761 = vmax.f32 %v6749, 0.0
  %v6762 = vmax.f32 %v6750, 0.0
  %v6763 = vmax.f32 %v6751, 0.0
  %v6764 = vmax.f32 %v6752, 0.0
  %v6765 = vmax.f32 %v6753, 0.0
  %v6766 = vmax.f32 %v6754, 0.0
  %v6770 = vcombine.high %v6755, %v6755
  %v6772 = vunpack.c.l.s4 1983009808
  %v6773 = vunpack.c.0.s8 %v6772
  %v6774 = vlaneseq
  %v6775 = vshrl.u32 %v6774, 7
  %v6776 = vsub.s32 %v6773, %v6775
  %v6777 = vrot.slane %v6755, %v6776
  %v6779 = vunpack.c.l.s4 1983009808
  %v6780 = vunpack.c.0.s8 %v6779
  %v6781 = vlaneseq
  %v6782 = vshrl.u32 %v6781, 7
  %v6783 = vsub.s32 %v6780, %v6782
  %v6784 = vrot.slane %v6770, %v6783
  %v6785 = vcombine.high %v6777, %v6777
  %v6786 = vcombine.high %v6784, %v6784
  %v6787 = vcombine.high %v6756, %v6756
  %v6789 = vunpack.c.l.s4 1983009808
  %v6790 = vunpack.c.0.s8 %v6789
  %v6791 = vlaneseq
  %v6792 = vshrl.u32 %v6791, 7
  %v6793 = vsub.s32 %v6790, %v6792
  %v6794 = vrot.slane %v6756, %v6793
  %v6796 = vunpack.c.l.s4 1983009808
  %v6797 = vunpack.c.0.s8 %v6796
  %v6798 = vlaneseq
  %v6799 = vshrl.u32 %v6798, 7
  %v6800 = vsub.s32 %v6797, %v6799
  %v6801 = vrot.slane %v6787, %v6800
  %v6802 = vcombine.high %v6794, %v6794
  %v6803 = vcombine.high %v6801, %v6801
  %v6804 = vcombine.high %v6757, %v6757
  %v6806 = vunpack.c.l.s4 1983009808
  %v6807 = vunpack.c.0.s8 %v6806
  %v6808 = vlaneseq
  %v6809 = vshrl.u32 %v6808, 7
  %v6810 = vsub.s32 %v6807, %v6809
  %v6811 = vrot.slane %v6757, %v6810
  %v6813 = vunpack.c.l.s4 1983009808
  %v6814 = vunpack.c.0.s8 %v6813
  %v6815 = vlaneseq
  %v6816 = vshrl.u32 %v6815, 7
  %v6817 = vsub.s32 %v6814, %v6816
  %v6818 = vrot.slane %v6804, %v6817
  %v6819 = vcombine.high %v6811, %v6811
  %v6820 = vcombine.high %v6818, %v6818
  %v6833 = vsel %vm1077, %v6777, -inf
  %v6834 = vrot.slane %v6833, 4
  %v6835 = vmax.f32 %v6833, %v6834
  %v6836 = vrot.slane %v6835, 2
  %v6837 = vmax.f32 %v6835, %v6836
  %v6838 = vrot.slane %v6837, 1
  %v6839 = vmax.f32 %v6837, %v6838
  %v6840 = vsel %vm1077, %v6785, -inf
  %v6841 = vrot.slane %v6840, 4
  %v6842 = vmax.f32 %v6840, %v6841
  %v6843 = vrot.slane %v6842, 2
  %v6844 = vmax.f32 %v6842, %v6843
  %v6845 = vrot.slane %v6844, 1
  %v6846 = vmax.f32 %v6844, %v6845
  %v6847 = vsel %vm1077, %v6784, -inf
  %v6848 = vrot.slane %v6847, 4
  %v6849 = vmax.f32 %v6847, %v6848
  %v6850 = vrot.slane %v6849, 2
  %v6851 = vmax.f32 %v6849, %v6850
  %v6852 = vrot.slane %v6851, 1
  %v6853 = vmax.f32 %v6851, %v6852
  %v6854 = vsel %vm1077, %v6786, -inf
  %v6855 = vrot.slane %v6854, 4
  %v6856 = vmax.f32 %v6854, %v6855
  %v6857 = vrot.slane %v6856, 2
  %v6858 = vmax.f32 %v6856, %v6857
  %v6859 = vrot.slane %v6858, 1
  %v6860 = vmax.f32 %v6858, %v6859
  %v6861 = vsel %vm1077, %v6794, -inf
  %v6862 = vrot.slane %v6861, 4
  %v6863 = vmax.f32 %v6861, %v6862
  %v6864 = vrot.slane %v6863, 2
  %v6865 = vmax.f32 %v6863, %v6864
  %v6866 = vrot.slane %v6865, 1
  %v6867 = vmax.f32 %v6865, %v6866
  %v6868 = vsel %vm1077, %v6802, -inf
  %v6869 = vrot.slane %v6868, 4
  %v6870 = vmax.f32 %v6868, %v6869
  %v6871 = vrot.slane %v6870, 2
  %v6872 = vmax.f32 %v6870, %v6871
  %v6873 = vrot.slane %v6872, 1
  %v6874 = vmax.f32 %v6872, %v6873
  %v6875 = vsel %vm1077, %v6801, -inf
  %v6876 = vrot.slane %v6875, 4
  %v6877 = vmax.f32 %v6875, %v6876
  %v6878 = vrot.slane %v6877, 2
  %v6879 = vmax.f32 %v6877, %v6878
  %v6880 = vrot.slane %v6879, 1
  %v6881 = vmax.f32 %v6879, %v6880
  %v6882 = vsel %vm1077, %v6803, -inf
  %v6883 = vrot.slane %v6882, 4
  %v6884 = vmax.f32 %v6882, %v6883
  %v6885 = vrot.slane %v6884, 2
  %v6886 = vmax.f32 %v6884, %v6885
  %v6887 = vrot.slane %v6886, 1
  %v6888 = vmax.f32 %v6886, %v6887
  %v6889 = vsel %vm1077, %v6811, -inf
  %v6890 = vrot.slane %v6889, 4
  %v6891 = vmax.f32 %v6889, %v6890
  %v6892 = vrot.slane %v6891, 2
  %v6893 = vmax.f32 %v6891, %v6892
  %v6894 = vrot.slane %v6893, 1
  %v6895 = vmax.f32 %v6893, %v6894
  %v6896 = vsel %vm1077, %v6819, -inf
  %v6897 = vrot.slane %v6896, 4
  %v6898 = vmax.f32 %v6896, %v6897
  %v6899 = vrot.slane %v6898, 2
  %v6900 = vmax.f32 %v6898, %v6899
  %v6901 = vrot.slane %v6900, 1
  %v6902 = vmax.f32 %v6900, %v6901
  %v6903 = vsel %vm1077, %v6818, -inf
  %v6904 = vrot.slane %v6903, 4
  %v6905 = vmax.f32 %v6903, %v6904
  %v6906 = vrot.slane %v6905, 2
  %v6907 = vmax.f32 %v6905, %v6906
  %v6908 = vrot.slane %v6907, 1
  %v6909 = vmax.f32 %v6907, %v6908
  %v6910 = vsel %vm1077, %v6820, -inf
  %v6911 = vrot.slane %v6910, 4
  %v6912 = vmax.f32 %v6910, %v6911
  %v6913 = vrot.slane %v6912, 2
  %v6914 = vmax.f32 %v6912, %v6913
  %v6915 = vrot.slane %v6914, 1
  %v6916 = vmax.f32 %v6914, %v6915
  %v6929 = vsel %vm1490, %v6846, %v6839
  %v6930 = vsel %vm1478, %v6853, %v6929
  %v6931 = vsel %vm1480, %v6860, %v6930
  %v6932 = vsel %vm1482, %v6867, %v6931
  %v6933 = vsel %vm1484, %v6874, %v6932
  %v6934 = vsel %vm1486, %v6881, %v6933
  %v6935 = vsel %vm1488, %v6888, %v6934
  %v6936 = vsel %vm1490, %v6902, %v6895
  %v6937 = vsel %vm1478, %v6909, %v6936
  %v6938 = vsel %vm1480, %v6916, %v6937
  %6941 = vst.msk [vmem:[#allocation4] sm:$0xff] %vm68, %v6935
  %vm6942 = vcmask 519168
  %6943 = vst.msk [vmem:[#allocation4 + $0x8] sm:$0xf] %vm6942, %v6938
  %v6947 = vcombine.high %v6758, %v6758
  %v6949 = vunpack.c.l.s4 1983009808
  %v6950 = vunpack.c.0.s8 %v6949
  %v6951 = vlaneseq
  %v6952 = vshrl.u32 %v6951, 7
  %v6953 = vsub.s32 %v6950, %v6952
  %v6954 = vrot.slane %v6758, %v6953
  %v6956 = vunpack.c.l.s4 1983009808
  %v6957 = vunpack.c.0.s8 %v6956
  %v6958 = vlaneseq
  %v6959 = vshrl.u32 %v6958, 7
  %v6960 = vsub.s32 %v6957, %v6959
  %v6961 = vrot.slane %v6947, %v6960
  %v6962 = vcombine.high %v6954, %v6954
  %v6963 = vcombine.high %v6961, %v6961
  %v6964 = vcombine.high %v6759, %v6759
  %v6966 = vunpack.c.l.s4 1983009808
  %v6967 = vunpack.c.0.s8 %v6966
  %v6968 = vlaneseq
  %v6969 = vshrl.u32 %v6968, 7
  %v6970 = vsub.s32 %v6967, %v6969
  %v6971 = vrot.slane %v6759, %v6970
  %v6973 = vunpack.c.l.s4 1983009808
  %v6974 = vunpack.c.0.s8 %v6973
  %v6975 = vlaneseq
  %v6976 = vshrl.u32 %v6975, 7
  %v6977 = vsub.s32 %v6974, %v6976
  %v6978 = vrot.slane %v6964, %v6977
  %v6979 = vcombine.high %v6971, %v6971
  %v6980 = vcombine.high %v6978, %v6978
  %v6981 = vcombine.high %v6760, %v6760
  %v6983 = vunpack.c.l.s4 1983009808
  %v6984 = vunpack.c.0.s8 %v6983
  %v6985 = vlaneseq
  %v6986 = vshrl.u32 %v6985, 7
  %v6987 = vsub.s32 %v6984, %v6986
  %v6988 = vrot.slane %v6760, %v6987
  %v6990 = vunpack.c.l.s4 1983009808
  %v6991 = vunpack.c.0.s8 %v6990
  %v6992 = vlaneseq
  %v6993 = vshrl.u32 %v6992, 7
  %v6994 = vsub.s32 %v6991, %v6993
  %v6995 = vrot.slane %v6981, %v6994
  %v6996 = vcombine.high %v6988, %v6988
  %v6997 = vcombine.high %v6995, %v6995
  %v7010 = vsel %vm1077, %v6954, -inf
  %v7011 = vrot.slane %v7010, 4
  %v7012 = vmax.f32 %v7010, %v7011
  %v7013 = vrot.slane %v7012, 2
  %v7014 = vmax.f32 %v7012, %v7013
  %v7015 = vrot.slane %v7014, 1
  %v7016 = vmax.f32 %v7014, %v7015
  %v7017 = vsel %vm1077, %v6962, -inf
  %v7018 = vrot.slane %v7017, 4
  %v7019 = vmax.f32 %v7017, %v7018
  %v7020 = vrot.slane %v7019, 2
  %v7021 = vmax.f32 %v7019, %v7020
  %v7022 = vrot.slane %v7021, 1
  %v7023 = vmax.f32 %v7021, %v7022
  %v7024 = vsel %vm1077, %v6961, -inf
  %v7025 = vrot.slane %v7024, 4
  %v7026 = vmax.f32 %v7024, %v7025
  %v7027 = vrot.slane %v7026, 2
  %v7028 = vmax.f32 %v7026, %v7027
  %v7029 = vrot.slane %v7028, 1
  %v7030 = vmax.f32 %v7028, %v7029
  %v7031 = vsel %vm1077, %v6963, -inf
  %v7032 = vrot.slane %v7031, 4
  %v7033 = vmax.f32 %v7031, %v7032
  %v7034 = vrot.slane %v7033, 2
  %v7035 = vmax.f32 %v7033, %v7034
  %v7036 = vrot.slane %v7035, 1
  %v7037 = vmax.f32 %v7035, %v7036
  %v7038 = vsel %vm1077, %v6971, -inf
  %v7039 = vrot.slane %v7038, 4
  %v7040 = vmax.f32 %v7038, %v7039
  %v7041 = vrot.slane %v7040, 2
  %v7042 = vmax.f32 %v7040, %v7041
  %v7043 = vrot.slane %v7042, 1
  %v7044 = vmax.f32 %v7042, %v7043
  %v7045 = vsel %vm1077, %v6979, -inf
  %v7046 = vrot.slane %v7045, 4
  %v7047 = vmax.f32 %v7045, %v7046
  %v7048 = vrot.slane %v7047, 2
  %v7049 = vmax.f32 %v7047, %v7048
  %v7050 = vrot.slane %v7049, 1
  %v7051 = vmax.f32 %v7049, %v7050
  %v7052 = vsel %vm1077, %v6978, -inf
  %v7053 = vrot.slane %v7052, 4
  %v7054 = vmax.f32 %v7052, %v7053
  %v7055 = vrot.slane %v7054, 2
  %v7056 = vmax.f32 %v7054, %v7055
  %v7057 = vrot.slane %v7056, 1
  %v7058 = vmax.f32 %v7056, %v7057
  %v7059 = vsel %vm1077, %v6980, -inf
  %v7060 = vrot.slane %v7059, 4
  %v7061 = vmax.f32 %v7059, %v7060
  %v7062 = vrot.slane %v7061, 2
  %v7063 = vmax.f32 %v7061, %v7062
  %v7064 = vrot.slane %v7063, 1
  %v7065 = vmax.f32 %v7063, %v7064
  %v7066 = vsel %vm1077, %v6988, -inf
  %v7067 = vrot.slane %v7066, 4
  %v7068 = vmax.f32 %v7066, %v7067
  %v7069 = vrot.slane %v7068, 2
  %v7070 = vmax.f32 %v7068, %v7069
  %v7071 = vrot.slane %v7070, 1
  %v7072 = vmax.f32 %v7070, %v7071
  %v7073 = vsel %vm1077, %v6996, -inf
  %v7074 = vrot.slane %v7073, 4
  %v7075 = vmax.f32 %v7073, %v7074
  %v7076 = vrot.slane %v7075, 2
  %v7077 = vmax.f32 %v7075, %v7076
  %v7078 = vrot.slane %v7077, 1
  %v7079 = vmax.f32 %v7077, %v7078
  %v7080 = vsel %vm1077, %v6995, -inf
  %v7081 = vrot.slane %v7080, 4
  %v7082 = vmax.f32 %v7080, %v7081
  %v7083 = vrot.slane %v7082, 2
  %v7084 = vmax.f32 %v7082, %v7083
  %v7085 = vrot.slane %v7084, 1
  %v7086 = vmax.f32 %v7084, %v7085
  %v7087 = vsel %vm1077, %v6997, -inf
  %v7088 = vrot.slane %v7087, 4
  %v7089 = vmax.f32 %v7087, %v7088
  %v7090 = vrot.slane %v7089, 2
  %v7091 = vmax.f32 %v7089, %v7090
  %v7092 = vrot.slane %v7091, 1
  %v7093 = vmax.f32 %v7091, %v7092
  %v7106 = vsel %vm1490, %v7023, %v7016
  %v7107 = vsel %vm1478, %v7030, %v7106
  %v7108 = vsel %vm1480, %v7037, %v7107
  %v7109 = vsel %vm1482, %v7044, %v7108
  %v7110 = vsel %vm1484, %v7051, %v7109
  %v7111 = vsel %vm1486, %v7058, %v7110
  %v7112 = vsel %vm1488, %v7065, %v7111
  %v7113 = vsel %vm1490, %v7079, %v7072
  %v7114 = vsel %vm1478, %v7086, %v7113
  %v7115 = vsel %vm1480, %v7093, %v7114
  %s7118 = scalar_lea.vmem [#allocation4], 16
  %7119 = vst.msk [vmem:[%s7118] sm:$0xff] %vm68, %v7112
  %7120 = vst.msk [vmem:[%s7118 + $0x8] sm:$0xf] %vm6942, %v7115
  %v7124 = vcombine.high %v6761, %v6761
  %v7126 = vunpack.c.l.s4 1983009808
  %v7127 = vunpack.c.0.s8 %v7126
  %v7128 = vlaneseq
  %v7129 = vshrl.u32 %v7128, 7
  %v7130 = vsub.s32 %v7127, %v7129
  %v7131 = vrot.slane %v6761, %v7130
  %v7133 = vunpack.c.l.s4 1983009808
  %v7134 = vunpack.c.0.s8 %v7133
  %v7135 = vlaneseq
  %v7136 = vshrl.u32 %v7135, 7
  %v7137 = vsub.s32 %v7134, %v7136
  %v7138 = vrot.slane %v7124, %v7137
  %v7139 = vcombine.high %v7131, %v7131
  %v7140 = vcombine.high %v7138, %v7138
  %v7141 = vcombine.high %v6762, %v6762
  %v7143 = vunpack.c.l.s4 1983009808
  %v7144 = vunpack.c.0.s8 %v7143
  %v7145 = vlaneseq
  %v7146 = vshrl.u32 %v7145, 7
  %v7147 = vsub.s32 %v7144, %v7146
  %v7148 = vrot.slane %v6762, %v7147
  %v7150 = vunpack.c.l.s4 1983009808
  %v7151 = vunpack.c.0.s8 %v7150
  %v7152 = vlaneseq
  %v7153 = vshrl.u32 %v7152, 7
  %v7154 = vsub.s32 %v7151, %v7153
  %v7155 = vrot.slane %v7141, %v7154
  %v7156 = vcombine.high %v7148, %v7148
  %v7157 = vcombine.high %v7155, %v7155
  %v7158 = vcombine.high %v6763, %v6763
  %v7160 = vunpack.c.l.s4 1983009808
  %v7161 = vunpack.c.0.s8 %v7160
  %v7162 = vlaneseq
  %v7163 = vshrl.u32 %v7162, 7
  %v7164 = vsub.s32 %v7161, %v7163
  %v7165 = vrot.slane %v6763, %v7164
  %v7167 = vunpack.c.l.s4 1983009808
  %v7168 = vunpack.c.0.s8 %v7167
  %v7169 = vlaneseq
  %v7170 = vshrl.u32 %v7169, 7
  %v7171 = vsub.s32 %v7168, %v7170
  %v7172 = vrot.slane %v7158, %v7171
  %v7173 = vcombine.high %v7165, %v7165
  %v7174 = vcombine.high %v7172, %v7172
  %v7187 = vsel %vm1077, %v7131, -inf
  %v7188 = vrot.slane %v7187, 4
  %v7189 = vmax.f32 %v7187, %v7188
  %v7190 = vrot.slane %v7189, 2
  %v7191 = vmax.f32 %v7189, %v7190
  %v7192 = vrot.slane %v7191, 1
  %v7193 = vmax.f32 %v7191, %v7192
  %v7194 = vsel %vm1077, %v7139, -inf
  %v7195 = vrot.slane %v7194, 4
  %v7196 = vmax.f32 %v7194, %v7195
  %v7197 = vrot.slane %v7196, 2
  %v7198 = vmax.f32 %v7196, %v7197
  %v7199 = vrot.slane %v7198, 1
  %v7200 = vmax.f32 %v7198, %v7199
  %v7201 = vsel %vm1077, %v7138, -inf
  %v7202 = vrot.slane %v7201, 4
  %v7203 = vmax.f32 %v7201, %v7202
  %v7204 = vrot.slane %v7203, 2
  %v7205 = vmax.f32 %v7203, %v7204
  %v7206 = vrot.slane %v7205, 1
  %v7207 = vmax.f32 %v7205, %v7206
  %v7208 = vsel %vm1077, %v7140, -inf
  %v7209 = vrot.slane %v7208, 4
  %v7210 = vmax.f32 %v7208, %v7209
  %v7211 = vrot.slane %v7210, 2
  %v7212 = vmax.f32 %v7210, %v7211
  %v7213 = vrot.slane %v7212, 1
  %v7214 = vmax.f32 %v7212, %v7213
  %v7215 = vsel %vm1077, %v7148, -inf
  %v7216 = vrot.slane %v7215, 4
  %v7217 = vmax.f32 %v7215, %v7216
  %v7218 = vrot.slane %v7217, 2
  %v7219 = vmax.f32 %v7217, %v7218
  %v7220 = vrot.slane %v7219, 1
  %v7221 = vmax.f32 %v7219, %v7220
  %v7222 = vsel %vm1077, %v7156, -inf
  %v7223 = vrot.slane %v7222, 4
  %v7224 = vmax.f32 %v7222, %v7223
  %v7225 = vrot.slane %v7224, 2
  %v7226 = vmax.f32 %v7224, %v7225
  %v7227 = vrot.slane %v7226, 1
  %v7228 = vmax.f32 %v7226, %v7227
  %v7229 = vsel %vm1077, %v7155, -inf
  %v7230 = vrot.slane %v7229, 4
  %v7231 = vmax.f32 %v7229, %v7230
  %v7232 = vrot.slane %v7231, 2
  %v7233 = vmax.f32 %v7231, %v7232
  %v7234 = vrot.slane %v7233, 1
  %v7235 = vmax.f32 %v7233, %v7234
  %v7236 = vsel %vm1077, %v7157, -inf
  %v7237 = vrot.slane %v7236, 4
  %v7238 = vmax.f32 %v7236, %v7237
  %v7239 = vrot.slane %v7238, 2
  %v7240 = vmax.f32 %v7238, %v7239
  %v7241 = vrot.slane %v7240, 1
  %v7242 = vmax.f32 %v7240, %v7241
  %v7243 = vsel %vm1077, %v7165, -inf
  %v7244 = vrot.slane %v7243, 4
  %v7245 = vmax.f32 %v7243, %v7244
  %v7246 = vrot.slane %v7245, 2
  %v7247 = vmax.f32 %v7245, %v7246
  %v7248 = vrot.slane %v7247, 1
  %v7249 = vmax.f32 %v7247, %v7248
  %v7250 = vsel %vm1077, %v7173, -inf
  %v7251 = vrot.slane %v7250, 4
  %v7252 = vmax.f32 %v7250, %v7251
  %v7253 = vrot.slane %v7252, 2
  %v7254 = vmax.f32 %v7252, %v7253
  %v7255 = vrot.slane %v7254, 1
  %v7256 = vmax.f32 %v7254, %v7255
  %v7257 = vsel %vm1077, %v7172, -inf
  %v7258 = vrot.slane %v7257, 4
  %v7259 = vmax.f32 %v7257, %v7258
  %v7260 = vrot.slane %v7259, 2
  %v7261 = vmax.f32 %v7259, %v7260
  %v7262 = vrot.slane %v7261, 1
  %v7263 = vmax.f32 %v7261, %v7262
  %v7264 = vsel %vm1077, %v7174, -inf
  %v7265 = vrot.slane %v7264, 4
  %v7266 = vmax.f32 %v7264, %v7265
  %v7267 = vrot.slane %v7266, 2
  %v7268 = vmax.f32 %v7266, %v7267
  %v7269 = vrot.slane %v7268, 1
  %v7270 = vmax.f32 %v7268, %v7269
  %v7283 = vsel %vm1490, %v7200, %v7193
  %v7284 = vsel %vm1478, %v7207, %v7283
  %v7285 = vsel %vm1480, %v7214, %v7284
  %v7286 = vsel %vm1482, %v7221, %v7285
  %v7287 = vsel %vm1484, %v7228, %v7286
  %v7288 = vsel %vm1486, %v7235, %v7287
  %v7289 = vsel %vm1488, %v7242, %v7288
  %v7290 = vsel %vm1490, %v7256, %v7249
  %v7291 = vsel %vm1478, %v7263, %v7290
  %v7292 = vsel %vm1480, %v7270, %v7291
  %s7295 = scalar_lea.vmem [#allocation4], 32
  %7296 = vst.msk [vmem:[%s7295] sm:$0xff] %vm68, %v7289
  %7297 = vst.msk [vmem:[%s7295 + $0x8] sm:$0xf] %vm6942, %v7292
  %v7301 = vcombine.high %v6764, %v6764
  %v7303 = vunpack.c.l.s4 1983009808
  %v7304 = vunpack.c.0.s8 %v7303
  %v7305 = vlaneseq
  %v7306 = vshrl.u32 %v7305, 7
  %v7307 = vsub.s32 %v7304, %v7306
  %v7308 = vrot.slane %v6764, %v7307
  %v7310 = vunpack.c.l.s4 1983009808
  %v7311 = vunpack.c.0.s8 %v7310
  %v7312 = vlaneseq
  %v7313 = vshrl.u32 %v7312, 7
  %v7314 = vsub.s32 %v7311, %v7313
  %v7315 = vrot.slane %v7301, %v7314
  %v7316 = vcombine.high %v7308, %v7308
  %v7317 = vcombine.high %v7315, %v7315
  %v7318 = vcombine.high %v6765, %v6765
  %v7320 = vunpack.c.l.s4 1983009808
  %v7321 = vunpack.c.0.s8 %v7320
  %v7322 = vlaneseq
  %v7323 = vshrl.u32 %v7322, 7
  %v7324 = vsub.s32 %v7321, %v7323
  %v7325 = vrot.slane %v6765, %v7324
  %v7327 = vunpack.c.l.s4 1983009808
  %v7328 = vunpack.c.0.s8 %v7327
  %v7329 = vlaneseq
  %v7330 = vshrl.u32 %v7329, 7
  %v7331 = vsub.s32 %v7328, %v7330
  %v7332 = vrot.slane %v7318, %v7331
  %v7333 = vcombine.high %v7325, %v7325
  %v7334 = vcombine.high %v7332, %v7332
  %v7335 = vcombine.high %v6766, %v6766
  %v7337 = vunpack.c.l.s4 1983009808
  %v7338 = vunpack.c.0.s8 %v7337
  %v7339 = vlaneseq
  %v7340 = vshrl.u32 %v7339, 7
  %v7341 = vsub.s32 %v7338, %v7340
  %v7342 = vrot.slane %v6766, %v7341
  %v7344 = vunpack.c.l.s4 1983009808
  %v7345 = vunpack.c.0.s8 %v7344
  %v7346 = vlaneseq
  %v7347 = vshrl.u32 %v7346, 7
  %v7348 = vsub.s32 %v7345, %v7347
  %v7349 = vrot.slane %v7335, %v7348
  %v7350 = vcombine.high %v7342, %v7342
  %v7351 = vcombine.high %v7349, %v7349
  %v7364 = vsel %vm1077, %v7308, -inf
  %v7365 = vrot.slane %v7364, 4
  %v7366 = vmax.f32 %v7364, %v7365
  %v7367 = vrot.slane %v7366, 2
  %v7368 = vmax.f32 %v7366, %v7367
  %v7369 = vrot.slane %v7368, 1
  %v7370 = vmax.f32 %v7368, %v7369
  %v7371 = vsel %vm1077, %v7316, -inf
  %v7372 = vrot.slane %v7371, 4
  %v7373 = vmax.f32 %v7371, %v7372
  %v7374 = vrot.slane %v7373, 2
  %v7375 = vmax.f32 %v7373, %v7374
  %v7376 = vrot.slane %v7375, 1
  %v7377 = vmax.f32 %v7375, %v7376
  %v7378 = vsel %vm1077, %v7315, -inf
  %v7379 = vrot.slane %v7378, 4
  %v7380 = vmax.f32 %v7378, %v7379
  %v7381 = vrot.slane %v7380, 2
  %v7382 = vmax.f32 %v7380, %v7381
  %v7383 = vrot.slane %v7382, 1
  %v7384 = vmax.f32 %v7382, %v7383
  %v7385 = vsel %vm1077, %v7317, -inf
  %v7386 = vrot.slane %v7385, 4
  %v7387 = vmax.f32 %v7385, %v7386
  %v7388 = vrot.slane %v7387, 2
  %v7389 = vmax.f32 %v7387, %v7388
  %v7390 = vrot.slane %v7389, 1
  %v7391 = vmax.f32 %v7389, %v7390
  %v7392 = vsel %vm1077, %v7325, -inf
  %v7393 = vrot.slane %v7392, 4
  %v7394 = vmax.f32 %v7392, %v7393
  %v7395 = vrot.slane %v7394, 2
  %v7396 = vmax.f32 %v7394, %v7395
  %v7397 = vrot.slane %v7396, 1
  %v7398 = vmax.f32 %v7396, %v7397
  %v7399 = vsel %vm1077, %v7333, -inf
  %v7400 = vrot.slane %v7399, 4
  %v7401 = vmax.f32 %v7399, %v7400
  %v7402 = vrot.slane %v7401, 2
  %v7403 = vmax.f32 %v7401, %v7402
  %v7404 = vrot.slane %v7403, 1
  %v7405 = vmax.f32 %v7403, %v7404
  %v7406 = vsel %vm1077, %v7332, -inf
  %v7407 = vrot.slane %v7406, 4
  %v7408 = vmax.f32 %v7406, %v7407
  %v7409 = vrot.slane %v7408, 2
  %v7410 = vmax.f32 %v7408, %v7409
  %v7411 = vrot.slane %v7410, 1
  %v7412 = vmax.f32 %v7410, %v7411
  %v7413 = vsel %vm1077, %v7334, -inf
  %v7414 = vrot.slane %v7413, 4
  %v7415 = vmax.f32 %v7413, %v7414
  %v7416 = vrot.slane %v7415, 2
  %v7417 = vmax.f32 %v7415, %v7416
  %v7418 = vrot.slane %v7417, 1
  %v7419 = vmax.f32 %v7417, %v7418
  %v7420 = vsel %vm1077, %v7342, -inf
  %v7421 = vrot.slane %v7420, 4
  %v7422 = vmax.f32 %v7420, %v7421
  %v7423 = vrot.slane %v7422, 2
  %v7424 = vmax.f32 %v7422, %v7423
  %v7425 = vrot.slane %v7424, 1
  %v7426 = vmax.f32 %v7424, %v7425
  %v7427 = vsel %vm1077, %v7350, -inf
  %v7428 = vrot.slane %v7427, 4
  %v7429 = vmax.f32 %v7427, %v7428
  %v7430 = vrot.slane %v7429, 2
  %v7431 = vmax.f32 %v7429, %v7430
  %v7432 = vrot.slane %v7431, 1
  %v7433 = vmax.f32 %v7431, %v7432
  %v7434 = vsel %vm1077, %v7349, -inf
  %v7435 = vrot.slane %v7434, 4
  %v7436 = vmax.f32 %v7434, %v7435
  %v7437 = vrot.slane %v7436, 2
  %v7438 = vmax.f32 %v7436, %v7437
  %v7439 = vrot.slane %v7438, 1
  %v7440 = vmax.f32 %v7438, %v7439
  %v7441 = vsel %vm1077, %v7351, -inf
  %v7442 = vrot.slane %v7441, 4
  %v7443 = vmax.f32 %v7441, %v7442
  %v7444 = vrot.slane %v7443, 2
  %v7445 = vmax.f32 %v7443, %v7444
  %v7446 = vrot.slane %v7445, 1
  %v7447 = vmax.f32 %v7445, %v7446
  %v7460 = vsel %vm1490, %v7377, %v7370
  %v7461 = vsel %vm1478, %v7384, %v7460
  %v7462 = vsel %vm1480, %v7391, %v7461
  %v7463 = vsel %vm1482, %v7398, %v7462
  %v7464 = vsel %vm1484, %v7405, %v7463
  %v7465 = vsel %vm1486, %v7412, %v7464
  %v7466 = vsel %vm1488, %v7419, %v7465
  %v7467 = vsel %vm1490, %v7433, %v7426
  %v7468 = vsel %vm1478, %v7440, %v7467
  %v7469 = vsel %vm1480, %v7447, %v7468
  %s7472 = scalar_lea.vmem [#allocation4], 48
  %7473 = vst.msk [vmem:[%s7472] sm:$0xff] %vm68, %v7466
  %7474 = vst.msk [vmem:[%s7472 + $0x8] sm:$0xf] %vm6942, %v7469
  %v7475 = vld [vmem:[#allocation4] sm:$0xff]
  %v7476 = vld [vmem:[#allocation4 + $0x8] sm:$0xf]
  %v7477 = vld [vmem:[#allocation4 + $0x10] sm:$0xff]
  %v7478 = vld [vmem:[#allocation4 + $0x18] sm:$0xf]
  %v7479 = vld [vmem:[#allocation4 + $0x20] sm:$0xff]
  %v7480 = vld [vmem:[#allocation4 + $0x28] sm:$0xf]
  %v7481 = vld [vmem:[#allocation4 + $0x30] sm:$0xff]
  %v7482 = vld [vmem:[#allocation4 + $0x38] sm:$0xf]
  %v7483 = vld [vmem:[%s10] sm:$0xff]
  %v7484 = vld [vmem:[%s10 + $0x8] sm:$0xff]
  %v7485 = vld [vmem:[%s10 + $0x10] sm:$0xff]
  %v7486 = vld [vmem:[%s10 + $0x18] sm:$0xff]
  %v7487 = vld [vmem:[%s10 + $0x20] sm:$0xff]
  %v7488 = vld [vmem:[%s10 + $0x28] sm:$0xff]
  %v7489 = vld [vmem:[%s10 + $0x30] sm:$0xff]
  %v7490 = vld [vmem:[%s10 + $0x38] sm:$0xff]
  %v7491 = vld [vmem:[%s11] sm:$0x1]
  %v7493 = vlaneseq
  %v7494 = vshrl.u32 %v7493, 7
  %v7495 = vsub.s32 0, %v7494
  %v7496 = vrot.slane %v7491, %v7495
  %v7502 = vrot.slane %v7477, 7
  %v7503 = vsel %vm1490, %v7502, %v7475
  %v7504 = vrot.slane %v7479, 6
  %v7505 = vsel %vm1478, %v7504, %v7503
  %v7506 = vrot.slane %v7481, 5
  %v7507 = vsel %vm1480, %v7506, %v7505
  %v7508 = vsel %vm68, %v7507, 0
  %7510 = vmatprep.subr.mxu0 0.0
  %7511 = vmatpush1.msra.mxu0 %v7483
  %7512 = vmatprep.subr.mxu0 0.0
  %7513 = vmatpush1.msra.mxu0 %v7484
  %7514 = vmatprep.subr.mxu0 0.0
  %7515 = vmatpush1.msra.mxu0 %v7485
  %7516 = vmatprep.subr.mxu0 0.0
  %7517 = vmatpush1.msra.mxu0 %v7486
  %7518 = vmatprep.subr.mxu0 0.0
  %7519 = vmatpush1.msra.mxu0 %v7487
  %7520 = vmatprep.subr.mxu0 0.0
  %7521 = vmatpush1.msra.mxu0 %v7488
  %7522 = vmatprep.subr.mxu0 0.0
  %7523 = vmatpush1.msra.mxu0 %v7489
  %7524 = vmatprep.subr.mxu0 0.0
  %7525 = vmatpush1.msra.mxu0 %v7490
  %7526 = vmatprep.subr.mxu0 0.0
  %7527 = vmatpush1.msra.mxu0 0.0
  %7528 = vmatprep.subr.mxu0 0.0
  %7529 = vmatpush1.msra.mxu0 0.0
  %7530 = vmatprep.subr.mxu0 0.0
  %7531 = vmatpush1.msra.mxu0 0.0
  %7532 = vmatprep.subr.mxu0 0.0
  %7533 = vmatpush1.msra.mxu0 0.0
  %7534 = vmatprep.subr.mxu0 0.0
  %7535 = vmatpush1.msra.mxu0 0.0
  %7536 = vmatprep.subr.mxu0 0.0
  %7537 = vmatpush1.msra.mxu0 0.0
  %7538 = vmatprep.subr.mxu0 0.0
  %7539 = vmatpush1.msra.mxu0 0.0
  %7540 = vmatprep.subr.mxu0 0.0
  %7541 = vmatpush1.msra.mxu0 0.0
  %7542 = vmatprep.subr.mxu0 0.0
  %7543 = vmatpush1.msra.mxu0 0.0
  %7544 = vmatprep.subr.mxu0 0.0
  %7545 = vmatpush1.msra.mxu0 0.0
  %7546 = vmatprep.subr.mxu0 0.0
  %7547 = vmatpush1.msra.mxu0 0.0
  %7548 = vmatprep.subr.mxu0 0.0
  %7549 = vmatpush1.msra.mxu0 0.0
  %7550 = vmatprep.subr.mxu0 0.0
  %7551 = vmatpush1.msra.mxu0 0.0
  %7552 = vmatprep.subr.mxu0 0.0
  %7553 = vmatpush1.msra.mxu0 0.0
  %7554 = vmatprep.subr.mxu0 0.0
  %7555 = vmatpush1.msra.mxu0 0.0
  %7556 = vmatprep.subr.mxu0 0.0
  %7557 = vmatpush1.msra.mxu0 0.0
  %7558 = vmatprep.subr.mxu0 0.0
  %7559 = vmatpush1.msra.mxu0 0.0
  %7560 = vmatprep.subr.mxu0 0.0
  %7561 = vmatpush1.msra.mxu0 0.0
  %7562 = vmatprep.subr.mxu0 0.0
  %7563 = vmatpush1.msra.mxu0 0.0
  %7564 = vmatprep.subr.mxu0 0.0
  %7565 = vmatpush1.msra.mxu0 0.0
  %7566 = vmatprep.subr.mxu0 0.0
  %7567 = vmatpush1.msra.mxu0 0.0
  %7568 = vmatprep.subr.mxu0 0.0
  %7569 = vmatpush1.msra.mxu0 0.0
  %7570 = vmatprep.subr.mxu0 0.0
  %7571 = vmatpush1.msra.mxu0 0.0
  %7572 = vmatprep.subr.mxu0 0.0
  %7573 = vmatpush1.msra.mxu0 0.0
  %7574 = vmatprep.mubr.f32.mxu0 0.0
  %7575 = vmatmul.mubr.f32.gmra.mrb[0].mxu0 %v7508
  %v7576 = vpop.f32.mrb[0].mxu0
  %v7577 = vadd.f32 %v7496, %v7576
  %v7578 = vpop.f32.mrb[0].mxu0
  %7579 = vdwg.mxu0
  %s7580 = scalar_lea.vmem %s10, 64
  %v7581 = vld [vmem:[%s7580] sm:$0xff]
  %v7582 = vld [vmem:[%s7580 + $0x8] sm:$0xff]
  %v7583 = vld [vmem:[%s7580 + $0x10] sm:$0xff]
  %v7584 = vld [vmem:[%s7580 + $0x18] sm:$0xff]
  %v7585 = vld [vmem:[%s7580 + $0x20] sm:$0xff]
  %v7586 = vld [vmem:[%s7580 + $0x28] sm:$0xff]
  %v7587 = vld [vmem:[%s7580 + $0x30] sm:$0xff]
  %v7588 = vld [vmem:[%s7580 + $0x38] sm:$0xff]
  %v7589 = vrot.slane %v7475, 1
  %v7590 = vsel %vm1490, %v7477, %v7589
  %v7591 = vrot.slane %v7479, 7
  %v7592 = vsel %vm1478, %v7591, %v7590
  %v7593 = vrot.slane %v7481, 6
  %v7594 = vsel %vm1480, %v7593, %v7592
  %v7595 = vsel %vm68, %v7594, 0
  %7597 = vmatprep.subr.mxu0 0.0
  %7598 = vmatpush1.msra.mxu0 %v7581
  %7599 = vmatprep.subr.mxu0 0.0
  %7600 = vmatpush1.msra.mxu0 %v7582
  %7601 = vmatprep.subr.mxu0 0.0
  %7602 = vmatpush1.msra.mxu0 %v7583
  %7603 = vmatprep.subr.mxu0 0.0
  %7604 = vmatpush1.msra.mxu0 %v7584
  %7605 = vmatprep.subr.mxu0 0.0
  %7606 = vmatpush1.msra.mxu0 %v7585
  %7607 = vmatprep.subr.mxu0 0.0
  %7608 = vmatpush1.msra.mxu0 %v7586
  %7609 = vmatprep.subr.mxu0 0.0
  %7610 = vmatpush1.msra.mxu0 %v7587
  %7611 = vmatprep.subr.mxu0 0.0
  %7612 = vmatpush1.msra.mxu0 %v7588
  %7613 = vmatprep.subr.mxu0 0.0
  %7614 = vmatpush1.msra.mxu0 0.0
  %7615 = vmatprep.subr.mxu0 0.0
  %7616 = vmatpush1.msra.mxu0 0.0
  %7617 = vmatprep.subr.mxu0 0.0
  %7618 = vmatpush1.msra.mxu0 0.0
  %7619 = vmatprep.subr.mxu0 0.0
  %7620 = vmatpush1.msra.mxu0 0.0
  %7621 = vmatprep.subr.mxu0 0.0
  %7622 = vmatpush1.msra.mxu0 0.0
  %7623 = vmatprep.subr.mxu0 0.0
  %7624 = vmatpush1.msra.mxu0 0.0
  %7625 = vmatprep.subr.mxu0 0.0
  %7626 = vmatpush1.msra.mxu0 0.0
  %7627 = vmatprep.subr.mxu0 0.0
  %7628 = vmatpush1.msra.mxu0 0.0
  %7629 = vmatprep.subr.mxu0 0.0
  %7630 = vmatpush1.msra.mxu0 0.0
  %7631 = vmatprep.subr.mxu0 0.0
  %7632 = vmatpush1.msra.mxu0 0.0
  %7633 = vmatprep.subr.mxu0 0.0
  %7634 = vmatpush1.msra.mxu0 0.0
  %7635 = vmatprep.subr.mxu0 0.0
  %7636 = vmatpush1.msra.mxu0 0.0
  %7637 = vmatprep.subr.mxu0 0.0
  %7638 = vmatpush1.msra.mxu0 0.0
  %7639 = vmatprep.subr.mxu0 0.0
  %7640 = vmatpush1.msra.mxu0 0.0
  %7641 = vmatprep.subr.mxu0 0.0
  %7642 = vmatpush1.msra.mxu0 0.0
  %7643 = vmatprep.subr.mxu0 0.0
  %7644 = vmatpush1.msra.mxu0 0.0
  %7645 = vmatprep.subr.mxu0 0.0
  %7646 = vmatpush1.msra.mxu0 0.0
  %7647 = vmatprep.subr.mxu0 0.0
  %7648 = vmatpush1.msra.mxu0 0.0
  %7649 = vmatprep.subr.mxu0 0.0
  %7650 = vmatpush1.msra.mxu0 0.0
  %7651 = vmatprep.subr.mxu0 0.0
  %7652 = vmatpush1.msra.mxu0 0.0
  %7653 = vmatprep.subr.mxu0 0.0
  %7654 = vmatpush1.msra.mxu0 0.0
  %7655 = vmatprep.subr.mxu0 0.0
  %7656 = vmatpush1.msra.mxu0 0.0
  %7657 = vmatprep.subr.mxu0 0.0
  %7658 = vmatpush1.msra.mxu0 0.0
  %7659 = vmatprep.subr.mxu0 0.0
  %7660 = vmatpush1.msra.mxu0 0.0
  %7661 = vmatprep.mubr.f32.mxu0 0.0
  %7662 = vmatmul.mubr.f32.gmra.mrb[0].mxu0 %v7595
  %v7663 = vpop.f32.mrb[0].mxu0
  %v7664 = vadd.f32 0.0, %v7663
  %v7665 = vpop.f32.mrb[0].mxu0
  %7666 = vdwg.mxu0
  %v7667 = vadd.f32 %v7577, %v7664
  %s7668 = scalar_lea.vmem %s10, 128
  %v7669 = vld [vmem:[%s7668] sm:$0xff]
  %v7670 = vld [vmem:[%s7668 + $0x8] sm:$0xff]
  %v7671 = vld [vmem:[%s7668 + $0x10] sm:$0xff]
  %v7672 = vld [vmem:[%s7668 + $0x18] sm:$0xff]
  %v7673 = vld [vmem:[%s7668 + $0x20] sm:$0xff]
  %v7674 = vld [vmem:[%s7668 + $0x28] sm:$0xff]
  %v7675 = vld [vmem:[%s7668 + $0x30] sm:$0xff]
  %v7676 = vld [vmem:[%s7668 + $0x38] sm:$0xff]
  %v7677 = vrot.slane %v7475, 2
  %v7678 = vrot.slane %v7477, 1
  %v7679 = vsel %vm1490, %v7678, %v7677
  %v7680 = vsel %vm1478, %v7479, %v7679
  %v7681 = vrot.slane %v7481, 7
  %v7682 = vsel %vm1480, %v7681, %v7680
  %v7683 = vsel %vm68, %v7682, 0
  %7685 = vmatprep.subr.mxu0 0.0
  %7686 = vmatpush1.msra.mxu0 %v7669
  %7687 = vmatprep.subr.mxu0 0.0
  %7688 = vmatpush1.msra.mxu0 %v7670
  %7689 = vmatprep.subr.mxu0 0.0
  %7690 = vmatpush1.msra.mxu0 %v7671
  %7691 = vmatprep.subr.mxu0 0.0
  %7692 = vmatpush1.msra.mxu0 %v7672
  %7693 = vmatprep.subr.mxu0 0.0
  %7694 = vmatpush1.msra.mxu0 %v7673
  %7695 = vmatprep.subr.mxu0 0.0
  %7696 = vmatpush1.msra.mxu0 %v7674
  %7697 = vmatprep.subr.mxu0 0.0
  %7698 = vmatpush1.msra.mxu0 %v7675
  %7699 = vmatprep.subr.mxu0 0.0
  %7700 = vmatpush1.msra.mxu0 %v7676
  %7701 = vmatprep.subr.mxu0 0.0
  %7702 = vmatpush1.msra.mxu0 0.0
  %7703 = vmatprep.subr.mxu0 0.0
  %7704 = vmatpush1.msra.mxu0 0.0
  %7705 = vmatprep.subr.mxu0 0.0
  %7706 = vmatpush1.msra.mxu0 0.0
  %7707 = vmatprep.subr.mxu0 0.0
  %7708 = vmatpush1.msra.mxu0 0.0
  %7709 = vmatprep.subr.mxu0 0.0
  %7710 = vmatpush1.msra.mxu0 0.0
  %7711 = vmatprep.subr.mxu0 0.0
  %7712 = vmatpush1.msra.mxu0 0.0
  %7713 = vmatprep.subr.mxu0 0.0
  %7714 = vmatpush1.msra.mxu0 0.0
  %7715 = vmatprep.subr.mxu0 0.0
  %7716 = vmatpush1.msra.mxu0 0.0
  %7717 = vmatprep.subr.mxu0 0.0
  %7718 = vmatpush1.msra.mxu0 0.0
  %7719 = vmatprep.subr.mxu0 0.0
  %7720 = vmatpush1.msra.mxu0 0.0
  %7721 = vmatprep.subr.mxu0 0.0
  %7722 = vmatpush1.msra.mxu0 0.0
  %7723 = vmatprep.subr.mxu0 0.0
  %7724 = vmatpush1.msra.mxu0 0.0
  %7725 = vmatprep.subr.mxu0 0.0
  %7726 = vmatpush1.msra.mxu0 0.0
  %7727 = vmatprep.subr.mxu0 0.0
  %7728 = vmatpush1.msra.mxu0 0.0
  %7729 = vmatprep.subr.mxu0 0.0
  %7730 = vmatpush1.msra.mxu0 0.0
  %7731 = vmatprep.subr.mxu0 0.0
  %7732 = vmatpush1.msra.mxu0 0.0
  %7733 = vmatprep.subr.mxu0 0.0
  %7734 = vmatpush1.msra.mxu0 0.0
  %7735 = vmatprep.subr.mxu0 0.0
  %7736 = vmatpush1.msra.mxu0 0.0
  %7737 = vmatprep.subr.mxu0 0.0
  %7738 = vmatpush1.msra.mxu0 0.0
  %7739 = vmatprep.subr.mxu0 0.0
  %7740 = vmatpush1.msra.mxu0 0.0
  %7741 = vmatprep.subr.mxu0 0.0
  %7742 = vmatpush1.msra.mxu0 0.0
  %7743 = vmatprep.subr.mxu0 0.0
  %7744 = vmatpush1.msra.mxu0 0.0
  %7745 = vmatprep.subr.mxu0 0.0
  %7746 = vmatpush1.msra.mxu0 0.0
  %7747 = vmatprep.subr.mxu0 0.0
  %7748 = vmatpush1.msra.mxu0 0.0
  %7749 = vmatprep.mubr.f32.mxu0 0.0
  %7750 = vmatmul.mubr.f32.gmra.mrb[0].mxu0 %v7683
  %v7751 = vpop.f32.mrb[0].mxu0
  %v7752 = vadd.f32 0.0, %v7751
  %v7753 = vpop.f32.mrb[0].mxu0
  %7754 = vdwg.mxu0
  %v7755 = vadd.f32 %v7667, %v7752
  %s7756 = scalar_lea.vmem %s10, 192
  %v7757 = vld [vmem:[%s7756] sm:$0xff]
  %v7758 = vld [vmem:[%s7756 + $0x8] sm:$0xff]
  %v7759 = vld [vmem:[%s7756 + $0x10] sm:$0xff]
  %v7760 = vld [vmem:[%s7756 + $0x18] sm:$0xff]
  %v7761 = vld [vmem:[%s7756 + $0x20] sm:$0xff]
  %v7762 = vld [vmem:[%s7756 + $0x28] sm:$0xff]
  %v7763 = vld [vmem:[%s7756 + $0x30] sm:$0xff]
  %v7764 = vld [vmem:[%s7756 + $0x38] sm:$0xff]
  %v7765 = vrot.slane %v7475, 3
  %v7766 = vrot.slane %v7477, 2
  %v7767 = vsel %vm1490, %v7766, %v7765
  %v7768 = vrot.slane %v7479, 1
  %v7769 = vsel %vm1478, %v7768, %v7767
  %v7770 = vsel %vm1480, %v7481, %v7769
  %v7771 = vsel %vm68, %v7770, 0
  %7773 = vmatprep.subr.mxu0 0.0
  %7774 = vmatpush1.msra.mxu0 %v7757
  %7775 = vmatprep.subr.mxu0 0.0
  %7776 = vmatpush1.msra.mxu0 %v7758
  %7777 = vmatprep.subr.mxu0 0.0
  %7778 = vmatpush1.msra.mxu0 %v7759
  %7779 = vmatprep.subr.mxu0 0.0
  %7780 = vmatpush1.msra.mxu0 %v7760
  %7781 = vmatprep.subr.mxu0 0.0
  %7782 = vmatpush1.msra.mxu0 %v7761
  %7783 = vmatprep.subr.mxu0 0.0
  %7784 = vmatpush1.msra.mxu0 %v7762
  %7785 = vmatprep.subr.mxu0 0.0
  %7786 = vmatpush1.msra.mxu0 %v7763
  %7787 = vmatprep.subr.mxu0 0.0
  %7788 = vmatpush1.msra.mxu0 %v7764
  %7789 = vmatprep.subr.mxu0 0.0
  %7790 = vmatpush1.msra.mxu0 0.0
  %7791 = vmatprep.subr.mxu0 0.0
  %7792 = vmatpush1.msra.mxu0 0.0
  %7793 = vmatprep.subr.mxu0 0.0
  %7794 = vmatpush1.msra.mxu0 0.0
  %7795 = vmatprep.subr.mxu0 0.0
  %7796 = vmatpush1.msra.mxu0 0.0
  %7797 = vmatprep.subr.mxu0 0.0
  %7798 = vmatpush1.msra.mxu0 0.0
  %7799 = vmatprep.subr.mxu0 0.0
  %7800 = vmatpush1.msra.mxu0 0.0
  %7801 = vmatprep.subr.mxu0 0.0
  %7802 = vmatpush1.msra.mxu0 0.0
  %7803 = vmatprep.subr.mxu0 0.0
  %7804 = vmatpush1.msra.mxu0 0.0
  %7805 = vmatprep.subr.mxu0 0.0
  %7806 = vmatpush1.msra.mxu0 0.0
  %7807 = vmatprep.subr.mxu0 0.0
  %7808 = vmatpush1.msra.mxu0 0.0
  %7809 = vmatprep.subr.mxu0 0.0
  %7810 = vmatpush1.msra.mxu0 0.0
  %7811 = vmatprep.subr.mxu0 0.0
  %7812 = vmatpush1.msra.mxu0 0.0
  %7813 = vmatprep.subr.mxu0 0.0
  %7814 = vmatpush1.msra.mxu0 0.0
  %7815 = vmatprep.subr.mxu0 0.0
  %7816 = vmatpush1.msra.mxu0 0.0
  %7817 = vmatprep.subr.mxu0 0.0
  %7818 = vmatpush1.msra.mxu0 0.0
  %7819 = vmatprep.subr.mxu0 0.0
  %7820 = vmatpush1.msra.mxu0 0.0
  %7821 = vmatprep.subr.mxu0 0.0
  %7822 = vmatpush1.msra.mxu0 0.0
  %7823 = vmatprep.subr.mxu0 0.0
  %7824 = vmatpush1.msra.mxu0 0.0
  %7825 = vmatprep.subr.mxu0 0.0
  %7826 = vmatpush1.msra.mxu0 0.0
  %7827 = vmatprep.subr.mxu0 0.0
  %7828 = vmatpush1.msra.mxu0 0.0
  %7829 = vmatprep.subr.mxu0 0.0
  %7830 = vmatpush1.msra.mxu0 0.0
  %7831 = vmatprep.subr.mxu0 0.0
  %7832 = vmatpush1.msra.mxu0 0.0
  %7833 = vmatprep.subr.mxu0 0.0
  %7834 = vmatpush1.msra.mxu0 0.0
  %7835 = vmatprep.subr.mxu0 0.0
  %7836 = vmatpush1.msra.mxu0 0.0
  %7837 = vmatprep.mubr.f32.mxu0 0.0
  %7838 = vmatmul.mubr.f32.gmra.mrb[0].mxu0 %v7771
  %v7839 = vpop.f32.mrb[0].mxu0
  %v7840 = vadd.f32 0.0, %v7839
  %v7841 = vpop.f32.mrb[0].mxu0
  %7842 = vdwg.mxu0
  %v7843 = vadd.f32 %v7755, %v7840
  %s7844 = scalar_lea.vmem %s10, 256
  %v7845 = vld [vmem:[%s7844] sm:$0xff]
  %v7846 = vld [vmem:[%s7844 + $0x8] sm:$0xff]
  %v7847 = vld [vmem:[%s7844 + $0x10] sm:$0xff]
  %v7848 = vld [vmem:[%s7844 + $0x18] sm:$0xff]
  %v7849 = vld [vmem:[%s7844 + $0x20] sm:$0xff]
  %v7850 = vld [vmem:[%s7844 + $0x28] sm:$0xff]
  %v7851 = vld [vmem:[%s7844 + $0x30] sm:$0xff]
  %v7852 = vld [vmem:[%s7844 + $0x38] sm:$0xff]
  %v7853 = vrot.slane %v7475, 4
  %v7854 = vrot.slane %v7477, 3
  %v7855 = vsel %vm1490, %v7854, %v7853
  %v7856 = vrot.slane %v7479, 2
  %v7857 = vsel %vm1478, %v7856, %v7855
  %v7858 = vrot.slane %v7481, 1
  %v7859 = vsel %vm1480, %v7858, %v7857
  %v7860 = vsel %vm68, %v7859, 0
  %7862 = vmatprep.subr.mxu0 0.0
  %7863 = vmatpush1.msra.mxu0 %v7845
  %7864 = vmatprep.subr.mxu0 0.0
  %7865 = vmatpush1.msra.mxu0 %v7846
  %7866 = vmatprep.subr.mxu0 0.0
  %7867 = vmatpush1.msra.mxu0 %v7847
  %7868 = vmatprep.subr.mxu0 0.0
  %7869 = vmatpush1.msra.mxu0 %v7848
  %7870 = vmatprep.subr.mxu0 0.0
  %7871 = vmatpush1.msra.mxu0 %v7849
  %7872 = vmatprep.subr.mxu0 0.0
  %7873 = vmatpush1.msra.mxu0 %v7850
  %7874 = vmatprep.subr.mxu0 0.0
  %7875 = vmatpush1.msra.mxu0 %v7851
  %7876 = vmatprep.subr.mxu0 0.0
  %7877 = vmatpush1.msra.mxu0 %v7852
  %7878 = vmatprep.subr.mxu0 0.0
  %7879 = vmatpush1.msra.mxu0 0.0
  %7880 = vmatprep.subr.mxu0 0.0
  %7881 = vmatpush1.msra.mxu0 0.0
  %7882 = vmatprep.subr.mxu0 0.0
  %7883 = vmatpush1.msra.mxu0 0.0
  %7884 = vmatprep.subr.mxu0 0.0
  %7885 = vmatpush1.msra.mxu0 0.0
  %7886 = vmatprep.subr.mxu0 0.0
  %7887 = vmatpush1.msra.mxu0 0.0
  %7888 = vmatprep.subr.mxu0 0.0
  %7889 = vmatpush1.msra.mxu0 0.0
  %7890 = vmatprep.subr.mxu0 0.0
  %7891 = vmatpush1.msra.mxu0 0.0
  %7892 = vmatprep.subr.mxu0 0.0
  %7893 = vmatpush1.msra.mxu0 0.0
  %7894 = vmatprep.subr.mxu0 0.0
  %7895 = vmatpush1.msra.mxu0 0.0
  %7896 = vmatprep.subr.mxu0 0.0
  %7897 = vmatpush1.msra.mxu0 0.0
  %7898 = vmatprep.subr.mxu0 0.0
  %7899 = vmatpush1.msra.mxu0 0.0
  %7900 = vmatprep.subr.mxu0 0.0
  %7901 = vmatpush1.msra.mxu0 0.0
  %7902 = vmatprep.subr.mxu0 0.0
  %7903 = vmatpush1.msra.mxu0 0.0
  %7904 = vmatprep.subr.mxu0 0.0
  %7905 = vmatpush1.msra.mxu0 0.0
  %7906 = vmatprep.subr.mxu0 0.0
  %7907 = vmatpush1.msra.mxu0 0.0
  %7908 = vmatprep.subr.mxu0 0.0
  %7909 = vmatpush1.msra.mxu0 0.0
  %7910 = vmatprep.subr.mxu0 0.0
  %7911 = vmatpush1.msra.mxu0 0.0
  %7912 = vmatprep.subr.mxu0 0.0
  %7913 = vmatpush1.msra.mxu0 0.0
  %7914 = vmatprep.subr.mxu0 0.0
  %7915 = vmatpush1.msra.mxu0 0.0
  %7916 = vmatprep.subr.mxu0 0.0
  %7917 = vmatpush1.msra.mxu0 0.0
  %7918 = vmatprep.subr.mxu0 0.0
  %7919 = vmatpush1.msra.mxu0 0.0
  %7920 = vmatprep.subr.mxu0 0.0
  %7921 = vmatpush1.msra.mxu0 0.0
  %7922 = vmatprep.subr.mxu0 0.0
  %7923 = vmatpush1.msra.mxu0 0.0
  %7924 = vmatprep.subr.mxu0 0.0
  %7925 = vmatpush1.msra.mxu0 0.0
  %7926 = vmatprep.mubr.f32.mxu0 0.0
  %7927 = vmatmul.mubr.f32.gmra.mrb[0].mxu0 %v7860
  %v7928 = vpop.f32.mrb[0].mxu0
  %v7929 = vadd.f32 0.0, %v7928
  %v7930 = vpop.f32.mrb[0].mxu0
  %7931 = vdwg.mxu0
  %v7932 = vadd.f32 %v7843, %v7929
  %s7933 = scalar_lea.vmem %s10, 320
  %v7934 = vld [vmem:[%s7933] sm:$0xff]
  %v7935 = vld [vmem:[%s7933 + $0x8] sm:$0xff]
  %v7936 = vld [vmem:[%s7933 + $0x10] sm:$0xff]
  %v7937 = vld [vmem:[%s7933 + $0x18] sm:$0xff]
  %v7938 = vld [vmem:[%s7933 + $0x20] sm:$0xff]
  %v7939 = vld [vmem:[%s7933 + $0x28] sm:$0xff]
  %v7940 = vld [vmem:[%s7933 + $0x30] sm:$0xff]
  %v7941 = vld [vmem:[%s7933 + $0x38] sm:$0xff]
  %v7942 = vrot.slane %v7475, 5
  %v7943 = vrot.slane %v7477, 4
  %v7944 = vsel %vm1490, %v7943, %v7942
  %v7945 = vrot.slane %v7479, 3
  %v7946 = vsel %vm1478, %v7945, %v7944
  %v7947 = vrot.slane %v7481, 2
  %v7948 = vsel %vm1480, %v7947, %v7946
  %v7949 = vsel %vm68, %v7948, 0
  %7951 = vmatprep.subr.mxu0 0.0
  %7952 = vmatpush1.msra.mxu0 %v7934
  %7953 = vmatprep.subr.mxu0 0.0
  %7954 = vmatpush1.msra.mxu0 %v7935
  %7955 = vmatprep.subr.mxu0 0.0
  %7956 = vmatpush1.msra.mxu0 %v7936
  %7957 = vmatprep.subr.mxu0 0.0
  %7958 = vmatpush1.msra.mxu0 %v7937
  %7959 = vmatprep.subr.mxu0 0.0
  %7960 = vmatpush1.msra.mxu0 %v7938
  %7961 = vmatprep.subr.mxu0 0.0
  %7962 = vmatpush1.msra.mxu0 %v7939
  %7963 = vmatprep.subr.mxu0 0.0
  %7964 = vmatpush1.msra.mxu0 %v7940
  %7965 = vmatprep.subr.mxu0 0.0
  %7966 = vmatpush1.msra.mxu0 %v7941
  %7967 = vmatprep.subr.mxu0 0.0
  %7968 = vmatpush1.msra.mxu0 0.0
  %7969 = vmatprep.subr.mxu0 0.0
  %7970 = vmatpush1.msra.mxu0 0.0
  %7971 = vmatprep.subr.mxu0 0.0
  %7972 = vmatpush1.msra.mxu0 0.0
  %7973 = vmatprep.subr.mxu0 0.0
  %7974 = vmatpush1.msra.mxu0 0.0
  %7975 = vmatprep.subr.mxu0 0.0
  %7976 = vmatpush1.msra.mxu0 0.0
  %7977 = vmatprep.subr.mxu0 0.0
  %7978 = vmatpush1.msra.mxu0 0.0
  %7979 = vmatprep.subr.mxu0 0.0
  %7980 = vmatpush1.msra.mxu0 0.0
  %7981 = vmatprep.subr.mxu0 0.0
  %7982 = vmatpush1.msra.mxu0 0.0
  %7983 = vmatprep.subr.mxu0 0.0
  %7984 = vmatpush1.msra.mxu0 0.0
  %7985 = vmatprep.subr.mxu0 0.0
  %7986 = vmatpush1.msra.mxu0 0.0
  %7987 = vmatprep.subr.mxu0 0.0
  %7988 = vmatpush1.msra.mxu0 0.0
  %7989 = vmatprep.subr.mxu0 0.0
  %7990 = vmatpush1.msra.mxu0 0.0
  %7991 = vmatprep.subr.mxu0 0.0
  %7992 = vmatpush1.msra.mxu0 0.0
  %7993 = vmatprep.subr.mxu0 0.0
  %7994 = vmatpush1.msra.mxu0 0.0
  %7995 = vmatprep.subr.mxu0 0.0
  %7996 = vmatpush1.msra.mxu0 0.0
  %7997 = vmatprep.subr.mxu0 0.0
  %7998 = vmatpush1.msra.mxu0 0.0
  %7999 = vmatprep.subr.mxu0 0.0
  %8000 = vmatpush1.msra.mxu0 0.0
  %8001 = vmatprep.subr.mxu0 0.0
  %8002 = vmatpush1.msra.mxu0 0.0
  %8003 = vmatprep.subr.mxu0 0.0
  %8004 = vmatpush1.msra.mxu0 0.0
  %8005 = vmatprep.subr.mxu0 0.0
  %8006 = vmatpush1.msra.mxu0 0.0
  %8007 = vmatprep.subr.mxu0 0.0
  %8008 = vmatpush1.msra.mxu0 0.0
  %8009 = vmatprep.subr.mxu0 0.0
  %8010 = vmatpush1.msra.mxu0 0.0
  %8011 = vmatprep.subr.mxu0 0.0
  %8012 = vmatpush1.msra.mxu0 0.0
  %8013 = vmatprep.subr.mxu0 0.0
  %8014 = vmatpush1.msra.mxu0 0.0
  %8015 = vmatprep.mubr.f32.mxu0 0.0
  %8016 = vmatmul.mubr.f32.gmra.mrb[0].mxu0 %v7949
  %v8017 = vpop.f32.mrb[0].mxu0
  %v8018 = vadd.f32 0.0, %v8017
  %v8019 = vpop.f32.mrb[0].mxu0
  %8020 = vdwg.mxu0
  %v8021 = vadd.f32 %v7932, %v8018
  %s8022 = scalar_lea.vmem %s10, 384
  %v8023 = vld [vmem:[%s8022] sm:$0xff]
  %v8024 = vld [vmem:[%s8022 + $0x8] sm:$0xff]
  %v8025 = vld [vmem:[%s8022 + $0x10] sm:$0xff]
  %v8026 = vld [vmem:[%s8022 + $0x18] sm:$0xff]
  %v8027 = vld [vmem:[%s8022 + $0x20] sm:$0xff]
  %v8028 = vld [vmem:[%s8022 + $0x28] sm:$0xff]
  %v8029 = vld [vmem:[%s8022 + $0x30] sm:$0xff]
  %v8030 = vld [vmem:[%s8022 + $0x38] sm:$0xff]
  %v8031 = vrot.slane %v7475, 6
  %v8032 = vrot.slane %v7477, 5
  %v8033 = vsel %vm1490, %v8032, %v8031
  %v8034 = vrot.slane %v7479, 4
  %v8035 = vsel %vm1478, %v8034, %v8033
  %v8036 = vrot.slane %v7481, 3
  %v8037 = vsel %vm1480, %v8036, %v8035
  %v8038 = vsel %vm68, %v8037, 0
  %8040 = vmatprep.subr.mxu0 0.0
  %8041 = vmatpush1.msra.mxu0 %v8023
  %8042 = vmatprep.subr.mxu0 0.0
  %8043 = vmatpush1.msra.mxu0 %v8024
  %8044 = vmatprep.subr.mxu0 0.0
  %8045 = vmatpush1.msra.mxu0 %v8025
  %8046 = vmatprep.subr.mxu0 0.0
  %8047 = vmatpush1.msra.mxu0 %v8026
  %8048 = vmatprep.subr.mxu0 0.0
  %8049 = vmatpush1.msra.mxu0 %v8027
  %8050 = vmatprep.subr.mxu0 0.0
  %8051 = vmatpush1.msra.mxu0 %v8028
  %8052 = vmatprep.subr.mxu0 0.0
  %8053 = vmatpush1.msra.mxu0 %v8029
  %8054 = vmatprep.subr.mxu0 0.0
  %8055 = vmatpush1.msra.mxu0 %v8030
  %8056 = vmatprep.subr.mxu0 0.0
  %8057 = vmatpush1.msra.mxu0 0.0
  %8058 = vmatprep.subr.mxu0 0.0
  %8059 = vmatpush1.msra.mxu0 0.0
  %8060 = vmatprep.subr.mxu0 0.0
  %8061 = vmatpush1.msra.mxu0 0.0
  %8062 = vmatprep.subr.mxu0 0.0
  %8063 = vmatpush1.msra.mxu0 0.0
  %8064 = vmatprep.subr.mxu0 0.0
  %8065 = vmatpush1.msra.mxu0 0.0
  %8066 = vmatprep.subr.mxu0 0.0
  %8067 = vmatpush1.msra.mxu0 0.0
  %8068 = vmatprep.subr.mxu0 0.0
  %8069 = vmatpush1.msra.mxu0 0.0
  %8070 = vmatprep.subr.mxu0 0.0
  %8071 = vmatpush1.msra.mxu0 0.0
  %8072 = vmatprep.subr.mxu0 0.0
  %8073 = vmatpush1.msra.mxu0 0.0
  %8074 = vmatprep.subr.mxu0 0.0
  %8075 = vmatpush1.msra.mxu0 0.0
  %8076 = vmatprep.subr.mxu0 0.0
  %8077 = vmatpush1.msra.mxu0 0.0
  %8078 = vmatprep.subr.mxu0 0.0
  %8079 = vmatpush1.msra.mxu0 0.0
  %8080 = vmatprep.subr.mxu0 0.0
  %8081 = vmatpush1.msra.mxu0 0.0
  %8082 = vmatprep.subr.mxu0 0.0
  %8083 = vmatpush1.msra.mxu0 0.0
  %8084 = vmatprep.subr.mxu0 0.0
  %8085 = vmatpush1.msra.mxu0 0.0
  %8086 = vmatprep.subr.mxu0 0.0
  %8087 = vmatpush1.msra.mxu0 0.0
  %8088 = vmatprep.subr.mxu0 0.0
  %8089 = vmatpush1.msra.mxu0 0.0
  %8090 = vmatprep.subr.mxu0 0.0
  %8091 = vmatpush1.msra.mxu0 0.0
  %8092 = vmatprep.subr.mxu0 0.0
  %8093 = vmatpush1.msra.mxu0 0.0
  %8094 = vmatprep.subr.mxu0 0.0
  %8095 = vmatpush1.msra.mxu0 0.0
  %8096 = vmatprep.subr.mxu0 0.0
  %8097 = vmatpush1.msra.mxu0 0.0
  %8098 = vmatprep.subr.mxu0 0.0
  %8099 = vmatpush1.msra.mxu0 0.0
  %8100 = vmatprep.subr.mxu0 0.0
  %8101 = vmatpush1.msra.mxu0 0.0
  %8102 = vmatprep.subr.mxu0 0.0
  %8103 = vmatpush1.msra.mxu0 0.0
  %8104 = vmatprep.mubr.f32.mxu0 0.0
  %8105 = vmatmul.mubr.f32.gmra.mrb[0].mxu0 %v8038
  %v8106 = vpop.f32.mrb[0].mxu0
  %v8107 = vadd.f32 0.0, %v8106
  %v8108 = vpop.f32.mrb[0].mxu0
  %8109 = vdwg.mxu0
  %v8110 = vadd.f32 %v8021, %v8107
  %s8111 = scalar_lea.vmem %s10, 448
  %v8112 = vld [vmem:[%s8111] sm:$0xff]
  %v8113 = vld [vmem:[%s8111 + $0x8] sm:$0xff]
  %v8114 = vld [vmem:[%s8111 + $0x10] sm:$0xff]
  %v8115 = vld [vmem:[%s8111 + $0x18] sm:$0xff]
  %v8116 = vld [vmem:[%s8111 + $0x20] sm:$0xff]
  %v8117 = vld [vmem:[%s8111 + $0x28] sm:$0xff]
  %v8118 = vld [vmem:[%s8111 + $0x30] sm:$0xff]
  %v8119 = vld [vmem:[%s8111 + $0x38] sm:$0xff]
  %v8120 = vrot.slane %v7475, 7
  %v8121 = vrot.slane %v7477, 6
  %v8122 = vsel %vm1490, %v8121, %v8120
  %v8123 = vrot.slane %v7479, 5
  %v8124 = vsel %vm1478, %v8123, %v8122
  %v8125 = vrot.slane %v7481, 4
  %v8126 = vsel %vm1480, %v8125, %v8124
  %v8127 = vsel %vm68, %v8126, 0
  %8129 = vmatprep.subr.mxu0 0.0
  %8130 = vmatpush1.msra.mxu0 %v8112
  %8131 = vmatprep.subr.mxu0 0.0
  %8132 = vmatpush1.msra.mxu0 %v8113
  %8133 = vmatprep.subr.mxu0 0.0
  %8134 = vmatpush1.msra.mxu0 %v8114
  %8135 = vmatprep.subr.mxu0 0.0
  %8136 = vmatpush1.msra.mxu0 %v8115
  %8137 = vmatprep.subr.mxu0 0.0
  %8138 = vmatpush1.msra.mxu0 %v8116
  %8139 = vmatprep.subr.mxu0 0.0
  %8140 = vmatpush1.msra.mxu0 %v8117
  %8141 = vmatprep.subr.mxu0 0.0
  %8142 = vmatpush1.msra.mxu0 %v8118
  %8143 = vmatprep.subr.mxu0 0.0
  %8144 = vmatpush1.msra.mxu0 %v8119
  %8145 = vmatprep.subr.mxu0 0.0
  %8146 = vmatpush1.msra.mxu0 0.0
  %8147 = vmatprep.subr.mxu0 0.0
  %8148 = vmatpush1.msra.mxu0 0.0
  %8149 = vmatprep.subr.mxu0 0.0
  %8150 = vmatpush1.msra.mxu0 0.0
  %8151 = vmatprep.subr.mxu0 0.0
  %8152 = vmatpush1.msra.mxu0 0.0
  %8153 = vmatprep.subr.mxu0 0.0
  %8154 = vmatpush1.msra.mxu0 0.0
  %8155 = vmatprep.subr.mxu0 0.0
  %8156 = vmatpush1.msra.mxu0 0.0
  %8157 = vmatprep.subr.mxu0 0.0
  %8158 = vmatpush1.msra.mxu0 0.0
  %8159 = vmatprep.subr.mxu0 0.0
  %8160 = vmatpush1.msra.mxu0 0.0
  %8161 = vmatprep.subr.mxu0 0.0
  %8162 = vmatpush1.msra.mxu0 0.0
  %8163 = vmatprep.subr.mxu0 0.0
  %8164 = vmatpush1.msra.mxu0 0.0
  %8165 = vmatprep.subr.mxu0 0.0
  %8166 = vmatpush1.msra.mxu0 0.0
  %8167 = vmatprep.subr.mxu0 0.0
  %8168 = vmatpush1.msra.mxu0 0.0
  %8169 = vmatprep.subr.mxu0 0.0
  %8170 = vmatpush1.msra.mxu0 0.0
  %8171 = vmatprep.subr.mxu0 0.0
  %8172 = vmatpush1.msra.mxu0 0.0
  %8173 = vmatprep.subr.mxu0 0.0
  %8174 = vmatpush1.msra.mxu0 0.0
  %8175 = vmatprep.subr.mxu0 0.0
  %8176 = vmatpush1.msra.mxu0 0.0
  %8177 = vmatprep.subr.mxu0 0.0
  %8178 = vmatpush1.msra.mxu0 0.0
  %8179 = vmatprep.subr.mxu0 0.0
  %8180 = vmatpush1.msra.mxu0 0.0
  %8181 = vmatprep.subr.mxu0 0.0
  %8182 = vmatpush1.msra.mxu0 0.0
  %8183 = vmatprep.subr.mxu0 0.0
  %8184 = vmatpush1.msra.mxu0 0.0
  %8185 = vmatprep.subr.mxu0 0.0
  %8186 = vmatpush1.msra.mxu0 0.0
  %8187 = vmatprep.subr.mxu0 0.0
  %8188 = vmatpush1.msra.mxu0 0.0
  %8189 = vmatprep.subr.mxu0 0.0
  %8190 = vmatpush1.msra.mxu0 0.0
  %8191 = vmatprep.subr.mxu0 0.0
  %8192 = vmatpush1.msra.mxu0 0.0
  %8193 = vmatprep.mubr.f32.mxu0 0.0
  %8194 = vmatmul.mubr.f32.gmra.mrb[0].mxu0 %v8127
  %v8195 = vpop.f32.mrb[0].mxu0
  %v8196 = vadd.f32 0.0, %v8195
  %v8197 = vpop.f32.mrb[0].mxu0
  %8198 = vdwg.mxu0
  %v8199 = vadd.f32 %v8110, %v8196
  %s8200 = scalar_lea.vmem %s10, 512
  %v8201 = vld [vmem:[%s8200] sm:$0xff]
  %v8202 = vld [vmem:[%s8200 + $0x8] sm:$0xff]
  %v8203 = vld [vmem:[%s8200 + $0x10] sm:$0xff]
  %v8204 = vld [vmem:[%s8200 + $0x18] sm:$0xff]
  %v8205 = vld [vmem:[%s8200 + $0x20] sm:$0xff]
  %v8206 = vld [vmem:[%s8200 + $0x28] sm:$0xff]
  %v8207 = vld [vmem:[%s8200 + $0x30] sm:$0xff]
  %v8208 = vld [vmem:[%s8200 + $0x38] sm:$0xff]
  %v8213 = vrot.slane %v7478, 7
  %v8214 = vsel %vm1490, %v8213, %v7476
  %v8215 = vrot.slane %v7480, 6
  %v8216 = vsel %vm1478, %v8215, %v8214
  %v8217 = vrot.slane %v7482, 5
  %v8218 = vsel %vm1480, %v8217, %v8216
  %v8219 = vsel %vm68, %v8218, 0
  %8221 = vmatprep.subr.mxu0 0.0
  %8222 = vmatpush1.msra.mxu0 %v8201
  %8223 = vmatprep.subr.mxu0 0.0
  %8224 = vmatpush1.msra.mxu0 %v8202
  %8225 = vmatprep.subr.mxu0 0.0
  %8226 = vmatpush1.msra.mxu0 %v8203
  %8227 = vmatprep.subr.mxu0 0.0
  %8228 = vmatpush1.msra.mxu0 %v8204
  %8229 = vmatprep.subr.mxu0 0.0
  %8230 = vmatpush1.msra.mxu0 %v8205
  %8231 = vmatprep.subr.mxu0 0.0
  %8232 = vmatpush1.msra.mxu0 %v8206
  %8233 = vmatprep.subr.mxu0 0.0
  %8234 = vmatpush1.msra.mxu0 %v8207
  %8235 = vmatprep.subr.mxu0 0.0
  %8236 = vmatpush1.msra.mxu0 %v8208
  %8237 = vmatprep.subr.mxu0 0.0
  %8238 = vmatpush1.msra.mxu0 0.0
  %8239 = vmatprep.subr.mxu0 0.0
  %8240 = vmatpush1.msra.mxu0 0.0
  %8241 = vmatprep.subr.mxu0 0.0
  %8242 = vmatpush1.msra.mxu0 0.0
  %8243 = vmatprep.subr.mxu0 0.0
  %8244 = vmatpush1.msra.mxu0 0.0
  %8245 = vmatprep.subr.mxu0 0.0
  %8246 = vmatpush1.msra.mxu0 0.0
  %8247 = vmatprep.subr.mxu0 0.0
  %8248 = vmatpush1.msra.mxu0 0.0
  %8249 = vmatprep.subr.mxu0 0.0
  %8250 = vmatpush1.msra.mxu0 0.0
  %8251 = vmatprep.subr.mxu0 0.0
  %8252 = vmatpush1.msra.mxu0 0.0
  %8253 = vmatprep.subr.mxu0 0.0
  %8254 = vmatpush1.msra.mxu0 0.0
  %8255 = vmatprep.subr.mxu0 0.0
  %8256 = vmatpush1.msra.mxu0 0.0
  %8257 = vmatprep.subr.mxu0 0.0
  %8258 = vmatpush1.msra.mxu0 0.0
  %8259 = vmatprep.subr.mxu0 0.0
  %8260 = vmatpush1.msra.mxu0 0.0
  %8261 = vmatprep.subr.mxu0 0.0
  %8262 = vmatpush1.msra.mxu0 0.0
  %8263 = vmatprep.subr.mxu0 0.0
  %8264 = vmatpush1.msra.mxu0 0.0
  %8265 = vmatprep.subr.mxu0 0.0
  %8266 = vmatpush1.msra.mxu0 0.0
  %8267 = vmatprep.subr.mxu0 0.0
  %8268 = vmatpush1.msra.mxu0 0.0
  %8269 = vmatprep.subr.mxu0 0.0
  %8270 = vmatpush1.msra.mxu0 0.0
  %8271 = vmatprep.subr.mxu0 0.0
  %8272 = vmatpush1.msra.mxu0 0.0
  %8273 = vmatprep.subr.mxu0 0.0
  %8274 = vmatpush1.msra.mxu0 0.0
  %8275 = vmatprep.subr.mxu0 0.0
  %8276 = vmatpush1.msra.mxu0 0.0
  %8277 = vmatprep.subr.mxu0 0.0
  %8278 = vmatpush1.msra.mxu0 0.0
  %8279 = vmatprep.subr.mxu0 0.0
  %8280 = vmatpush1.msra.mxu0 0.0
  %8281 = vmatprep.subr.mxu0 0.0
  %8282 = vmatpush1.msra.mxu0 0.0
  %8283 = vmatprep.subr.mxu0 0.0
  %8284 = vmatpush1.msra.mxu0 0.0
  %8285 = vmatprep.mubr.f32.mxu0 0.0
  %8286 = vmatmul.mubr.f32.gmra.mrb[0].mxu0 %v8219
  %v8287 = vpop.f32.mrb[0].mxu0
  %v8288 = vadd.f32 0.0, %v8287
  %v8289 = vpop.f32.mrb[0].mxu0
  %8290 = vdwg.mxu0
  %v8291 = vadd.f32 %v8199, %v8288
  %s8292 = scalar_lea.vmem %s10, 576
  %v8293 = vld [vmem:[%s8292] sm:$0xff]
  %v8294 = vld [vmem:[%s8292 + $0x8] sm:$0xff]
  %v8295 = vld [vmem:[%s8292 + $0x10] sm:$0xff]
  %v8296 = vld [vmem:[%s8292 + $0x18] sm:$0xff]
  %v8297 = vld [vmem:[%s8292 + $0x20] sm:$0xff]
  %v8298 = vld [vmem:[%s8292 + $0x28] sm:$0xff]
  %v8299 = vld [vmem:[%s8292 + $0x30] sm:$0xff]
  %v8300 = vld [vmem:[%s8292 + $0x38] sm:$0xff]
  %v8301 = vrot.slane %v7476, 1
  %v8302 = vsel %vm1490, %v7478, %v8301
  %v8303 = vrot.slane %v7480, 7
  %v8304 = vsel %vm1478, %v8303, %v8302
  %v8305 = vrot.slane %v7482, 6
  %v8306 = vsel %vm1480, %v8305, %v8304
  %v8307 = vsel %vm68, %v8306, 0
  %8309 = vmatprep.subr.mxu0 0.0
  %8310 = vmatpush1.msra.mxu0 %v8293
  %8311 = vmatprep.subr.mxu0 0.0
  %8312 = vmatpush1.msra.mxu0 %v8294
  %8313 = vmatprep.subr.mxu0 0.0
  %8314 = vmatpush1.msra.mxu0 %v8295
  %8315 = vmatprep.subr.mxu0 0.0
  %8316 = vmatpush1.msra.mxu0 %v8296
  %8317 = vmatprep.subr.mxu0 0.0
  %8318 = vmatpush1.msra.mxu0 %v8297
  %8319 = vmatprep.subr.mxu0 0.0
  %8320 = vmatpush1.msra.mxu0 %v8298
  %8321 = vmatprep.subr.mxu0 0.0
  %8322 = vmatpush1.msra.mxu0 %v8299
  %8323 = vmatprep.subr.mxu0 0.0
  %8324 = vmatpush1.msra.mxu0 %v8300
  %8325 = vmatprep.subr.mxu0 0.0
  %8326 = vmatpush1.msra.mxu0 0.0
  %8327 = vmatprep.subr.mxu0 0.0
  %8328 = vmatpush1.msra.mxu0 0.0
  %8329 = vmatprep.subr.mxu0 0.0
  %8330 = vmatpush1.msra.mxu0 0.0
  %8331 = vmatprep.subr.mxu0 0.0
  %8332 = vmatpush1.msra.mxu0 0.0
  %8333 = vmatprep.subr.mxu0 0.0
  %8334 = vmatpush1.msra.mxu0 0.0
  %8335 = vmatprep.subr.mxu0 0.0
  %8336 = vmatpush1.msra.mxu0 0.0
  %8337 = vmatprep.subr.mxu0 0.0
  %8338 = vmatpush1.msra.mxu0 0.0
  %8339 = vmatprep.subr.mxu0 0.0
  %8340 = vmatpush1.msra.mxu0 0.0
  %8341 = vmatprep.subr.mxu0 0.0
  %8342 = vmatpush1.msra.mxu0 0.0
  %8343 = vmatprep.subr.mxu0 0.0
  %8344 = vmatpush1.msra.mxu0 0.0
  %8345 = vmatprep.subr.mxu0 0.0
  %8346 = vmatpush1.msra.mxu0 0.0
  %8347 = vmatprep.subr.mxu0 0.0
  %8348 = vmatpush1.msra.mxu0 0.0
  %8349 = vmatprep.subr.mxu0 0.0
  %8350 = vmatpush1.msra.mxu0 0.0
  %8351 = vmatprep.subr.mxu0 0.0
  %8352 = vmatpush1.msra.mxu0 0.0
  %8353 = vmatprep.subr.mxu0 0.0
  %8354 = vmatpush1.msra.mxu0 0.0
  %8355 = vmatprep.subr.mxu0 0.0
  %8356 = vmatpush1.msra.mxu0 0.0
  %8357 = vmatprep.subr.mxu0 0.0
  %8358 = vmatpush1.msra.mxu0 0.0
  %8359 = vmatprep.subr.mxu0 0.0
  %8360 = vmatpush1.msra.mxu0 0.0
  %8361 = vmatprep.subr.mxu0 0.0
  %8362 = vmatpush1.msra.mxu0 0.0
  %8363 = vmatprep.subr.mxu0 0.0
  %8364 = vmatpush1.msra.mxu0 0.0
  %8365 = vmatprep.subr.mxu0 0.0
  %8366 = vmatpush1.msra.mxu0 0.0
  %8367 = vmatprep.subr.mxu0 0.0
  %8368 = vmatpush1.msra.mxu0 0.0
  %8369 = vmatprep.subr.mxu0 0.0
  %8370 = vmatpush1.msra.mxu0 0.0
  %8371 = vmatprep.subr.mxu0 0.0
  %8372 = vmatpush1.msra.mxu0 0.0
  %8373 = vmatprep.mubr.f32.mxu0 0.0
  %8374 = vmatmul.mubr.f32.gmra.mrb[0].mxu0 %v8307
  %v8375 = vpop.f32.mrb[0].mxu0
  %v8376 = vadd.f32 0.0, %v8375
  %v8377 = vpop.f32.mrb[0].mxu0
  %8378 = vdwg.mxu0
  %v8379 = vadd.f32 %v8291, %v8376
  %s8380 = scalar_lea.vmem %s10, 640
  %v8381 = vld [vmem:[%s8380] sm:$0xff]
  %v8382 = vld [vmem:[%s8380 + $0x8] sm:$0xff]
  %v8383 = vld [vmem:[%s8380 + $0x10] sm:$0xff]
  %v8384 = vld [vmem:[%s8380 + $0x18] sm:$0xff]
  %v8385 = vld [vmem:[%s8380 + $0x20] sm:$0xff]
  %v8386 = vld [vmem:[%s8380 + $0x28] sm:$0xff]
  %v8387 = vld [vmem:[%s8380 + $0x30] sm:$0xff]
  %v8388 = vld [vmem:[%s8380 + $0x38] sm:$0xff]
  %v8389 = vrot.slane %v7476, 2
  %v8390 = vrot.slane %v7478, 1
  %v8391 = vsel %vm1490, %v8390, %v8389
  %v8392 = vsel %vm1478, %v7480, %v8391
  %v8393 = vrot.slane %v7482, 7
  %v8394 = vsel %vm1480, %v8393, %v8392
  %v8395 = vsel %vm68, %v8394, 0
  %8397 = vmatprep.subr.mxu0 0.0
  %8398 = vmatpush1.msra.mxu0 %v8381
  %8399 = vmatprep.subr.mxu0 0.0
  %8400 = vmatpush1.msra.mxu0 %v8382
  %8401 = vmatprep.subr.mxu0 0.0
  %8402 = vmatpush1.msra.mxu0 %v8383
  %8403 = vmatprep.subr.mxu0 0.0
  %8404 = vmatpush1.msra.mxu0 %v8384
  %8405 = vmatprep.subr.mxu0 0.0
  %8406 = vmatpush1.msra.mxu0 %v8385
  %8407 = vmatprep.subr.mxu0 0.0
  %8408 = vmatpush1.msra.mxu0 %v8386
  %8409 = vmatprep.subr.mxu0 0.0
  %8410 = vmatpush1.msra.mxu0 %v8387
  %8411 = vmatprep.subr.mxu0 0.0
  %8412 = vmatpush1.msra.mxu0 %v8388
  %8413 = vmatprep.subr.mxu0 0.0
  %8414 = vmatpush1.msra.mxu0 0.0
  %8415 = vmatprep.subr.mxu0 0.0
  %8416 = vmatpush1.msra.mxu0 0.0
  %8417 = vmatprep.subr.mxu0 0.0
  %8418 = vmatpush1.msra.mxu0 0.0
  %8419 = vmatprep.subr.mxu0 0.0
  %8420 = vmatpush1.msra.mxu0 0.0
  %8421 = vmatprep.subr.mxu0 0.0
  %8422 = vmatpush1.msra.mxu0 0.0
  %8423 = vmatprep.subr.mxu0 0.0
  %8424 = vmatpush1.msra.mxu0 0.0
  %8425 = vmatprep.subr.mxu0 0.0
  %8426 = vmatpush1.msra.mxu0 0.0
  %8427 = vmatprep.subr.mxu0 0.0
  %8428 = vmatpush1.msra.mxu0 0.0
  %8429 = vmatprep.subr.mxu0 0.0
  %8430 = vmatpush1.msra.mxu0 0.0
  %8431 = vmatprep.subr.mxu0 0.0
  %8432 = vmatpush1.msra.mxu0 0.0
  %8433 = vmatprep.subr.mxu0 0.0
  %8434 = vmatpush1.msra.mxu0 0.0
  %8435 = vmatprep.subr.mxu0 0.0
  %8436 = vmatpush1.msra.mxu0 0.0
  %8437 = vmatprep.subr.mxu0 0.0
  %8438 = vmatpush1.msra.mxu0 0.0
  %8439 = vmatprep.subr.mxu0 0.0
  %8440 = vmatpush1.msra.mxu0 0.0
  %8441 = vmatprep.subr.mxu0 0.0
  %8442 = vmatpush1.msra.mxu0 0.0
  %8443 = vmatprep.subr.mxu0 0.0
  %8444 = vmatpush1.msra.mxu0 0.0
  %8445 = vmatprep.subr.mxu0 0.0
  %8446 = vmatpush1.msra.mxu0 0.0
  %8447 = vmatprep.subr.mxu0 0.0
  %8448 = vmatpush1.msra.mxu0 0.0
  %8449 = vmatprep.subr.mxu0 0.0
  %8450 = vmatpush1.msra.mxu0 0.0
  %8451 = vmatprep.subr.mxu0 0.0
  %8452 = vmatpush1.msra.mxu0 0.0
  %8453 = vmatprep.subr.mxu0 0.0
  %8454 = vmatpush1.msra.mxu0 0.0
  %8455 = vmatprep.subr.mxu0 0.0
  %8456 = vmatpush1.msra.mxu0 0.0
  %8457 = vmatprep.subr.mxu0 0.0
  %8458 = vmatpush1.msra.mxu0 0.0
  %8459 = vmatprep.subr.mxu0 0.0
  %8460 = vmatpush1.msra.mxu0 0.0
  %8461 = vmatprep.mubr.f32.mxu0 0.0
  %8462 = vmatmul.mubr.f32.gmra.mrb[0].mxu0 %v8395
  %v8463 = vpop.f32.mrb[0].mxu0
  %v8464 = vadd.f32 0.0, %v8463
  %v8465 = vpop.f32.mrb[0].mxu0
  %8466 = vdwg.mxu0
  %v8467 = vadd.f32 %v8379, %v8464
  %s8468 = scalar_lea.vmem %s10, 704
  %v8469 = vld [vmem:[%s8468] sm:$0xff]
  %v8470 = vld [vmem:[%s8468 + $0x8] sm:$0xff]
  %v8471 = vld [vmem:[%s8468 + $0x10] sm:$0xff]
  %v8472 = vld [vmem:[%s8468 + $0x18] sm:$0xff]
  %v8473 = vld [vmem:[%s8468 + $0x20] sm:$0xff]
  %v8474 = vld [vmem:[%s8468 + $0x28] sm:$0xff]
  %v8475 = vld [vmem:[%s8468 + $0x30] sm:$0xff]
  %v8476 = vld [vmem:[%s8468 + $0x38] sm:$0xff]
  %v8477 = vrot.slane %v7476, 3
  %v8478 = vrot.slane %v7478, 2
  %v8479 = vsel %vm1490, %v8478, %v8477
  %v8480 = vrot.slane %v7480, 1
  %v8481 = vsel %vm1478, %v8480, %v8479
  %v8482 = vsel %vm1480, %v7482, %v8481
  %v8483 = vsel %vm68, %v8482, 0
  %8485 = vmatprep.subr.mxu0 0.0
  %8486 = vmatpush1.msra.mxu0 %v8469
  %8487 = vmatprep.subr.mxu0 0.0
  %8488 = vmatpush1.msra.mxu0 %v8470
  %8489 = vmatprep.subr.mxu0 0.0
  %8490 = vmatpush1.msra.mxu0 %v8471
  %8491 = vmatprep.subr.mxu0 0.0
  %8492 = vmatpush1.msra.mxu0 %v8472
  %8493 = vmatprep.subr.mxu0 0.0
  %8494 = vmatpush1.msra.mxu0 %v8473
  %8495 = vmatprep.subr.mxu0 0.0
  %8496 = vmatpush1.msra.mxu0 %v8474
  %8497 = vmatprep.subr.mxu0 0.0
  %8498 = vmatpush1.msra.mxu0 %v8475
  %8499 = vmatprep.subr.mxu0 0.0
  %8500 = vmatpush1.msra.mxu0 %v8476
  %8501 = vmatprep.subr.mxu0 0.0
  %8502 = vmatpush1.msra.mxu0 0.0
  %8503 = vmatprep.subr.mxu0 0.0
  %8504 = vmatpush1.msra.mxu0 0.0
  %8505 = vmatprep.subr.mxu0 0.0
  %8506 = vmatpush1.msra.mxu0 0.0
  %8507 = vmatprep.subr.mxu0 0.0
  %8508 = vmatpush1.msra.mxu0 0.0
  %8509 = vmatprep.subr.mxu0 0.0
  %8510 = vmatpush1.msra.mxu0 0.0
  %8511 = vmatprep.subr.mxu0 0.0
  %8512 = vmatpush1.msra.mxu0 0.0
  %8513 = vmatprep.subr.mxu0 0.0
  %8514 = vmatpush1.msra.mxu0 0.0
  %8515 = vmatprep.subr.mxu0 0.0
  %8516 = vmatpush1.msra.mxu0 0.0
  %8517 = vmatprep.subr.mxu0 0.0
  %8518 = vmatpush1.msra.mxu0 0.0
  %8519 = vmatprep.subr.mxu0 0.0
  %8520 = vmatpush1.msra.mxu0 0.0
  %8521 = vmatprep.subr.mxu0 0.0
  %8522 = vmatpush1.msra.mxu0 0.0
  %8523 = vmatprep.subr.mxu0 0.0
  %8524 = vmatpush1.msra.mxu0 0.0
  %8525 = vmatprep.subr.mxu0 0.0
  %8526 = vmatpush1.msra.mxu0 0.0
  %8527 = vmatprep.subr.mxu0 0.0
  %8528 = vmatpush1.msra.mxu0 0.0
  %8529 = vmatprep.subr.mxu0 0.0
  %8530 = vmatpush1.msra.mxu0 0.0
  %8531 = vmatprep.subr.mxu0 0.0
  %8532 = vmatpush1.msra.mxu0 0.0
  %8533 = vmatprep.subr.mxu0 0.0
  %8534 = vmatpush1.msra.mxu0 0.0
  %8535 = vmatprep.subr.mxu0 0.0
  %8536 = vmatpush1.msra.mxu0 0.0
  %8537 = vmatprep.subr.mxu0 0.0
  %8538 = vmatpush1.msra.mxu0 0.0
  %8539 = vmatprep.subr.mxu0 0.0
  %8540 = vmatpush1.msra.mxu0 0.0
  %8541 = vmatprep.subr.mxu0 0.0
  %8542 = vmatpush1.msra.mxu0 0.0
  %8543 = vmatprep.subr.mxu0 0.0
  %8544 = vmatpush1.msra.mxu0 0.0
  %8545 = vmatprep.subr.mxu0 0.0
  %8546 = vmatpush1.msra.mxu0 0.0
  %8547 = vmatprep.subr.mxu0 0.0
  %8548 = vmatpush1.msra.mxu0 0.0
  %8549 = vmatprep.mubr.f32.mxu0 0.0
  %8550 = vmatmul.mubr.f32.gmra.mrb[0].mxu0 %v8483
  %v8551 = vpop.f32.mrb[0].mxu0
  %v8552 = vadd.f32 0.0, %v8551
  %v8553 = vpop.f32.mrb[0].mxu0
  %8554 = vdwg.mxu0
  %v8555 = vadd.f32 %v8467, %v8552
  %vm8556 = vcmp.gt.f32.partialorder %v8555, 0.0
  %v8557 = vmin.f32 %v8555, 0.0
  %v8558 = vmul.f32 %v8557, 1.442695
  %v8559 = vpow.pop %v8558
  %v8560 = vsub.f32 %v8559, 1.0
  %v8561 = vsel %vm8556, %v8555, %v8560
  %v8562 = vld [vmem:[%s12] sm:$0x1]
  %v8564 = vlaneseq
  %v8565 = vshrl.u32 %v8564, 7
  %v8566 = vsub.s32 0, %v8565
  %v8567 = vrot.slane %v8562, %v8566
  %v8569 = vmul.f32 %v8561, %v8567
  %v8570 = vld [vmem:[%s13] sm:$0x1]
  %v8572 = vlaneseq
  %v8573 = vshrl.u32 %v8572, 7
  %v8574 = vsub.s32 0, %v8573
  %v8575 = vrot.slane %v8570, %v8574
  %v8577 = vadd.f32 %v8569, %v8575
  %v8578 = vld [vmem:[%s14] sm:$0xff]
  %v8579 = vld [vmem:[%s14 + $0x8] sm:$0xff]
  %v8580 = vld [vmem:[%s14 + $0x10] sm:$0xff]
  %v8581 = vld [vmem:[%s14 + $0x18] sm:$0xff]
  %v8582 = vld [vmem:[%s14 + $0x20] sm:$0xff]
  %v8583 = vld [vmem:[%s14 + $0x28] sm:$0xff]
  %v8584 = vld [vmem:[%s14 + $0x30] sm:$0xff]
  %v8585 = vld [vmem:[%s14 + $0x38] sm:$0xff]
  %v8586 = vld [vmem:[%s14 + $0x40] sm:$0xff]
  %v8587 = vld [vmem:[%s14 + $0x48] sm:$0xff]
  %v8588 = vld [vmem:[%s14 + $0x50] sm:$0xff]
  %v8589 = vld [vmem:[%s14 + $0x58] sm:$0xff]
  %v8590 = vld [vmem:[%s14 + $0x60] sm:$0xf]
  %v8591 = vld [vmem:[%s15] sm:$0x1]
  %v8593 = vlaneseq
  %v8594 = vshrl.u32 %v8593, 7
  %v8595 = vsub.s32 0, %v8594
  %v8596 = vrot.slane %v8591, %v8595
  %vm8598 = vcmask 818176
  %v8600 = vsel %vm8598, %v8577, 0
  %vm8602 = vcmask 1043456
  %v8604 = vsel %vm8602, %v8590, 0
  %8606 = vmatprep.subr.mxu0 0.0
  %8607 = vmatpush1.msra.mxu0 %v8578
  %8608 = vmatprep.subr.mxu0 0.0
  %8609 = vmatpush1.msra.mxu0 %v8579
  %8610 = vmatprep.subr.mxu0 0.0
  %8611 = vmatpush1.msra.mxu0 %v8580
  %8612 = vmatprep.subr.mxu0 0.0
  %8613 = vmatpush1.msra.mxu0 %v8581
  %8614 = vmatprep.subr.mxu0 0.0
  %8615 = vmatpush1.msra.mxu0 %v8582
  %8616 = vmatprep.subr.mxu0 0.0
  %8617 = vmatpush1.msra.mxu0 %v8583
  %8618 = vmatprep.subr.mxu0 0.0
  %8619 = vmatpush1.msra.mxu0 %v8584
  %8620 = vmatprep.subr.mxu0 0.0
  %8621 = vmatpush1.msra.mxu0 %v8585
  %8622 = vmatprep.subr.mxu0 0.0
  %8623 = vmatpush1.msra.mxu0 %v8586
  %8624 = vmatprep.subr.mxu0 0.0
  %8625 = vmatpush1.msra.mxu0 %v8587
  %8626 = vmatprep.subr.mxu0 0.0
  %8627 = vmatpush1.msra.mxu0 %v8588
  %8628 = vmatprep.subr.mxu0 0.0
  %8629 = vmatpush1.msra.mxu0 %v8589
  %8630 = vmatprep.subr.mxu0 0.0
  %8631 = vmatpush1.msra.mxu0 %v8604
  %8632 = vmatprep.subr.mxu0 0.0
  %8633 = vmatpush1.msra.mxu0 0.0
  %8634 = vmatprep.subr.mxu0 0.0
  %8635 = vmatpush1.msra.mxu0 0.0
  %8636 = vmatprep.subr.mxu0 0.0
  %8637 = vmatpush1.msra.mxu0 0.0
  %8638 = vmatprep.subr.mxu0 0.0
  %8639 = vmatpush1.msra.mxu0 0.0
  %8640 = vmatprep.subr.mxu0 0.0
  %8641 = vmatpush1.msra.mxu0 0.0
  %8642 = vmatprep.subr.mxu0 0.0
  %8643 = vmatpush1.msra.mxu0 0.0
  %8644 = vmatprep.subr.mxu0 0.0
  %8645 = vmatpush1.msra.mxu0 0.0
  %8646 = vmatprep.subr.mxu0 0.0
  %8647 = vmatpush1.msra.mxu0 0.0
  %8648 = vmatprep.subr.mxu0 0.0
  %8649 = vmatpush1.msra.mxu0 0.0
  %8650 = vmatprep.subr.mxu0 0.0
  %8651 = vmatpush1.msra.mxu0 0.0
  %8652 = vmatprep.subr.mxu0 0.0
  %8653 = vmatpush1.msra.mxu0 0.0
  %8654 = vmatprep.subr.mxu0 0.0
  %8655 = vmatpush1.msra.mxu0 0.0
  %8656 = vmatprep.subr.mxu0 0.0
  %8657 = vmatpush1.msra.mxu0 0.0
  %8658 = vmatprep.subr.mxu0 0.0
  %8659 = vmatpush1.msra.mxu0 0.0
  %8660 = vmatprep.subr.mxu0 0.0
  %8661 = vmatpush1.msra.mxu0 0.0
  %8662 = vmatprep.subr.mxu0 0.0
  %8663 = vmatpush1.msra.mxu0 0.0
  %8664 = vmatprep.subr.mxu0 0.0
  %8665 = vmatpush1.msra.mxu0 0.0
  %8666 = vmatprep.subr.mxu0 0.0
  %8667 = vmatpush1.msra.mxu0 0.0
  %8668 = vmatprep.subr.mxu0 0.0
  %8669 = vmatpush1.msra.mxu0 0.0
  %8670 = vmatprep.mubr.f32.mxu0 0.0
  %8671 = vmatmul.mubr.f32.gmra.mrb[0].mxu0 %v8600
  %v8672 = vpop.f32.mrb[0].mxu0
  %v8673 = vadd.f32 %v8596, %v8672
  %v8674 = vpop.f32.mrb[0].mxu0
  %8675 = vdwg.mxu0
  %vm8676 = vcmp.gt.f32.partialorder %v8673, 0.0
  %v8677 = vmin.f32 %v8673, 0.0
  %v8678 = vmul.f32 %v8677, 1.442695
  %v8679 = vpow.pop %v8678
  %v8680 = vsub.f32 %v8679, 1.0
  %v8681 = vsel %vm8676, %v8673, %v8680
  %v8682 = vld [vmem:[%s16] sm:$0x1]
  %v8684 = vlaneseq
  %v8685 = vshrl.u32 %v8684, 7
  %v8686 = vsub.s32 0, %v8685
  %v8687 = vrot.slane %v8682, %v8686
  %v8689 = vmul.f32 %v8681, %v8687
  %v8690 = vld [vmem:[%s17] sm:$0x1]
  %v8692 = vlaneseq
  %v8693 = vshrl.u32 %v8692, 7
  %v8694 = vsub.s32 0, %v8693
  %v8695 = vrot.slane %v8690, %v8694
  %v8697 = vadd.f32 %v8689, %v8695
  %v8698 = vld [vmem:[%s18] sm:$0xff]
  %v8699 = vld [vmem:[%s18 + $0x8] sm:$0xff]
  %v8700 = vld [vmem:[%s18 + $0x10] sm:$0xff]
  %v8701 = vld [vmem:[%s18 + $0x18] sm:$0x3f]
  %v8702 = vld [vmem:[#allocation5] sm:$0x1]
  %v8704 = vlaneseq
  %v8705 = vshrl.u32 %v8704, 7
  %v8706 = vsub.s32 0, %v8705
  %v8707 = vrot.slane %v8702, %v8706
  %vm8709 = vcmask 244736
  %v8711 = vsel %vm8709, %v8697, 0
  %vm8713 = vcmask 1045504
  %v8715 = vsel %vm8713, %v8701, 0
  %8717 = vmatprep.subr.mxu0 0.0
  %8718 = vmatpush1.msra.mxu0 %v8698
  %8719 = vmatprep.subr.mxu0 0.0
  %8720 = vmatpush1.msra.mxu0 %v8699
  %8721 = vmatprep.subr.mxu0 0.0
  %8722 = vmatpush1.msra.mxu0 %v8700
  %8723 = vmatprep.subr.mxu0 0.0
  %8724 = vmatpush1.msra.mxu0 %v8715
  %8725 = vmatprep.subr.mxu0 0.0
  %8726 = vmatpush1.msra.mxu0 0.0
  %8727 = vmatprep.subr.mxu0 0.0
  %8728 = vmatpush1.msra.mxu0 0.0
  %8729 = vmatprep.subr.mxu0 0.0
  %8730 = vmatpush1.msra.mxu0 0.0
  %8731 = vmatprep.subr.mxu0 0.0
  %8732 = vmatpush1.msra.mxu0 0.0
  %8733 = vmatprep.subr.mxu0 0.0
  %8734 = vmatpush1.msra.mxu0 0.0
  %8735 = vmatprep.subr.mxu0 0.0
  %8736 = vmatpush1.msra.mxu0 0.0
  %8737 = vmatprep.subr.mxu0 0.0
  %8738 = vmatpush1.msra.mxu0 0.0
  %8739 = vmatprep.subr.mxu0 0.0
  %8740 = vmatpush1.msra.mxu0 0.0
  %8741 = vmatprep.subr.mxu0 0.0
  %8742 = vmatpush1.msra.mxu0 0.0
  %8743 = vmatprep.subr.mxu0 0.0
  %8744 = vmatpush1.msra.mxu0 0.0
  %8745 = vmatprep.subr.mxu0 0.0
  %8746 = vmatpush1.msra.mxu0 0.0
  %8747 = vmatprep.subr.mxu0 0.0
  %8748 = vmatpush1.msra.mxu0 0.0
  %8749 = vmatprep.subr.mxu0 0.0
  %8750 = vmatpush1.msra.mxu0 0.0
  %8751 = vmatprep.subr.mxu0 0.0
  %8752 = vmatpush1.msra.mxu0 0.0
  %8753 = vmatprep.subr.mxu0 0.0
  %8754 = vmatpush1.msra.mxu0 0.0
  %8755 = vmatprep.subr.mxu0 0.0
  %8756 = vmatpush1.msra.mxu0 0.0
  %8757 = vmatprep.subr.mxu0 0.0
  %8758 = vmatpush1.msra.mxu0 0.0
  %8759 = vmatprep.subr.mxu0 0.0
  %8760 = vmatpush1.msra.mxu0 0.0
  %8761 = vmatprep.subr.mxu0 0.0
  %8762 = vmatpush1.msra.mxu0 0.0
  %8763 = vmatprep.subr.mxu0 0.0
  %8764 = vmatpush1.msra.mxu0 0.0
  %8765 = vmatprep.subr.mxu0 0.0
  %8766 = vmatpush1.msra.mxu0 0.0
  %8767 = vmatprep.subr.mxu0 0.0
  %8768 = vmatpush1.msra.mxu0 0.0
  %8769 = vmatprep.subr.mxu0 0.0
  %8770 = vmatpush1.msra.mxu0 0.0
  %8771 = vmatprep.subr.mxu0 0.0
  %8772 = vmatpush1.msra.mxu0 0.0
  %8773 = vmatprep.subr.mxu0 0.0
  %8774 = vmatpush1.msra.mxu0 0.0
  %8775 = vmatprep.subr.mxu0 0.0
  %8776 = vmatpush1.msra.mxu0 0.0
  %8777 = vmatprep.subr.mxu0 0.0
  %8778 = vmatpush1.msra.mxu0 0.0
  %8779 = vmatprep.subr.mxu0 0.0
  %8780 = vmatpush1.msra.mxu0 0.0
  %8781 = vmatprep.mubr.f32.mxu0 0.0
  %8782 = vmatmul.mubr.f32.gmra.mrb[0].mxu0 %v8711
  %v8783 = vpop.f32.mrb[0].mxu0
  %v8784 = vadd.f32 %v8707, %v8783
  %v8785 = vpop.f32.mrb[0].mxu0
  %8786 = vdwg.mxu0
  %vm8787 = vcmp.gt.f32.partialorder %v8784, 0.0
  %v8788 = vmin.f32 %v8784, 0.0
  %v8789 = vmul.f32 %v8788, 1.442695
  %v8790 = vpow.pop %v8789
  %v8791 = vsub.f32 %v8790, 1.0
  %v8792 = vsel %vm8787, %v8784, %v8791
  %vm8793 = vcmask 3072
  %8794 = vst.msk [vmem:[%s20] sm:$0xf] %vm8793, %v8792
  // Predicated region
  $region82: #{mfe_forward.1} parent=0 // pred_check
    _
  $region83: #{mfe_forward.1} parent=0 // pred_check_branch
    %8796 = sbr.rel (0) target = $region85
  $region84: #{mfe_forward.1} parent=0 // pred_region
    _
  $region85: #{mfe_forward.1} parent=0 // pred_fallthru
    _
  // Predicated region
  $region86: #{mfe_forward.1} parent=0 // pred_check
    _
  $region87: #{mfe_forward.1} parent=0 // pred_check_branch
    %8798 = sbr.rel (0) target = $region89
  $region88: #{mfe_forward.1} parent=0 // pred_region
    _
  $region89: #{mfe_forward.1} parent=0 // pred_fallthru
    _

</llo_original>
